<compile_context>
chip_gen: v7x
topology: tpu7x:2x2x1
jax: 0.10.0
libtpu: 0.0.40
codegen_flags: <defaults>
</compile_context>

<pallas_src>
import functools

import jax
import jax.numpy as jnp
from jax.experimental import pallas as pl
from jax.experimental.pallas import tpu as pltpu

LANES = 128  # channel padding target (lane width)


# ---------------------------------------------------------------------------
# Pallas kernels
# ---------------------------------------------------------------------------
def matmul_bias_act_kernel(x_ref, w_ref, b_ref, o_ref, *, relu):
    """out = act(x @ w + b); bf16 inputs, f32 accumulation."""
    acc = jnp.dot(x_ref[...], w_ref[...], preferred_element_type=jnp.float32)
    acc = acc + b_ref[...]
    if relu:
        acc = jnp.maximum(acc, 0.0)
    o_ref[...] = acc.astype(o_ref.dtype)


def conv3x3_kernel(x_ref, w_ref, b_ref, o_ref, *, W, Mtot):
    """Fused valid 3x3 conv + bias + ReLU on one flattened image.

    x_ref: (H*W + pad, C)   flattened NHWC image (C multiple of 128), bf16
    w_ref: (9*C, Cout)      weight, row order (dy, dx, cin), bf16
    b_ref: (1, Cout)        bias, f32
    o_ref: (Mtot, Cout)     Mtot = (H-2)*W rows; the 2 right-most columns of
                            each output row are wrap-around garbage and are
                            sliced off in the wrapper.
    The 9 taps are formed by statically shifted VMEM windows and concatenated
    along lanes -> ONE deep MXU contraction (K = 9*C), no HBM tap tensor.
    """
    taps = [x_ref[dy * W + dx: dy * W + dx + Mtot, :]
            for dy in range(3) for dx in range(3)]
    patches = jnp.concatenate(taps, axis=-1)                  # (Mtot, 9*C)
    acc = jnp.dot(patches, w_ref[...], preferred_element_type=jnp.float32)
    acc = acc + b_ref[...]
    o_ref[...] = jnp.maximum(acc, 0.0).astype(o_ref.dtype)


# ---------------------------------------------------------------------------
# pallas_call wrappers
# ---------------------------------------------------------------------------
def matmul_bias_act(x, w, b, *, relu, out_dtype):
    """x: (M, K) bf16, w: (K, Cout) bf16, b: (1, Cout) f32 -> (M, Cout)."""
    M, K = x.shape
    Cout = w.shape[-1]
    TM = M
    for cand in (1024, 512, 256):
        if M % cand == 0:
            TM = cand
            break
    return pl.pallas_call(
        functools.partial(matmul_bias_act_kernel, relu=relu),
        out_shape=jax.ShapeDtypeStruct((M, Cout), out_dtype),
        grid=(M // TM,),
        in_specs=[
            pl.BlockSpec((TM, K), lambda i: (i, 0)),
            pl.BlockSpec((K, Cout), lambda i: (0, 0)),
            pl.BlockSpec((1, Cout), lambda i: (0, 0)),
        ],
        out_specs=pl.BlockSpec((TM, Cout), lambda i: (i, 0)),
        compiler_params=pltpu.CompilerParams(
            dimension_semantics=("parallel",)),
    )(x, w, b)


def conv7x7_relu(x, w, b):
    """Valid 7x7 conv + bias + ReLU. x: (N, H, W, Cin=3) bf16 -> (N, Ho, Wo, 128)."""
    N, H, W, Cin = x.shape
    K = 7
    Ho, Wo = H - K + 1, W - K + 1
    Cout = w.shape[-1]
    # Small wrapper-side im2col (stem only: Cin=3 taps are not lane friendly).
    taps = [x[:, dy:dy + Ho, dx:dx + Wo, :] for dy in range(K) for dx in range(K)]
    patches = jnp.concatenate(taps, axis=-1).reshape(N * Ho * Wo, K * K * Cin)
    out = matmul_bias_act(patches, w, b, relu=True, out_dtype=jnp.bfloat16)
    return out.reshape(N, Ho, Wo, Cout)


def conv3x3_relu(x, w, b):
    """Valid 3x3 conv + bias + ReLU. x: (N, H, W, C) bf16, C multiple of 128."""
    N, H, W, C = x.shape
    Cout = w.shape[-1]
    Ho, Wo = H - 2, W - 2
    Mtot = Ho * W                       # full-width strip; wrap columns dropped below
    pad_rows = 8                        # covers the 2-element overrun of the (2,2) tap
    x2 = jnp.pad(x.reshape(N, H * W, C), ((0, 0), (0, pad_rows), (0, 0)))
    out = pl.pallas_call(
        functools.partial(conv3x3_kernel, W=W, Mtot=Mtot),
        out_shape=jax.ShapeDtypeStruct((N, Mtot, Cout), jnp.bfloat16),
        grid=(N,),
        in_specs=[
            pl.BlockSpec((None, H * W + pad_rows, C), lambda n: (n, 0, 0)),
            pl.BlockSpec((9 * C, Cout), lambda n: (0, 0)),
            pl.BlockSpec((1, Cout), lambda n: (0, 0)),
        ],
        out_specs=pl.BlockSpec((None, Mtot, Cout), lambda n: (n, 0, 0)),
        compiler_params=pltpu.CompilerParams(
            dimension_semantics=("parallel",)),
    )(x2, w, b)
    # (N, Ho*W, Cout) -> (N, Ho, W, Cout); drop the 2 wrap-around garbage columns.
    return out.reshape(N, Ho, W, Cout)[:, :, :Wo, :]


# ---------------------------------------------------------------------------
# Cheap glue (memory-bound, negligible compute)
# ---------------------------------------------------------------------------
def maxpool2x2(x):
    """2x2 stride-2 max pool (floor mode), NHWC."""
    N, H, W, C = x.shape
    return jnp.max(x.reshape(N, H // 2, 2, W // 2, 2, C), axis=(2, 4))


# ---------------------------------------------------------------------------
# Parameters (deterministic synthetic) and forward pass
# ---------------------------------------------------------------------------
def init_params(key, num_classes):
    k = jax.random.split(key, 8)

    def he(kk, shape, fan_in):
        return jax.random.normal(kk, shape, jnp.float32) * (2.0 / fan_in) ** 0.5

    # conv1: 7x7, 3 -> 32 (output channels padded to 128 lanes)
    w1 = he(k[0], (7, 7, 3, 32), 7 * 7 * 3).reshape(147, 32)
    w1 = jnp.pad(w1, ((0, 0), (0, LANES - 32))).astype(jnp.bfloat16)
    b1 = jnp.pad(0.01 * jax.random.normal(k[1], (32,), jnp.float32),
                 (0, LANES - 32)).reshape(1, LANES)

    # conv2: 3x3, 32 -> 64 (Cin padded 32->128 with zero rows, Cout 64->128)
    w2 = he(k[2], (3, 3, 32, 64), 9 * 32)
    w2 = jnp.pad(w2, ((0, 0), (0, 0), (0, LANES - 32), (0, LANES - 64)))
    w2 = w2.reshape(9 * LANES, LANES).astype(jnp.bfloat16)
    b2 = jnp.pad(0.01 * jax.random.normal(k[3], (64,), jnp.float32),
                 (0, LANES - 64)).reshape(1, LANES)

    # conv3: 3x3, 64 -> 128 (Cin padded 64->128 with zero rows)
    w3 = he(k[4], (3, 3, 64, 128), 9 * 64)
    w3 = jnp.pad(w3, ((0, 0), (0, 0), (0, LANES - 64), (0, 0)))
    w3 = w3.reshape(9 * LANES, LANES).astype(jnp.bfloat16)
    b3 = (0.01 * jax.random.normal(k[5], (128,), jnp.float32)).reshape(1, LANES)

    # fc: 128 -> num_classes (output padded to 128 lanes; sliced in forward)
    wf = 0.05 * jax.random.normal(k[6], (128, num_classes), jnp.float32)
    wf = jnp.pad(wf, ((0, 0), (0, LANES - num_classes))).astype(jnp.bfloat16)
    bf = jnp.pad(0.01 * jax.random.normal(k[7], (num_classes,), jnp.float32),
                 (0, LANES - num_classes)).reshape(1, LANES)

    return (w1, b1), (w2, b2), (w3, b3), (wf, bf)


def base_model_forward(x_nchw, params, *, num_classes):
    (w1, b1), (w2, b2), (w3, b3), (wf, bf) = params
    # NCHW (PyTorch) -> NHWC (lane-friendly), bf16 activations.
    x = jnp.transpose(x_nchw, (0, 2, 3, 1)).astype(jnp.bfloat16)
    x = conv7x7_relu(x, w1, b1)          # (N, 26, 26, 128) [32 real ch + zeros]
    x = conv3x3_relu(x, w2, b2)          # (N, 24, 24, 128) [64 real ch + zeros]
    x = maxpool2x2(x)                    # (N, 12, 12, 128)
    # TODO(synk): Dropout(0.25) is inference-mode identity; train-mode masking not modeled.
    x = conv3x3_relu(x, w3, b3)          # (N, 10, 10, 128)
    x = maxpool2x2(x)                    # (N, 5, 5, 128)
    # (dropout2: identity in eval)
    x = jnp.mean(x.astype(jnp.float32), axis=(1, 2))            # AdaptiveAvgPool2d((1,1)) + flatten
    logits = matmul_bias_act(x.astype(jnp.bfloat16), wf, bf,
                             relu=False, out_dtype=jnp.float32)  # (N, 128)
    return logits[:, :num_classes]


if __name__ == "__main__":
    key = jax.random.PRNGKey(0)
    kx, kp = jax.random.split(key)
    num_classes = 10

    # Small NCHW input (3 RGB channels as conv1 requires).
    x = jax.random.normal(kx, (2, 3, 32, 32), jnp.float32)
    params = init_params(kp, num_classes)

    fwd = jax.jit(functools.partial(base_model_forward, num_classes=num_classes))
    out = fwd(x, params)
    out = jax.block_until_ready(out)
    assert out.shape == (2, num_classes) and out.dtype == jnp.float32
    print("KERNEL_OK")
</pallas_src>

<mosaic_0001>
module attributes {stable_mosaic.version = 11 : i64} {
  func.func @matmul_bias_act_kernel(%arg0: i32, %arg1: memref<1352x147xbf16, #tpu.memory_space<vmem>>, %arg2: memref<147x128xbf16, #tpu.memory_space<vmem>>, %arg3: memref<1x128xf32, #tpu.memory_space<vmem>>, %arg4: memref<1352x128xbf16, #tpu.memory_space<vmem>>) attributes {dimension_semantics = [#tpu.dimension_semantics<parallel>], iteration_bounds = array<i64: 1>, scalar_prefetch = 0 : i64, scratch_operands = 0 : i64, tpu.core_type = #tpu.core_type<tc>, window_params = [{transform_indices = @transform_0, window_bounds = array<i64: 1352, 147>}, {pipeline_mode = #tpu.pipeline_mode<synchronous>, transform_indices = @transform_1, window_bounds = array<i64: 147, 128>}, {pipeline_mode = #tpu.pipeline_mode<synchronous>, transform_indices = @transform_2, window_bounds = array<i64: 1, 128>}, {transform_indices = @transform_3, window_bounds = array<i64: 1352, 128>}]} {
    %c0 = arith.constant 0 : index
    %c0_0 = arith.constant 0 : index
    %0 = vector.load %arg1[%c0, %c0_0] : memref<1352x147xbf16, #tpu.memory_space<vmem>>, vector<1352x147xbf16>
    %c0_1 = arith.constant 0 : index
    %c0_2 = arith.constant 0 : index
    %1 = vector.load %arg2[%c0_1, %c0_2] : memref<147x128xbf16, #tpu.memory_space<vmem>>, vector<147x128xbf16>
    %cst = arith.constant dense<0.000000e+00> : vector<1352x128xf32>
    %2 = tpu.matmul %0, %1, %cst {dimension_numbers = #tpu.dot_dimension_numbers<[1], [0], [0], [1], [0, 0, 1, 1], [], []>} : vector<1352x147xbf16>, vector<147x128xbf16>, vector<1352x128xf32> -> vector<1352x128xf32>
    %c0_3 = arith.constant 0 : index
    %c0_4 = arith.constant 0 : index
    %3 = vector.load %arg3[%c0_3, %c0_4] : memref<1x128xf32, #tpu.memory_space<vmem>>, vector<1x128xf32>
    %4 = vector.broadcast %3 : vector<1x128xf32> to vector<1352x128xf32>
    %5 = arith.addf %2, %4 : vector<1352x128xf32>
    %cst_5 = arith.constant 0.000000e+00 : f32
    %6 = vector.broadcast %cst_5 : f32 to vector<1352x128xf32>
    %7 = arith.maximumf %5, %6 : vector<1352x128xf32>
    %8 = arith.truncf %7 : vector<1352x128xf32> to vector<1352x128xbf16>
    %c0_6 = arith.constant 0 : index
    %c0_7 = arith.constant 0 : index
    %9 = vector.load %arg4[%c0_6, %c0_7] : memref<1352x128xbf16, #tpu.memory_space<vmem>>, vector<1352x128xbf16>
    tpu.vector_store %arg4[%c0_6, %c0_7], %8 {strides = array<i32>} : memref<1352x128xbf16, #tpu.memory_space<vmem>>, vector<1352x128xbf16>,
    return
  }
  func.func @transform_0(%arg0: i32) -> (i32, i32) {
    %c0_i32 = arith.constant 0 : i32
    %c0_i32_0 = arith.constant 0 : i32
    return %arg0, %c0_i32 : i32, i32
  }
  func.func @transform_1(%arg0: i32) -> (i32, i32) {
    %c0_i32 = arith.constant 0 : i32
    %c0_i32_0 = arith.constant 0 : i32
    %c0_i32_1 = arith.constant 0 : i32
    return %c0_i32, %c0_i32_0 : i32, i32
  }
  func.func @transform_2(%arg0: i32) -> (i32, i32) {
    %c0_i32 = arith.constant 0 : i32
    %c0_i32_0 = arith.constant 0 : i32
    %c0_i32_1 = arith.constant 0 : i32
    return %c0_i32, %c0_i32_0 : i32, i32
  }
  func.func @transform_3(%arg0: i32) -> (i32, i32) {
    %c0_i32 = arith.constant 0 : i32
    %c0_i32_0 = arith.constant 0 : i32
    return %arg0, %c0_i32 : i32, i32
  }
}

module attributes {stable_mosaic.version = 11 : i64} {
  func.func @conv3x3_kernel(%arg0: i32, %arg1: memref<1x684x128xbf16, #tpu.memory_space<vmem>>, %arg2: memref<1152x128xbf16, #tpu.memory_space<vmem>>, %arg3: memref<1x128xf32, #tpu.memory_space<vmem>>, %arg4: memref<1x624x128xbf16, #tpu.memory_space<vmem>>) attributes {dimension_semantics = [#tpu.dimension_semantics<parallel>], iteration_bounds = array<i64: 2>, scalar_prefetch = 0 : i64, scratch_operands = 0 : i64, tpu.core_type = #tpu.core_type<tc>, window_params = [{transform_indices = @transform_0, window_bounds = array<i64: 1, 684, 128>}, {pipeline_mode = #tpu.pipeline_mode<synchronous>, transform_indices = @transform_1, window_bounds = array<i64: 1152, 128>}, {pipeline_mode = #tpu.pipeline_mode<synchronous>, transform_indices = @transform_2, window_bounds = array<i64: 1, 128>}, {transform_indices = @transform_3, window_bounds = array<i64: 1, 624, 128>}]} {
    %c0 = arith.constant 0 : index
    %c0_0 = arith.constant 0 : index
    %c0_1 = arith.constant 0 : index
    %0 = vector.load %arg1[%c0, %c0_0, %c0_1] : memref<1x684x128xbf16, #tpu.memory_space<vmem>>, vector<1x624x128xbf16>
    %1 = vector.shape_cast %0 : vector<1x624x128xbf16> to vector<624x128xbf16>
    %c0_2 = arith.constant 0 : index
    %c1 = arith.constant 1 : index
    %c0_3 = arith.constant 0 : index
    %2 = vector.load %arg1[%c0_2, %c1, %c0_3] : memref<1x684x128xbf16, #tpu.memory_space<vmem>>, vector<1x624x128xbf16>
    %3 = vector.shape_cast %2 : vector<1x624x128xbf16> to vector<624x128xbf16>
    %c0_4 = arith.constant 0 : index
    %c2 = arith.constant 2 : index
    %c0_5 = arith.constant 0 : index
    %4 = vector.load %arg1[%c0_4, %c2, %c0_5] : memref<1x684x128xbf16, #tpu.memory_space<vmem>>, vector<1x624x128xbf16>
    %5 = vector.shape_cast %4 : vector<1x624x128xbf16> to vector<624x128xbf16>
    %c0_6 = arith.constant 0 : index
    %c26 = arith.constant 26 : index
    %c0_7 = arith.constant 0 : index
    %6 = vector.load %arg1[%c0_6, %c26, %c0_7] : memref<1x684x128xbf16, #tpu.memory_space<vmem>>, vector<1x624x128xbf16>
    %7 = vector.shape_cast %6 : vector<1x624x128xbf16> to vector<624x128xbf16>
    %c0_8 = arith.constant 0 : index
    %c27 = arith.constant 27 : index
    %c0_9 = arith.constant 0 : index
    %8 = vector.load %arg1[%c0_8, %c27, %c0_9] : memref<1x684x128xbf16, #tpu.memory_space<vmem>>, vector<1x624x128xbf16>
    %9 = vector.shape_cast %8 : vector<1x624x128xbf16> to vector<624x128xbf16>
    %c0_10 = arith.constant 0 : index
    %c28 = arith.constant 28 : index
    %c0_11 = arith.constant 0 : index
    %10 = vector.load %arg1[%c0_10, %c28, %c0_11] : memref<1x684x128xbf16, #tpu.memory_space<vmem>>, vector<1x624x128xbf16>
    %11 = vector.shape_cast %10 : vector<1x624x128xbf16> to vector<624x128xbf16>
    %c0_12 = arith.constant 0 : index
    %c52 = arith.constant 52 : index
    %c0_13 = arith.constant 0 : index
    %12 = vector.load %arg1[%c0_12, %c52, %c0_13] : memref<1x684x128xbf16, #tpu.memory_space<vmem>>, vector<1x624x128xbf16>
    %13 = vector.shape_cast %12 : vector<1x624x128xbf16> to vector<624x128xbf16>
    %c0_14 = arith.constant 0 : index
    %c53 = arith.constant 53 : index
    %c0_15 = arith.constant 0 : index
    %14 = vector.load %arg1[%c0_14, %c53, %c0_15] : memref<1x684x128xbf16, #tpu.memory_space<vmem>>, vector<1x624x128xbf16>
    %15 = vector.shape_cast %14 : vector<1x624x128xbf16> to vector<624x128xbf16>
    %c0_16 = arith.constant 0 : index
    %c54 = arith.constant 54 : index
    %c0_17 = arith.constant 0 : index
    %16 = vector.load %arg1[%c0_16, %c54, %c0_17] : memref<1x684x128xbf16, #tpu.memory_space<vmem>>, vector<1x624x128xbf16>
    %17 = vector.shape_cast %16 : vector<1x624x128xbf16> to vector<624x128xbf16>
    %18 = tpu.concatenate %1, %3, %5, %7, %9, %11, %13, %15, %17 in 1 : vector<624x128xbf16>, vector<624x128xbf16>, vector<624x128xbf16>, vector<624x128xbf16>, vector<624x128xbf16>, vector<624x128xbf16>, vector<624x128xbf16>, vector<624x128xbf16>, vector<624x128xbf16> -> vector<624x1152xbf16>
    %c0_18 = arith.constant 0 : index
    %c0_19 = arith.constant 0 : index
    %19 = vector.load %arg2[%c0_18, %c0_19] : memref<1152x128xbf16, #tpu.memory_space<vmem>>, vector<1152x128xbf16>
    %cst = arith.constant dense<0.000000e+00> : vector<624x128xf32>
    %20 = tpu.matmul %18, %19, %cst {dimension_numbers = #tpu.dot_dimension_numbers<[1], [0], [0], [1], [0, 0, 1, 1], [], []>} : vector<624x1152xbf16>, vector<1152x128xbf16>, vector<624x128xf32> -> vector<624x128xf32>
    %c0_20 = arith.constant 0 : index
    %c0_21 = arith.constant 0 : index
    %21 = vector.load %arg3[%c0_20, %c0_21] : memref<1x128xf32, #tpu.memory_space<vmem>>, vector<1x128xf32>
    %22 = vector.broadcast %21 : vector<1x128xf32> to vector<624x128xf32>
    %23 = arith.addf %20, %22 : vector<624x128xf32>
    %cst_22 = arith.constant 0.000000e+00 : f32
    %24 = vector.broadcast %cst_22 : f32 to vector<624x128xf32>
    %25 = arith.maximumf %23, %24 : vector<624x128xf32>
    %26 = arith.truncf %25 : vector<624x128xf32> to vector<624x128xbf16>
    %c0_23 = arith.constant 0 : index
    %c0_24 = arith.constant 0 : index
    %c0_25 = arith.constant 0 : index
    %27 = vector.load %arg4[%c0_23, %c0_24, %c0_25] : memref<1x624x128xbf16, #tpu.memory_space<vmem>>, vector<1x624x128xbf16>
    %28 = vector.shape_cast %27 : vector<1x624x128xbf16> to vector<624x128xbf16>
    %29 = vector.shape_cast %26 : vector<624x128xbf16> to vector<1x624x128xbf16>
    tpu.vector_store %arg4[%c0_23, %c0_24, %c0_25], %29 {strides = array<i32>} : memref<1x624x128xbf16, #tpu.memory_space<vmem>>, vector<1x624x128xbf16>,
    return
  }
  func.func @transform_0(%arg0: i32) -> (i32, i32, i32) {
    %c0_i32 = arith.constant 0 : i32
    %c0_i32_0 = arith.constant 0 : i32
    %c0_i32_1 = arith.constant 0 : i32
    return %arg0, %c0_i32, %c0_i32_0 : i32, i32, i32
  }
  func.func @transform_1(%arg0: i32) -> (i32, i32) {
    %c0_i32 = arith.constant 0 : i32
    %c0_i32_0 = arith.constant 0 : i32
    %c0_i32_1 = arith.constant 0 : i32
    return %c0_i32, %c0_i32_0 : i32, i32
  }
  func.func @transform_2(%arg0: i32) -> (i32, i32) {
    %c0_i32 = arith.constant 0 : i32
    %c0_i32_0 = arith.constant 0 : i32
    %c0_i32_1 = arith.constant 0 : i32
    return %c0_i32, %c0_i32_0 : i32, i32
  }
  func.func @transform_3(%arg0: i32) -> (i32, i32, i32) {
    %c0_i32 = arith.constant 0 : i32
    %c0_i32_0 = arith.constant 0 : i32
    %c0_i32_1 = arith.constant 0 : i32
    return %arg0, %c0_i32, %c0_i32_0 : i32, i32, i32
  }
}

module attributes {stable_mosaic.version = 11 : i64} {
  func.func @conv3x3_kernel(%arg0: i32, %arg1: memref<1x152x128xbf16, #tpu.memory_space<vmem>>, %arg2: memref<1152x128xbf16, #tpu.memory_space<vmem>>, %arg3: memref<1x128xf32, #tpu.memory_space<vmem>>, %arg4: memref<1x120x128xbf16, #tpu.memory_space<vmem>>) attributes {dimension_semantics = [#tpu.dimension_semantics<parallel>], iteration_bounds = array<i64: 2>, scalar_prefetch = 0 : i64, scratch_operands = 0 : i64, tpu.core_type = #tpu.core_type<tc>, window_params = [{transform_indices = @transform_0, window_bounds = array<i64: 1, 152, 128>}, {pipeline_mode = #tpu.pipeline_mode<synchronous>, transform_indices = @transform_1, window_bounds = array<i64: 1152, 128>}, {pipeline_mode = #tpu.pipeline_mode<synchronous>, transform_indices = @transform_2, window_bounds = array<i64: 1, 128>}, {transform_indices = @transform_3, window_bounds = array<i64: 1, 120, 128>}]} {
    %c0 = arith.constant 0 : index
    %c0_0 = arith.constant 0 : index
    %c0_1 = arith.constant 0 : index
    %0 = vector.load %arg1[%c0, %c0_0, %c0_1] : memref<1x152x128xbf16, #tpu.memory_space<vmem>>, vector<1x120x128xbf16>
    %1 = vector.shape_cast %0 : vector<1x120x128xbf16> to vector<120x128xbf16>
    %c0_2 = arith.constant 0 : index
    %c1 = arith.constant 1 : index
    %c0_3 = arith.constant 0 : index
    %2 = vector.load %arg1[%c0_2, %c1, %c0_3] : memref<1x152x128xbf16, #tpu.memory_space<vmem>>, vector<1x120x128xbf16>
    %3 = vector.shape_cast %2 : vector<1x120x128xbf16> to vector<120x128xbf16>
    %c0_4 = arith.constant 0 : index
    %c2 = arith.constant 2 : index
    %c0_5 = arith.constant 0 : index
    %4 = vector.load %arg1[%c0_4, %c2, %c0_5] : memref<1x152x128xbf16, #tpu.memory_space<vmem>>, vector<1x120x128xbf16>
    %5 = vector.shape_cast %4 : vector<1x120x128xbf16> to vector<120x128xbf16>
    %c0_6 = arith.constant 0 : index
    %c12 = arith.constant 12 : index
    %c0_7 = arith.constant 0 : index
    %6 = vector.load %arg1[%c0_6, %c12, %c0_7] : memref<1x152x128xbf16, #tpu.memory_space<vmem>>, vector<1x120x128xbf16>
    %7 = vector.shape_cast %6 : vector<1x120x128xbf16> to vector<120x128xbf16>
    %c0_8 = arith.constant 0 : index
    %c13 = arith.constant 13 : index
    %c0_9 = arith.constant 0 : index
    %8 = vector.load %arg1[%c0_8, %c13, %c0_9] : memref<1x152x128xbf16, #tpu.memory_space<vmem>>, vector<1x120x128xbf16>
    %9 = vector.shape_cast %8 : vector<1x120x128xbf16> to vector<120x128xbf16>
    %c0_10 = arith.constant 0 : index
    %c14 = arith.constant 14 : index
    %c0_11 = arith.constant 0 : index
    %10 = vector.load %arg1[%c0_10, %c14, %c0_11] : memref<1x152x128xbf16, #tpu.memory_space<vmem>>, vector<1x120x128xbf16>
    %11 = vector.shape_cast %10 : vector<1x120x128xbf16> to vector<120x128xbf16>
    %c0_12 = arith.constant 0 : index
    %c24 = arith.constant 24 : index
    %c0_13 = arith.constant 0 : index
    %12 = vector.load %arg1[%c0_12, %c24, %c0_13] : memref<1x152x128xbf16, #tpu.memory_space<vmem>>, vector<1x120x128xbf16>
    %13 = vector.shape_cast %12 : vector<1x120x128xbf16> to vector<120x128xbf16>
    %c0_14 = arith.constant 0 : index
    %c25 = arith.constant 25 : index
    %c0_15 = arith.constant 0 : index
    %14 = vector.load %arg1[%c0_14, %c25, %c0_15] : memref<1x152x128xbf16, #tpu.memory_space<vmem>>, vector<1x120x128xbf16>
    %15 = vector.shape_cast %14 : vector<1x120x128xbf16> to vector<120x128xbf16>
    %c0_16 = arith.constant 0 : index
    %c26 = arith.constant 26 : index
    %c0_17 = arith.constant 0 : index
    %16 = vector.load %arg1[%c0_16, %c26, %c0_17] : memref<1x152x128xbf16, #tpu.memory_space<vmem>>, vector<1x120x128xbf16>
    %17 = vector.shape_cast %16 : vector<1x120x128xbf16> to vector<120x128xbf16>
    %18 = tpu.concatenate %1, %3, %5, %7, %9, %11, %13, %15, %17 in 1 : vector<120x128xbf16>, vector<120x128xbf16>, vector<120x128xbf16>, vector<120x128xbf16>, vector<120x128xbf16>, vector<120x128xbf16>, vector<120x128xbf16>, vector<120x128xbf16>, vector<120x128xbf16> -> vector<120x1152xbf16>
    %c0_18 = arith.constant 0 : index
    %c0_19 = arith.constant 0 : index
    %19 = vector.load %arg2[%c0_18, %c0_19] : memref<1152x128xbf16, #tpu.memory_space<vmem>>, vector<1152x128xbf16>
    %cst = arith.constant dense<0.000000e+00> : vector<120x128xf32>
    %20 = tpu.matmul %18, %19, %cst {dimension_numbers = #tpu.dot_dimension_numbers<[1], [0], [0], [1], [0, 0, 1, 1], [], []>} : vector<120x1152xbf16>, vector<1152x128xbf16>, vector<120x128xf32> -> vector<120x128xf32>
    %c0_20 = arith.constant 0 : index
    %c0_21 = arith.constant 0 : index
    %21 = vector.load %arg3[%c0_20, %c0_21] : memref<1x128xf32, #tpu.memory_space<vmem>>, vector<1x128xf32>
    %22 = vector.broadcast %21 : vector<1x128xf32> to vector<120x128xf32>
    %23 = arith.addf %20, %22 : vector<120x128xf32>
    %cst_22 = arith.constant 0.000000e+00 : f32
    %24 = vector.broadcast %cst_22 : f32 to vector<120x128xf32>
    %25 = arith.maximumf %23, %24 : vector<120x128xf32>
    %26 = arith.truncf %25 : vector<120x128xf32> to vector<120x128xbf16>
    %c0_23 = arith.constant 0 : index
    %c0_24 = arith.constant 0 : index
    %c0_25 = arith.constant 0 : index
    %27 = vector.load %arg4[%c0_23, %c0_24, %c0_25] : memref<1x120x128xbf16, #tpu.memory_space<vmem>>, vector<1x120x128xbf16>
    %28 = vector.shape_cast %27 : vector<1x120x128xbf16> to vector<120x128xbf16>
    %29 = vector.shape_cast %26 : vector<120x128xbf16> to vector<1x120x128xbf16>
    tpu.vector_store %arg4[%c0_23, %c0_24, %c0_25], %29 {strides = array<i32>} : memref<1x120x128xbf16, #tpu.memory_space<vmem>>, vector<1x120x128xbf16>,
    return
  }
  func.func @transform_0(%arg0: i32) -> (i32, i32, i32) {
    %c0_i32 = arith.constant 0 : i32
    %c0_i32_0 = arith.constant 0 : i32
    %c0_i32_1 = arith.constant 0 : i32
    return %arg0, %c0_i32, %c0_i32_0 : i32, i32, i32
  }
  func.func @transform_1(%arg0: i32) -> (i32, i32) {
    %c0_i32 = arith.constant 0 : i32
    %c0_i32_0 = arith.constant 0 : i32
    %c0_i32_1 = arith.constant 0 : i32
    return %c0_i32, %c0_i32_0 : i32, i32
  }
  func.func @transform_2(%arg0: i32) -> (i32, i32) {
    %c0_i32 = arith.constant 0 : i32
    %c0_i32_0 = arith.constant 0 : i32
    %c0_i32_1 = arith.constant 0 : i32
    return %c0_i32, %c0_i32_0 : i32, i32
  }
  func.func @transform_3(%arg0: i32) -> (i32, i32, i32) {
    %c0_i32 = arith.constant 0 : i32
    %c0_i32_0 = arith.constant 0 : i32
    %c0_i32_1 = arith.constant 0 : i32
    return %arg0, %c0_i32, %c0_i32_0 : i32, i32, i32
  }
}

module attributes {stable_mosaic.version = 11 : i64} {
  func.func @matmul_bias_act_kernel(%arg0: i32, %arg1: memref<2x128xbf16, #tpu.memory_space<vmem>>, %arg2: memref<128x128xbf16, #tpu.memory_space<vmem>>, %arg3: memref<1x128xf32, #tpu.memory_space<vmem>>, %arg4: memref<2x128xf32, #tpu.memory_space<vmem>>) attributes {dimension_semantics = [#tpu.dimension_semantics<parallel>], iteration_bounds = array<i64: 1>, scalar_prefetch = 0 : i64, scratch_operands = 0 : i64, tpu.core_type = #tpu.core_type<tc>, window_params = [{transform_indices = @transform_0, window_bounds = array<i64: 2, 128>}, {pipeline_mode = #tpu.pipeline_mode<synchronous>, transform_indices = @transform_1, window_bounds = array<i64: 128, 128>}, {pipeline_mode = #tpu.pipeline_mode<synchronous>, transform_indices = @transform_2, window_bounds = array<i64: 1, 128>}, {transform_indices = @transform_3, window_bounds = array<i64: 2, 128>}]} {
    %c0 = arith.constant 0 : index
    %c0_0 = arith.constant 0 : index
    %0 = vector.load %arg1[%c0, %c0_0] : memref<2x128xbf16, #tpu.memory_space<vmem>>, vector<2x128xbf16>
    %c0_1 = arith.constant 0 : index
    %c0_2 = arith.constant 0 : index
    %1 = vector.load %arg2[%c0_1, %c0_2] : memref<128x128xbf16, #tpu.memory_space<vmem>>, vector<128x128xbf16>
    %cst = arith.constant dense<0.000000e+00> : vector<2x128xf32>
    %2 = tpu.matmul %0, %1, %cst {dimension_numbers = #tpu.dot_dimension_numbers<[1], [0], [0], [1], [0, 0, 1, 1], [], []>} : vector<2x128xbf16>, vector<128x128xbf16>, vector<2x128xf32> -> vector<2x128xf32>
    %c0_3 = arith.constant 0 : index
    %c0_4 = arith.constant 0 : index
    %3 = vector.load %arg3[%c0_3, %c0_4] : memref<1x128xf32, #tpu.memory_space<vmem>>, vector<1x128xf32>
    %4 = vector.broadcast %3 : vector<1x128xf32> to vector<2x128xf32>
    %5 = arith.addf %2, %4 : vector<2x128xf32>
    %c0_5 = arith.constant 0 : index
    %c0_6 = arith.constant 0 : index
    %6 = vector.load %arg4[%c0_5, %c0_6] : memref<2x128xf32, #tpu.memory_space<vmem>>, vector<2x128xf32>
    tpu.vector_store %arg4[%c0_5, %c0_6], %5 {strides = array<i32>} : memref<2x128xf32, #tpu.memory_space<vmem>>, vector<2x128xf32>,
    return
  }
  func.func @transform_0(%arg0: i32) -> (i32, i32) {
    %c0_i32 = arith.constant 0 : i32
    %c0_i32_0 = arith.constant 0 : i32
    return %arg0, %c0_i32 : i32, i32
  }
  func.func @transform_1(%arg0: i32) -> (i32, i32) {
    %c0_i32 = arith.constant 0 : i32
    %c0_i32_0 = arith.constant 0 : i32
    %c0_i32_1 = arith.constant 0 : i32
    return %c0_i32, %c0_i32_0 : i32, i32
  }
  func.func @transform_2(%arg0: i32) -> (i32, i32) {
    %c0_i32 = arith.constant 0 : i32
    %c0_i32_0 = arith.constant 0 : i32
    %c0_i32_1 = arith.constant 0 : i32
    return %c0_i32, %c0_i32_0 : i32, i32
  }
  func.func @transform_3(%arg0: i32) -> (i32, i32) {
    %c0_i32 = arith.constant 0 : i32
    %c0_i32_0 = arith.constant 0 : i32
    return %arg0, %c0_i32 : i32, i32
  }
}

</mosaic_0001>

<llo_original>
// kernel: base_model_forward.4
$region0: #{base_model_forward.4}
  #allocation0 [shape = 'u32[]', space=smem, size = 0x4, offset = 0x4, fixed_abs, tag = 'smem constant byte address 0x4 - core index']
  #allocation1 [shape = 'u32[144,128]{1,0:T(1,128)}', space=vmem, size = 0x12000, scoped, tag = 'internal scratch']
  %s0 = inlined_call_operand.vmem [shape: bf16[1352,147], index: 0, kind: input, shape index: {}]
  %s1 = inlined_call_operand.vmem [shape: bf16[147,128], index: 1, kind: input, shape index: {}]
  %s2 = inlined_call_operand.vmem [shape: f32[1,128], index: 2, kind: input, shape index: {}]
  %s3 = inlined_call_operand.vmem [shape: bf16[1352,128], index: 3, kind: output, shape index: {}]
  %s4 = sld [smem:[#allocation0]]
  $region22: #{base_model_forward.4} parent=0
    _
  %s6 = ssub.s32 1, %s4
  %s7 = scalar_select 0, %s6, %s4
  // Predicated region
  $region2: #{base_model_forward.4} parent=0 // pred_check
    _
  $region3: #{base_model_forward.4} parent=0 // pred_check_branch
    %9 = sbr.rel (0) target = $region5
  $region4: #{base_model_forward.4} parent=0 // pred_region
    _
  $region5: #{base_model_forward.4} parent=0 // pred_fallthru
    _
  // Predicated region
  $region6: #{base_model_forward.4} parent=0 // pred_check
    _
  $region7: #{base_model_forward.4} parent=0 // pred_check_branch
    %11 = sbr.rel (0) target = $region9
  $region8: #{base_model_forward.4} parent=0 // pred_region
    _
  $region9: #{base_model_forward.4} parent=0 // pred_fallthru
    _
  // Predicated region
  $region10: #{base_model_forward.4} parent=0 // pred_check
    _
  $region11: #{base_model_forward.4} parent=0 // pred_check_branch
    %13 = sbr.rel (0) target = $region13
  $region12: #{base_model_forward.4} parent=0 // pred_region
    _
  $region13: #{base_model_forward.4} parent=0 // pred_fallthru
    _
  %v15 = vld [vmem:[%s0] sm:$0xff]
  %v16 = vld [vmem:[%s0 + $0x8] sm:$0xff]
  %v17 = vld [vmem:[%s0 + $0x10] sm:$0xff]
  %v18 = vld [vmem:[%s0 + $0x18] sm:$0xff]
  %v19 = vld [vmem:[%s0 + $0x20] sm:$0xff]
  %v20 = vld [vmem:[%s0 + $0x28] sm:$0xff]
  %v21 = vld [vmem:[%s0 + $0x30] sm:$0xff]
  %v22 = vld [vmem:[%s0 + $0x38] sm:$0xff]
  %v23 = vld [vmem:[%s0 + $0x40] sm:$0xff]
  %v24 = vld [vmem:[%s0 + $0x48] sm:$0xff]
  %v25 = vld [vmem:[%s0 + $0x50] sm:$0xff]
  %v26 = vld [vmem:[%s0 + $0x58] sm:$0xff]
  %v27 = vld [vmem:[%s0 + $0x60] sm:$0xff]
  %v28 = vld [vmem:[%s0 + $0x68] sm:$0xff]
  %v29 = vld [vmem:[%s0 + $0x70] sm:$0xff]
  %v30 = vld [vmem:[%s0 + $0x78] sm:$0xff]
  %v31 = vld [vmem:[%s0 + $0x80] sm:$0xff]
  %v32 = vld [vmem:[%s0 + $0x88] sm:$0xff]
  %v33 = vld [vmem:[%s0 + $0x90] sm:$0xff]
  %v34 = vld [vmem:[%s0 + $0x98] sm:$0xff]
  %v35 = vld [vmem:[%s0 + $0xa0] sm:$0xff]
  %v36 = vld [vmem:[%s0 + $0xa8] sm:$0xff]
  %v37 = vld [vmem:[%s0 + $0xb0] sm:$0xff]
  %v38 = vld [vmem:[%s0 + $0xb8] sm:$0xff]
  %v39 = vld [vmem:[%s0 + $0xc0] sm:$0xff]
  %v40 = vld [vmem:[%s0 + $0xc8] sm:$0xff]
  %v41 = vld [vmem:[%s0 + $0xd0] sm:$0xff]
  %v42 = vld [vmem:[%s0 + $0xd8] sm:$0xff]
  %v43 = vld [vmem:[%s0 + $0xe0] sm:$0xff]
  %v44 = vld [vmem:[%s0 + $0xe8] sm:$0xff]
  %v45 = vld [vmem:[%s0 + $0xf0] sm:$0xff]
  %v46 = vld [vmem:[%s0 + $0xf8] sm:$0xff]
  %v47 = vld [vmem:[%s0 + $0x100] sm:$0xff]
  %v48 = vld [vmem:[%s0 + $0x108] sm:$0xff]
  %v49 = vld [vmem:[%s0 + $0x110] sm:$0xff]
  %v50 = vld [vmem:[%s0 + $0x118] sm:$0xff]
  %v51 = vld [vmem:[%s0 + $0x120] sm:$0xff]
  %v52 = vld [vmem:[%s0 + $0x128] sm:$0xff]
  %v53 = vld [vmem:[%s0 + $0x130] sm:$0xff]
  %v54 = vld [vmem:[%s0 + $0x138] sm:$0xff]
  %v55 = vld [vmem:[%s0 + $0x140] sm:$0xff]
  %v56 = vld [vmem:[%s0 + $0x148] sm:$0xff]
  %v57 = vld [vmem:[%s0 + $0x150] sm:$0xff]
  %v58 = vld [vmem:[%s0 + $0x158] sm:$0xff]
  %v59 = vld [vmem:[%s0 + $0x160] sm:$0xff]
  %v60 = vld [vmem:[%s0 + $0x168] sm:$0xff]
  %v61 = vld [vmem:[%s0 + $0x170] sm:$0xff]
  %v62 = vld [vmem:[%s0 + $0x178] sm:$0xff]
  %v63 = vld [vmem:[%s0 + $0x180] sm:$0xff]
  %v64 = vld [vmem:[%s0 + $0x188] sm:$0xff]
  %v65 = vld [vmem:[%s0 + $0x190] sm:$0xff]
  %v66 = vld [vmem:[%s0 + $0x198] sm:$0xff]
  %v67 = vld [vmem:[%s0 + $0x1a0] sm:$0xff]
  %v68 = vld [vmem:[%s0 + $0x1a8] sm:$0xff]
  %v69 = vld [vmem:[%s0 + $0x1b0] sm:$0xff]
  %v70 = vld [vmem:[%s0 + $0x1b8] sm:$0xff]
  %v71 = vld [vmem:[%s0 + $0x1c0] sm:$0xff]
  %v72 = vld [vmem:[%s0 + $0x1c8] sm:$0xff]
  %v73 = vld [vmem:[%s0 + $0x1d0] sm:$0xff]
  %v74 = vld [vmem:[%s0 + $0x1d8] sm:$0xff]
  %v75 = vld [vmem:[%s0 + $0x1e0] sm:$0xff]
  %v76 = vld [vmem:[%s0 + $0x1e8] sm:$0xff]
  %v77 = vld [vmem:[%s0 + $0x1f0] sm:$0xff]
  %v78 = vld [vmem:[%s0 + $0x1f8] sm:$0xff]
  %v79 = vld [vmem:[%s0 + $0x200] sm:$0xff]
  %v80 = vld [vmem:[%s0 + $0x208] sm:$0xff]
  %v81 = vld [vmem:[%s0 + $0x210] sm:$0xff]
  %v82 = vld [vmem:[%s0 + $0x218] sm:$0xff]
  %v83 = vld [vmem:[%s0 + $0x220] sm:$0xff]
  %v84 = vld [vmem:[%s0 + $0x228] sm:$0xff]
  %v85 = vld [vmem:[%s0 + $0x230] sm:$0xff]
  %v86 = vld [vmem:[%s0 + $0x238] sm:$0xff]
  %v87 = vld [vmem:[%s0 + $0x240] sm:$0xff]
  %v88 = vld [vmem:[%s0 + $0x248] sm:$0xff]
  %v89 = vld [vmem:[%s0 + $0x250] sm:$0xff]
  %v90 = vld [vmem:[%s0 + $0x258] sm:$0xff]
  %v91 = vld [vmem:[%s0 + $0x260] sm:$0xff]
  %v92 = vld [vmem:[%s0 + $0x268] sm:$0xff]
  %v93 = vld [vmem:[%s0 + $0x270] sm:$0xff]
  %v94 = vld [vmem:[%s0 + $0x278] sm:$0xff]
  %v95 = vld [vmem:[%s0 + $0x280] sm:$0xff]
  %v96 = vld [vmem:[%s0 + $0x288] sm:$0xff]
  %v97 = vld [vmem:[%s0 + $0x290] sm:$0xff]
  %v98 = vld [vmem:[%s0 + $0x298] sm:$0xff]
  %v99 = vld [vmem:[%s0 + $0x2a0] sm:$0xff]
  %v100 = vld [vmem:[%s0 + $0x2a8] sm:$0xff]
  %v101 = vld [vmem:[%s0 + $0x2b0] sm:$0xff]
  %v102 = vld [vmem:[%s0 + $0x2b8] sm:$0xff]
  %v103 = vld [vmem:[%s0 + $0x2c0] sm:$0xff]
  %v104 = vld [vmem:[%s0 + $0x2c8] sm:$0xff]
  %v105 = vld [vmem:[%s0 + $0x2d0] sm:$0xff]
  %v106 = vld [vmem:[%s0 + $0x2d8] sm:$0xff]
  %v107 = vld [vmem:[%s0 + $0x2e0] sm:$0xff]
  %v108 = vld [vmem:[%s0 + $0x2e8] sm:$0xff]
  %v109 = vld [vmem:[%s0 + $0x2f0] sm:$0xff]
  %v110 = vld [vmem:[%s0 + $0x2f8] sm:$0xff]
  %v111 = vld [vmem:[%s0 + $0x300] sm:$0xff]
  %v112 = vld [vmem:[%s0 + $0x308] sm:$0xff]
  %v113 = vld [vmem:[%s0 + $0x310] sm:$0xff]
  %v114 = vld [vmem:[%s0 + $0x318] sm:$0xff]
  %v115 = vld [vmem:[%s0 + $0x320] sm:$0xff]
  %v116 = vld [vmem:[%s0 + $0x328] sm:$0xff]
  %v117 = vld [vmem:[%s0 + $0x330] sm:$0xff]
  %v118 = vld [vmem:[%s0 + $0x338] sm:$0xff]
  %v119 = vld [vmem:[%s0 + $0x340] sm:$0xff]
  %v120 = vld [vmem:[%s0 + $0x348] sm:$0xff]
  %v121 = vld [vmem:[%s0 + $0x350] sm:$0xff]
  %v122 = vld [vmem:[%s0 + $0x358] sm:$0xff]
  %v123 = vld [vmem:[%s0 + $0x360] sm:$0xff]
  %v124 = vld [vmem:[%s0 + $0x368] sm:$0xff]
  %v125 = vld [vmem:[%s0 + $0x370] sm:$0xff]
  %v126 = vld [vmem:[%s0 + $0x378] sm:$0xff]
  %v127 = vld [vmem:[%s0 + $0x380] sm:$0xff]
  %v128 = vld [vmem:[%s0 + $0x388] sm:$0xff]
  %v129 = vld [vmem:[%s0 + $0x390] sm:$0xff]
  %v130 = vld [vmem:[%s0 + $0x398] sm:$0xff]
  %v131 = vld [vmem:[%s0 + $0x3a0] sm:$0xff]
  %v132 = vld [vmem:[%s0 + $0x3a8] sm:$0xff]
  %v133 = vld [vmem:[%s0 + $0x3b0] sm:$0xff]
  %v134 = vld [vmem:[%s0 + $0x3b8] sm:$0xff]
  %v135 = vld [vmem:[%s0 + $0x3c0] sm:$0xff]
  %v136 = vld [vmem:[%s0 + $0x3c8] sm:$0xff]
  %v137 = vld [vmem:[%s0 + $0x3d0] sm:$0xff]
  %v138 = vld [vmem:[%s0 + $0x3d8] sm:$0xff]
  %v139 = vld [vmem:[%s0 + $0x3e0] sm:$0xff]
  %v140 = vld [vmem:[%s0 + $0x3e8] sm:$0xff]
  %v141 = vld [vmem:[%s0 + $0x3f0] sm:$0xff]
  %v142 = vld [vmem:[%s0 + $0x3f8] sm:$0xff]
  %v143 = vld [vmem:[%s0 + $0x400] sm:$0xff]
  %v144 = vld [vmem:[%s0 + $0x408] sm:$0xff]
  %v145 = vld [vmem:[%s0 + $0x410] sm:$0xff]
  %v146 = vld [vmem:[%s0 + $0x418] sm:$0xff]
  %v147 = vld [vmem:[%s0 + $0x420] sm:$0xff]
  %v148 = vld [vmem:[%s0 + $0x428] sm:$0xff]
  %v149 = vld [vmem:[%s0 + $0x430] sm:$0xff]
  %v150 = vld [vmem:[%s0 + $0x438] sm:$0xff]
  %v151 = vld [vmem:[%s0 + $0x440] sm:$0xff]
  %v152 = vld [vmem:[%s0 + $0x448] sm:$0xff]
  %v153 = vld [vmem:[%s0 + $0x450] sm:$0xff]
  %v154 = vld [vmem:[%s0 + $0x458] sm:$0xff]
  %v155 = vld [vmem:[%s0 + $0x460] sm:$0xff]
  %v156 = vld [vmem:[%s0 + $0x468] sm:$0xff]
  %v157 = vld [vmem:[%s0 + $0x470] sm:$0xff]
  %v158 = vld [vmem:[%s0 + $0x478] sm:$0xff]
  %v159 = vld [vmem:[%s0 + $0x480] sm:$0xff]
  %v160 = vld [vmem:[%s0 + $0x488] sm:$0xff]
  %v161 = vld [vmem:[%s0 + $0x490] sm:$0xff]
  %v162 = vld [vmem:[%s0 + $0x498] sm:$0xff]
  %v163 = vld [vmem:[%s0 + $0x4a0] sm:$0xff]
  %v164 = vld [vmem:[%s0 + $0x4a8] sm:$0xff]
  %v165 = vld [vmem:[%s0 + $0x4b0] sm:$0xff]
  %v166 = vld [vmem:[%s0 + $0x4b8] sm:$0xff]
  %v167 = vld [vmem:[%s0 + $0x4c0] sm:$0xff]
  %v168 = vld [vmem:[%s0 + $0x4c8] sm:$0xff]
  %v169 = vld [vmem:[%s0 + $0x4d0] sm:$0xff]
  %v170 = vld [vmem:[%s0 + $0x4d8] sm:$0xff]
  %v171 = vld [vmem:[%s0 + $0x4e0] sm:$0xff]
  %v172 = vld [vmem:[%s0 + $0x4e8] sm:$0xff]
  %v173 = vld [vmem:[%s0 + $0x4f0] sm:$0xff]
  %v174 = vld [vmem:[%s0 + $0x4f8] sm:$0xff]
  %v175 = vld [vmem:[%s0 + $0x500] sm:$0xff]
  %v176 = vld [vmem:[%s0 + $0x508] sm:$0xff]
  %v177 = vld [vmem:[%s0 + $0x510] sm:$0xff]
  %v178 = vld [vmem:[%s0 + $0x518] sm:$0xff]
  %v179 = vld [vmem:[%s0 + $0x520] sm:$0xff]
  %v180 = vld [vmem:[%s0 + $0x528] sm:$0xff]
  %v181 = vld [vmem:[%s0 + $0x530] sm:$0xff]
  %v182 = vld [vmem:[%s0 + $0x538] sm:$0xff]
  %v183 = vld [vmem:[%s0 + $0x540] sm:$0xff]
  %v184 = vld [vmem:[%s1] sm:$0xf]
  %v185 = vld [vmem:[%s1 + $0x4] sm:$0xf]
  %v186 = vld [vmem:[%s1 + $0x8] sm:$0xf]
  %v187 = vld [vmem:[%s1 + $0xc] sm:$0xf]
  %v188 = vld [vmem:[%s1 + $0x10] sm:$0xf]
  %v189 = vld [vmem:[%s1 + $0x14] sm:$0xf]
  %v190 = vld [vmem:[%s1 + $0x18] sm:$0xf]
  %v191 = vld [vmem:[%s1 + $0x1c] sm:$0xf]
  %v192 = vld [vmem:[%s1 + $0x20] sm:$0xf]
  %v193 = vld [vmem:[%s1 + $0x24] sm:$0xf]
  %v194 = vld [vmem:[%s1 + $0x28] sm:$0xf]
  %v195 = vld [vmem:[%s1 + $0x2c] sm:$0xf]
  %v196 = vld [vmem:[%s1 + $0x30] sm:$0xf]
  %v197 = vld [vmem:[%s1 + $0x34] sm:$0xf]
  %v198 = vld [vmem:[%s1 + $0x38] sm:$0xf]
  %v199 = vld [vmem:[%s1 + $0x3c] sm:$0xf]
  %v200 = vld [vmem:[%s1 + $0x40] sm:$0xf]
  %v201 = vld [vmem:[%s1 + $0x44] sm:$0xf]
  %v202 = vld [vmem:[%s1 + $0x48] sm:$0x3]
  %v203 = vld [vmem:[%s2] sm:$0x1]
  %v205 = vlaneseq
  %v206 = vshrl.u32 %v205, 7
  %v207 = vsub.s32 0, %v206
  %v208 = vrot.slane %v203, %v207
  %v379 = vunpack.c.l.b16 %v15
  %v380 = vunpack.c.h.b16 %v15
  %v381 = vunpack.c.l.b16 %v16
  %v382 = vunpack.c.h.b16 %v16
  %v383 = vunpack.c.l.b16 %v17
  %v384 = vunpack.c.h.b16 %v17
  %v385 = vunpack.c.l.b16 %v18
  %v386 = vunpack.c.h.b16 %v18
  %v387 = vunpack.c.l.b16 %v19
  %v388 = vunpack.c.h.b16 %v19
  %v389 = vunpack.c.l.b16 %v20
  %v390 = vunpack.c.h.b16 %v20
  %v391 = vunpack.c.l.b16 %v21
  %v392 = vunpack.c.h.b16 %v21
  %v393 = vunpack.c.l.b16 %v22
  %v394 = vunpack.c.h.b16 %v22
  %v395 = vunpack.c.l.b16 %v23
  %v396 = vunpack.c.h.b16 %v23
  %v397 = vunpack.c.l.b16 %v24
  %v398 = vunpack.c.h.b16 %v24
  %v399 = vunpack.c.l.b16 %v25
  %v400 = vunpack.c.h.b16 %v25
  %v401 = vunpack.c.l.b16 %v26
  %v402 = vunpack.c.h.b16 %v26
  %v403 = vunpack.c.l.b16 %v27
  %v404 = vunpack.c.h.b16 %v27
  %v405 = vunpack.c.l.b16 %v28
  %v406 = vunpack.c.h.b16 %v28
  %v407 = vunpack.c.l.b16 %v29
  %v408 = vunpack.c.h.b16 %v29
  %v409 = vunpack.c.l.b16 %v30
  %v410 = vunpack.c.h.b16 %v30
  %v411 = vunpack.c.l.b16 %v31
  %v412 = vunpack.c.h.b16 %v31
  %v413 = vunpack.c.l.b16 %v32
  %v414 = vunpack.c.h.b16 %v32
  %v415 = vunpack.c.l.b16 %v33
  %v416 = vunpack.c.h.b16 %v33
  %v417 = vunpack.c.l.b16 %v34
  %v418 = vunpack.c.h.b16 %v34
  %v419 = vunpack.c.l.b16 %v35
  %v420 = vunpack.c.h.b16 %v35
  %v421 = vunpack.c.l.b16 %v36
  %v422 = vunpack.c.h.b16 %v36
  %v423 = vunpack.c.l.b16 %v37
  %v424 = vunpack.c.h.b16 %v37
  %v425 = vunpack.c.l.b16 %v38
  %v426 = vunpack.c.h.b16 %v38
  %v427 = vunpack.c.l.b16 %v39
  %v428 = vunpack.c.h.b16 %v39
  %v429 = vunpack.c.l.b16 %v40
  %v430 = vunpack.c.h.b16 %v40
  %v431 = vunpack.c.l.b16 %v41
  %v432 = vunpack.c.h.b16 %v41
  %v433 = vunpack.c.l.b16 %v42
  %v434 = vunpack.c.h.b16 %v42
  %v435 = vunpack.c.l.b16 %v43
  %v436 = vunpack.c.h.b16 %v43
  %v437 = vunpack.c.l.b16 %v44
  %v438 = vunpack.c.h.b16 %v44
  %v439 = vunpack.c.l.b16 %v45
  %v440 = vunpack.c.h.b16 %v45
  %v441 = vunpack.c.l.b16 %v46
  %v442 = vunpack.c.h.b16 %v46
  %v443 = vunpack.c.l.b16 %v47
  %v444 = vunpack.c.h.b16 %v47
  %v445 = vunpack.c.l.b16 %v48
  %v446 = vunpack.c.h.b16 %v48
  %v447 = vunpack.c.l.b16 %v49
  %v448 = vunpack.c.h.b16 %v49
  %v449 = vunpack.c.l.b16 %v50
  %v450 = vunpack.c.h.b16 %v50
  %v451 = vunpack.c.l.b16 %v51
  %v452 = vunpack.c.h.b16 %v51
  %v453 = vunpack.c.l.b16 %v52
  %v454 = vunpack.c.h.b16 %v52
  %v455 = vunpack.c.l.b16 %v53
  %v456 = vunpack.c.h.b16 %v53
  %v457 = vunpack.c.l.b16 %v54
  %v458 = vunpack.c.h.b16 %v54
  %v459 = vunpack.c.l.b16 %v55
  %v460 = vunpack.c.h.b16 %v55
  %v461 = vunpack.c.l.b16 %v56
  %v462 = vunpack.c.h.b16 %v56
  %v463 = vunpack.c.l.b16 %v57
  %v464 = vunpack.c.h.b16 %v57
  %v465 = vunpack.c.l.b16 %v58
  %v466 = vunpack.c.h.b16 %v58
  %v467 = vunpack.c.l.b16 %v59
  %v468 = vunpack.c.h.b16 %v59
  %v469 = vunpack.c.l.b16 %v60
  %v470 = vunpack.c.h.b16 %v60
  %v471 = vunpack.c.l.b16 %v61
  %v472 = vunpack.c.h.b16 %v61
  %v473 = vunpack.c.l.b16 %v62
  %v474 = vunpack.c.h.b16 %v62
  %v475 = vunpack.c.l.b16 %v63
  %v476 = vunpack.c.h.b16 %v63
  %v477 = vunpack.c.l.b16 %v64
  %v478 = vunpack.c.h.b16 %v64
  %v479 = vunpack.c.l.b16 %v65
  %v480 = vunpack.c.h.b16 %v65
  %v481 = vunpack.c.l.b16 %v66
  %v482 = vunpack.c.h.b16 %v66
  %v483 = vunpack.c.l.b16 %v67
  %v484 = vunpack.c.h.b16 %v67
  %v485 = vunpack.c.l.b16 %v68
  %v486 = vunpack.c.h.b16 %v68
  %v487 = vunpack.c.l.b16 %v69
  %v488 = vunpack.c.h.b16 %v69
  %v489 = vunpack.c.l.b16 %v70
  %v490 = vunpack.c.h.b16 %v70
  %v491 = vunpack.c.l.b16 %v71
  %v492 = vunpack.c.h.b16 %v71
  %v493 = vunpack.c.l.b16 %v72
  %v494 = vunpack.c.h.b16 %v72
  %v495 = vunpack.c.l.b16 %v73
  %v496 = vunpack.c.h.b16 %v73
  %v497 = vunpack.c.l.b16 %v74
  %v498 = vunpack.c.h.b16 %v74
  %v499 = vunpack.c.l.b16 %v75
  %v500 = vunpack.c.h.b16 %v75
  %v501 = vunpack.c.l.b16 %v76
  %v502 = vunpack.c.h.b16 %v76
  %v503 = vunpack.c.l.b16 %v77
  %v504 = vunpack.c.h.b16 %v77
  %v505 = vunpack.c.l.b16 %v78
  %v506 = vunpack.c.h.b16 %v78
  %v507 = vunpack.c.l.b16 %v79
  %v508 = vunpack.c.h.b16 %v79
  %v509 = vunpack.c.l.b16 %v80
  %v510 = vunpack.c.h.b16 %v80
  %v511 = vunpack.c.l.b16 %v81
  %v512 = vunpack.c.h.b16 %v81
  %v513 = vunpack.c.l.b16 %v82
  %v514 = vunpack.c.h.b16 %v82
  %v515 = vunpack.c.l.b16 %v83
  %v516 = vunpack.c.h.b16 %v83
  %v517 = vunpack.c.l.b16 %v84
  %v518 = vunpack.c.h.b16 %v84
  %v519 = vunpack.c.l.b16 %v85
  %v520 = vunpack.c.h.b16 %v85
  %v521 = vunpack.c.l.b16 %v86
  %v522 = vunpack.c.h.b16 %v86
  %v523 = vunpack.c.l.b16 %v87
  %v524 = vunpack.c.h.b16 %v87
  %v525 = vunpack.c.l.b16 %v88
  %v526 = vunpack.c.h.b16 %v88
  %v527 = vunpack.c.l.b16 %v89
  %v528 = vunpack.c.h.b16 %v89
  %v529 = vunpack.c.l.b16 %v90
  %v530 = vunpack.c.h.b16 %v90
  %v531 = vunpack.c.l.b16 %v91
  %v532 = vunpack.c.h.b16 %v91
  %v533 = vunpack.c.l.b16 %v92
  %v534 = vunpack.c.h.b16 %v92
  %v535 = vunpack.c.l.b16 %v93
  %v536 = vunpack.c.h.b16 %v93
  %v537 = vunpack.c.l.b16 %v94
  %v538 = vunpack.c.h.b16 %v94
  %v539 = vunpack.c.l.b16 %v95
  %v540 = vunpack.c.h.b16 %v95
  %v541 = vunpack.c.l.b16 %v96
  %v542 = vunpack.c.h.b16 %v96
  %v543 = vunpack.c.l.b16 %v97
  %v544 = vunpack.c.h.b16 %v97
  %v545 = vunpack.c.l.b16 %v98
  %v546 = vunpack.c.h.b16 %v98
  %v547 = vunpack.c.l.b16 %v99
  %v548 = vunpack.c.h.b16 %v99
  %v549 = vunpack.c.l.b16 %v100
  %v550 = vunpack.c.h.b16 %v100
  %v551 = vunpack.c.l.b16 %v101
  %v552 = vunpack.c.h.b16 %v101
  %v553 = vunpack.c.l.b16 %v102
  %v554 = vunpack.c.h.b16 %v102
  %v555 = vunpack.c.l.b16 %v103
  %v556 = vunpack.c.h.b16 %v103
  %v557 = vunpack.c.l.b16 %v104
  %v558 = vunpack.c.h.b16 %v104
  %v559 = vunpack.c.l.b16 %v105
  %v560 = vunpack.c.h.b16 %v105
  %v561 = vunpack.c.l.b16 %v106
  %v562 = vunpack.c.h.b16 %v106
  %v563 = vunpack.c.l.b16 %v107
  %v564 = vunpack.c.h.b16 %v107
  %v565 = vunpack.c.l.b16 %v108
  %v566 = vunpack.c.h.b16 %v108
  %v567 = vunpack.c.l.b16 %v109
  %v568 = vunpack.c.h.b16 %v109
  %v569 = vunpack.c.l.b16 %v110
  %v570 = vunpack.c.h.b16 %v110
  %v571 = vunpack.c.l.b16 %v111
  %v572 = vunpack.c.h.b16 %v111
  %v573 = vunpack.c.l.b16 %v112
  %v574 = vunpack.c.h.b16 %v112
  %v575 = vunpack.c.l.b16 %v113
  %v576 = vunpack.c.h.b16 %v113
  %v577 = vunpack.c.l.b16 %v114
  %v578 = vunpack.c.h.b16 %v114
  %v579 = vunpack.c.l.b16 %v115
  %v580 = vunpack.c.h.b16 %v115
  %v581 = vunpack.c.l.b16 %v116
  %v582 = vunpack.c.h.b16 %v116
  %v583 = vunpack.c.l.b16 %v117
  %v584 = vunpack.c.h.b16 %v117
  %v585 = vunpack.c.l.b16 %v118
  %v586 = vunpack.c.h.b16 %v118
  %v587 = vunpack.c.l.b16 %v119
  %v588 = vunpack.c.h.b16 %v119
  %v589 = vunpack.c.l.b16 %v120
  %v590 = vunpack.c.h.b16 %v120
  %v591 = vunpack.c.l.b16 %v121
  %v592 = vunpack.c.h.b16 %v121
  %v593 = vunpack.c.l.b16 %v122
  %v594 = vunpack.c.h.b16 %v122
  %v595 = vunpack.c.l.b16 %v123
  %v596 = vunpack.c.h.b16 %v123
  %v597 = vunpack.c.l.b16 %v124
  %v598 = vunpack.c.h.b16 %v124
  %v599 = vunpack.c.l.b16 %v125
  %v600 = vunpack.c.h.b16 %v125
  %v601 = vunpack.c.l.b16 %v126
  %v602 = vunpack.c.h.b16 %v126
  %v603 = vunpack.c.l.b16 %v127
  %v604 = vunpack.c.h.b16 %v127
  %v605 = vunpack.c.l.b16 %v128
  %v606 = vunpack.c.h.b16 %v128
  %v607 = vunpack.c.l.b16 %v129
  %v608 = vunpack.c.h.b16 %v129
  %v609 = vunpack.c.l.b16 %v130
  %v610 = vunpack.c.h.b16 %v130
  %v611 = vunpack.c.l.b16 %v131
  %v612 = vunpack.c.h.b16 %v131
  %v613 = vunpack.c.l.b16 %v132
  %v614 = vunpack.c.h.b16 %v132
  %v615 = vunpack.c.l.b16 %v133
  %v616 = vunpack.c.h.b16 %v133
  %v617 = vunpack.c.l.b16 %v134
  %v618 = vunpack.c.h.b16 %v134
  %v619 = vunpack.c.l.b16 %v135
  %v620 = vunpack.c.h.b16 %v135
  %v621 = vunpack.c.l.b16 %v136
  %v622 = vunpack.c.h.b16 %v136
  %v623 = vunpack.c.l.b16 %v137
  %v624 = vunpack.c.h.b16 %v137
  %v625 = vunpack.c.l.b16 %v138
  %v626 = vunpack.c.h.b16 %v138
  %v627 = vunpack.c.l.b16 %v139
  %v628 = vunpack.c.h.b16 %v139
  %v629 = vunpack.c.l.b16 %v140
  %v630 = vunpack.c.h.b16 %v140
  %v631 = vunpack.c.l.b16 %v141
  %v632 = vunpack.c.h.b16 %v141
  %v633 = vunpack.c.l.b16 %v142
  %v634 = vunpack.c.h.b16 %v142
  %v635 = vunpack.c.l.b16 %v143
  %v636 = vunpack.c.h.b16 %v143
  %v637 = vunpack.c.l.b16 %v144
  %v638 = vunpack.c.h.b16 %v144
  %v639 = vunpack.c.l.b16 %v145
  %v640 = vunpack.c.h.b16 %v145
  %v641 = vunpack.c.l.b16 %v146
  %v642 = vunpack.c.h.b16 %v146
  %v643 = vunpack.c.l.b16 %v147
  %v644 = vunpack.c.h.b16 %v147
  %v645 = vunpack.c.l.b16 %v148
  %v646 = vunpack.c.h.b16 %v148
  %v647 = vunpack.c.l.b16 %v149
  %v648 = vunpack.c.h.b16 %v149
  %v649 = vunpack.c.l.b16 %v150
  %v650 = vunpack.c.h.b16 %v150
  %v651 = vunpack.c.l.b16 %v151
  %v652 = vunpack.c.h.b16 %v151
  %v653 = vunpack.c.l.b16 %v152
  %v654 = vunpack.c.h.b16 %v152
  %v655 = vunpack.c.l.b16 %v153
  %v656 = vunpack.c.h.b16 %v153
  %v657 = vunpack.c.l.b16 %v154
  %v658 = vunpack.c.h.b16 %v154
  %v659 = vunpack.c.l.b16 %v155
  %v660 = vunpack.c.h.b16 %v155
  %v661 = vunpack.c.l.b16 %v156
  %v662 = vunpack.c.h.b16 %v156
  %v663 = vunpack.c.l.b16 %v157
  %v664 = vunpack.c.h.b16 %v157
  %v665 = vunpack.c.l.b16 %v158
  %v666 = vunpack.c.h.b16 %v158
  %v667 = vunpack.c.l.b16 %v159
  %v668 = vunpack.c.h.b16 %v159
  %v669 = vunpack.c.l.b16 %v160
  %v670 = vunpack.c.h.b16 %v160
  %v671 = vunpack.c.l.b16 %v161
  %v672 = vunpack.c.h.b16 %v161
  %v673 = vunpack.c.l.b16 %v162
  %v674 = vunpack.c.h.b16 %v162
  %v675 = vunpack.c.l.b16 %v163
  %v676 = vunpack.c.h.b16 %v163
  %v677 = vunpack.c.l.b16 %v164
  %v678 = vunpack.c.h.b16 %v164
  %v679 = vunpack.c.l.b16 %v165
  %v680 = vunpack.c.h.b16 %v165
  %v681 = vunpack.c.l.b16 %v166
  %v682 = vunpack.c.h.b16 %v166
  %v683 = vunpack.c.l.b16 %v167
  %v684 = vunpack.c.h.b16 %v167
  %v685 = vunpack.c.l.b16 %v168
  %v686 = vunpack.c.h.b16 %v168
  %v687 = vunpack.c.l.b16 %v169
  %v688 = vunpack.c.h.b16 %v169
  %v689 = vunpack.c.l.b16 %v170
  %v690 = vunpack.c.h.b16 %v170
  %v691 = vunpack.c.l.b16 %v171
  %v692 = vunpack.c.h.b16 %v171
  %v693 = vunpack.c.l.b16 %v172
  %v694 = vunpack.c.h.b16 %v172
  %v695 = vunpack.c.l.b16 %v173
  %v696 = vunpack.c.h.b16 %v173
  %v697 = vunpack.c.l.b16 %v174
  %v698 = vunpack.c.h.b16 %v174
  %v699 = vunpack.c.l.b16 %v175
  %v700 = vunpack.c.h.b16 %v175
  %v701 = vunpack.c.l.b16 %v176
  %v702 = vunpack.c.h.b16 %v176
  %v703 = vunpack.c.l.b16 %v177
  %v704 = vunpack.c.h.b16 %v177
  %v705 = vunpack.c.l.b16 %v178
  %v706 = vunpack.c.h.b16 %v178
  %v707 = vunpack.c.l.b16 %v179
  %v708 = vunpack.c.h.b16 %v179
  %v709 = vunpack.c.l.b16 %v180
  %v710 = vunpack.c.h.b16 %v180
  %v711 = vunpack.c.l.b16 %v181
  %v712 = vunpack.c.h.b16 %v181
  %v713 = vunpack.c.l.b16 %v182
  %v714 = vunpack.c.h.b16 %v182
  %v715 = vunpack.c.l.b16 %v183
  %v716 = vunpack.c.h.b16 %v183
  %v717 = vpack.c.b16 %v381, %v379
  %v718 = vpack.c.b16 %v382, %v380
  %v719 = vpack.c.b16 %v385, %v383
  %v720 = vpack.c.b16 %v386, %v384
  %v721 = vpack.c.b16 %v389, %v387
  %v722 = vpack.c.b16 %v390, %v388
  %v723 = vpack.c.b16 %v393, %v391
  %v724 = vpack.c.b16 %v394, %v392
  %v725 = vpack.c.b16 %v397, %v395
  %v726 = vpack.c.b16 %v398, %v396
  %v727 = vpack.c.b16 %v401, %v399
  %v728 = vpack.c.b16 %v402, %v400
  %v729 = vpack.c.b16 %v405, %v403
  %v730 = vpack.c.b16 %v406, %v404
  %v731 = vpack.c.b16 %v409, %v407
  %v732 = vpack.c.b16 %v410, %v408
  %v733 = vpack.c.b16 %v413, %v411
  %v734 = vpack.c.b16 %v414, %v412
  %v735 = vpack.c.b16 %v417, %v415
  %v736 = vpack.c.b16 %v418, %v416
  %v737 = vpack.c.b16 %v421, %v419
  %v738 = vpack.c.b16 %v422, %v420
  %v739 = vpack.c.b16 %v425, %v423
  %v740 = vpack.c.b16 %v426, %v424
  %v741 = vpack.c.b16 %v429, %v427
  %v742 = vpack.c.b16 %v430, %v428
  %v743 = vpack.c.b16 %v433, %v431
  %v744 = vpack.c.b16 %v434, %v432
  %v745 = vpack.c.b16 %v437, %v435
  %v746 = vpack.c.b16 %v438, %v436
  %v747 = vpack.c.b16 %v441, %v439
  %v748 = vpack.c.b16 %v442, %v440
  %v749 = vpack.c.b16 %v445, %v443
  %v750 = vpack.c.b16 %v446, %v444
  %v751 = vpack.c.b16 %v449, %v447
  %v752 = vpack.c.b16 %v450, %v448
  %v753 = vpack.c.b16 %v453, %v451
  %v754 = vpack.c.b16 %v454, %v452
  %v755 = vpack.c.b16 %v457, %v455
  %v756 = vpack.c.b16 %v458, %v456
  %v757 = vpack.c.b16 %v461, %v459
  %v758 = vpack.c.b16 %v462, %v460
  %v759 = vpack.c.b16 %v465, %v463
  %v760 = vpack.c.b16 %v466, %v464
  %v761 = vpack.c.b16 %v469, %v467
  %v762 = vpack.c.b16 %v470, %v468
  %v763 = vpack.c.b16 %v473, %v471
  %v764 = vpack.c.b16 %v474, %v472
  %v765 = vpack.c.b16 %v477, %v475
  %v766 = vpack.c.b16 %v478, %v476
  %v767 = vpack.c.b16 %v481, %v479
  %v768 = vpack.c.b16 %v482, %v480
  %v769 = vpack.c.b16 %v485, %v483
  %v770 = vpack.c.b16 %v486, %v484
  %v771 = vpack.c.b16 %v489, %v487
  %v772 = vpack.c.b16 %v490, %v488
  %v773 = vpack.c.b16 %v493, %v491
  %v774 = vpack.c.b16 %v494, %v492
  %v775 = vpack.c.b16 %v497, %v495
  %v776 = vpack.c.b16 %v498, %v496
  %v777 = vpack.c.b16 %v501, %v499
  %v778 = vpack.c.b16 %v502, %v500
  %v779 = vpack.c.b16 %v505, %v503
  %v780 = vpack.c.b16 %v506, %v504
  %v781 = vpack.c.b16 %v509, %v507
  %v782 = vpack.c.b16 %v510, %v508
  %v783 = vpack.c.b16 %v513, %v511
  %v784 = vpack.c.b16 %v514, %v512
  %v785 = vpack.c.b16 %v517, %v515
  %v786 = vpack.c.b16 %v518, %v516
  %v787 = vpack.c.b16 %v521, %v519
  %v788 = vpack.c.b16 %v522, %v520
  %v789 = vpack.c.b16 %v525, %v523
  %v790 = vpack.c.b16 %v526, %v524
  %v791 = vpack.c.b16 %v529, %v527
  %v792 = vpack.c.b16 %v530, %v528
  %v793 = vpack.c.b16 %v533, %v531
  %v794 = vpack.c.b16 %v534, %v532
  %v795 = vpack.c.b16 %v537, %v535
  %v796 = vpack.c.b16 %v538, %v536
  %v797 = vpack.c.b16 %v541, %v539
  %v798 = vpack.c.b16 %v542, %v540
  %v799 = vpack.c.b16 %v545, %v543
  %v800 = vpack.c.b16 %v546, %v544
  %v801 = vpack.c.b16 %v549, %v547
  %v802 = vpack.c.b16 %v550, %v548
  %v803 = vpack.c.b16 %v553, %v551
  %v804 = vpack.c.b16 %v554, %v552
  %v805 = vpack.c.b16 %v557, %v555
  %v806 = vpack.c.b16 %v558, %v556
  %v807 = vpack.c.b16 %v561, %v559
  %v808 = vpack.c.b16 %v562, %v560
  %v809 = vpack.c.b16 %v565, %v563
  %v810 = vpack.c.b16 %v566, %v564
  %v811 = vpack.c.b16 %v569, %v567
  %v812 = vpack.c.b16 %v570, %v568
  %v813 = vpack.c.b16 %v573, %v571
  %v814 = vpack.c.b16 %v574, %v572
  %v815 = vpack.c.b16 %v577, %v575
  %v816 = vpack.c.b16 %v578, %v576
  %v817 = vpack.c.b16 %v581, %v579
  %v818 = vpack.c.b16 %v582, %v580
  %v819 = vpack.c.b16 %v585, %v583
  %v820 = vpack.c.b16 %v586, %v584
  %v821 = vpack.c.b16 %v589, %v587
  %v822 = vpack.c.b16 %v590, %v588
  %v823 = vpack.c.b16 %v593, %v591
  %v824 = vpack.c.b16 %v594, %v592
  %v825 = vpack.c.b16 %v597, %v595
  %v826 = vpack.c.b16 %v598, %v596
  %v827 = vpack.c.b16 %v601, %v599
  %v828 = vpack.c.b16 %v602, %v600
  %v829 = vpack.c.b16 %v605, %v603
  %v830 = vpack.c.b16 %v606, %v604
  %v831 = vpack.c.b16 %v609, %v607
  %v832 = vpack.c.b16 %v610, %v608
  %v833 = vpack.c.b16 %v613, %v611
  %v834 = vpack.c.b16 %v614, %v612
  %v835 = vpack.c.b16 %v617, %v615
  %v836 = vpack.c.b16 %v618, %v616
  %v837 = vpack.c.b16 %v621, %v619
  %v838 = vpack.c.b16 %v622, %v620
  %v839 = vpack.c.b16 %v625, %v623
  %v840 = vpack.c.b16 %v626, %v624
  %v841 = vpack.c.b16 %v629, %v627
  %v842 = vpack.c.b16 %v630, %v628
  %v843 = vpack.c.b16 %v633, %v631
  %v844 = vpack.c.b16 %v634, %v632
  %v845 = vpack.c.b16 %v637, %v635
  %v846 = vpack.c.b16 %v638, %v636
  %v847 = vpack.c.b16 %v641, %v639
  %v848 = vpack.c.b16 %v642, %v640
  %v849 = vpack.c.b16 %v645, %v643
  %v850 = vpack.c.b16 %v646, %v644
  %v851 = vpack.c.b16 %v649, %v647
  %v852 = vpack.c.b16 %v650, %v648
  %v853 = vpack.c.b16 %v653, %v651
  %v854 = vpack.c.b16 %v654, %v652
  %v855 = vpack.c.b16 %v657, %v655
  %v856 = vpack.c.b16 %v658, %v656
  %v857 = vpack.c.b16 %v661, %v659
  %v858 = vpack.c.b16 %v662, %v660
  %v859 = vpack.c.b16 %v665, %v663
  %v860 = vpack.c.b16 %v666, %v664
  %v861 = vpack.c.b16 %v669, %v667
  %v862 = vpack.c.b16 %v670, %v668
  %v863 = vpack.c.b16 %v673, %v671
  %v864 = vpack.c.b16 %v674, %v672
  %v865 = vpack.c.b16 %v677, %v675
  %v866 = vpack.c.b16 %v678, %v676
  %v867 = vpack.c.b16 %v681, %v679
  %v868 = vpack.c.b16 %v682, %v680
  %v869 = vpack.c.b16 %v685, %v683
  %v870 = vpack.c.b16 %v686, %v684
  %v871 = vpack.c.b16 %v689, %v687
  %v872 = vpack.c.b16 %v690, %v688
  %v873 = vpack.c.b16 %v693, %v691
  %v874 = vpack.c.b16 %v694, %v692
  %v875 = vpack.c.b16 %v697, %v695
  %v876 = vpack.c.b16 %v698, %v696
  %v877 = vpack.c.b16 %v701, %v699
  %v878 = vpack.c.b16 %v702, %v700
  %v879 = vpack.c.b16 %v705, %v703
  %v880 = vpack.c.b16 %v706, %v704
  %v881 = vpack.c.b16 %v709, %v707
  %v882 = vpack.c.b16 %v710, %v708
  %v883 = vpack.c.b16 %v713, %v711
  %v884 = vpack.c.b16 %v714, %v712
  %v885 = vpack.c.b16 %v715, %v715
  %v886 = vpack.c.b16 %v716, %v716
  %v991 = vunpack.c.l.b16 %v184
  %v992 = vunpack.c.l.b16 %v185
  %v993 = vunpack.c.l.b16 %v186
  %v994 = vunpack.c.l.b16 %v187
  %v995 = vunpack.c.l.b16 %v188
  %v996 = vunpack.c.l.b16 %v189
  %v997 = vunpack.c.l.b16 %v190
  %v998 = vunpack.c.l.b16 %v191
  %v999 = vunpack.c.l.b16 %v192
  %v1000 = vunpack.c.l.b16 %v193
  %v1001 = vunpack.c.l.b16 %v194
  %v1002 = vunpack.c.l.b16 %v195
  %v1003 = vunpack.c.l.b16 %v196
  %v1004 = vunpack.c.l.b16 %v197
  %v1005 = vunpack.c.l.b16 %v198
  %v1006 = vunpack.c.l.b16 %v199
  %v1007 = vunpack.c.l.b16 %v200
  %v1008 = vunpack.c.l.b16 %v201
  %v1009 = vunpack.c.l.b16 %v202
  %v1010 = vpack.c.b16 %v992, %v991
  %v1011 = vpack.c.b16 %v994, %v993
  %v1012 = vpack.c.b16 %v996, %v995
  %v1013 = vpack.c.b16 %v998, %v997
  %v1014 = vpack.c.b16 %v1000, %v999
  %v1015 = vpack.c.b16 %v1002, %v1001
  %v1016 = vpack.c.b16 %v1004, %v1003
  %v1017 = vpack.c.b16 %v1006, %v1005
  %v1018 = vpack.c.b16 %v1008, %v1007
  %v1019 = vpack.c.b16 %v1009, %v1009
  %vm1029 = vcmask 154624
  %v1031 = vsel %vm1029, %v718, 0
  %v1034 = vsel %vm1029, %v720, 0
  %v1037 = vsel %vm1029, %v722, 0
  %v1040 = vsel %vm1029, %v724, 0
  %v1043 = vsel %vm1029, %v726, 0
  %v1046 = vsel %vm1029, %v728, 0
  %v1049 = vsel %vm1029, %v730, 0
  %v1052 = vsel %vm1029, %v732, 0
  %v1055 = vsel %vm1029, %v734, 0
  %v1058 = vsel %vm1029, %v736, 0
  %v1061 = vsel %vm1029, %v738, 0
  %v1064 = vsel %vm1029, %v740, 0
  %v1067 = vsel %vm1029, %v742, 0
  %v1070 = vsel %vm1029, %v744, 0
  %v1073 = vsel %vm1029, %v746, 0
  %v1076 = vsel %vm1029, %v748, 0
  %v1079 = vsel %vm1029, %v750, 0
  %v1082 = vsel %vm1029, %v752, 0
  %v1085 = vsel %vm1029, %v754, 0
  %v1088 = vsel %vm1029, %v756, 0
  %v1091 = vsel %vm1029, %v758, 0
  %v1094 = vsel %vm1029, %v760, 0
  %v1097 = vsel %vm1029, %v762, 0
  %v1100 = vsel %vm1029, %v764, 0
  %v1103 = vsel %vm1029, %v766, 0
  %v1106 = vsel %vm1029, %v768, 0
  %v1109 = vsel %vm1029, %v770, 0
  %v1112 = vsel %vm1029, %v772, 0
  %v1115 = vsel %vm1029, %v774, 0
  %v1118 = vsel %vm1029, %v776, 0
  %v1121 = vsel %vm1029, %v778, 0
  %v1124 = vsel %vm1029, %v780, 0
  %v1127 = vsel %vm1029, %v782, 0
  %v1130 = vsel %vm1029, %v784, 0
  %v1133 = vsel %vm1029, %v786, 0
  %v1136 = vsel %vm1029, %v788, 0
  %v1139 = vsel %vm1029, %v790, 0
  %v1142 = vsel %vm1029, %v792, 0
  %v1145 = vsel %vm1029, %v794, 0
  %v1148 = vsel %vm1029, %v796, 0
  %v1151 = vsel %vm1029, %v798, 0
  %v1154 = vsel %vm1029, %v800, 0
  %v1157 = vsel %vm1029, %v802, 0
  %v1160 = vsel %vm1029, %v804, 0
  %v1163 = vsel %vm1029, %v806, 0
  %v1166 = vsel %vm1029, %v808, 0
  %v1169 = vsel %vm1029, %v810, 0
  %v1172 = vsel %vm1029, %v812, 0
  %v1175 = vsel %vm1029, %v814, 0
  %v1178 = vsel %vm1029, %v816, 0
  %v1181 = vsel %vm1029, %v818, 0
  %v1184 = vsel %vm1029, %v820, 0
  %v1187 = vsel %vm1029, %v822, 0
  %v1190 = vsel %vm1029, %v824, 0
  %v1193 = vsel %vm1029, %v826, 0
  %v1196 = vsel %vm1029, %v828, 0
  %v1199 = vsel %vm1029, %v830, 0
  %v1202 = vsel %vm1029, %v832, 0
  %v1205 = vsel %vm1029, %v834, 0
  %v1208 = vsel %vm1029, %v836, 0
  %v1211 = vsel %vm1029, %v838, 0
  %v1214 = vsel %vm1029, %v840, 0
  %v1217 = vsel %vm1029, %v842, 0
  %v1220 = vsel %vm1029, %v844, 0
  %v1223 = vsel %vm1029, %v846, 0
  %v1226 = vsel %vm1029, %v848, 0
  %v1229 = vsel %vm1029, %v850, 0
  %v1232 = vsel %vm1029, %v852, 0
  %v1235 = vsel %vm1029, %v854, 0
  %v1238 = vsel %vm1029, %v856, 0
  %v1241 = vsel %vm1029, %v858, 0
  %v1244 = vsel %vm1029, %v860, 0
  %v1247 = vsel %vm1029, %v862, 0
  %v1250 = vsel %vm1029, %v864, 0
  %v1253 = vsel %vm1029, %v866, 0
  %v1256 = vsel %vm1029, %v868, 0
  %v1259 = vsel %vm1029, %v870, 0
  %v1262 = vsel %vm1029, %v872, 0
  %v1265 = vsel %vm1029, %v874, 0
  %v1268 = vsel %vm1029, %v876, 0
  %v1271 = vsel %vm1029, %v878, 0
  %v1274 = vsel %vm1029, %v880, 0
  %v1277 = vsel %vm1029, %v882, 0
  %v1280 = vsel %vm1029, %v884, 0
  %v1283 = vsel %vm1029, %v886, 0
  %vm1285 = vcmask 1040384
  %vm1286 = vcmask 1041408
  %v1287 = vsel %vm1285, 4294967295, 65535
  %v1288 = vsel %vm1286, %v1287, 0
  %v1290 = vand.u32 %v1019, %v1288
  %1292 = vmatprep.subr.bf16.mxu0 0
  %1293 = vmatpush1.bf16.msra.mxu0 %v1010
  %1294 = vmatprep.subr.bf16.mxu0 0
  %1295 = vmatpush1.bf16.msra.mxu0 %v1011
  %1296 = vmatprep.subr.bf16.mxu0 0
  %1297 = vmatpush1.bf16.msra.mxu0 %v1012
  %1298 = vmatprep.subr.bf16.mxu0 0
  %1299 = vmatpush1.bf16.msra.mxu0 %v1013
  %1300 = vmatprep.subr.bf16.mxu0 0
  %1301 = vmatpush1.bf16.msra.mxu0 %v1014
  %1302 = vmatprep.subr.bf16.mxu0 0
  %1303 = vmatpush1.bf16.msra.mxu0 %v1015
  %1304 = vmatprep.subr.bf16.mxu0 0
  %1305 = vmatpush1.bf16.msra.mxu0 %v1016
  %1306 = vmatprep.subr.bf16.mxu0 0
  %1307 = vmatpush1.bf16.msra.mxu0 %v1017
  %1308 = vmatprep.subr.bf16.mxu0 0
  %1309 = vmatpush1.bf16.msra.mxu0 %v1018
  %1310 = vmatprep.subr.bf16.mxu0 0
  %1311 = vmatpush1.bf16.msra.mxu0 %v1290
  %1312 = vmatprep.subr.bf16.mxu0 0
  %1313 = vmatpush1.bf16.msra.mxu0 0
  %1314 = vmatprep.subr.bf16.mxu0 0
  %1315 = vmatpush1.bf16.msra.mxu0 0
  %1316 = vmatprep.subr.bf16.mxu0 0
  %1317 = vmatpush1.bf16.msra.mxu0 0
  %1318 = vmatprep.subr.bf16.mxu0 0
  %1319 = vmatpush1.bf16.msra.mxu0 0
  %1320 = vmatprep.subr.bf16.mxu0 0
  %1321 = vmatpush1.bf16.msra.mxu0 0
  %1322 = vmatprep.subr.bf16.mxu0 0
  %1323 = vmatpush1.bf16.msra.mxu0 0
  %1324 = vmatprep.mubr.bf16.mxu0 %v1031
  %1325 = vmatmul.mubr.bf16.gmra.mrb[0].mxu0 %v717
  %v1326 = vpop.f32.mrb[0].mxu0
  %v1327 = vadd.f32 %v208, %v1326
  %v1328 = vpop.f32.mrb[0].mxu0
  %v1329 = vpop.f32.mrb[0].mxu0
  %v1330 = vadd.f32 %v208, %v1329
  %v1331 = vpop.f32.mrb[0].mxu0
  %1332 = vmatprep.mubr.bf16.mxu0 %v1034
  %1333 = vmatmul.mubr.bf16.gmra.mrb[0].mxu0 %v719
  %v1334 = vpop.f32.mrb[0].mxu0
  %v1335 = vadd.f32 %v208, %v1334
  %v1336 = vpop.f32.mrb[0].mxu0
  %v1337 = vpop.f32.mrb[0].mxu0
  %v1338 = vadd.f32 %v208, %v1337
  %v1339 = vpop.f32.mrb[0].mxu0
  %1340 = vmatprep.mubr.bf16.mxu0 %v1037
  %1341 = vmatmul.mubr.bf16.gmra.mrb[0].mxu0 %v721
  %v1342 = vpop.f32.mrb[0].mxu0
  %v1343 = vadd.f32 %v208, %v1342
  %v1344 = vpop.f32.mrb[0].mxu0
  %v1345 = vpop.f32.mrb[0].mxu0
  %v1346 = vadd.f32 %v208, %v1345
  %v1347 = vpop.f32.mrb[0].mxu0
  %1348 = vmatprep.mubr.bf16.mxu0 %v1040
  %1349 = vmatmul.mubr.bf16.gmra.mrb[0].mxu0 %v723
  %v1350 = vpop.f32.mrb[0].mxu0
  %v1351 = vadd.f32 %v208, %v1350
  %v1352 = vpop.f32.mrb[0].mxu0
  %v1353 = vpop.f32.mrb[0].mxu0
  %v1354 = vadd.f32 %v208, %v1353
  %v1355 = vpop.f32.mrb[0].mxu0
  %1356 = vmatprep.mubr.bf16.mxu0 %v1043
  %1357 = vmatmul.mubr.bf16.gmra.mrb[0].mxu0 %v725
  %v1358 = vpop.f32.mrb[0].mxu0
  %v1359 = vadd.f32 %v208, %v1358
  %v1360 = vpop.f32.mrb[0].mxu0
  %v1361 = vpop.f32.mrb[0].mxu0
  %v1362 = vadd.f32 %v208, %v1361
  %v1363 = vpop.f32.mrb[0].mxu0
  %1364 = vmatprep.mubr.bf16.mxu0 %v1046
  %1365 = vmatmul.mubr.bf16.gmra.mrb[0].mxu0 %v727
  %v1366 = vpop.f32.mrb[0].mxu0
  %v1367 = vadd.f32 %v208, %v1366
  %v1368 = vpop.f32.mrb[0].mxu0
  %v1369 = vpop.f32.mrb[0].mxu0
  %v1370 = vadd.f32 %v208, %v1369
  %v1371 = vpop.f32.mrb[0].mxu0
  %1372 = vmatprep.mubr.bf16.mxu0 %v1049
  %1373 = vmatmul.mubr.bf16.gmra.mrb[0].mxu0 %v729
  %v1374 = vpop.f32.mrb[0].mxu0
  %v1375 = vadd.f32 %v208, %v1374
  %v1376 = vpop.f32.mrb[0].mxu0
  %v1377 = vpop.f32.mrb[0].mxu0
  %v1378 = vadd.f32 %v208, %v1377
  %v1379 = vpop.f32.mrb[0].mxu0
  %1380 = vmatprep.mubr.bf16.mxu0 %v1052
  %1381 = vmatmul.mubr.bf16.gmra.mrb[0].mxu0 %v731
  %v1382 = vpop.f32.mrb[0].mxu0
  %v1383 = vadd.f32 %v208, %v1382
  %v1384 = vpop.f32.mrb[0].mxu0
  %v1385 = vpop.f32.mrb[0].mxu0
  %v1386 = vadd.f32 %v208, %v1385
  %v1387 = vpop.f32.mrb[0].mxu0
  %1388 = vmatprep.mubr.bf16.mxu0 %v1055
  %1389 = vmatmul.mubr.bf16.gmra.mrb[0].mxu0 %v733
  %v1390 = vpop.f32.mrb[0].mxu0
  %v1391 = vadd.f32 %v208, %v1390
  %v1392 = vpop.f32.mrb[0].mxu0
  %v1393 = vpop.f32.mrb[0].mxu0
  %v1394 = vadd.f32 %v208, %v1393
  %v1395 = vpop.f32.mrb[0].mxu0
  %1396 = vmatprep.mubr.bf16.mxu0 %v1058
  %1397 = vmatmul.mubr.bf16.gmra.mrb[0].mxu0 %v735
  %v1398 = vpop.f32.mrb[0].mxu0
  %v1399 = vadd.f32 %v208, %v1398
  %v1400 = vpop.f32.mrb[0].mxu0
  %v1401 = vpop.f32.mrb[0].mxu0
  %v1402 = vadd.f32 %v208, %v1401
  %v1403 = vpop.f32.mrb[0].mxu0
  %1404 = vmatprep.mubr.bf16.mxu0 %v1061
  %1405 = vmatmul.mubr.bf16.gmra.mrb[0].mxu0 %v737
  %v1406 = vpop.f32.mrb[0].mxu0
  %v1407 = vadd.f32 %v208, %v1406
  %v1408 = vpop.f32.mrb[0].mxu0
  %v1409 = vpop.f32.mrb[0].mxu0
  %v1410 = vadd.f32 %v208, %v1409
  %v1411 = vpop.f32.mrb[0].mxu0
  %1412 = vmatprep.mubr.bf16.mxu0 %v1064
  %1413 = vmatmul.mubr.bf16.gmra.mrb[0].mxu0 %v739
  %v1414 = vpop.f32.mrb[0].mxu0
  %v1415 = vadd.f32 %v208, %v1414
  %v1416 = vpop.f32.mrb[0].mxu0
  %v1417 = vpop.f32.mrb[0].mxu0
  %v1418 = vadd.f32 %v208, %v1417
  %v1419 = vpop.f32.mrb[0].mxu0
  %1420 = vmatprep.mubr.bf16.mxu0 %v1067
  %1421 = vmatmul.mubr.bf16.gmra.mrb[0].mxu0 %v741
  %v1422 = vpop.f32.mrb[0].mxu0
  %v1423 = vadd.f32 %v208, %v1422
  %v1424 = vpop.f32.mrb[0].mxu0
  %v1425 = vpop.f32.mrb[0].mxu0
  %v1426 = vadd.f32 %v208, %v1425
  %v1427 = vpop.f32.mrb[0].mxu0
  %1428 = vmatprep.mubr.bf16.mxu0 %v1070
  %1429 = vmatmul.mubr.bf16.gmra.mrb[0].mxu0 %v743
  %v1430 = vpop.f32.mrb[0].mxu0
  %v1431 = vadd.f32 %v208, %v1430
  %v1432 = vpop.f32.mrb[0].mxu0
  %v1433 = vpop.f32.mrb[0].mxu0
  %v1434 = vadd.f32 %v208, %v1433
  %v1435 = vpop.f32.mrb[0].mxu0
  %1436 = vmatprep.mubr.bf16.mxu0 %v1073
  %1437 = vmatmul.mubr.bf16.gmra.mrb[0].mxu0 %v745
  %v1438 = vpop.f32.mrb[0].mxu0
  %v1439 = vadd.f32 %v208, %v1438
  %v1440 = vpop.f32.mrb[0].mxu0
  %v1441 = vpop.f32.mrb[0].mxu0
  %v1442 = vadd.f32 %v208, %v1441
  %v1443 = vpop.f32.mrb[0].mxu0
  %1444 = vmatprep.mubr.bf16.mxu0 %v1076
  %1445 = vmatmul.mubr.bf16.gmra.mrb[0].mxu0 %v747
  %v1446 = vpop.f32.mrb[0].mxu0
  %v1447 = vadd.f32 %v208, %v1446
  %v1448 = vpop.f32.mrb[0].mxu0
  %v1449 = vpop.f32.mrb[0].mxu0
  %v1450 = vadd.f32 %v208, %v1449
  %v1451 = vpop.f32.mrb[0].mxu0
  %1452 = vmatprep.mubr.bf16.mxu0 %v1079
  %1453 = vmatmul.mubr.bf16.gmra.mrb[0].mxu0 %v749
  %v1454 = vpop.f32.mrb[0].mxu0
  %v1455 = vadd.f32 %v208, %v1454
  %v1456 = vpop.f32.mrb[0].mxu0
  %v1457 = vpop.f32.mrb[0].mxu0
  %v1458 = vadd.f32 %v208, %v1457
  %v1459 = vpop.f32.mrb[0].mxu0
  %1460 = vmatprep.mubr.bf16.mxu0 %v1082
  %1461 = vmatmul.mubr.bf16.gmra.mrb[0].mxu0 %v751
  %v1462 = vpop.f32.mrb[0].mxu0
  %v1463 = vadd.f32 %v208, %v1462
  %v1464 = vpop.f32.mrb[0].mxu0
  %v1465 = vpop.f32.mrb[0].mxu0
  %v1466 = vadd.f32 %v208, %v1465
  %v1467 = vpop.f32.mrb[0].mxu0
  %1468 = vmatprep.mubr.bf16.mxu0 %v1085
  %1469 = vmatmul.mubr.bf16.gmra.mrb[0].mxu0 %v753
  %v1470 = vpop.f32.mrb[0].mxu0
  %v1471 = vadd.f32 %v208, %v1470
  %v1472 = vpop.f32.mrb[0].mxu0
  %v1473 = vpop.f32.mrb[0].mxu0
  %v1474 = vadd.f32 %v208, %v1473
  %v1475 = vpop.f32.mrb[0].mxu0
  %1476 = vmatprep.mubr.bf16.mxu0 %v1088
  %1477 = vmatmul.mubr.bf16.gmra.mrb[0].mxu0 %v755
  %v1478 = vpop.f32.mrb[0].mxu0
  %v1479 = vadd.f32 %v208, %v1478
  %v1480 = vpop.f32.mrb[0].mxu0
  %v1481 = vpop.f32.mrb[0].mxu0
  %v1482 = vadd.f32 %v208, %v1481
  %v1483 = vpop.f32.mrb[0].mxu0
  %1484 = vmatprep.mubr.bf16.mxu0 %v1091
  %1485 = vmatmul.mubr.bf16.gmra.mrb[0].mxu0 %v757
  %v1486 = vpop.f32.mrb[0].mxu0
  %v1487 = vadd.f32 %v208, %v1486
  %v1488 = vpop.f32.mrb[0].mxu0
  %v1489 = vpop.f32.mrb[0].mxu0
  %v1490 = vadd.f32 %v208, %v1489
  %v1491 = vpop.f32.mrb[0].mxu0
  %1492 = vmatprep.mubr.bf16.mxu0 %v1094
  %1493 = vmatmul.mubr.bf16.gmra.mrb[0].mxu0 %v759
  %v1494 = vpop.f32.mrb[0].mxu0
  %v1495 = vadd.f32 %v208, %v1494
  %v1496 = vpop.f32.mrb[0].mxu0
  %v1497 = vpop.f32.mrb[0].mxu0
  %v1498 = vadd.f32 %v208, %v1497
  %v1499 = vpop.f32.mrb[0].mxu0
  %1500 = vmatprep.mubr.bf16.mxu0 %v1097
  %1501 = vmatmul.mubr.bf16.gmra.mrb[0].mxu0 %v761
  %v1502 = vpop.f32.mrb[0].mxu0
  %v1503 = vadd.f32 %v208, %v1502
  %v1504 = vpop.f32.mrb[0].mxu0
  %v1505 = vpop.f32.mrb[0].mxu0
  %v1506 = vadd.f32 %v208, %v1505
  %v1507 = vpop.f32.mrb[0].mxu0
  %1508 = vmatprep.mubr.bf16.mxu0 %v1100
  %1509 = vmatmul.mubr.bf16.gmra.mrb[0].mxu0 %v763
  %v1510 = vpop.f32.mrb[0].mxu0
  %v1511 = vadd.f32 %v208, %v1510
  %v1512 = vpop.f32.mrb[0].mxu0
  %v1513 = vpop.f32.mrb[0].mxu0
  %v1514 = vadd.f32 %v208, %v1513
  %v1515 = vpop.f32.mrb[0].mxu0
  %1516 = vmatprep.mubr.bf16.mxu0 %v1103
  %1517 = vmatmul.mubr.bf16.gmra.mrb[0].mxu0 %v765
  %v1518 = vpop.f32.mrb[0].mxu0
  %v1519 = vadd.f32 %v208, %v1518
  %v1520 = vpop.f32.mrb[0].mxu0
  %v1521 = vpop.f32.mrb[0].mxu0
  %v1522 = vadd.f32 %v208, %v1521
  %v1523 = vpop.f32.mrb[0].mxu0
  %1524 = vmatprep.mubr.bf16.mxu0 %v1106
  %1525 = vmatmul.mubr.bf16.gmra.mrb[0].mxu0 %v767
  %v1526 = vpop.f32.mrb[0].mxu0
  %v1527 = vadd.f32 %v208, %v1526
  %v1528 = vpop.f32.mrb[0].mxu0
  %v1529 = vpop.f32.mrb[0].mxu0
  %v1530 = vadd.f32 %v208, %v1529
  %v1531 = vpop.f32.mrb[0].mxu0
  %1532 = vmatprep.mubr.bf16.mxu0 %v1109
  %1533 = vmatmul.mubr.bf16.gmra.mrb[0].mxu0 %v769
  %v1534 = vpop.f32.mrb[0].mxu0
  %v1535 = vadd.f32 %v208, %v1534
  %v1536 = vpop.f32.mrb[0].mxu0
  %v1537 = vpop.f32.mrb[0].mxu0
  %v1538 = vadd.f32 %v208, %v1537
  %v1539 = vpop.f32.mrb[0].mxu0
  %1540 = vmatprep.mubr.bf16.mxu0 %v1112
  %1541 = vmatmul.mubr.bf16.gmra.mrb[0].mxu0 %v771
  %v1542 = vpop.f32.mrb[0].mxu0
  %v1543 = vadd.f32 %v208, %v1542
  %v1544 = vpop.f32.mrb[0].mxu0
  %v1545 = vpop.f32.mrb[0].mxu0
  %v1546 = vadd.f32 %v208, %v1545
  %v1547 = vpop.f32.mrb[0].mxu0
  %1548 = vmatprep.mubr.bf16.mxu0 %v1115
  %1549 = vmatmul.mubr.bf16.gmra.mrb[0].mxu0 %v773
  %v1550 = vpop.f32.mrb[0].mxu0
  %v1551 = vadd.f32 %v208, %v1550
  %v1552 = vpop.f32.mrb[0].mxu0
  %v1553 = vpop.f32.mrb[0].mxu0
  %v1554 = vadd.f32 %v208, %v1553
  %v1555 = vpop.f32.mrb[0].mxu0
  %1556 = vmatprep.mubr.bf16.mxu0 %v1118
  %1557 = vmatmul.mubr.bf16.gmra.mrb[0].mxu0 %v775
  %v1558 = vpop.f32.mrb[0].mxu0
  %v1559 = vadd.f32 %v208, %v1558
  %v1560 = vpop.f32.mrb[0].mxu0
  %v1561 = vpop.f32.mrb[0].mxu0
  %v1562 = vadd.f32 %v208, %v1561
  %v1563 = vpop.f32.mrb[0].mxu0
  %1564 = vmatprep.mubr.bf16.mxu0 %v1121
  %1565 = vmatmul.mubr.bf16.gmra.mrb[0].mxu0 %v777
  %v1566 = vpop.f32.mrb[0].mxu0
  %v1567 = vadd.f32 %v208, %v1566
  %v1568 = vpop.f32.mrb[0].mxu0
  %v1569 = vpop.f32.mrb[0].mxu0
  %v1570 = vadd.f32 %v208, %v1569
  %v1571 = vpop.f32.mrb[0].mxu0
  %1572 = vmatprep.mubr.bf16.mxu0 %v1124
  %1573 = vmatmul.mubr.bf16.gmra.mrb[0].mxu0 %v779
  %v1574 = vpop.f32.mrb[0].mxu0
  %v1575 = vadd.f32 %v208, %v1574
  %v1576 = vpop.f32.mrb[0].mxu0
  %v1577 = vpop.f32.mrb[0].mxu0
  %v1578 = vadd.f32 %v208, %v1577
  %v1579 = vpop.f32.mrb[0].mxu0
  %1580 = vmatprep.mubr.bf16.mxu0 %v1127
  %1581 = vmatmul.mubr.bf16.gmra.mrb[0].mxu0 %v781
  %v1582 = vpop.f32.mrb[0].mxu0
  %v1583 = vadd.f32 %v208, %v1582
  %v1584 = vpop.f32.mrb[0].mxu0
  %v1585 = vpop.f32.mrb[0].mxu0
  %v1586 = vadd.f32 %v208, %v1585
  %v1587 = vpop.f32.mrb[0].mxu0
  %1588 = vmatprep.mubr.bf16.mxu0 %v1130
  %1589 = vmatmul.mubr.bf16.gmra.mrb[0].mxu0 %v783
  %v1590 = vpop.f32.mrb[0].mxu0
  %v1591 = vadd.f32 %v208, %v1590
  %v1592 = vpop.f32.mrb[0].mxu0
  %v1593 = vpop.f32.mrb[0].mxu0
  %v1594 = vadd.f32 %v208, %v1593
  %v1595 = vpop.f32.mrb[0].mxu0
  %1596 = vmatprep.mubr.bf16.mxu0 %v1133
  %1597 = vmatmul.mubr.bf16.gmra.mrb[0].mxu0 %v785
  %v1598 = vpop.f32.mrb[0].mxu0
  %v1599 = vadd.f32 %v208, %v1598
  %v1600 = vpop.f32.mrb[0].mxu0
  %v1601 = vpop.f32.mrb[0].mxu0
  %v1602 = vadd.f32 %v208, %v1601
  %v1603 = vpop.f32.mrb[0].mxu0
  %1604 = vmatprep.mubr.bf16.mxu0 %v1136
  %1605 = vmatmul.mubr.bf16.gmra.mrb[0].mxu0 %v787
  %v1606 = vpop.f32.mrb[0].mxu0
  %v1607 = vadd.f32 %v208, %v1606
  %v1608 = vpop.f32.mrb[0].mxu0
  %v1609 = vpop.f32.mrb[0].mxu0
  %v1610 = vadd.f32 %v208, %v1609
  %v1611 = vpop.f32.mrb[0].mxu0
  %1612 = vmatprep.mubr.bf16.mxu0 %v1139
  %1613 = vmatmul.mubr.bf16.gmra.mrb[0].mxu0 %v789
  %v1614 = vpop.f32.mrb[0].mxu0
  %v1615 = vadd.f32 %v208, %v1614
  %v1616 = vpop.f32.mrb[0].mxu0
  %v1617 = vpop.f32.mrb[0].mxu0
  %v1618 = vadd.f32 %v208, %v1617
  %v1619 = vpop.f32.mrb[0].mxu0
  %1620 = vmatprep.mubr.bf16.mxu0 %v1142
  %1621 = vmatmul.mubr.bf16.gmra.mrb[0].mxu0 %v791
  %v1622 = vpop.f32.mrb[0].mxu0
  %v1623 = vadd.f32 %v208, %v1622
  %v1624 = vpop.f32.mrb[0].mxu0
  %v1625 = vpop.f32.mrb[0].mxu0
  %v1626 = vadd.f32 %v208, %v1625
  %v1627 = vpop.f32.mrb[0].mxu0
  %1628 = vmatprep.mubr.bf16.mxu0 %v1145
  %1629 = vmatmul.mubr.bf16.gmra.mrb[0].mxu0 %v793
  %v1630 = vpop.f32.mrb[0].mxu0
  %v1631 = vadd.f32 %v208, %v1630
  %v1632 = vpop.f32.mrb[0].mxu0
  %v1633 = vpop.f32.mrb[0].mxu0
  %v1634 = vadd.f32 %v208, %v1633
  %v1635 = vpop.f32.mrb[0].mxu0
  %1636 = vmatprep.mubr.bf16.mxu0 %v1148
  %1637 = vmatmul.mubr.bf16.gmra.mrb[0].mxu0 %v795
  %v1638 = vpop.f32.mrb[0].mxu0
  %v1639 = vadd.f32 %v208, %v1638
  %v1640 = vpop.f32.mrb[0].mxu0
  %v1641 = vpop.f32.mrb[0].mxu0
  %v1642 = vadd.f32 %v208, %v1641
  %v1643 = vpop.f32.mrb[0].mxu0
  %1644 = vmatprep.mubr.bf16.mxu0 %v1151
  %1645 = vmatmul.mubr.bf16.gmra.mrb[0].mxu0 %v797
  %v1646 = vpop.f32.mrb[0].mxu0
  %v1647 = vadd.f32 %v208, %v1646
  %v1648 = vpop.f32.mrb[0].mxu0
  %v1649 = vpop.f32.mrb[0].mxu0
  %v1650 = vadd.f32 %v208, %v1649
  %v1651 = vpop.f32.mrb[0].mxu0
  %1652 = vmatprep.mubr.bf16.mxu0 %v1154
  %1653 = vmatmul.mubr.bf16.gmra.mrb[0].mxu0 %v799
  %v1654 = vpop.f32.mrb[0].mxu0
  %v1655 = vadd.f32 %v208, %v1654
  %v1656 = vpop.f32.mrb[0].mxu0
  %v1657 = vpop.f32.mrb[0].mxu0
  %v1658 = vadd.f32 %v208, %v1657
  %v1659 = vpop.f32.mrb[0].mxu0
  %1660 = vmatprep.mubr.bf16.mxu0 %v1157
  %1661 = vmatmul.mubr.bf16.gmra.mrb[0].mxu0 %v801
  %v1662 = vpop.f32.mrb[0].mxu0
  %v1663 = vadd.f32 %v208, %v1662
  %v1664 = vpop.f32.mrb[0].mxu0
  %v1665 = vpop.f32.mrb[0].mxu0
  %v1666 = vadd.f32 %v208, %v1665
  %v1667 = vpop.f32.mrb[0].mxu0
  %1668 = vmatprep.mubr.bf16.mxu0 %v1160
  %1669 = vmatmul.mubr.bf16.gmra.mrb[0].mxu0 %v803
  %v1670 = vpop.f32.mrb[0].mxu0
  %v1671 = vadd.f32 %v208, %v1670
  %v1672 = vpop.f32.mrb[0].mxu0
  %v1673 = vpop.f32.mrb[0].mxu0
  %v1674 = vadd.f32 %v208, %v1673
  %v1675 = vpop.f32.mrb[0].mxu0
  %1676 = vmatprep.mubr.bf16.mxu0 %v1163
  %1677 = vmatmul.mubr.bf16.gmra.mrb[0].mxu0 %v805
  %v1678 = vpop.f32.mrb[0].mxu0
  %v1679 = vadd.f32 %v208, %v1678
  %v1680 = vpop.f32.mrb[0].mxu0
  %v1681 = vpop.f32.mrb[0].mxu0
  %v1682 = vadd.f32 %v208, %v1681
  %v1683 = vpop.f32.mrb[0].mxu0
  %1684 = vmatprep.mubr.bf16.mxu0 %v1166
  %1685 = vmatmul.mubr.bf16.gmra.mrb[0].mxu0 %v807
  %v1686 = vpop.f32.mrb[0].mxu0
  %v1687 = vadd.f32 %v208, %v1686
  %v1688 = vpop.f32.mrb[0].mxu0
  %v1689 = vpop.f32.mrb[0].mxu0
  %v1690 = vadd.f32 %v208, %v1689
  %v1691 = vpop.f32.mrb[0].mxu0
  %1692 = vmatprep.mubr.bf16.mxu0 %v1169
  %1693 = vmatmul.mubr.bf16.gmra.mrb[0].mxu0 %v809
  %v1694 = vpop.f32.mrb[0].mxu0
  %v1695 = vadd.f32 %v208, %v1694
  %v1696 = vpop.f32.mrb[0].mxu0
  %v1697 = vpop.f32.mrb[0].mxu0
  %v1698 = vadd.f32 %v208, %v1697
  %v1699 = vpop.f32.mrb[0].mxu0
  %1700 = vmatprep.mubr.bf16.mxu0 %v1172
  %1701 = vmatmul.mubr.bf16.gmra.mrb[0].mxu0 %v811
  %v1702 = vpop.f32.mrb[0].mxu0
  %v1703 = vadd.f32 %v208, %v1702
  %v1704 = vpop.f32.mrb[0].mxu0
  %v1705 = vpop.f32.mrb[0].mxu0
  %v1706 = vadd.f32 %v208, %v1705
  %v1707 = vpop.f32.mrb[0].mxu0
  %1708 = vmatprep.mubr.bf16.mxu0 %v1175
  %1709 = vmatmul.mubr.bf16.gmra.mrb[0].mxu0 %v813
  %v1710 = vpop.f32.mrb[0].mxu0
  %v1711 = vadd.f32 %v208, %v1710
  %v1712 = vpop.f32.mrb[0].mxu0
  %v1713 = vpop.f32.mrb[0].mxu0
  %v1714 = vadd.f32 %v208, %v1713
  %v1715 = vpop.f32.mrb[0].mxu0
  %1716 = vmatprep.mubr.bf16.mxu0 %v1178
  %1717 = vmatmul.mubr.bf16.gmra.mrb[0].mxu0 %v815
  %v1718 = vpop.f32.mrb[0].mxu0
  %v1719 = vadd.f32 %v208, %v1718
  %v1720 = vpop.f32.mrb[0].mxu0
  %v1721 = vpop.f32.mrb[0].mxu0
  %v1722 = vadd.f32 %v208, %v1721
  %v1723 = vpop.f32.mrb[0].mxu0
  %1724 = vmatprep.mubr.bf16.mxu0 %v1181
  %1725 = vmatmul.mubr.bf16.gmra.mrb[0].mxu0 %v817
  %v1726 = vpop.f32.mrb[0].mxu0
  %v1727 = vadd.f32 %v208, %v1726
  %v1728 = vpop.f32.mrb[0].mxu0
  %v1729 = vpop.f32.mrb[0].mxu0
  %v1730 = vadd.f32 %v208, %v1729
  %v1731 = vpop.f32.mrb[0].mxu0
  %1732 = vmatprep.mubr.bf16.mxu0 %v1184
  %1733 = vmatmul.mubr.bf16.gmra.mrb[0].mxu0 %v819
  %v1734 = vpop.f32.mrb[0].mxu0
  %v1735 = vadd.f32 %v208, %v1734
  %v1736 = vpop.f32.mrb[0].mxu0
  %v1737 = vpop.f32.mrb[0].mxu0
  %v1738 = vadd.f32 %v208, %v1737
  %v1739 = vpop.f32.mrb[0].mxu0
  %1740 = vmatprep.mubr.bf16.mxu0 %v1187
  %1741 = vmatmul.mubr.bf16.gmra.mrb[0].mxu0 %v821
  %v1742 = vpop.f32.mrb[0].mxu0
  %v1743 = vadd.f32 %v208, %v1742
  %v1744 = vpop.f32.mrb[0].mxu0
  %v1745 = vpop.f32.mrb[0].mxu0
  %v1746 = vadd.f32 %v208, %v1745
  %v1747 = vpop.f32.mrb[0].mxu0
  %1748 = vmatprep.mubr.bf16.mxu0 %v1190
  %1749 = vmatmul.mubr.bf16.gmra.mrb[0].mxu0 %v823
  %v1750 = vpop.f32.mrb[0].mxu0
  %v1751 = vadd.f32 %v208, %v1750
  %v1752 = vpop.f32.mrb[0].mxu0
  %v1753 = vpop.f32.mrb[0].mxu0
  %v1754 = vadd.f32 %v208, %v1753
  %v1755 = vpop.f32.mrb[0].mxu0
  %1756 = vmatprep.mubr.bf16.mxu0 %v1193
  %1757 = vmatmul.mubr.bf16.gmra.mrb[0].mxu0 %v825
  %v1758 = vpop.f32.mrb[0].mxu0
  %v1759 = vadd.f32 %v208, %v1758
  %v1760 = vpop.f32.mrb[0].mxu0
  %v1761 = vpop.f32.mrb[0].mxu0
  %v1762 = vadd.f32 %v208, %v1761
  %v1763 = vpop.f32.mrb[0].mxu0
  %1764 = vmatprep.mubr.bf16.mxu0 %v1196
  %1765 = vmatmul.mubr.bf16.gmra.mrb[0].mxu0 %v827
  %v1766 = vpop.f32.mrb[0].mxu0
  %v1767 = vadd.f32 %v208, %v1766
  %v1768 = vpop.f32.mrb[0].mxu0
  %v1769 = vpop.f32.mrb[0].mxu0
  %v1770 = vadd.f32 %v208, %v1769
  %v1771 = vpop.f32.mrb[0].mxu0
  %1772 = vmatprep.mubr.bf16.mxu0 %v1199
  %1773 = vmatmul.mubr.bf16.gmra.mrb[0].mxu0 %v829
  %v1774 = vpop.f32.mrb[0].mxu0
  %v1775 = vadd.f32 %v208, %v1774
  %v1776 = vpop.f32.mrb[0].mxu0
  %v1777 = vpop.f32.mrb[0].mxu0
  %v1778 = vadd.f32 %v208, %v1777
  %v1779 = vpop.f32.mrb[0].mxu0
  %1780 = vmatprep.mubr.bf16.mxu0 %v1202
  %1781 = vmatmul.mubr.bf16.gmra.mrb[0].mxu0 %v831
  %v1782 = vpop.f32.mrb[0].mxu0
  %v1783 = vadd.f32 %v208, %v1782
  %v1784 = vpop.f32.mrb[0].mxu0
  %v1785 = vpop.f32.mrb[0].mxu0
  %v1786 = vadd.f32 %v208, %v1785
  %v1787 = vpop.f32.mrb[0].mxu0
  %1788 = vmatprep.mubr.bf16.mxu0 %v1205
  %1789 = vmatmul.mubr.bf16.gmra.mrb[0].mxu0 %v833
  %v1790 = vpop.f32.mrb[0].mxu0
  %v1791 = vadd.f32 %v208, %v1790
  %v1792 = vpop.f32.mrb[0].mxu0
  %v1793 = vpop.f32.mrb[0].mxu0
  %v1794 = vadd.f32 %v208, %v1793
  %v1795 = vpop.f32.mrb[0].mxu0
  %1796 = vmatprep.mubr.bf16.mxu0 %v1208
  %1797 = vmatmul.mubr.bf16.gmra.mrb[0].mxu0 %v835
  %v1798 = vpop.f32.mrb[0].mxu0
  %v1799 = vadd.f32 %v208, %v1798
  %v1800 = vpop.f32.mrb[0].mxu0
  %v1801 = vpop.f32.mrb[0].mxu0
  %v1802 = vadd.f32 %v208, %v1801
  %v1803 = vpop.f32.mrb[0].mxu0
  %1804 = vmatprep.mubr.bf16.mxu0 %v1211
  %1805 = vmatmul.mubr.bf16.gmra.mrb[0].mxu0 %v837
  %v1806 = vpop.f32.mrb[0].mxu0
  %v1807 = vadd.f32 %v208, %v1806
  %v1808 = vpop.f32.mrb[0].mxu0
  %v1809 = vpop.f32.mrb[0].mxu0
  %v1810 = vadd.f32 %v208, %v1809
  %v1811 = vpop.f32.mrb[0].mxu0
  %1812 = vmatprep.mubr.bf16.mxu0 %v1214
  %1813 = vmatmul.mubr.bf16.gmra.mrb[0].mxu0 %v839
  %v1814 = vpop.f32.mrb[0].mxu0
  %v1815 = vadd.f32 %v208, %v1814
  %v1816 = vpop.f32.mrb[0].mxu0
  %v1817 = vpop.f32.mrb[0].mxu0
  %v1818 = vadd.f32 %v208, %v1817
  %v1819 = vpop.f32.mrb[0].mxu0
  %1820 = vmatprep.mubr.bf16.mxu0 %v1217
  %1821 = vmatmul.mubr.bf16.gmra.mrb[0].mxu0 %v841
  %v1822 = vpop.f32.mrb[0].mxu0
  %v1823 = vadd.f32 %v208, %v1822
  %v1824 = vpop.f32.mrb[0].mxu0
  %v1825 = vpop.f32.mrb[0].mxu0
  %v1826 = vadd.f32 %v208, %v1825
  %v1827 = vpop.f32.mrb[0].mxu0
  %1828 = vmatprep.mubr.bf16.mxu0 %v1220
  %1829 = vmatmul.mubr.bf16.gmra.mrb[0].mxu0 %v843
  %v1830 = vpop.f32.mrb[0].mxu0
  %v1831 = vadd.f32 %v208, %v1830
  %v1832 = vpop.f32.mrb[0].mxu0
  %v1833 = vpop.f32.mrb[0].mxu0
  %v1834 = vadd.f32 %v208, %v1833
  %v1835 = vpop.f32.mrb[0].mxu0
  %1836 = vmatprep.mubr.bf16.mxu0 %v1223
  %1837 = vmatmul.mubr.bf16.gmra.mrb[0].mxu0 %v845
  %v1838 = vpop.f32.mrb[0].mxu0
  %v1839 = vadd.f32 %v208, %v1838
  %v1840 = vpop.f32.mrb[0].mxu0
  %v1841 = vpop.f32.mrb[0].mxu0
  %v1842 = vadd.f32 %v208, %v1841
  %v1843 = vpop.f32.mrb[0].mxu0
  %1844 = vmatprep.mubr.bf16.mxu0 %v1226
  %1845 = vmatmul.mubr.bf16.gmra.mrb[0].mxu0 %v847
  %v1846 = vpop.f32.mrb[0].mxu0
  %v1847 = vadd.f32 %v208, %v1846
  %v1848 = vpop.f32.mrb[0].mxu0
  %v1849 = vpop.f32.mrb[0].mxu0
  %v1850 = vadd.f32 %v208, %v1849
  %v1851 = vpop.f32.mrb[0].mxu0
  %1852 = vmatprep.mubr.bf16.mxu0 %v1229
  %1853 = vmatmul.mubr.bf16.gmra.mrb[0].mxu0 %v849
  %v1854 = vpop.f32.mrb[0].mxu0
  %v1855 = vadd.f32 %v208, %v1854
  %v1856 = vpop.f32.mrb[0].mxu0
  %v1857 = vpop.f32.mrb[0].mxu0
  %v1858 = vadd.f32 %v208, %v1857
  %v1859 = vpop.f32.mrb[0].mxu0
  %1860 = vmatprep.mubr.bf16.mxu0 %v1232
  %1861 = vmatmul.mubr.bf16.gmra.mrb[0].mxu0 %v851
  %v1862 = vpop.f32.mrb[0].mxu0
  %v1863 = vadd.f32 %v208, %v1862
  %v1864 = vpop.f32.mrb[0].mxu0
  %v1865 = vpop.f32.mrb[0].mxu0
  %v1866 = vadd.f32 %v208, %v1865
  %v1867 = vpop.f32.mrb[0].mxu0
  %1868 = vmatprep.mubr.bf16.mxu0 %v1235
  %1869 = vmatmul.mubr.bf16.gmra.mrb[0].mxu0 %v853
  %v1870 = vpop.f32.mrb[0].mxu0
  %v1871 = vadd.f32 %v208, %v1870
  %v1872 = vpop.f32.mrb[0].mxu0
  %v1873 = vpop.f32.mrb[0].mxu0
  %v1874 = vadd.f32 %v208, %v1873
  %v1875 = vpop.f32.mrb[0].mxu0
  %1876 = vmatprep.mubr.bf16.mxu0 %v1238
  %1877 = vmatmul.mubr.bf16.gmra.mrb[0].mxu0 %v855
  %v1878 = vpop.f32.mrb[0].mxu0
  %v1879 = vadd.f32 %v208, %v1878
  %v1880 = vpop.f32.mrb[0].mxu0
  %v1881 = vpop.f32.mrb[0].mxu0
  %v1882 = vadd.f32 %v208, %v1881
  %v1883 = vpop.f32.mrb[0].mxu0
  %1884 = vmatprep.mubr.bf16.mxu0 %v1241
  %1885 = vmatmul.mubr.bf16.gmra.mrb[0].mxu0 %v857
  %v1886 = vpop.f32.mrb[0].mxu0
  %v1887 = vadd.f32 %v208, %v1886
  %v1888 = vpop.f32.mrb[0].mxu0
  %v1889 = vpop.f32.mrb[0].mxu0
  %v1890 = vadd.f32 %v208, %v1889
  %v1891 = vpop.f32.mrb[0].mxu0
  %1892 = vmatprep.mubr.bf16.mxu0 %v1244
  %1893 = vmatmul.mubr.bf16.gmra.mrb[0].mxu0 %v859
  %v1894 = vpop.f32.mrb[0].mxu0
  %v1895 = vadd.f32 %v208, %v1894
  %v1896 = vpop.f32.mrb[0].mxu0
  %v1897 = vpop.f32.mrb[0].mxu0
  %v1898 = vadd.f32 %v208, %v1897
  %v1899 = vpop.f32.mrb[0].mxu0
  %1900 = vmatprep.mubr.bf16.mxu0 %v1247
  %1901 = vmatmul.mubr.bf16.gmra.mrb[0].mxu0 %v861
  %v1902 = vpop.f32.mrb[0].mxu0
  %v1903 = vadd.f32 %v208, %v1902
  %v1904 = vpop.f32.mrb[0].mxu0
  %v1905 = vpop.f32.mrb[0].mxu0
  %v1906 = vadd.f32 %v208, %v1905
  %v1907 = vpop.f32.mrb[0].mxu0
  %1908 = vmatprep.mubr.bf16.mxu0 %v1250
  %1909 = vmatmul.mubr.bf16.gmra.mrb[0].mxu0 %v863
  %v1910 = vpop.f32.mrb[0].mxu0
  %v1911 = vadd.f32 %v208, %v1910
  %v1912 = vpop.f32.mrb[0].mxu0
  %v1913 = vpop.f32.mrb[0].mxu0
  %v1914 = vadd.f32 %v208, %v1913
  %v1915 = vpop.f32.mrb[0].mxu0
  %1916 = vmatprep.mubr.bf16.mxu0 %v1253
  %1917 = vmatmul.mubr.bf16.gmra.mrb[0].mxu0 %v865
  %v1918 = vpop.f32.mrb[0].mxu0
  %v1919 = vadd.f32 %v208, %v1918
  %v1920 = vpop.f32.mrb[0].mxu0
  %v1921 = vpop.f32.mrb[0].mxu0
  %v1922 = vadd.f32 %v208, %v1921
  %v1923 = vpop.f32.mrb[0].mxu0
  %1924 = vmatprep.mubr.bf16.mxu0 %v1256
  %1925 = vmatmul.mubr.bf16.gmra.mrb[0].mxu0 %v867
  %v1926 = vpop.f32.mrb[0].mxu0
  %v1927 = vadd.f32 %v208, %v1926
  %v1928 = vpop.f32.mrb[0].mxu0
  %v1929 = vpop.f32.mrb[0].mxu0
  %v1930 = vadd.f32 %v208, %v1929
  %v1931 = vpop.f32.mrb[0].mxu0
  %1932 = vmatprep.mubr.bf16.mxu0 %v1259
  %1933 = vmatmul.mubr.bf16.gmra.mrb[0].mxu0 %v869
  %v1934 = vpop.f32.mrb[0].mxu0
  %v1935 = vadd.f32 %v208, %v1934
  %v1936 = vpop.f32.mrb[0].mxu0
  %v1937 = vpop.f32.mrb[0].mxu0
  %v1938 = vadd.f32 %v208, %v1937
  %v1939 = vpop.f32.mrb[0].mxu0
  %1940 = vmatprep.mubr.bf16.mxu0 %v1262
  %1941 = vmatmul.mubr.bf16.gmra.mrb[0].mxu0 %v871
  %v1942 = vpop.f32.mrb[0].mxu0
  %v1943 = vadd.f32 %v208, %v1942
  %v1944 = vpop.f32.mrb[0].mxu0
  %v1945 = vpop.f32.mrb[0].mxu0
  %v1946 = vadd.f32 %v208, %v1945
  %v1947 = vpop.f32.mrb[0].mxu0
  %1948 = vmatprep.mubr.bf16.mxu0 %v1265
  %1949 = vmatmul.mubr.bf16.gmra.mrb[0].mxu0 %v873
  %v1950 = vpop.f32.mrb[0].mxu0
  %v1951 = vadd.f32 %v208, %v1950
  %v1952 = vpop.f32.mrb[0].mxu0
  %v1953 = vpop.f32.mrb[0].mxu0
  %v1954 = vadd.f32 %v208, %v1953
  %v1955 = vpop.f32.mrb[0].mxu0
  %1956 = vmatprep.mubr.bf16.mxu0 %v1268
  %1957 = vmatmul.mubr.bf16.gmra.mrb[0].mxu0 %v875
  %v1958 = vpop.f32.mrb[0].mxu0
  %v1959 = vadd.f32 %v208, %v1958
  %v1960 = vpop.f32.mrb[0].mxu0
  %v1961 = vpop.f32.mrb[0].mxu0
  %v1962 = vadd.f32 %v208, %v1961
  %v1963 = vpop.f32.mrb[0].mxu0
  %1964 = vmatprep.mubr.bf16.mxu0 %v1271
  %1965 = vmatmul.mubr.bf16.gmra.mrb[0].mxu0 %v877
  %v1966 = vpop.f32.mrb[0].mxu0
  %v1967 = vadd.f32 %v208, %v1966
  %v1968 = vpop.f32.mrb[0].mxu0
  %v1969 = vpop.f32.mrb[0].mxu0
  %v1970 = vadd.f32 %v208, %v1969
  %v1971 = vpop.f32.mrb[0].mxu0
  %1972 = vmatprep.mubr.bf16.mxu0 %v1274
  %1973 = vmatmul.mubr.bf16.gmra.mrb[0].mxu0 %v879
  %v1974 = vpop.f32.mrb[0].mxu0
  %v1975 = vadd.f32 %v208, %v1974
  %v1976 = vpop.f32.mrb[0].mxu0
  %v1977 = vpop.f32.mrb[0].mxu0
  %v1978 = vadd.f32 %v208, %v1977
  %v1979 = vpop.f32.mrb[0].mxu0
  %1980 = vmatprep.mubr.bf16.mxu0 %v1277
  %1981 = vmatmul.mubr.bf16.gmra.mrb[0].mxu0 %v881
  %v1982 = vpop.f32.mrb[0].mxu0
  %v1983 = vadd.f32 %v208, %v1982
  %v1984 = vpop.f32.mrb[0].mxu0
  %v1985 = vpop.f32.mrb[0].mxu0
  %v1986 = vadd.f32 %v208, %v1985
  %v1987 = vpop.f32.mrb[0].mxu0
  %1988 = vmatprep.mubr.bf16.mxu0 %v1280
  %1989 = vmatmul.mubr.bf16.gmra.mrb[0].mxu0 %v883
  %v1990 = vpop.f32.mrb[0].mxu0
  %v1991 = vadd.f32 %v208, %v1990
  %v1992 = vpop.f32.mrb[0].mxu0
  %v1993 = vpop.f32.mrb[0].mxu0
  %v1994 = vadd.f32 %v208, %v1993
  %v1995 = vpop.f32.mrb[0].mxu0
  %1996 = vmatprep.mubr.bf16.mxu0 %v1283
  %1997 = vmatmul.mubr.bf16.gmra.mrb[0].mxu0 %v885
  %v1998 = vpop.f32.mrb[0].mxu0
  %v1999 = vadd.f32 %v208, %v1998
  %v2000 = vpop.f32.mrb[0].mxu0
  %v2001 = vpop.f32.mrb[0].mxu0
  %v2002 = vpop.f32.mrb[0].mxu0
  %2003 = vdwg.mxu0
  %v2004 = vmax.f32 %v1327, 0.0
  %v2005 = vmax.f32 %v1330, 0.0
  %v2006 = vmax.f32 %v1335, 0.0
  %v2007 = vmax.f32 %v1338, 0.0
  %v2008 = vmax.f32 %v1343, 0.0
  %v2009 = vmax.f32 %v1346, 0.0
  %v2010 = vmax.f32 %v1351, 0.0
  %v2011 = vmax.f32 %v1354, 0.0
  %v2012 = vmax.f32 %v1359, 0.0
  %v2013 = vmax.f32 %v1362, 0.0
  %v2014 = vmax.f32 %v1367, 0.0
  %v2015 = vmax.f32 %v1370, 0.0
  %v2016 = vmax.f32 %v1375, 0.0
  %v2017 = vmax.f32 %v1378, 0.0
  %v2018 = vmax.f32 %v1383, 0.0
  %v2019 = vmax.f32 %v1386, 0.0
  %v2020 = vmax.f32 %v1391, 0.0
  %v2021 = vmax.f32 %v1394, 0.0
  %v2022 = vmax.f32 %v1399, 0.0
  %v2023 = vmax.f32 %v1402, 0.0
  %v2024 = vmax.f32 %v1407, 0.0
  %v2025 = vmax.f32 %v1410, 0.0
  %v2026 = vmax.f32 %v1415, 0.0
  %v2027 = vmax.f32 %v1418, 0.0
  %v2028 = vmax.f32 %v1423, 0.0
  %v2029 = vmax.f32 %v1426, 0.0
  %v2030 = vmax.f32 %v1431, 0.0
  %v2031 = vmax.f32 %v1434, 0.0
  %v2032 = vmax.f32 %v1439, 0.0
  %v2033 = vmax.f32 %v1442, 0.0
  %v2034 = vmax.f32 %v1447, 0.0
  %v2035 = vmax.f32 %v1450, 0.0
  %v2036 = vmax.f32 %v1455, 0.0
  %v2037 = vmax.f32 %v1458, 0.0
  %v2038 = vmax.f32 %v1463, 0.0
  %v2039 = vmax.f32 %v1466, 0.0
  %v2040 = vmax.f32 %v1471, 0.0
  %v2041 = vmax.f32 %v1474, 0.0
  %v2042 = vmax.f32 %v1479, 0.0
  %v2043 = vmax.f32 %v1482, 0.0
  %v2044 = vmax.f32 %v1487, 0.0
  %v2045 = vmax.f32 %v1490, 0.0
  %v2046 = vmax.f32 %v1495, 0.0
  %v2047 = vmax.f32 %v1498, 0.0
  %v2048 = vmax.f32 %v1503, 0.0
  %v2049 = vmax.f32 %v1506, 0.0
  %v2050 = vmax.f32 %v1511, 0.0
  %v2051 = vmax.f32 %v1514, 0.0
  %v2052 = vmax.f32 %v1519, 0.0
  %v2053 = vmax.f32 %v1522, 0.0
  %v2054 = vmax.f32 %v1527, 0.0
  %v2055 = vmax.f32 %v1530, 0.0
  %v2056 = vmax.f32 %v1535, 0.0
  %v2057 = vmax.f32 %v1538, 0.0
  %v2058 = vmax.f32 %v1543, 0.0
  %v2059 = vmax.f32 %v1546, 0.0
  %v2060 = vmax.f32 %v1551, 0.0
  %v2061 = vmax.f32 %v1554, 0.0
  %v2062 = vmax.f32 %v1559, 0.0
  %v2063 = vmax.f32 %v1562, 0.0
  %v2064 = vmax.f32 %v1567, 0.0
  %v2065 = vmax.f32 %v1570, 0.0
  %v2066 = vmax.f32 %v1575, 0.0
  %v2067 = vmax.f32 %v1578, 0.0
  %v2068 = vmax.f32 %v1583, 0.0
  %v2069 = vmax.f32 %v1586, 0.0
  %v2070 = vmax.f32 %v1591, 0.0
  %v2071 = vmax.f32 %v1594, 0.0
  %v2072 = vmax.f32 %v1599, 0.0
  %v2073 = vmax.f32 %v1602, 0.0
  %v2074 = vmax.f32 %v1607, 0.0
  %v2075 = vmax.f32 %v1610, 0.0
  %v2076 = vmax.f32 %v1615, 0.0
  %v2077 = vmax.f32 %v1618, 0.0
  %v2078 = vmax.f32 %v1623, 0.0
  %v2079 = vmax.f32 %v1626, 0.0
  %v2080 = vmax.f32 %v1631, 0.0
  %v2081 = vmax.f32 %v1634, 0.0
  %v2082 = vmax.f32 %v1639, 0.0
  %v2083 = vmax.f32 %v1642, 0.0
  %v2084 = vmax.f32 %v1647, 0.0
  %v2085 = vmax.f32 %v1650, 0.0
  %v2086 = vmax.f32 %v1655, 0.0
  %v2087 = vmax.f32 %v1658, 0.0
  %v2088 = vmax.f32 %v1663, 0.0
  %v2089 = vmax.f32 %v1666, 0.0
  %v2090 = vmax.f32 %v1671, 0.0
  %v2091 = vmax.f32 %v1674, 0.0
  %v2092 = vmax.f32 %v1679, 0.0
  %v2093 = vmax.f32 %v1682, 0.0
  %v2094 = vmax.f32 %v1687, 0.0
  %v2095 = vmax.f32 %v1690, 0.0
  %v2096 = vmax.f32 %v1695, 0.0
  %v2097 = vmax.f32 %v1698, 0.0
  %v2098 = vmax.f32 %v1703, 0.0
  %v2099 = vmax.f32 %v1706, 0.0
  %v2100 = vmax.f32 %v1711, 0.0
  %v2101 = vmax.f32 %v1714, 0.0
  %v2102 = vmax.f32 %v1719, 0.0
  %v2103 = vmax.f32 %v1722, 0.0
  %v2104 = vmax.f32 %v1727, 0.0
  %v2105 = vmax.f32 %v1730, 0.0
  %v2106 = vmax.f32 %v1735, 0.0
  %v2107 = vmax.f32 %v1738, 0.0
  %v2108 = vmax.f32 %v1743, 0.0
  %v2109 = vmax.f32 %v1746, 0.0
  %v2110 = vmax.f32 %v1751, 0.0
  %v2111 = vmax.f32 %v1754, 0.0
  %v2112 = vmax.f32 %v1759, 0.0
  %v2113 = vmax.f32 %v1762, 0.0
  %v2114 = vmax.f32 %v1767, 0.0
  %v2115 = vmax.f32 %v1770, 0.0
  %v2116 = vmax.f32 %v1775, 0.0
  %v2117 = vmax.f32 %v1778, 0.0
  %v2118 = vmax.f32 %v1783, 0.0
  %v2119 = vmax.f32 %v1786, 0.0
  %v2120 = vmax.f32 %v1791, 0.0
  %v2121 = vmax.f32 %v1794, 0.0
  %v2122 = vmax.f32 %v1799, 0.0
  %v2123 = vmax.f32 %v1802, 0.0
  %v2124 = vmax.f32 %v1807, 0.0
  %v2125 = vmax.f32 %v1810, 0.0
  %v2126 = vmax.f32 %v1815, 0.0
  %v2127 = vmax.f32 %v1818, 0.0
  %v2128 = vmax.f32 %v1823, 0.0
  %v2129 = vmax.f32 %v1826, 0.0
  %v2130 = vmax.f32 %v1831, 0.0
  %v2131 = vmax.f32 %v1834, 0.0
  %v2132 = vmax.f32 %v1839, 0.0
  %v2133 = vmax.f32 %v1842, 0.0
  %v2134 = vmax.f32 %v1847, 0.0
  %v2135 = vmax.f32 %v1850, 0.0
  %v2136 = vmax.f32 %v1855, 0.0
  %v2137 = vmax.f32 %v1858, 0.0
  %v2138 = vmax.f32 %v1863, 0.0
  %v2139 = vmax.f32 %v1866, 0.0
  %v2140 = vmax.f32 %v1871, 0.0
  %v2141 = vmax.f32 %v1874, 0.0
  %v2142 = vmax.f32 %v1879, 0.0
  %v2143 = vmax.f32 %v1882, 0.0
  %v2144 = vmax.f32 %v1887, 0.0
  %v2145 = vmax.f32 %v1890, 0.0
  %v2146 = vmax.f32 %v1895, 0.0
  %v2147 = vmax.f32 %v1898, 0.0
  %v2148 = vmax.f32 %v1903, 0.0
  %v2149 = vmax.f32 %v1906, 0.0
  %v2150 = vmax.f32 %v1911, 0.0
  %v2151 = vmax.f32 %v1914, 0.0
  %v2152 = vmax.f32 %v1919, 0.0
  %v2153 = vmax.f32 %v1922, 0.0
  %v2154 = vmax.f32 %v1927, 0.0
  %v2155 = vmax.f32 %v1930, 0.0
  %v2156 = vmax.f32 %v1935, 0.0
  %v2157 = vmax.f32 %v1938, 0.0
  %v2158 = vmax.f32 %v1943, 0.0
  %v2159 = vmax.f32 %v1946, 0.0
  %v2160 = vmax.f32 %v1951, 0.0
  %v2161 = vmax.f32 %v1954, 0.0
  %v2162 = vmax.f32 %v1959, 0.0
  %v2163 = vmax.f32 %v1962, 0.0
  %v2164 = vmax.f32 %v1967, 0.0
  %v2165 = vmax.f32 %v1970, 0.0
  %v2166 = vmax.f32 %v1975, 0.0
  %v2167 = vmax.f32 %v1978, 0.0
  %v2168 = vmax.f32 %v1983, 0.0
  %v2169 = vmax.f32 %v1986, 0.0
  %v2170 = vmax.f32 %v1991, 0.0
  %v2171 = vmax.f32 %v1994, 0.0
  %v2172 = vmax.f32 %v1999, 0.0
  %v2173 = vpack.c.bf16 %v2005, %v2004
  %v2174 = vpack.c.bf16 %v2007, %v2006
  %v2175 = vpack.c.bf16 %v2009, %v2008
  %v2176 = vpack.c.bf16 %v2011, %v2010
  %v2177 = vpack.c.bf16 %v2013, %v2012
  %v2178 = vpack.c.bf16 %v2015, %v2014
  %v2179 = vpack.c.bf16 %v2017, %v2016
  %v2180 = vpack.c.bf16 %v2019, %v2018
  %v2181 = vpack.c.bf16 %v2021, %v2020
  %v2182 = vpack.c.bf16 %v2023, %v2022
  %v2183 = vpack.c.bf16 %v2025, %v2024
  %v2184 = vpack.c.bf16 %v2027, %v2026
  %v2185 = vpack.c.bf16 %v2029, %v2028
  %v2186 = vpack.c.bf16 %v2031, %v2030
  %v2187 = vpack.c.bf16 %v2033, %v2032
  %v2188 = vpack.c.bf16 %v2035, %v2034
  %v2189 = vpack.c.bf16 %v2037, %v2036
  %v2190 = vpack.c.bf16 %v2039, %v2038
  %v2191 = vpack.c.bf16 %v2041, %v2040
  %v2192 = vpack.c.bf16 %v2043, %v2042
  %v2193 = vpack.c.bf16 %v2045, %v2044
  %v2194 = vpack.c.bf16 %v2047, %v2046
  %v2195 = vpack.c.bf16 %v2049, %v2048
  %v2196 = vpack.c.bf16 %v2051, %v2050
  %v2197 = vpack.c.bf16 %v2053, %v2052
  %v2198 = vpack.c.bf16 %v2055, %v2054
  %v2199 = vpack.c.bf16 %v2057, %v2056
  %v2200 = vpack.c.bf16 %v2059, %v2058
  %v2201 = vpack.c.bf16 %v2061, %v2060
  %v2202 = vpack.c.bf16 %v2063, %v2062
  %v2203 = vpack.c.bf16 %v2065, %v2064
  %v2204 = vpack.c.bf16 %v2067, %v2066
  %v2205 = vpack.c.bf16 %v2069, %v2068
  %v2206 = vpack.c.bf16 %v2071, %v2070
  %v2207 = vpack.c.bf16 %v2073, %v2072
  %v2208 = vpack.c.bf16 %v2075, %v2074
  %v2209 = vpack.c.bf16 %v2077, %v2076
  %v2210 = vpack.c.bf16 %v2079, %v2078
  %v2211 = vpack.c.bf16 %v2081, %v2080
  %v2212 = vpack.c.bf16 %v2083, %v2082
  %v2213 = vpack.c.bf16 %v2085, %v2084
  %v2214 = vpack.c.bf16 %v2087, %v2086
  %v2215 = vpack.c.bf16 %v2089, %v2088
  %v2216 = vpack.c.bf16 %v2091, %v2090
  %v2217 = vpack.c.bf16 %v2093, %v2092
  %v2218 = vpack.c.bf16 %v2095, %v2094
  %v2219 = vpack.c.bf16 %v2097, %v2096
  %v2220 = vpack.c.bf16 %v2099, %v2098
  %v2221 = vpack.c.bf16 %v2101, %v2100
  %v2222 = vpack.c.bf16 %v2103, %v2102
  %v2223 = vpack.c.bf16 %v2105, %v2104
  %v2224 = vpack.c.bf16 %v2107, %v2106
  %v2225 = vpack.c.bf16 %v2109, %v2108
  %v2226 = vpack.c.bf16 %v2111, %v2110
  %v2227 = vpack.c.bf16 %v2113, %v2112
  %v2228 = vpack.c.bf16 %v2115, %v2114
  %v2229 = vpack.c.bf16 %v2117, %v2116
  %v2230 = vpack.c.bf16 %v2119, %v2118
  %v2231 = vpack.c.bf16 %v2121, %v2120
  %v2232 = vpack.c.bf16 %v2123, %v2122
  %v2233 = vpack.c.bf16 %v2125, %v2124
  %v2234 = vpack.c.bf16 %v2127, %v2126
  %v2235 = vpack.c.bf16 %v2129, %v2128
  %v2236 = vpack.c.bf16 %v2131, %v2130
  %v2237 = vpack.c.bf16 %v2133, %v2132
  %v2238 = vpack.c.bf16 %v2135, %v2134
  %v2239 = vpack.c.bf16 %v2137, %v2136
  %v2240 = vpack.c.bf16 %v2139, %v2138
  %v2241 = vpack.c.bf16 %v2141, %v2140
  %v2242 = vpack.c.bf16 %v2143, %v2142
  %v2243 = vpack.c.bf16 %v2145, %v2144
  %v2244 = vpack.c.bf16 %v2147, %v2146
  %v2245 = vpack.c.bf16 %v2149, %v2148
  %v2246 = vpack.c.bf16 %v2151, %v2150
  %v2247 = vpack.c.bf16 %v2153, %v2152
  %v2248 = vpack.c.bf16 %v2155, %v2154
  %v2249 = vpack.c.bf16 %v2157, %v2156
  %v2250 = vpack.c.bf16 %v2159, %v2158
  %v2251 = vpack.c.bf16 %v2161, %v2160
  %v2252 = vpack.c.bf16 %v2163, %v2162
  %v2253 = vpack.c.bf16 %v2165, %v2164
  %v2254 = vpack.c.bf16 %v2167, %v2166
  %v2255 = vpack.c.bf16 %v2169, %v2168
  %v2256 = vpack.c.bf16 %v2171, %v2170
  %v2257 = vpack.c.bf16 %v2172, %v2172
  %v2343 = vunpack.c.l.b16 %v2173
  %v2344 = vunpack.c.h.b16 %v2173
  %v2345 = vunpack.c.l.b16 %v2174
  %v2346 = vunpack.c.h.b16 %v2174
  %v2347 = vunpack.c.l.b16 %v2175
  %v2348 = vunpack.c.h.b16 %v2175
  %v2349 = vunpack.c.l.b16 %v2176
  %v2350 = vunpack.c.h.b16 %v2176
  %v2351 = vunpack.c.l.b16 %v2177
  %v2352 = vunpack.c.h.b16 %v2177
  %v2353 = vunpack.c.l.b16 %v2178
  %v2354 = vunpack.c.h.b16 %v2178
  %v2355 = vunpack.c.l.b16 %v2179
  %v2356 = vunpack.c.h.b16 %v2179
  %v2357 = vunpack.c.l.b16 %v2180
  %v2358 = vunpack.c.h.b16 %v2180
  %v2359 = vunpack.c.l.b16 %v2181
  %v2360 = vunpack.c.h.b16 %v2181
  %v2361 = vunpack.c.l.b16 %v2182
  %v2362 = vunpack.c.h.b16 %v2182
  %v2363 = vunpack.c.l.b16 %v2183
  %v2364 = vunpack.c.h.b16 %v2183
  %v2365 = vunpack.c.l.b16 %v2184
  %v2366 = vunpack.c.h.b16 %v2184
  %v2367 = vunpack.c.l.b16 %v2185
  %v2368 = vunpack.c.h.b16 %v2185
  %v2369 = vunpack.c.l.b16 %v2186
  %v2370 = vunpack.c.h.b16 %v2186
  %v2371 = vunpack.c.l.b16 %v2187
  %v2372 = vunpack.c.h.b16 %v2187
  %v2373 = vunpack.c.l.b16 %v2188
  %v2374 = vunpack.c.h.b16 %v2188
  %v2375 = vunpack.c.l.b16 %v2189
  %v2376 = vunpack.c.h.b16 %v2189
  %v2377 = vunpack.c.l.b16 %v2190
  %v2378 = vunpack.c.h.b16 %v2190
  %v2379 = vunpack.c.l.b16 %v2191
  %v2380 = vunpack.c.h.b16 %v2191
  %v2381 = vunpack.c.l.b16 %v2192
  %v2382 = vunpack.c.h.b16 %v2192
  %v2383 = vunpack.c.l.b16 %v2193
  %v2384 = vunpack.c.h.b16 %v2193
  %v2385 = vunpack.c.l.b16 %v2194
  %v2386 = vunpack.c.h.b16 %v2194
  %v2387 = vunpack.c.l.b16 %v2195
  %v2388 = vunpack.c.h.b16 %v2195
  %v2389 = vunpack.c.l.b16 %v2196
  %v2390 = vunpack.c.h.b16 %v2196
  %v2391 = vunpack.c.l.b16 %v2197
  %v2392 = vunpack.c.h.b16 %v2197
  %v2393 = vunpack.c.l.b16 %v2198
  %v2394 = vunpack.c.h.b16 %v2198
  %v2395 = vunpack.c.l.b16 %v2199
  %v2396 = vunpack.c.h.b16 %v2199
  %v2397 = vunpack.c.l.b16 %v2200
  %v2398 = vunpack.c.h.b16 %v2200
  %v2399 = vunpack.c.l.b16 %v2201
  %v2400 = vunpack.c.h.b16 %v2201
  %v2401 = vunpack.c.l.b16 %v2202
  %v2402 = vunpack.c.h.b16 %v2202
  %v2403 = vunpack.c.l.b16 %v2203
  %v2404 = vunpack.c.h.b16 %v2203
  %v2405 = vunpack.c.l.b16 %v2204
  %v2406 = vunpack.c.h.b16 %v2204
  %v2407 = vunpack.c.l.b16 %v2205
  %v2408 = vunpack.c.h.b16 %v2205
  %v2409 = vunpack.c.l.b16 %v2206
  %v2410 = vunpack.c.h.b16 %v2206
  %v2411 = vunpack.c.l.b16 %v2207
  %v2412 = vunpack.c.h.b16 %v2207
  %v2413 = vunpack.c.l.b16 %v2208
  %v2414 = vunpack.c.h.b16 %v2208
  %v2415 = vunpack.c.l.b16 %v2209
  %v2416 = vunpack.c.h.b16 %v2209
  %v2417 = vunpack.c.l.b16 %v2210
  %v2418 = vunpack.c.h.b16 %v2210
  %v2419 = vunpack.c.l.b16 %v2211
  %v2420 = vunpack.c.h.b16 %v2211
  %v2421 = vunpack.c.l.b16 %v2212
  %v2422 = vunpack.c.h.b16 %v2212
  %v2423 = vunpack.c.l.b16 %v2213
  %v2424 = vunpack.c.h.b16 %v2213
  %v2425 = vunpack.c.l.b16 %v2214
  %v2426 = vunpack.c.h.b16 %v2214
  %v2427 = vunpack.c.l.b16 %v2215
  %v2428 = vunpack.c.h.b16 %v2215
  %v2429 = vunpack.c.l.b16 %v2216
  %v2430 = vunpack.c.h.b16 %v2216
  %v2431 = vunpack.c.l.b16 %v2217
  %v2432 = vunpack.c.h.b16 %v2217
  %v2433 = vunpack.c.l.b16 %v2218
  %v2434 = vunpack.c.h.b16 %v2218
  %v2435 = vunpack.c.l.b16 %v2219
  %v2436 = vunpack.c.h.b16 %v2219
  %v2437 = vunpack.c.l.b16 %v2220
  %v2438 = vunpack.c.h.b16 %v2220
  %v2439 = vunpack.c.l.b16 %v2221
  %v2440 = vunpack.c.h.b16 %v2221
  %v2441 = vunpack.c.l.b16 %v2222
  %v2442 = vunpack.c.h.b16 %v2222
  %v2443 = vunpack.c.l.b16 %v2223
  %v2444 = vunpack.c.h.b16 %v2223
  %v2445 = vunpack.c.l.b16 %v2224
  %v2446 = vunpack.c.h.b16 %v2224
  %v2447 = vunpack.c.l.b16 %v2225
  %v2448 = vunpack.c.h.b16 %v2225
  %v2449 = vunpack.c.l.b16 %v2226
  %v2450 = vunpack.c.h.b16 %v2226
  %v2451 = vunpack.c.l.b16 %v2227
  %v2452 = vunpack.c.h.b16 %v2227
  %v2453 = vunpack.c.l.b16 %v2228
  %v2454 = vunpack.c.h.b16 %v2228
  %v2455 = vunpack.c.l.b16 %v2229
  %v2456 = vunpack.c.h.b16 %v2229
  %v2457 = vunpack.c.l.b16 %v2230
  %v2458 = vunpack.c.h.b16 %v2230
  %v2459 = vunpack.c.l.b16 %v2231
  %v2460 = vunpack.c.h.b16 %v2231
  %v2461 = vunpack.c.l.b16 %v2232
  %v2462 = vunpack.c.h.b16 %v2232
  %v2463 = vunpack.c.l.b16 %v2233
  %v2464 = vunpack.c.h.b16 %v2233
  %v2465 = vunpack.c.l.b16 %v2234
  %v2466 = vunpack.c.h.b16 %v2234
  %v2467 = vunpack.c.l.b16 %v2235
  %v2468 = vunpack.c.h.b16 %v2235
  %v2469 = vunpack.c.l.b16 %v2236
  %v2470 = vunpack.c.h.b16 %v2236
  %v2471 = vunpack.c.l.b16 %v2237
  %v2472 = vunpack.c.h.b16 %v2237
  %v2473 = vunpack.c.l.b16 %v2238
  %v2474 = vunpack.c.h.b16 %v2238
  %v2475 = vunpack.c.l.b16 %v2239
  %v2476 = vunpack.c.h.b16 %v2239
  %v2477 = vunpack.c.l.b16 %v2240
  %v2478 = vunpack.c.h.b16 %v2240
  %v2479 = vunpack.c.l.b16 %v2241
  %v2480 = vunpack.c.h.b16 %v2241
  %v2481 = vunpack.c.l.b16 %v2242
  %v2482 = vunpack.c.h.b16 %v2242
  %v2483 = vunpack.c.l.b16 %v2243
  %v2484 = vunpack.c.h.b16 %v2243
  %v2485 = vunpack.c.l.b16 %v2244
  %v2486 = vunpack.c.h.b16 %v2244
  %v2487 = vunpack.c.l.b16 %v2245
  %v2488 = vunpack.c.h.b16 %v2245
  %v2489 = vunpack.c.l.b16 %v2246
  %v2490 = vunpack.c.h.b16 %v2246
  %v2491 = vunpack.c.l.b16 %v2247
  %v2492 = vunpack.c.h.b16 %v2247
  %v2493 = vunpack.c.l.b16 %v2248
  %v2494 = vunpack.c.h.b16 %v2248
  %v2495 = vunpack.c.l.b16 %v2249
  %v2496 = vunpack.c.h.b16 %v2249
  %v2497 = vunpack.c.l.b16 %v2250
  %v2498 = vunpack.c.h.b16 %v2250
  %v2499 = vunpack.c.l.b16 %v2251
  %v2500 = vunpack.c.h.b16 %v2251
  %v2501 = vunpack.c.l.b16 %v2252
  %v2502 = vunpack.c.h.b16 %v2252
  %v2503 = vunpack.c.l.b16 %v2253
  %v2504 = vunpack.c.h.b16 %v2253
  %v2505 = vunpack.c.l.b16 %v2254
  %v2506 = vunpack.c.h.b16 %v2254
  %v2507 = vunpack.c.l.b16 %v2255
  %v2508 = vunpack.c.h.b16 %v2255
  %v2509 = vunpack.c.l.b16 %v2256
  %v2510 = vunpack.c.h.b16 %v2256
  %v2511 = vunpack.c.l.b16 %v2257
  %v2512 = vpack.c.b16 %v2343, %v2343
  %v2513 = vpack.c.b16 %v2344, %v2344
  %v2514 = vpack.c.b16 %v2345, %v2345
  %v2515 = vpack.c.b16 %v2346, %v2346
  %v2516 = vpack.c.b16 %v2347, %v2347
  %v2517 = vpack.c.b16 %v2348, %v2348
  %v2518 = vpack.c.b16 %v2349, %v2349
  %v2519 = vpack.c.b16 %v2350, %v2350
  %v2520 = vpack.c.b16 %v2351, %v2351
  %v2521 = vpack.c.b16 %v2352, %v2352
  %v2522 = vpack.c.b16 %v2353, %v2353
  %v2523 = vpack.c.b16 %v2354, %v2354
  %v2524 = vpack.c.b16 %v2355, %v2355
  %v2525 = vpack.c.b16 %v2356, %v2356
  %v2526 = vpack.c.b16 %v2357, %v2357
  %v2527 = vpack.c.b16 %v2358, %v2358
  %v2528 = vpack.c.b16 %v2359, %v2359
  %v2529 = vpack.c.b16 %v2360, %v2360
  %v2530 = vpack.c.b16 %v2361, %v2361
  %v2531 = vpack.c.b16 %v2362, %v2362
  %v2532 = vpack.c.b16 %v2363, %v2363
  %v2533 = vpack.c.b16 %v2364, %v2364
  %v2534 = vpack.c.b16 %v2365, %v2365
  %v2535 = vpack.c.b16 %v2366, %v2366
  %v2536 = vpack.c.b16 %v2367, %v2367
  %v2537 = vpack.c.b16 %v2368, %v2368
  %v2538 = vpack.c.b16 %v2369, %v2369
  %v2539 = vpack.c.b16 %v2370, %v2370
  %v2540 = vpack.c.b16 %v2371, %v2371
  %v2541 = vpack.c.b16 %v2372, %v2372
  %v2542 = vpack.c.b16 %v2373, %v2373
  %v2543 = vpack.c.b16 %v2374, %v2374
  %v2544 = vpack.c.b16 %v2375, %v2375
  %v2545 = vpack.c.b16 %v2376, %v2376
  %v2546 = vpack.c.b16 %v2377, %v2377
  %v2547 = vpack.c.b16 %v2378, %v2378
  %v2548 = vpack.c.b16 %v2379, %v2379
  %v2549 = vpack.c.b16 %v2380, %v2380
  %v2550 = vpack.c.b16 %v2381, %v2381
  %v2551 = vpack.c.b16 %v2382, %v2382
  %v2552 = vpack.c.b16 %v2383, %v2383
  %v2553 = vpack.c.b16 %v2384, %v2384
  %v2554 = vpack.c.b16 %v2385, %v2385
  %v2555 = vpack.c.b16 %v2386, %v2386
  %v2556 = vpack.c.b16 %v2387, %v2387
  %v2557 = vpack.c.b16 %v2388, %v2388
  %v2558 = vpack.c.b16 %v2389, %v2389
  %v2559 = vpack.c.b16 %v2390, %v2390
  %v2560 = vpack.c.b16 %v2391, %v2391
  %v2561 = vpack.c.b16 %v2392, %v2392
  %v2562 = vpack.c.b16 %v2393, %v2393
  %v2563 = vpack.c.b16 %v2394, %v2394
  %v2564 = vpack.c.b16 %v2395, %v2395
  %v2565 = vpack.c.b16 %v2396, %v2396
  %v2566 = vpack.c.b16 %v2397, %v2397
  %v2567 = vpack.c.b16 %v2398, %v2398
  %v2568 = vpack.c.b16 %v2399, %v2399
  %v2569 = vpack.c.b16 %v2400, %v2400
  %v2570 = vpack.c.b16 %v2401, %v2401
  %v2571 = vpack.c.b16 %v2402, %v2402
  %v2572 = vpack.c.b16 %v2403, %v2403
  %v2573 = vpack.c.b16 %v2404, %v2404
  %v2574 = vpack.c.b16 %v2405, %v2405
  %v2575 = vpack.c.b16 %v2406, %v2406
  %v2576 = vpack.c.b16 %v2407, %v2407
  %v2577 = vpack.c.b16 %v2408, %v2408
  %v2578 = vpack.c.b16 %v2409, %v2409
  %v2579 = vpack.c.b16 %v2410, %v2410
  %v2580 = vpack.c.b16 %v2411, %v2411
  %v2581 = vpack.c.b16 %v2412, %v2412
  %v2582 = vpack.c.b16 %v2413, %v2413
  %v2583 = vpack.c.b16 %v2414, %v2414
  %v2584 = vpack.c.b16 %v2415, %v2415
  %v2585 = vpack.c.b16 %v2416, %v2416
  %v2586 = vpack.c.b16 %v2417, %v2417
  %v2587 = vpack.c.b16 %v2418, %v2418
  %v2588 = vpack.c.b16 %v2419, %v2419
  %v2589 = vpack.c.b16 %v2420, %v2420
  %v2590 = vpack.c.b16 %v2421, %v2421
  %v2591 = vpack.c.b16 %v2422, %v2422
  %v2592 = vpack.c.b16 %v2423, %v2423
  %v2593 = vpack.c.b16 %v2424, %v2424
  %v2594 = vpack.c.b16 %v2425, %v2425
  %v2595 = vpack.c.b16 %v2426, %v2426
  %v2596 = vpack.c.b16 %v2427, %v2427
  %v2597 = vpack.c.b16 %v2428, %v2428
  %v2598 = vpack.c.b16 %v2429, %v2429
  %v2599 = vpack.c.b16 %v2430, %v2430
  %v2600 = vpack.c.b16 %v2431, %v2431
  %v2601 = vpack.c.b16 %v2432, %v2432
  %v2602 = vpack.c.b16 %v2433, %v2433
  %v2603 = vpack.c.b16 %v2434, %v2434
  %v2604 = vpack.c.b16 %v2435, %v2435
  %v2605 = vpack.c.b16 %v2436, %v2436
  %v2606 = vpack.c.b16 %v2437, %v2437
  %v2607 = vpack.c.b16 %v2438, %v2438
  %v2608 = vpack.c.b16 %v2439, %v2439
  %v2609 = vpack.c.b16 %v2440, %v2440
  %v2610 = vpack.c.b16 %v2441, %v2441
  %v2611 = vpack.c.b16 %v2442, %v2442
  %v2612 = vpack.c.b16 %v2443, %v2443
  %v2613 = vpack.c.b16 %v2444, %v2444
  %v2614 = vpack.c.b16 %v2445, %v2445
  %v2615 = vpack.c.b16 %v2446, %v2446
  %v2616 = vpack.c.b16 %v2447, %v2447
  %v2617 = vpack.c.b16 %v2448, %v2448
  %v2618 = vpack.c.b16 %v2449, %v2449
  %v2619 = vpack.c.b16 %v2450, %v2450
  %v2620 = vpack.c.b16 %v2451, %v2451
  %v2621 = vpack.c.b16 %v2452, %v2452
  %v2622 = vpack.c.b16 %v2453, %v2453
  %v2623 = vpack.c.b16 %v2454, %v2454
  %v2624 = vpack.c.b16 %v2455, %v2455
  %v2625 = vpack.c.b16 %v2456, %v2456
  %v2626 = vpack.c.b16 %v2457, %v2457
  %v2627 = vpack.c.b16 %v2458, %v2458
  %v2628 = vpack.c.b16 %v2459, %v2459
  %v2629 = vpack.c.b16 %v2460, %v2460
  %v2630 = vpack.c.b16 %v2461, %v2461
  %v2631 = vpack.c.b16 %v2462, %v2462
  %v2632 = vpack.c.b16 %v2463, %v2463
  %v2633 = vpack.c.b16 %v2464, %v2464
  %v2634 = vpack.c.b16 %v2465, %v2465
  %v2635 = vpack.c.b16 %v2466, %v2466
  %v2636 = vpack.c.b16 %v2467, %v2467
  %v2637 = vpack.c.b16 %v2468, %v2468
  %v2638 = vpack.c.b16 %v2469, %v2469
  %v2639 = vpack.c.b16 %v2470, %v2470
  %v2640 = vpack.c.b16 %v2471, %v2471
  %v2641 = vpack.c.b16 %v2472, %v2472
  %v2642 = vpack.c.b16 %v2473, %v2473
  %v2643 = vpack.c.b16 %v2474, %v2474
  %v2644 = vpack.c.b16 %v2475, %v2475
  %v2645 = vpack.c.b16 %v2476, %v2476
  %v2646 = vpack.c.b16 %v2477, %v2477
  %v2647 = vpack.c.b16 %v2478, %v2478
  %v2648 = vpack.c.b16 %v2479, %v2479
  %v2649 = vpack.c.b16 %v2480, %v2480
  %v2650 = vpack.c.b16 %v2481, %v2481
  %v2651 = vpack.c.b16 %v2482, %v2482
  %v2652 = vpack.c.b16 %v2483, %v2483
  %v2653 = vpack.c.b16 %v2484, %v2484
  %v2654 = vpack.c.b16 %v2485, %v2485
  %v2655 = vpack.c.b16 %v2486, %v2486
  %v2656 = vpack.c.b16 %v2487, %v2487
  %v2657 = vpack.c.b16 %v2488, %v2488
  %v2658 = vpack.c.b16 %v2489, %v2489
  %v2659 = vpack.c.b16 %v2490, %v2490
  %v2660 = vpack.c.b16 %v2491, %v2491
  %v2661 = vpack.c.b16 %v2492, %v2492
  %v2662 = vpack.c.b16 %v2493, %v2493
  %v2663 = vpack.c.b16 %v2494, %v2494
  %v2664 = vpack.c.b16 %v2495, %v2495
  %v2665 = vpack.c.b16 %v2496, %v2496
  %v2666 = vpack.c.b16 %v2497, %v2497
  %v2667 = vpack.c.b16 %v2498, %v2498
  %v2668 = vpack.c.b16 %v2499, %v2499
  %v2669 = vpack.c.b16 %v2500, %v2500
  %v2670 = vpack.c.b16 %v2501, %v2501
  %v2671 = vpack.c.b16 %v2502, %v2502
  %v2672 = vpack.c.b16 %v2503, %v2503
  %v2673 = vpack.c.b16 %v2504, %v2504
  %v2674 = vpack.c.b16 %v2505, %v2505
  %v2675 = vpack.c.b16 %v2506, %v2506
  %v2676 = vpack.c.b16 %v2507, %v2507
  %v2677 = vpack.c.b16 %v2508, %v2508
  %v2678 = vpack.c.b16 %v2509, %v2509
  %v2679 = vpack.c.b16 %v2510, %v2510
  %v2680 = vpack.c.b16 %v2511, %v2511
  %2850 = vst [vmem:[%s3] sm:$0xf] %v2512
  %2851 = vst [vmem:[%s3 + $0x4] sm:$0xf] %v2513
  %2852 = vst [vmem:[%s3 + $0x8] sm:$0xf] %v2514
  %2853 = vst [vmem:[%s3 + $0xc] sm:$0xf] %v2515
  %2854 = vst [vmem:[%s3 + $0x10] sm:$0xf] %v2516
  %2855 = vst [vmem:[%s3 + $0x14] sm:$0xf] %v2517
  %2856 = vst [vmem:[%s3 + $0x18] sm:$0xf] %v2518
  %2857 = vst [vmem:[%s3 + $0x1c] sm:$0xf] %v2519
  %2858 = vst [vmem:[%s3 + $0x20] sm:$0xf] %v2520
  %2859 = vst [vmem:[%s3 + $0x24] sm:$0xf] %v2521
  %2860 = vst [vmem:[%s3 + $0x28] sm:$0xf] %v2522
  %2861 = vst [vmem:[%s3 + $0x2c] sm:$0xf] %v2523
  %2862 = vst [vmem:[%s3 + $0x30] sm:$0xf] %v2524
  %2863 = vst [vmem:[%s3 + $0x34] sm:$0xf] %v2525
  %2864 = vst [vmem:[%s3 + $0x38] sm:$0xf] %v2526
  %2865 = vst [vmem:[%s3 + $0x3c] sm:$0xf] %v2527
  %2866 = vst [vmem:[%s3 + $0x40] sm:$0xf] %v2528
  %2867 = vst [vmem:[%s3 + $0x44] sm:$0xf] %v2529
  %2868 = vst [vmem:[%s3 + $0x48] sm:$0xf] %v2530
  %2869 = vst [vmem:[%s3 + $0x4c] sm:$0xf] %v2531
  %2870 = vst [vmem:[%s3 + $0x50] sm:$0xf] %v2532
  %2871 = vst [vmem:[%s3 + $0x54] sm:$0xf] %v2533
  %2872 = vst [vmem:[%s3 + $0x58] sm:$0xf] %v2534
  %2873 = vst [vmem:[%s3 + $0x5c] sm:$0xf] %v2535
  %2874 = vst [vmem:[%s3 + $0x60] sm:$0xf] %v2536
  %2875 = vst [vmem:[%s3 + $0x64] sm:$0xf] %v2537
  %2876 = vst [vmem:[%s3 + $0x68] sm:$0xf] %v2538
  %2877 = vst [vmem:[%s3 + $0x6c] sm:$0xf] %v2539
  %2878 = vst [vmem:[%s3 + $0x70] sm:$0xf] %v2540
  %2879 = vst [vmem:[%s3 + $0x74] sm:$0xf] %v2541
  %2880 = vst [vmem:[%s3 + $0x78] sm:$0xf] %v2542
  %2881 = vst [vmem:[%s3 + $0x7c] sm:$0xf] %v2543
  %2882 = vst [vmem:[%s3 + $0x80] sm:$0xf] %v2544
  %2883 = vst [vmem:[%s3 + $0x84] sm:$0xf] %v2545
  %2884 = vst [vmem:[%s3 + $0x88] sm:$0xf] %v2546
  %2885 = vst [vmem:[%s3 + $0x8c] sm:$0xf] %v2547
  %2886 = vst [vmem:[%s3 + $0x90] sm:$0xf] %v2548
  %2887 = vst [vmem:[%s3 + $0x94] sm:$0xf] %v2549
  %2888 = vst [vmem:[%s3 + $0x98] sm:$0xf] %v2550
  %2889 = vst [vmem:[%s3 + $0x9c] sm:$0xf] %v2551
  %2890 = vst [vmem:[%s3 + $0xa0] sm:$0xf] %v2552
  %2891 = vst [vmem:[%s3 + $0xa4] sm:$0xf] %v2553
  %2892 = vst [vmem:[%s3 + $0xa8] sm:$0xf] %v2554
  %2893 = vst [vmem:[%s3 + $0xac] sm:$0xf] %v2555
  %2894 = vst [vmem:[%s3 + $0xb0] sm:$0xf] %v2556
  %2895 = vst [vmem:[%s3 + $0xb4] sm:$0xf] %v2557
  %2896 = vst [vmem:[%s3 + $0xb8] sm:$0xf] %v2558
  %2897 = vst [vmem:[%s3 + $0xbc] sm:$0xf] %v2559
  %2898 = vst [vmem:[%s3 + $0xc0] sm:$0xf] %v2560
  %2899 = vst [vmem:[%s3 + $0xc4] sm:$0xf] %v2561
  %2900 = vst [vmem:[%s3 + $0xc8] sm:$0xf] %v2562
  %2901 = vst [vmem:[%s3 + $0xcc] sm:$0xf] %v2563
  %2902 = vst [vmem:[%s3 + $0xd0] sm:$0xf] %v2564
  %2903 = vst [vmem:[%s3 + $0xd4] sm:$0xf] %v2565
  %2904 = vst [vmem:[%s3 + $0xd8] sm:$0xf] %v2566
  %2905 = vst [vmem:[%s3 + $0xdc] sm:$0xf] %v2567
  %2906 = vst [vmem:[%s3 + $0xe0] sm:$0xf] %v2568
  %2907 = vst [vmem:[%s3 + $0xe4] sm:$0xf] %v2569
  %2908 = vst [vmem:[%s3 + $0xe8] sm:$0xf] %v2570
  %2909 = vst [vmem:[%s3 + $0xec] sm:$0xf] %v2571
  %2910 = vst [vmem:[%s3 + $0xf0] sm:$0xf] %v2572
  %2911 = vst [vmem:[%s3 + $0xf4] sm:$0xf] %v2573
  %2912 = vst [vmem:[%s3 + $0xf8] sm:$0xf] %v2574
  %2913 = vst [vmem:[%s3 + $0xfc] sm:$0xf] %v2575
  %2914 = vst [vmem:[%s3 + $0x100] sm:$0xf] %v2576
  %2915 = vst [vmem:[%s3 + $0x104] sm:$0xf] %v2577
  %2916 = vst [vmem:[%s3 + $0x108] sm:$0xf] %v2578
  %2917 = vst [vmem:[%s3 + $0x10c] sm:$0xf] %v2579
  %2918 = vst [vmem:[%s3 + $0x110] sm:$0xf] %v2580
  %2919 = vst [vmem:[%s3 + $0x114] sm:$0xf] %v2581
  %2920 = vst [vmem:[%s3 + $0x118] sm:$0xf] %v2582
  %2921 = vst [vmem:[%s3 + $0x11c] sm:$0xf] %v2583
  %2922 = vst [vmem:[%s3 + $0x120] sm:$0xf] %v2584
  %2923 = vst [vmem:[%s3 + $0x124] sm:$0xf] %v2585
  %2924 = vst [vmem:[%s3 + $0x128] sm:$0xf] %v2586
  %2925 = vst [vmem:[%s3 + $0x12c] sm:$0xf] %v2587
  %2926 = vst [vmem:[%s3 + $0x130] sm:$0xf] %v2588
  %2927 = vst [vmem:[%s3 + $0x134] sm:$0xf] %v2589
  %2928 = vst [vmem:[%s3 + $0x138] sm:$0xf] %v2590
  %2929 = vst [vmem:[%s3 + $0x13c] sm:$0xf] %v2591
  %2930 = vst [vmem:[%s3 + $0x140] sm:$0xf] %v2592
  %2931 = vst [vmem:[%s3 + $0x144] sm:$0xf] %v2593
  %2932 = vst [vmem:[%s3 + $0x148] sm:$0xf] %v2594
  %2933 = vst [vmem:[%s3 + $0x14c] sm:$0xf] %v2595
  %2934 = vst [vmem:[%s3 + $0x150] sm:$0xf] %v2596
  %2935 = vst [vmem:[%s3 + $0x154] sm:$0xf] %v2597
  %2936 = vst [vmem:[%s3 + $0x158] sm:$0xf] %v2598
  %2937 = vst [vmem:[%s3 + $0x15c] sm:$0xf] %v2599
  %2938 = vst [vmem:[%s3 + $0x160] sm:$0xf] %v2600
  %2939 = vst [vmem:[%s3 + $0x164] sm:$0xf] %v2601
  %2940 = vst [vmem:[%s3 + $0x168] sm:$0xf] %v2602
  %2941 = vst [vmem:[%s3 + $0x16c] sm:$0xf] %v2603
  %2942 = vst [vmem:[%s3 + $0x170] sm:$0xf] %v2604
  %2943 = vst [vmem:[%s3 + $0x174] sm:$0xf] %v2605
  %2944 = vst [vmem:[%s3 + $0x178] sm:$0xf] %v2606
  %2945 = vst [vmem:[%s3 + $0x17c] sm:$0xf] %v2607
  %2946 = vst [vmem:[%s3 + $0x180] sm:$0xf] %v2608
  %2947 = vst [vmem:[%s3 + $0x184] sm:$0xf] %v2609
  %2948 = vst [vmem:[%s3 + $0x188] sm:$0xf] %v2610
  %2949 = vst [vmem:[%s3 + $0x18c] sm:$0xf] %v2611
  %2950 = vst [vmem:[%s3 + $0x190] sm:$0xf] %v2612
  %2951 = vst [vmem:[%s3 + $0x194] sm:$0xf] %v2613
  %2952 = vst [vmem:[%s3 + $0x198] sm:$0xf] %v2614
  %2953 = vst [vmem:[%s3 + $0x19c] sm:$0xf] %v2615
  %2954 = vst [vmem:[%s3 + $0x1a0] sm:$0xf] %v2616
  %2955 = vst [vmem:[%s3 + $0x1a4] sm:$0xf] %v2617
  %2956 = vst [vmem:[%s3 + $0x1a8] sm:$0xf] %v2618
  %2957 = vst [vmem:[%s3 + $0x1ac] sm:$0xf] %v2619
  %2958 = vst [vmem:[%s3 + $0x1b0] sm:$0xf] %v2620
  %2959 = vst [vmem:[%s3 + $0x1b4] sm:$0xf] %v2621
  %2960 = vst [vmem:[%s3 + $0x1b8] sm:$0xf] %v2622
  %2961 = vst [vmem:[%s3 + $0x1bc] sm:$0xf] %v2623
  %2962 = vst [vmem:[%s3 + $0x1c0] sm:$0xf] %v2624
  %2963 = vst [vmem:[%s3 + $0x1c4] sm:$0xf] %v2625
  %2964 = vst [vmem:[%s3 + $0x1c8] sm:$0xf] %v2626
  %2965 = vst [vmem:[%s3 + $0x1cc] sm:$0xf] %v2627
  %2966 = vst [vmem:[%s3 + $0x1d0] sm:$0xf] %v2628
  %2967 = vst [vmem:[%s3 + $0x1d4] sm:$0xf] %v2629
  %2968 = vst [vmem:[%s3 + $0x1d8] sm:$0xf] %v2630
  %2969 = vst [vmem:[%s3 + $0x1dc] sm:$0xf] %v2631
  %2970 = vst [vmem:[%s3 + $0x1e0] sm:$0xf] %v2632
  %2971 = vst [vmem:[%s3 + $0x1e4] sm:$0xf] %v2633
  %2972 = vst [vmem:[%s3 + $0x1e8] sm:$0xf] %v2634
  %2973 = vst [vmem:[%s3 + $0x1ec] sm:$0xf] %v2635
  %2974 = vst [vmem:[%s3 + $0x1f0] sm:$0xf] %v2636
  %2975 = vst [vmem:[%s3 + $0x1f4] sm:$0xf] %v2637
  %2976 = vst [vmem:[%s3 + $0x1f8] sm:$0xf] %v2638
  %2977 = vst [vmem:[%s3 + $0x1fc] sm:$0xf] %v2639
  %2978 = vst [vmem:[%s3 + $0x200] sm:$0xf] %v2640
  %2979 = vst [vmem:[%s3 + $0x204] sm:$0xf] %v2641
  %2980 = vst [vmem:[%s3 + $0x208] sm:$0xf] %v2642
  %2981 = vst [vmem:[%s3 + $0x20c] sm:$0xf] %v2643
  %2982 = vst [vmem:[%s3 + $0x210] sm:$0xf] %v2644
  %2983 = vst [vmem:[%s3 + $0x214] sm:$0xf] %v2645
  %2984 = vst [vmem:[%s3 + $0x218] sm:$0xf] %v2646
  %2985 = vst [vmem:[%s3 + $0x21c] sm:$0xf] %v2647
  %2986 = vst [vmem:[%s3 + $0x220] sm:$0xf] %v2648
  %2987 = vst [vmem:[%s3 + $0x224] sm:$0xf] %v2649
  %2988 = vst [vmem:[%s3 + $0x228] sm:$0xf] %v2650
  %2989 = vst [vmem:[%s3 + $0x22c] sm:$0xf] %v2651
  %2990 = vst [vmem:[%s3 + $0x230] sm:$0xf] %v2652
  %2991 = vst [vmem:[%s3 + $0x234] sm:$0xf] %v2653
  %2992 = vst [vmem:[%s3 + $0x238] sm:$0xf] %v2654
  %2993 = vst [vmem:[%s3 + $0x23c] sm:$0xf] %v2655
  %2994 = vst [vmem:[%s3 + $0x240] sm:$0xf] %v2656
  %2995 = vst [vmem:[%s3 + $0x244] sm:$0xf] %v2657
  %2996 = vst [vmem:[%s3 + $0x248] sm:$0xf] %v2658
  %2997 = vst [vmem:[%s3 + $0x24c] sm:$0xf] %v2659
  %2998 = vst [vmem:[%s3 + $0x250] sm:$0xf] %v2660
  %2999 = vst [vmem:[%s3 + $0x254] sm:$0xf] %v2661
  %3000 = vst [vmem:[%s3 + $0x258] sm:$0xf] %v2662
  %3001 = vst [vmem:[%s3 + $0x25c] sm:$0xf] %v2663
  %3002 = vst [vmem:[%s3 + $0x260] sm:$0xf] %v2664
  %3003 = vst [vmem:[%s3 + $0x264] sm:$0xf] %v2665
  %3004 = vst [vmem:[%s3 + $0x268] sm:$0xf] %v2666
  %3005 = vst [vmem:[%s3 + $0x26c] sm:$0xf] %v2667
  %3006 = vst [vmem:[%s3 + $0x270] sm:$0xf] %v2668
  %3007 = vst [vmem:[%s3 + $0x274] sm:$0xf] %v2669
  %3008 = vst [vmem:[%s3 + $0x278] sm:$0xf] %v2670
  %3009 = vst [vmem:[%s3 + $0x27c] sm:$0xf] %v2671
  %3010 = vst [vmem:[%s3 + $0x280] sm:$0xf] %v2672
  %3011 = vst [vmem:[%s3 + $0x284] sm:$0xf] %v2673
  %3012 = vst [vmem:[%s3 + $0x288] sm:$0xf] %v2674
  %3013 = vst [vmem:[%s3 + $0x28c] sm:$0xf] %v2675
  %3014 = vst [vmem:[%s3 + $0x290] sm:$0xf] %v2676
  %3015 = vst [vmem:[%s3 + $0x294] sm:$0xf] %v2677
  %3016 = vst [vmem:[%s3 + $0x298] sm:$0xf] %v2678
  %3017 = vst [vmem:[%s3 + $0x29c] sm:$0xf] %v2679
  %3018 = vst [vmem:[%s3 + $0x2a0] sm:$0xf] %v2680
  // Predicated region
  $region14: #{base_model_forward.4} parent=0 // pred_check
    _
  $region15: #{base_model_forward.4} parent=0 // pred_check_branch
    %3020 = sbr.rel (0) target = $region17
  $region16: #{base_model_forward.4} parent=0 // pred_region
    _
  $region17: #{base_model_forward.4} parent=0 // pred_fallthru
    _
  // Predicated region
  $region18: #{base_model_forward.4} parent=0 // pred_check
    _
  $region19: #{base_model_forward.4} parent=0 // pred_check_branch
    %3022 = sbr.rel (0) target = $region21
  $region20: #{base_model_forward.4} parent=0 // pred_region
    _
  $region21: #{base_model_forward.4} parent=0 // pred_fallthru
    _

// kernel: base_model_forward.5
$region0: #{base_model_forward.5}
  #allocation0 [shape = 'u32[]', space=smem, size = 0x4, offset = 0x4, fixed_abs, tag = 'smem constant byte address 0x4 - core index']
  #allocation1 [shape = 'u32[144,128]{1,0:T(1,128)}', space=vmem, size = 0x12000, scoped, tag = 'internal scratch']
  %s0 = inlined_call_operand.vmem [shape: bf16[2,684,128], index: 0, kind: input, shape index: {}]
  %s1 = inlined_call_operand.vmem [shape: bf16[1152,128], index: 1, kind: input, shape index: {}]
  %s2 = inlined_call_operand.vmem [shape: f32[1,128], index: 2, kind: input, shape index: {}]
  %s3 = inlined_call_operand.vmem [shape: bf16[2,624,128], index: 3, kind: output, shape index: {}]
  %s4 = sld [smem:[#allocation0]]
  $region45: #{base_model_forward.5} parent=0
    _
  %s6 = ssub.s32 1, %s4
  %s7 = scalar_select 0, %s6, %s4
  loop: start=0, step=1, limit=4
  $region2: #{base_model_forward.5} parent=0 // loop_pre_header
    _
  $region3: #{base_model_forward.5} parent=0 // loop_header
    %s9 = sphi 0, %s13
    %p10 = scmp.ge.s32.totalorder %s9, 4
    %s19 = sphi 0, %s21
    %s22 = sphi 0, %s19
    %s23 = sphi 0, %s22
    %s39 = sphi 0, %s23
    %s43 = sphi 0, %s43
    %s45 = sphi 0, %s43
    %s46 = sphi 0, %s45
    %s60 = sphi 0, %s46
    %s64 = sphi 0, %s64
    %s66 = sphi 0, %s64
    %s67 = sphi 0, %s66
    %s81 = sphi 0, %s67
    %s87 = sphi 0, %s89
    %s90 = sphi 0, %s87
    %s91 = sphi 0, %s90
    %s107 = sphi 0, %s91
  $region4: #{base_model_forward.5} parent=0 // loop_header_branch
    %12 = sbr.rel (%p10) target = $region8
  $region5: #{base_model_forward.5} parent=0 // loop_body
    %s14 = ssub.s32 %s9, 1
    %s15 = ssub.s32 %s9, 2
    %s16 = sadd.s32 %s9, 1
    %s17 = ssub.s32 %s9, %s16
    %p18 = scmp.eq.s32.totalorder %s17, 0
    %s20 = sadd.s32 %s19, 1
    %s21 = scalar_select %p18, %s19, %s20
    %p24 = pneg %p18
    %p25 = scmp.eq.s32.totalorder %s9, 1
    %p26 = por %p24, %p25
    %p27 = scmp.ne.s32.totalorder %s19, %s22
    %p28 = scmp.eq.s32.totalorder %s9, 0
    %p29 = por %p27, %p28
    %p30 = scmp.ne.s32.totalorder %s19, %s22
    %p31 = scmp.eq.s32.totalorder %s14, 1
    %p32 = por %p30, %p31
    %p33 = scmp.ne.s32.totalorder %s22, %s23
    %p34 = scmp.eq.s32.totalorder %s14, 0
    %p35 = por %p33, %p34
    %p36 = scmp.ne.s32.totalorder %s22, %s23
    %p37 = scmp.eq.s32.totalorder %s15, 1
    %p38 = por %p36, %p37
    %p40 = scmp.ne.s32.totalorder %s23, %s39
    %p41 = scmp.eq.s32.totalorder %s15, 0
    %p42 = por %p40, %p41
    %s44 = sadd.s32 %s43, 1
    %p47 = scmp.eq.s32.totalorder %s9, 1
    %p48 = scmp.ne.s32.totalorder %s43, %s45
    %p49 = scmp.eq.s32.totalorder %s9, 0
    %p50 = por %p48, %p49
    %p51 = scmp.ne.s32.totalorder %s43, %s45
    %p52 = scmp.eq.s32.totalorder %s14, 1
    %p53 = por %p51, %p52
    %p54 = scmp.ne.s32.totalorder %s45, %s46
    %p55 = scmp.eq.s32.totalorder %s14, 0
    %p56 = por %p54, %p55
    %p57 = scmp.ne.s32.totalorder %s45, %s46
    %p58 = scmp.eq.s32.totalorder %s15, 1
    %p59 = por %p57, %p58
    %p61 = scmp.ne.s32.totalorder %s46, %s60
    %p62 = scmp.eq.s32.totalorder %s15, 0
    %p63 = por %p61, %p62
    %s65 = sadd.s32 %s64, 1
    %p68 = scmp.eq.s32.totalorder %s9, 1
    %p69 = scmp.ne.s32.totalorder %s64, %s66
    %p70 = scmp.eq.s32.totalorder %s9, 0
    %p71 = por %p69, %p70
    %p72 = scmp.ne.s32.totalorder %s64, %s66
    %p73 = scmp.eq.s32.totalorder %s14, 1
    %p74 = por %p72, %p73
    %p75 = scmp.ne.s32.totalorder %s66, %s67
    %p76 = scmp.eq.s32.totalorder %s14, 0
    %p77 = por %p75, %p76
    %p78 = scmp.ne.s32.totalorder %s66, %s67
    %p79 = scmp.eq.s32.totalorder %s15, 1
    %p80 = por %p78, %p79
    %p82 = scmp.ne.s32.totalorder %s67, %s81
    %p83 = scmp.eq.s32.totalorder %s15, 0
    %p84 = por %p82, %p83
    %s85 = ssub.s32 %s9, %s16
    %p86 = scmp.eq.s32.totalorder %s85, 0
    %s88 = sadd.s32 %s87, 1
    %s89 = scalar_select %p86, %s87, %s88
    %p92 = pneg %p86
    %p93 = scmp.eq.s32.totalorder %s9, 1
    %p94 = por %p92, %p93
    %p95 = scmp.ne.s32.totalorder %s87, %s90
    %p96 = scmp.eq.s32.totalorder %s9, 0
    %p97 = por %p95, %p96
    %p98 = scmp.ne.s32.totalorder %s87, %s90
    %p99 = scmp.eq.s32.totalorder %s14, 1
    %p100 = por %p98, %p99
    %p101 = scmp.ne.s32.totalorder %s90, %s91
    %p102 = scmp.eq.s32.totalorder %s14, 0
    %p103 = por %p101, %p102
    %p104 = scmp.ne.s32.totalorder %s90, %s91
    %p105 = scmp.eq.s32.totalorder %s15, 1
    %p106 = por %p104, %p105
    %p108 = scmp.ne.s32.totalorder %s91, %s107
    %p109 = scmp.eq.s32.totalorder %s15, 0
    %p110 = por %p108, %p109
    %p111 = scmp.le.s32.totalorder 1, %s9
    %p112 = scmp.lt.s32.totalorder %s9, 3
    %p113 = pnand %p111, %p112
    %p114 = pneg %p113
    // Predicated region
    $region9: #{base_model_forward.5} parent=5 // pred_check
      _
    $region10: #{base_model_forward.5} parent=5 // pred_check_branch
      %116 = sbr.rel (%p113) target = $region12
    $region11: #{base_model_forward.5} parent=5 // pred_region
      %s117 = ssub.s32 %s9, 1
      // Predicated region
      $region13: #{base_model_forward.5} parent=11 // pred_check
        %p118 = pneg %p56
      $region14: #{base_model_forward.5} parent=11 // pred_check_branch
        %120 = sbr.rel (%p118) target = $region16
      $region15: #{base_model_forward.5} parent=11 // pred_region
        _
      $region16: #{base_model_forward.5} parent=11 // pred_fallthru
        _
      // Predicated region
      $region17: #{base_model_forward.5} parent=11 // pred_check
        %p121 = pneg %p77
      $region18: #{base_model_forward.5} parent=11 // pred_check_branch
        %123 = sbr.rel (%p121) target = $region20
      $region19: #{base_model_forward.5} parent=11 // pred_region
        _
      $region20: #{base_model_forward.5} parent=11 // pred_fallthru
        _
    $region12: #{base_model_forward.5} parent=5 // pred_fallthru
      _
    %p124 = scmp.lt.s32.totalorder %s9, 2
    // Predicated region
    $region21: #{base_model_forward.5} parent=5 // pred_check
      %p125 = pneg %p124
    $region22: #{base_model_forward.5} parent=5 // pred_check_branch
      %127 = sbr.rel (%p125) target = $region24
    $region23: #{base_model_forward.5} parent=5 // pred_region
      // Predicated region
      $region25: #{base_model_forward.5} parent=23 // pred_check
        %p128 = pneg %p29
      $region26: #{base_model_forward.5} parent=23 // pred_check_branch
        %130 = sbr.rel (%p128) target = $region28
      $region27: #{base_model_forward.5} parent=23 // pred_region
        %p131 = scmp.lt.s32.totalorder %s9, 1
        %s132 = scalar_select %p131, %s9, 1
        %s133 = smul.addr %s132, 86
        %s134 = smul.addr %s133, 4
        %s135 = scalar_lea.vmem %s0, %s134
      $region28: #{base_model_forward.5} parent=23 // pred_fallthru
        _
    $region24: #{base_model_forward.5} parent=5 // pred_fallthru
      _
    %p136 = scmp.le.s32.totalorder 1, %s9
    %p137 = scmp.lt.s32.totalorder %s9, 3
    %p138 = pnand %p136, %p137
    %p139 = pneg %p138
    // Predicated region
    $region29: #{base_model_forward.5} parent=5 // pred_check
      _
    $region30: #{base_model_forward.5} parent=5 // pred_check_branch
      %141 = sbr.rel (%p138) target = $region32
    $region31: #{base_model_forward.5} parent=5 // pred_region
      %s142 = ssub.s32 %s9, 1
      %p143 = scmp.lt.s32.totalorder %s14, 1
      %s144 = scalar_select %p143, %s14, 1
      %s145 = smul.addr %s144, 86
      %s146 = smul.addr %s145, 4
      %s147 = scalar_lea.vmem %s0, %s146
      %p148 = pneg %p35
      %p149 = pneg %p32
      %p150 = pneg %p56
      %p151 = pneg %p53
      %p152 = pneg %p77
      %p153 = pneg %p74
      %p154 = pneg %p103
      %p155 = pneg %p100
      %p156 = scmp.lt.s32.totalorder %s14, 1
      %s157 = scalar_select %p156, %s14, 1
      %s158 = smul.addr %s157, 78
      %s159 = smul.addr %s158, 4
      %s160 = scalar_lea.vmem %s3, %s159
      %p161 = scmp.lt.s32.totalorder %s14, 1
      %s162 = scalar_select %p161, %s14, 1
      %s163 = smul.addr %s162, 86
      %s164 = smul.addr %s163, 4
      %s165 = scalar_lea.vmem %s0, %s164
      %p166 = scmp.lt.s32.totalorder %s14, 1
      %s167 = scalar_select %p166, %s14, 1
      %s168 = smul.addr %s167, 78
      %s169 = smul.addr %s168, 4
      %s170 = scalar_lea.vmem %s3, %s169
      %v172 = vld [vmem:[%s165] sm:$0xf]
      %v173 = vld [vmem:[%s165 + $0x4] sm:$0xf]
      %v174 = vld [vmem:[%s165 + $0x8] sm:$0xf]
      %v175 = vld [vmem:[%s165 + $0xc] sm:$0xf]
      %v176 = vld [vmem:[%s165 + $0x10] sm:$0xf]
      %v177 = vld [vmem:[%s165 + $0x14] sm:$0xf]
      %v178 = vld [vmem:[%s165 + $0x18] sm:$0xf]
      %v179 = vld [vmem:[%s165 + $0x1c] sm:$0xf]
      %v180 = vld [vmem:[%s165 + $0x20] sm:$0xf]
      %v181 = vld [vmem:[%s165 + $0x24] sm:$0xf]
      %v182 = vld [vmem:[%s165 + $0x28] sm:$0xf]
      %v183 = vld [vmem:[%s165 + $0x2c] sm:$0xf]
      %v184 = vld [vmem:[%s165 + $0x30] sm:$0xf]
      %v185 = vld [vmem:[%s165 + $0x34] sm:$0xf]
      %v186 = vld [vmem:[%s165 + $0x38] sm:$0xf]
      %v187 = vld [vmem:[%s165 + $0x3c] sm:$0xf]
      %v188 = vld [vmem:[%s165 + $0x40] sm:$0xf]
      %v189 = vld [vmem:[%s165 + $0x44] sm:$0xf]
      %v190 = vld [vmem:[%s165 + $0x48] sm:$0xf]
      %v191 = vld [vmem:[%s165 + $0x4c] sm:$0xf]
      %v192 = vld [vmem:[%s165 + $0x50] sm:$0xf]
      %v193 = vld [vmem:[%s165 + $0x54] sm:$0xf]
      %v194 = vld [vmem:[%s165 + $0x58] sm:$0xf]
      %v195 = vld [vmem:[%s165 + $0x5c] sm:$0xf]
      %v196 = vld [vmem:[%s165 + $0x60] sm:$0xf]
      %v197 = vld [vmem:[%s165 + $0x64] sm:$0xf]
      %v198 = vld [vmem:[%s165 + $0x68] sm:$0xf]
      %v199 = vld [vmem:[%s165 + $0x6c] sm:$0xf]
      %v200 = vld [vmem:[%s165 + $0x70] sm:$0xf]
      %v201 = vld [vmem:[%s165 + $0x74] sm:$0xf]
      %v202 = vld [vmem:[%s165 + $0x78] sm:$0xf]
      %v203 = vld [vmem:[%s165 + $0x7c] sm:$0xf]
      %v204 = vld [vmem:[%s165 + $0x80] sm:$0xf]
      %v205 = vld [vmem:[%s165 + $0x84] sm:$0xf]
      %v206 = vld [vmem:[%s165 + $0x88] sm:$0xf]
      %v207 = vld [vmem:[%s165 + $0x8c] sm:$0xf]
      %v208 = vld [vmem:[%s165 + $0x90] sm:$0xf]
      %v209 = vld [vmem:[%s165 + $0x94] sm:$0xf]
      %v210 = vld [vmem:[%s165 + $0x98] sm:$0xf]
      %v211 = vld [vmem:[%s165 + $0x9c] sm:$0xf]
      %v212 = vld [vmem:[%s165 + $0xa0] sm:$0xf]
      %v213 = vld [vmem:[%s165 + $0xa4] sm:$0xf]
      %v214 = vld [vmem:[%s165 + $0xa8] sm:$0xf]
      %v215 = vld [vmem:[%s165 + $0xac] sm:$0xf]
      %v216 = vld [vmem:[%s165 + $0xb0] sm:$0xf]
      %v217 = vld [vmem:[%s165 + $0xb4] sm:$0xf]
      %v218 = vld [vmem:[%s165 + $0xb8] sm:$0xf]
      %v219 = vld [vmem:[%s165 + $0xbc] sm:$0xf]
      %v220 = vld [vmem:[%s165 + $0xc0] sm:$0xf]
      %v221 = vld [vmem:[%s165 + $0xc4] sm:$0xf]
      %v222 = vld [vmem:[%s165 + $0xc8] sm:$0xf]
      %v223 = vld [vmem:[%s165 + $0xcc] sm:$0xf]
      %v224 = vld [vmem:[%s165 + $0xd0] sm:$0xf]
      %v225 = vld [vmem:[%s165 + $0xd4] sm:$0xf]
      %v226 = vld [vmem:[%s165 + $0xd8] sm:$0xf]
      %v227 = vld [vmem:[%s165 + $0xdc] sm:$0xf]
      %v228 = vld [vmem:[%s165 + $0xe0] sm:$0xf]
      %v229 = vld [vmem:[%s165 + $0xe4] sm:$0xf]
      %v230 = vld [vmem:[%s165 + $0xe8] sm:$0xf]
      %v231 = vld [vmem:[%s165 + $0xec] sm:$0xf]
      %v232 = vld [vmem:[%s165 + $0xf0] sm:$0xf]
      %v233 = vld [vmem:[%s165 + $0xf4] sm:$0xf]
      %v234 = vld [vmem:[%s165 + $0xf8] sm:$0xf]
      %v235 = vld [vmem:[%s165 + $0xfc] sm:$0xf]
      %v236 = vld [vmem:[%s165 + $0x100] sm:$0xf]
      %v237 = vld [vmem:[%s165 + $0x104] sm:$0xf]
      %v238 = vld [vmem:[%s165 + $0x108] sm:$0xf]
      %v239 = vld [vmem:[%s165 + $0x10c] sm:$0xf]
      %v240 = vld [vmem:[%s165 + $0x110] sm:$0xf]
      %v241 = vld [vmem:[%s165 + $0x114] sm:$0xf]
      %v242 = vld [vmem:[%s165 + $0x118] sm:$0xf]
      %v243 = vld [vmem:[%s165 + $0x11c] sm:$0xf]
      %v244 = vld [vmem:[%s165 + $0x120] sm:$0xf]
      %v245 = vld [vmem:[%s165 + $0x124] sm:$0xf]
      %v246 = vld [vmem:[%s165 + $0x128] sm:$0xf]
      %v247 = vld [vmem:[%s165 + $0x12c] sm:$0xf]
      %v248 = vld [vmem:[%s165 + $0x130] sm:$0xf]
      %v249 = vld [vmem:[%s165 + $0x134] sm:$0xf]
      %v250 = vld [vmem:[%s165 + $0x138] sm:$0x1]
      %v251 = vld [vmem:[%s165] sm:$0xe]
      %v252 = vld [vmem:[%s165 + $0xc] sm:$0xe]
      %v253 = vld [vmem:[%s165 + $0x138] sm:$0xf]
      %v254 = vld [vmem:[%s165 + $0x13c] sm:$0xf]
      %v255 = vld [vmem:[%s165 + $0x140] sm:$0xf]
      %v256 = vld [vmem:[%s165 + $0x144] sm:$0x1]
      %v257 = vld [vmem:[%s165 + $0x144] sm:$0x3]
      %v258 = vld [vmem:[%s165 + $0xc] sm:$0xc]
      %v259 = vld [vmem:[%s165 + $0x18] sm:$0xc]
      %v260 = vld [vmem:[%s165 + $0x144] sm:$0xf]
      %v261 = vld [vmem:[%s165 + $0x148] sm:$0xf]
      %v262 = vld [vmem:[%s165 + $0x14c] sm:$0xf]
      %v263 = vld [vmem:[%s165 + $0x150] sm:$0x3]
      %v264 = vld [vmem:[%s165 + $0x150] sm:$0x7]
      %v265 = vld [vmem:[%s165 + $0x18] sm:$0x8]
      %v344 = vunpack.c.l.b16 %v172
      %v345 = vunpack.c.l.b16 %v173
      %v346 = vunpack.c.l.b16 %v174
      %v347 = vunpack.c.l.b16 %v175
      %v348 = vunpack.c.l.b16 %v176
      %v349 = vunpack.c.l.b16 %v177
      %v350 = vunpack.c.l.b16 %v178
      %v351 = vunpack.c.l.b16 %v179
      %v352 = vunpack.c.l.b16 %v180
      %v353 = vunpack.c.l.b16 %v181
      %v354 = vunpack.c.l.b16 %v182
      %v355 = vunpack.c.l.b16 %v183
      %v356 = vunpack.c.l.b16 %v184
      %v357 = vunpack.c.l.b16 %v185
      %v358 = vunpack.c.l.b16 %v186
      %v359 = vunpack.c.l.b16 %v187
      %v360 = vunpack.c.l.b16 %v188
      %v361 = vunpack.c.l.b16 %v189
      %v362 = vunpack.c.l.b16 %v190
      %v363 = vunpack.c.l.b16 %v191
      %v364 = vunpack.c.l.b16 %v192
      %v365 = vunpack.c.l.b16 %v193
      %v366 = vunpack.c.l.b16 %v194
      %v367 = vunpack.c.l.b16 %v195
      %v368 = vunpack.c.l.b16 %v196
      %v369 = vunpack.c.l.b16 %v197
      %v370 = vunpack.c.l.b16 %v198
      %v371 = vunpack.c.l.b16 %v199
      %v372 = vunpack.c.l.b16 %v200
      %v373 = vunpack.c.l.b16 %v201
      %v374 = vunpack.c.l.b16 %v202
      %v375 = vunpack.c.l.b16 %v203
      %v376 = vunpack.c.l.b16 %v204
      %v377 = vunpack.c.l.b16 %v205
      %v378 = vunpack.c.l.b16 %v206
      %v379 = vunpack.c.l.b16 %v207
      %v380 = vunpack.c.l.b16 %v208
      %v381 = vunpack.c.l.b16 %v209
      %v382 = vunpack.c.l.b16 %v210
      %v383 = vunpack.c.l.b16 %v211
      %v384 = vunpack.c.l.b16 %v212
      %v385 = vunpack.c.l.b16 %v213
      %v386 = vunpack.c.l.b16 %v214
      %v387 = vunpack.c.l.b16 %v215
      %v388 = vunpack.c.l.b16 %v216
      %v389 = vunpack.c.l.b16 %v217
      %v390 = vunpack.c.l.b16 %v218
      %v391 = vunpack.c.l.b16 %v219
      %v392 = vunpack.c.l.b16 %v220
      %v393 = vunpack.c.l.b16 %v221
      %v394 = vunpack.c.l.b16 %v222
      %v395 = vunpack.c.l.b16 %v223
      %v396 = vunpack.c.l.b16 %v224
      %v397 = vunpack.c.l.b16 %v225
      %v398 = vunpack.c.l.b16 %v226
      %v399 = vunpack.c.l.b16 %v227
      %v400 = vunpack.c.l.b16 %v228
      %v401 = vunpack.c.l.b16 %v229
      %v402 = vunpack.c.l.b16 %v230
      %v403 = vunpack.c.l.b16 %v231
      %v404 = vunpack.c.l.b16 %v232
      %v405 = vunpack.c.l.b16 %v233
      %v406 = vunpack.c.l.b16 %v234
      %v407 = vunpack.c.l.b16 %v235
      %v408 = vunpack.c.l.b16 %v236
      %v409 = vunpack.c.l.b16 %v237
      %v410 = vunpack.c.l.b16 %v238
      %v411 = vunpack.c.l.b16 %v239
      %v412 = vunpack.c.l.b16 %v240
      %v413 = vunpack.c.l.b16 %v241
      %v414 = vunpack.c.l.b16 %v242
      %v415 = vunpack.c.l.b16 %v243
      %v416 = vunpack.c.l.b16 %v244
      %v417 = vunpack.c.l.b16 %v245
      %v418 = vunpack.c.l.b16 %v246
      %v419 = vunpack.c.l.b16 %v247
      %v420 = vunpack.c.l.b16 %v248
      %v421 = vunpack.c.l.b16 %v249
      %v422 = vpack.c.b16 %v345, %v344
      %v423 = vpack.c.b16 %v347, %v346
      %v424 = vpack.c.b16 %v349, %v348
      %v425 = vpack.c.b16 %v351, %v350
      %v426 = vpack.c.b16 %v353, %v352
      %v427 = vpack.c.b16 %v355, %v354
      %v428 = vpack.c.b16 %v357, %v356
      %v429 = vpack.c.b16 %v359, %v358
      %v430 = vpack.c.b16 %v361, %v360
      %v431 = vpack.c.b16 %v363, %v362
      %v432 = vpack.c.b16 %v365, %v364
      %v433 = vpack.c.b16 %v367, %v366
      %v434 = vpack.c.b16 %v369, %v368
      %v435 = vpack.c.b16 %v371, %v370
      %v436 = vpack.c.b16 %v373, %v372
      %v437 = vpack.c.b16 %v375, %v374
      %v438 = vpack.c.b16 %v377, %v376
      %v439 = vpack.c.b16 %v379, %v378
      %v440 = vpack.c.b16 %v381, %v380
      %v441 = vpack.c.b16 %v383, %v382
      %v442 = vpack.c.b16 %v385, %v384
      %v443 = vpack.c.b16 %v387, %v386
      %v444 = vpack.c.b16 %v389, %v388
      %v445 = vpack.c.b16 %v391, %v390
      %v446 = vpack.c.b16 %v393, %v392
      %v447 = vpack.c.b16 %v395, %v394
      %v448 = vpack.c.b16 %v397, %v396
      %v449 = vpack.c.b16 %v399, %v398
      %v450 = vpack.c.b16 %v401, %v400
      %v451 = vpack.c.b16 %v403, %v402
      %v452 = vpack.c.b16 %v405, %v404
      %v453 = vpack.c.b16 %v407, %v406
      %v454 = vpack.c.b16 %v409, %v408
      %v455 = vpack.c.b16 %v411, %v410
      %v456 = vpack.c.b16 %v413, %v412
      %v457 = vpack.c.b16 %v415, %v414
      %v458 = vpack.c.b16 %v417, %v416
      %v459 = vpack.c.b16 %v419, %v418
      %v460 = vpack.c.b16 %v421, %v420
      %v501 = vunpack.c.l.b16 %v250
      %v502 = vpack.c.b16 %v501, %v501
      %vm503 = vsmask.f32 7424
      %v505 = vshrl.u32 %v422, 16
      %v507 = vshll.u32 %v422, 16
      %v509 = vrot.slane %v507, 1
      %v510 = vor.u32 %v505, %v509
      %v512 = vshll.u32 %v423, 16
      %v514 = vrot.slane %v512, 1
      %v515 = vsel %vm503, %v510, %v514
      %v516 = vshrl.u32 %v423, 16
      %v518 = vor.u32 %v516, %v514
      %v520 = vshll.u32 %v424, 16
      %v522 = vrot.slane %v520, 1
      %v523 = vsel %vm503, %v518, %v522
      %v524 = vshrl.u32 %v424, 16
      %v526 = vor.u32 %v524, %v522
      %v528 = vshll.u32 %v425, 16
      %v530 = vrot.slane %v528, 1
      %v531 = vsel %vm503, %v526, %v530
      %v532 = vshrl.u32 %v425, 16
      %v534 = vor.u32 %v532, %v530
      %v536 = vshll.u32 %v426, 16
      %v538 = vrot.slane %v536, 1
      %v539 = vsel %vm503, %v534, %v538
      %v540 = vshrl.u32 %v426, 16
      %v542 = vor.u32 %v540, %v538
      %v544 = vshll.u32 %v427, 16
      %v546 = vrot.slane %v544, 1
      %v547 = vsel %vm503, %v542, %v546
      %v548 = vshrl.u32 %v427, 16
      %v550 = vor.u32 %v548, %v546
      %v552 = vshll.u32 %v428, 16
      %v554 = vrot.slane %v552, 1
      %v555 = vsel %vm503, %v550, %v554
      %v556 = vshrl.u32 %v428, 16
      %v558 = vor.u32 %v556, %v554
      %v560 = vshll.u32 %v429, 16
      %v562 = vrot.slane %v560, 1
      %v563 = vsel %vm503, %v558, %v562
      %v564 = vshrl.u32 %v429, 16
      %v566 = vor.u32 %v564, %v562
      %v568 = vshll.u32 %v430, 16
      %v570 = vrot.slane %v568, 1
      %v571 = vsel %vm503, %v566, %v570
      %v572 = vshrl.u32 %v430, 16
      %v574 = vor.u32 %v572, %v570
      %v576 = vshll.u32 %v431, 16
      %v578 = vrot.slane %v576, 1
      %v579 = vsel %vm503, %v574, %v578
      %v580 = vshrl.u32 %v431, 16
      %v582 = vor.u32 %v580, %v578
      %v584 = vshll.u32 %v432, 16
      %v586 = vrot.slane %v584, 1
      %v587 = vsel %vm503, %v582, %v586
      %v588 = vshrl.u32 %v432, 16
      %v590 = vor.u32 %v588, %v586
      %v592 = vshll.u32 %v433, 16
      %v594 = vrot.slane %v592, 1
      %v595 = vsel %vm503, %v590, %v594
      %v596 = vshrl.u32 %v433, 16
      %v598 = vor.u32 %v596, %v594
      %v600 = vshll.u32 %v434, 16
      %v602 = vrot.slane %v600, 1
      %v603 = vsel %vm503, %v598, %v602
      %v604 = vshrl.u32 %v434, 16
      %v606 = vor.u32 %v604, %v602
      %v608 = vshll.u32 %v435, 16
      %v610 = vrot.slane %v608, 1
      %v611 = vsel %vm503, %v606, %v610
      %v612 = vshrl.u32 %v435, 16
      %v614 = vor.u32 %v612, %v610
      %v616 = vshll.u32 %v436, 16
      %v618 = vrot.slane %v616, 1
      %v619 = vsel %vm503, %v614, %v618
      %v620 = vshrl.u32 %v436, 16
      %v622 = vor.u32 %v620, %v618
      %v624 = vshll.u32 %v437, 16
      %v626 = vrot.slane %v624, 1
      %v627 = vsel %vm503, %v622, %v626
      %v628 = vshrl.u32 %v437, 16
      %v630 = vor.u32 %v628, %v626
      %v632 = vshll.u32 %v438, 16
      %v634 = vrot.slane %v632, 1
      %v635 = vsel %vm503, %v630, %v634
      %v636 = vshrl.u32 %v438, 16
      %v638 = vor.u32 %v636, %v634
      %v640 = vshll.u32 %v439, 16
      %v642 = vrot.slane %v640, 1
      %v643 = vsel %vm503, %v638, %v642
      %v644 = vshrl.u32 %v439, 16
      %v646 = vor.u32 %v644, %v642
      %v648 = vshll.u32 %v440, 16
      %v650 = vrot.slane %v648, 1
      %v651 = vsel %vm503, %v646, %v650
      %v652 = vshrl.u32 %v440, 16
      %v654 = vor.u32 %v652, %v650
      %v656 = vshll.u32 %v441, 16
      %v658 = vrot.slane %v656, 1
      %v659 = vsel %vm503, %v654, %v658
      %v660 = vshrl.u32 %v441, 16
      %v662 = vor.u32 %v660, %v658
      %v664 = vshll.u32 %v442, 16
      %v666 = vrot.slane %v664, 1
      %v667 = vsel %vm503, %v662, %v666
      %v668 = vshrl.u32 %v442, 16
      %v670 = vor.u32 %v668, %v666
      %v672 = vshll.u32 %v443, 16
      %v674 = vrot.slane %v672, 1
      %v675 = vsel %vm503, %v670, %v674
      %v676 = vshrl.u32 %v443, 16
      %v678 = vor.u32 %v676, %v674
      %v680 = vshll.u32 %v444, 16
      %v682 = vrot.slane %v680, 1
      %v683 = vsel %vm503, %v678, %v682
      %v684 = vshrl.u32 %v444, 16
      %v686 = vor.u32 %v684, %v682
      %v688 = vshll.u32 %v445, 16
      %v690 = vrot.slane %v688, 1
      %v691 = vsel %vm503, %v686, %v690
      %v692 = vshrl.u32 %v445, 16
      %v694 = vor.u32 %v692, %v690
      %v696 = vshll.u32 %v446, 16
      %v698 = vrot.slane %v696, 1
      %v699 = vsel %vm503, %v694, %v698
      %v700 = vshrl.u32 %v446, 16
      %v702 = vor.u32 %v700, %v698
      %v704 = vshll.u32 %v447, 16
      %v706 = vrot.slane %v704, 1
      %v707 = vsel %vm503, %v702, %v706
      %v708 = vshrl.u32 %v447, 16
      %v710 = vor.u32 %v708, %v706
      %v712 = vshll.u32 %v448, 16
      %v714 = vrot.slane %v712, 1
      %v715 = vsel %vm503, %v710, %v714
      %v716 = vshrl.u32 %v448, 16
      %v718 = vor.u32 %v716, %v714
      %v720 = vshll.u32 %v449, 16
      %v722 = vrot.slane %v720, 1
      %v723 = vsel %vm503, %v718, %v722
      %v724 = vshrl.u32 %v449, 16
      %v726 = vor.u32 %v724, %v722
      %v728 = vshll.u32 %v450, 16
      %v730 = vrot.slane %v728, 1
      %v731 = vsel %vm503, %v726, %v730
      %v732 = vshrl.u32 %v450, 16
      %v734 = vor.u32 %v732, %v730
      %v736 = vshll.u32 %v451, 16
      %v738 = vrot.slane %v736, 1
      %v739 = vsel %vm503, %v734, %v738
      %v740 = vshrl.u32 %v451, 16
      %v742 = vor.u32 %v740, %v738
      %v744 = vshll.u32 %v452, 16
      %v746 = vrot.slane %v744, 1
      %v747 = vsel %vm503, %v742, %v746
      %v748 = vshrl.u32 %v452, 16
      %v750 = vor.u32 %v748, %v746
      %v752 = vshll.u32 %v453, 16
      %v754 = vrot.slane %v752, 1
      %v755 = vsel %vm503, %v750, %v754
      %v756 = vshrl.u32 %v453, 16
      %v758 = vor.u32 %v756, %v754
      %v760 = vshll.u32 %v454, 16
      %v762 = vrot.slane %v760, 1
      %v763 = vsel %vm503, %v758, %v762
      %v764 = vshrl.u32 %v454, 16
      %v766 = vor.u32 %v764, %v762
      %v768 = vshll.u32 %v455, 16
      %v770 = vrot.slane %v768, 1
      %v771 = vsel %vm503, %v766, %v770
      %v772 = vshrl.u32 %v455, 16
      %v774 = vor.u32 %v772, %v770
      %v776 = vshll.u32 %v456, 16
      %v778 = vrot.slane %v776, 1
      %v779 = vsel %vm503, %v774, %v778
      %v780 = vshrl.u32 %v456, 16
      %v782 = vor.u32 %v780, %v778
      %v784 = vshll.u32 %v457, 16
      %v786 = vrot.slane %v784, 1
      %v787 = vsel %vm503, %v782, %v786
      %v788 = vshrl.u32 %v457, 16
      %v790 = vor.u32 %v788, %v786
      %v792 = vshll.u32 %v458, 16
      %v794 = vrot.slane %v792, 1
      %v795 = vsel %vm503, %v790, %v794
      %v796 = vshrl.u32 %v458, 16
      %v798 = vor.u32 %v796, %v794
      %v800 = vshll.u32 %v459, 16
      %v802 = vrot.slane %v800, 1
      %v803 = vsel %vm503, %v798, %v802
      %v804 = vshrl.u32 %v459, 16
      %v806 = vor.u32 %v804, %v802
      %v808 = vshll.u32 %v460, 16
      %v810 = vrot.slane %v808, 1
      %v811 = vsel %vm503, %v806, %v810
      %v812 = vshrl.u32 %v460, 16
      %v814 = vor.u32 %v812, %v810
      %v816 = vshll.u32 %v502, 16
      %v818 = vrot.slane %v816, 1
      %v819 = vsel %vm503, %v814, %v818
      %v860 = vunpack.c.l.b16 %v251
      %v861 = vpack.c.b16 %v345, %v860
      %vm862 = vcmask 1046528
      %v863 = vrot.slane %v861, 1
      %v864 = vrot.slane %v423, 1
      %v865 = vsel %vm862, %v863, %v864
      %v866 = vrot.slane %v424, 1
      %v867 = vsel %vm862, %v864, %v866
      %v868 = vrot.slane %v425, 1
      %v869 = vsel %vm862, %v866, %v868
      %v870 = vrot.slane %v426, 1
      %v871 = vsel %vm862, %v868, %v870
      %v872 = vrot.slane %v427, 1
      %v873 = vsel %vm862, %v870, %v872
      %v874 = vrot.slane %v428, 1
      %v875 = vsel %vm862, %v872, %v874
      %v876 = vrot.slane %v429, 1
      %v877 = vsel %vm862, %v874, %v876
      %v878 = vrot.slane %v430, 1
      %v879 = vsel %vm862, %v876, %v878
      %v880 = vrot.slane %v431, 1
      %v881 = vsel %vm862, %v878, %v880
      %v882 = vrot.slane %v432, 1
      %v883 = vsel %vm862, %v880, %v882
      %v884 = vrot.slane %v433, 1
      %v885 = vsel %vm862, %v882, %v884
      %v886 = vrot.slane %v434, 1
      %v887 = vsel %vm862, %v884, %v886
      %v888 = vrot.slane %v435, 1
      %v889 = vsel %vm862, %v886, %v888
      %v890 = vrot.slane %v436, 1
      %v891 = vsel %vm862, %v888, %v890
      %v892 = vrot.slane %v437, 1
      %v893 = vsel %vm862, %v890, %v892
      %v894 = vrot.slane %v438, 1
      %v895 = vsel %vm862, %v892, %v894
      %v896 = vrot.slane %v439, 1
      %v897 = vsel %vm862, %v894, %v896
      %v898 = vrot.slane %v440, 1
      %v899 = vsel %vm862, %v896, %v898
      %v900 = vrot.slane %v441, 1
      %v901 = vsel %vm862, %v898, %v900
      %v902 = vrot.slane %v442, 1
      %v903 = vsel %vm862, %v900, %v902
      %v904 = vrot.slane %v443, 1
      %v905 = vsel %vm862, %v902, %v904
      %v906 = vrot.slane %v444, 1
      %v907 = vsel %vm862, %v904, %v906
      %v908 = vrot.slane %v445, 1
      %v909 = vsel %vm862, %v906, %v908
      %v910 = vrot.slane %v446, 1
      %v911 = vsel %vm862, %v908, %v910
      %v912 = vrot.slane %v447, 1
      %v913 = vsel %vm862, %v910, %v912
      %v914 = vrot.slane %v448, 1
      %v915 = vsel %vm862, %v912, %v914
      %v916 = vrot.slane %v449, 1
      %v917 = vsel %vm862, %v914, %v916
      %v918 = vrot.slane %v450, 1
      %v919 = vsel %vm862, %v916, %v918
      %v920 = vrot.slane %v451, 1
      %v921 = vsel %vm862, %v918, %v920
      %v922 = vrot.slane %v452, 1
      %v923 = vsel %vm862, %v920, %v922
      %v924 = vrot.slane %v453, 1
      %v925 = vsel %vm862, %v922, %v924
      %v926 = vrot.slane %v454, 1
      %v927 = vsel %vm862, %v924, %v926
      %v928 = vrot.slane %v455, 1
      %v929 = vsel %vm862, %v926, %v928
      %v930 = vrot.slane %v456, 1
      %v931 = vsel %vm862, %v928, %v930
      %v932 = vrot.slane %v457, 1
      %v933 = vsel %vm862, %v930, %v932
      %v934 = vrot.slane %v458, 1
      %v935 = vsel %vm862, %v932, %v934
      %v936 = vrot.slane %v459, 1
      %v937 = vsel %vm862, %v934, %v936
      %v938 = vrot.slane %v460, 1
      %v939 = vsel %vm862, %v936, %v938
      %v940 = vrot.slane %v502, 1
      %v941 = vsel %vm862, %v938, %v940
      %v986 = vunpack.c.l.b16 %v252
      %v987 = vunpack.c.l.b16 %v253
      %v988 = vunpack.c.l.b16 %v254
      %v989 = vunpack.c.l.b16 %v255
      %v990 = vunpack.c.l.b16 %v256
      %v991 = vpack.c.b16 %v348, %v986
      %v992 = vpack.c.b16 %v350, %v349
      %v993 = vpack.c.b16 %v352, %v351
      %v994 = vpack.c.b16 %v354, %v353
      %v995 = vpack.c.b16 %v356, %v355
      %v996 = vpack.c.b16 %v358, %v357
      %v997 = vpack.c.b16 %v360, %v359
      %v998 = vpack.c.b16 %v362, %v361
      %v999 = vpack.c.b16 %v364, %v363
      %v1000 = vpack.c.b16 %v366, %v365
      %v1001 = vpack.c.b16 %v368, %v367
      %v1002 = vpack.c.b16 %v370, %v369
      %v1003 = vpack.c.b16 %v372, %v371
      %v1004 = vpack.c.b16 %v374, %v373
      %v1005 = vpack.c.b16 %v376, %v375
      %v1006 = vpack.c.b16 %v378, %v377
      %v1007 = vpack.c.b16 %v380, %v379
      %v1008 = vpack.c.b16 %v382, %v381
      %v1009 = vpack.c.b16 %v384, %v383
      %v1010 = vpack.c.b16 %v386, %v385
      %v1011 = vpack.c.b16 %v388, %v387
      %v1012 = vpack.c.b16 %v390, %v389
      %v1013 = vpack.c.b16 %v392, %v391
      %v1014 = vpack.c.b16 %v394, %v393
      %v1015 = vpack.c.b16 %v396, %v395
      %v1016 = vpack.c.b16 %v398, %v397
      %v1017 = vpack.c.b16 %v400, %v399
      %v1018 = vpack.c.b16 %v402, %v401
      %v1019 = vpack.c.b16 %v404, %v403
      %v1020 = vpack.c.b16 %v406, %v405
      %v1021 = vpack.c.b16 %v408, %v407
      %v1022 = vpack.c.b16 %v410, %v409
      %v1023 = vpack.c.b16 %v412, %v411
      %v1024 = vpack.c.b16 %v414, %v413
      %v1025 = vpack.c.b16 %v416, %v415
      %v1026 = vpack.c.b16 %v418, %v417
      %v1027 = vpack.c.b16 %v420, %v419
      %v1028 = vpack.c.b16 %v987, %v421
      %v1029 = vpack.c.b16 %v989, %v988
      %v1030 = vpack.c.b16 %v990, %v990
      %v1031 = vrot.slane %v991, 1
      %v1032 = vrot.slane %v992, 1
      %v1033 = vsel %vm862, %v1031, %v1032
      %v1034 = vrot.slane %v993, 1
      %v1035 = vsel %vm862, %v1032, %v1034
      %v1036 = vrot.slane %v994, 1
      %v1037 = vsel %vm862, %v1034, %v1036
      %v1038 = vrot.slane %v995, 1
      %v1039 = vsel %vm862, %v1036, %v1038
      %v1040 = vrot.slane %v996, 1
      %v1041 = vsel %vm862, %v1038, %v1040
      %v1042 = vrot.slane %v997, 1
      %v1043 = vsel %vm862, %v1040, %v1042
      %v1044 = vrot.slane %v998, 1
      %v1045 = vsel %vm862, %v1042, %v1044
      %v1046 = vrot.slane %v999, 1
      %v1047 = vsel %vm862, %v1044, %v1046
      %v1048 = vrot.slane %v1000, 1
      %v1049 = vsel %vm862, %v1046, %v1048
      %v1050 = vrot.slane %v1001, 1
      %v1051 = vsel %vm862, %v1048, %v1050
      %v1052 = vrot.slane %v1002, 1
      %v1053 = vsel %vm862, %v1050, %v1052
      %v1054 = vrot.slane %v1003, 1
      %v1055 = vsel %vm862, %v1052, %v1054
      %v1056 = vrot.slane %v1004, 1
      %v1057 = vsel %vm862, %v1054, %v1056
      %v1058 = vrot.slane %v1005, 1
      %v1059 = vsel %vm862, %v1056, %v1058
      %v1060 = vrot.slane %v1006, 1
      %v1061 = vsel %vm862, %v1058, %v1060
      %v1062 = vrot.slane %v1007, 1
      %v1063 = vsel %vm862, %v1060, %v1062
      %v1064 = vrot.slane %v1008, 1
      %v1065 = vsel %vm862, %v1062, %v1064
      %v1066 = vrot.slane %v1009, 1
      %v1067 = vsel %vm862, %v1064, %v1066
      %v1068 = vrot.slane %v1010, 1
      %v1069 = vsel %vm862, %v1066, %v1068
      %v1070 = vrot.slane %v1011, 1
      %v1071 = vsel %vm862, %v1068, %v1070
      %v1072 = vrot.slane %v1012, 1
      %v1073 = vsel %vm862, %v1070, %v1072
      %v1074 = vrot.slane %v1013, 1
      %v1075 = vsel %vm862, %v1072, %v1074
      %v1076 = vrot.slane %v1014, 1
      %v1077 = vsel %vm862, %v1074, %v1076
      %v1078 = vrot.slane %v1015, 1
      %v1079 = vsel %vm862, %v1076, %v1078
      %v1080 = vrot.slane %v1016, 1
      %v1081 = vsel %vm862, %v1078, %v1080
      %v1082 = vrot.slane %v1017, 1
      %v1083 = vsel %vm862, %v1080, %v1082
      %v1084 = vrot.slane %v1018, 1
      %v1085 = vsel %vm862, %v1082, %v1084
      %v1086 = vrot.slane %v1019, 1
      %v1087 = vsel %vm862, %v1084, %v1086
      %v1088 = vrot.slane %v1020, 1
      %v1089 = vsel %vm862, %v1086, %v1088
      %v1090 = vrot.slane %v1021, 1
      %v1091 = vsel %vm862, %v1088, %v1090
      %v1092 = vrot.slane %v1022, 1
      %v1093 = vsel %vm862, %v1090, %v1092
      %v1094 = vrot.slane %v1023, 1
      %v1095 = vsel %vm862, %v1092, %v1094
      %v1096 = vrot.slane %v1024, 1
      %v1097 = vsel %vm862, %v1094, %v1096
      %v1098 = vrot.slane %v1025, 1
      %v1099 = vsel %vm862, %v1096, %v1098
      %v1100 = vrot.slane %v1026, 1
      %v1101 = vsel %vm862, %v1098, %v1100
      %v1102 = vrot.slane %v1027, 1
      %v1103 = vsel %vm862, %v1100, %v1102
      %v1104 = vrot.slane %v1028, 1
      %v1105 = vsel %vm862, %v1102, %v1104
      %v1106 = vrot.slane %v1029, 1
      %v1107 = vsel %vm862, %v1104, %v1106
      %v1108 = vrot.slane %v1030, 1
      %v1109 = vsel %vm862, %v1106, %v1108
      %v1150 = vunpack.c.l.b16 %v257
      %v1151 = vpack.c.b16 %v1150, %v1150
      %vm1152 = vsmask.f32 6400
      %v1154 = vshrl.u32 %v991, 16
      %v1156 = vrot.slane %v1154, 1
      %v1157 = vshll.u32 %v991, 16
      %v1159 = vrot.slane %v1157, 2
      %v1160 = vor.u32 %v1156, %v1159
      %v1162 = vshrl.u32 %v992, 16
      %v1164 = vrot.slane %v1162, 1
      %v1165 = vshll.u32 %v992, 16
      %v1167 = vrot.slane %v1165, 2
      %v1168 = vor.u32 %v1164, %v1167
      %v1169 = vsel %vm1152, %v1160, %v1168
      %v1171 = vshrl.u32 %v993, 16
      %v1173 = vrot.slane %v1171, 1
      %v1174 = vshll.u32 %v993, 16
      %v1176 = vrot.slane %v1174, 2
      %v1177 = vor.u32 %v1173, %v1176
      %v1178 = vsel %vm1152, %v1168, %v1177
      %v1180 = vshrl.u32 %v994, 16
      %v1182 = vrot.slane %v1180, 1
      %v1183 = vshll.u32 %v994, 16
      %v1185 = vrot.slane %v1183, 2
      %v1186 = vor.u32 %v1182, %v1185
      %v1187 = vsel %vm1152, %v1177, %v1186
      %v1189 = vshrl.u32 %v995, 16
      %v1191 = vrot.slane %v1189, 1
      %v1192 = vshll.u32 %v995, 16
      %v1194 = vrot.slane %v1192, 2
      %v1195 = vor.u32 %v1191, %v1194
      %v1196 = vsel %vm1152, %v1186, %v1195
      %v1198 = vshrl.u32 %v996, 16
      %v1200 = vrot.slane %v1198, 1
      %v1201 = vshll.u32 %v996, 16
      %v1203 = vrot.slane %v1201, 2
      %v1204 = vor.u32 %v1200, %v1203
      %v1205 = vsel %vm1152, %v1195, %v1204
      %v1207 = vshrl.u32 %v997, 16
      %v1209 = vrot.slane %v1207, 1
      %v1210 = vshll.u32 %v997, 16
      %v1212 = vrot.slane %v1210, 2
      %v1213 = vor.u32 %v1209, %v1212
      %v1214 = vsel %vm1152, %v1204, %v1213
      %v1216 = vshrl.u32 %v998, 16
      %v1218 = vrot.slane %v1216, 1
      %v1219 = vshll.u32 %v998, 16
      %v1221 = vrot.slane %v1219, 2
      %v1222 = vor.u32 %v1218, %v1221
      %v1223 = vsel %vm1152, %v1213, %v1222
      %v1225 = vshrl.u32 %v999, 16
      %v1227 = vrot.slane %v1225, 1
      %v1228 = vshll.u32 %v999, 16
      %v1230 = vrot.slane %v1228, 2
      %v1231 = vor.u32 %v1227, %v1230
      %v1232 = vsel %vm1152, %v1222, %v1231
      %v1234 = vshrl.u32 %v1000, 16
      %v1236 = vrot.slane %v1234, 1
      %v1237 = vshll.u32 %v1000, 16
      %v1239 = vrot.slane %v1237, 2
      %v1240 = vor.u32 %v1236, %v1239
      %v1241 = vsel %vm1152, %v1231, %v1240
      %v1243 = vshrl.u32 %v1001, 16
      %v1245 = vrot.slane %v1243, 1
      %v1246 = vshll.u32 %v1001, 16
      %v1248 = vrot.slane %v1246, 2
      %v1249 = vor.u32 %v1245, %v1248
      %v1250 = vsel %vm1152, %v1240, %v1249
      %v1252 = vshrl.u32 %v1002, 16
      %v1254 = vrot.slane %v1252, 1
      %v1255 = vshll.u32 %v1002, 16
      %v1257 = vrot.slane %v1255, 2
      %v1258 = vor.u32 %v1254, %v1257
      %v1259 = vsel %vm1152, %v1249, %v1258
      %v1261 = vshrl.u32 %v1003, 16
      %v1263 = vrot.slane %v1261, 1
      %v1264 = vshll.u32 %v1003, 16
      %v1266 = vrot.slane %v1264, 2
      %v1267 = vor.u32 %v1263, %v1266
      %v1268 = vsel %vm1152, %v1258, %v1267
      %v1270 = vshrl.u32 %v1004, 16
      %v1272 = vrot.slane %v1270, 1
      %v1273 = vshll.u32 %v1004, 16
      %v1275 = vrot.slane %v1273, 2
      %v1276 = vor.u32 %v1272, %v1275
      %v1277 = vsel %vm1152, %v1267, %v1276
      %v1279 = vshrl.u32 %v1005, 16
      %v1281 = vrot.slane %v1279, 1
      %v1282 = vshll.u32 %v1005, 16
      %v1284 = vrot.slane %v1282, 2
      %v1285 = vor.u32 %v1281, %v1284
      %v1286 = vsel %vm1152, %v1276, %v1285
      %v1288 = vshrl.u32 %v1006, 16
      %v1290 = vrot.slane %v1288, 1
      %v1291 = vshll.u32 %v1006, 16
      %v1293 = vrot.slane %v1291, 2
      %v1294 = vor.u32 %v1290, %v1293
      %v1295 = vsel %vm1152, %v1285, %v1294
      %v1297 = vshrl.u32 %v1007, 16
      %v1299 = vrot.slane %v1297, 1
      %v1300 = vshll.u32 %v1007, 16
      %v1302 = vrot.slane %v1300, 2
      %v1303 = vor.u32 %v1299, %v1302
      %v1304 = vsel %vm1152, %v1294, %v1303
      %v1306 = vshrl.u32 %v1008, 16
      %v1308 = vrot.slane %v1306, 1
      %v1309 = vshll.u32 %v1008, 16
      %v1311 = vrot.slane %v1309, 2
      %v1312 = vor.u32 %v1308, %v1311
      %v1313 = vsel %vm1152, %v1303, %v1312
      %v1315 = vshrl.u32 %v1009, 16
      %v1317 = vrot.slane %v1315, 1
      %v1318 = vshll.u32 %v1009, 16
      %v1320 = vrot.slane %v1318, 2
      %v1321 = vor.u32 %v1317, %v1320
      %v1322 = vsel %vm1152, %v1312, %v1321
      %v1324 = vshrl.u32 %v1010, 16
      %v1326 = vrot.slane %v1324, 1
      %v1327 = vshll.u32 %v1010, 16
      %v1329 = vrot.slane %v1327, 2
      %v1330 = vor.u32 %v1326, %v1329
      %v1331 = vsel %vm1152, %v1321, %v1330
      %v1333 = vshrl.u32 %v1011, 16
      %v1335 = vrot.slane %v1333, 1
      %v1336 = vshll.u32 %v1011, 16
      %v1338 = vrot.slane %v1336, 2
      %v1339 = vor.u32 %v1335, %v1338
      %v1340 = vsel %vm1152, %v1330, %v1339
      %v1342 = vshrl.u32 %v1012, 16
      %v1344 = vrot.slane %v1342, 1
      %v1345 = vshll.u32 %v1012, 16
      %v1347 = vrot.slane %v1345, 2
      %v1348 = vor.u32 %v1344, %v1347
      %v1349 = vsel %vm1152, %v1339, %v1348
      %v1351 = vshrl.u32 %v1013, 16
      %v1353 = vrot.slane %v1351, 1
      %v1354 = vshll.u32 %v1013, 16
      %v1356 = vrot.slane %v1354, 2
      %v1357 = vor.u32 %v1353, %v1356
      %v1358 = vsel %vm1152, %v1348, %v1357
      %v1360 = vshrl.u32 %v1014, 16
      %v1362 = vrot.slane %v1360, 1
      %v1363 = vshll.u32 %v1014, 16
      %v1365 = vrot.slane %v1363, 2
      %v1366 = vor.u32 %v1362, %v1365
      %v1367 = vsel %vm1152, %v1357, %v1366
      %v1369 = vshrl.u32 %v1015, 16
      %v1371 = vrot.slane %v1369, 1
      %v1372 = vshll.u32 %v1015, 16
      %v1374 = vrot.slane %v1372, 2
      %v1375 = vor.u32 %v1371, %v1374
      %v1376 = vsel %vm1152, %v1366, %v1375
      %v1378 = vshrl.u32 %v1016, 16
      %v1380 = vrot.slane %v1378, 1
      %v1381 = vshll.u32 %v1016, 16
      %v1383 = vrot.slane %v1381, 2
      %v1384 = vor.u32 %v1380, %v1383
      %v1385 = vsel %vm1152, %v1375, %v1384
      %v1387 = vshrl.u32 %v1017, 16
      %v1389 = vrot.slane %v1387, 1
      %v1390 = vshll.u32 %v1017, 16
      %v1392 = vrot.slane %v1390, 2
      %v1393 = vor.u32 %v1389, %v1392
      %v1394 = vsel %vm1152, %v1384, %v1393
      %v1396 = vshrl.u32 %v1018, 16
      %v1398 = vrot.slane %v1396, 1
      %v1399 = vshll.u32 %v1018, 16
      %v1401 = vrot.slane %v1399, 2
      %v1402 = vor.u32 %v1398, %v1401
      %v1403 = vsel %vm1152, %v1393, %v1402
      %v1405 = vshrl.u32 %v1019, 16
      %v1407 = vrot.slane %v1405, 1
      %v1408 = vshll.u32 %v1019, 16
      %v1410 = vrot.slane %v1408, 2
      %v1411 = vor.u32 %v1407, %v1410
      %v1412 = vsel %vm1152, %v1402, %v1411
      %v1414 = vshrl.u32 %v1020, 16
      %v1416 = vrot.slane %v1414, 1
      %v1417 = vshll.u32 %v1020, 16
      %v1419 = vrot.slane %v1417, 2
      %v1420 = vor.u32 %v1416, %v1419
      %v1421 = vsel %vm1152, %v1411, %v1420
      %v1423 = vshrl.u32 %v1021, 16
      %v1425 = vrot.slane %v1423, 1
      %v1426 = vshll.u32 %v1021, 16
      %v1428 = vrot.slane %v1426, 2
      %v1429 = vor.u32 %v1425, %v1428
      %v1430 = vsel %vm1152, %v1420, %v1429
      %v1432 = vshrl.u32 %v1022, 16
      %v1434 = vrot.slane %v1432, 1
      %v1435 = vshll.u32 %v1022, 16
      %v1437 = vrot.slane %v1435, 2
      %v1438 = vor.u32 %v1434, %v1437
      %v1439 = vsel %vm1152, %v1429, %v1438
      %v1441 = vshrl.u32 %v1023, 16
      %v1443 = vrot.slane %v1441, 1
      %v1444 = vshll.u32 %v1023, 16
      %v1446 = vrot.slane %v1444, 2
      %v1447 = vor.u32 %v1443, %v1446
      %v1448 = vsel %vm1152, %v1438, %v1447
      %v1450 = vshrl.u32 %v1024, 16
      %v1452 = vrot.slane %v1450, 1
      %v1453 = vshll.u32 %v1024, 16
      %v1455 = vrot.slane %v1453, 2
      %v1456 = vor.u32 %v1452, %v1455
      %v1457 = vsel %vm1152, %v1447, %v1456
      %v1459 = vshrl.u32 %v1025, 16
      %v1461 = vrot.slane %v1459, 1
      %v1462 = vshll.u32 %v1025, 16
      %v1464 = vrot.slane %v1462, 2
      %v1465 = vor.u32 %v1461, %v1464
      %v1466 = vsel %vm1152, %v1456, %v1465
      %v1468 = vshrl.u32 %v1026, 16
      %v1470 = vrot.slane %v1468, 1
      %v1471 = vshll.u32 %v1026, 16
      %v1473 = vrot.slane %v1471, 2
      %v1474 = vor.u32 %v1470, %v1473
      %v1475 = vsel %vm1152, %v1465, %v1474
      %v1477 = vshrl.u32 %v1027, 16
      %v1479 = vrot.slane %v1477, 1
      %v1480 = vshll.u32 %v1027, 16
      %v1482 = vrot.slane %v1480, 2
      %v1483 = vor.u32 %v1479, %v1482
      %v1484 = vsel %vm1152, %v1474, %v1483
      %v1486 = vshrl.u32 %v1028, 16
      %v1488 = vrot.slane %v1486, 1
      %v1489 = vshll.u32 %v1028, 16
      %v1491 = vrot.slane %v1489, 2
      %v1492 = vor.u32 %v1488, %v1491
      %v1493 = vsel %vm1152, %v1483, %v1492
      %v1495 = vshrl.u32 %v1029, 16
      %v1497 = vrot.slane %v1495, 1
      %v1498 = vshll.u32 %v1029, 16
      %v1500 = vrot.slane %v1498, 2
      %v1501 = vor.u32 %v1497, %v1500
      %v1502 = vsel %vm1152, %v1492, %v1501
      %v1504 = vshrl.u32 %v1151, 16
      %v1506 = vrot.slane %v1504, 1
      %v1507 = vshll.u32 %v1151, 16
      %v1509 = vrot.slane %v1507, 2
      %v1510 = vor.u32 %v1506, %v1509
      %v1511 = vsel %vm1152, %v1501, %v1510
      %v1552 = vunpack.c.l.b16 %v258
      %v1553 = vpack.c.b16 %v348, %v1552
      %vm1554 = vcmask 1045504
      %v1555 = vrot.slane %v1553, 2
      %v1556 = vrot.slane %v992, 2
      %v1557 = vsel %vm1554, %v1555, %v1556
      %v1558 = vrot.slane %v993, 2
      %v1559 = vsel %vm1554, %v1556, %v1558
      %v1560 = vrot.slane %v994, 2
      %v1561 = vsel %vm1554, %v1558, %v1560
      %v1562 = vrot.slane %v995, 2
      %v1563 = vsel %vm1554, %v1560, %v1562
      %v1564 = vrot.slane %v996, 2
      %v1565 = vsel %vm1554, %v1562, %v1564
      %v1566 = vrot.slane %v997, 2
      %v1567 = vsel %vm1554, %v1564, %v1566
      %v1568 = vrot.slane %v998, 2
      %v1569 = vsel %vm1554, %v1566, %v1568
      %v1570 = vrot.slane %v999, 2
      %v1571 = vsel %vm1554, %v1568, %v1570
      %v1572 = vrot.slane %v1000, 2
      %v1573 = vsel %vm1554, %v1570, %v1572
      %v1574 = vrot.slane %v1001, 2
      %v1575 = vsel %vm1554, %v1572, %v1574
      %v1576 = vrot.slane %v1002, 2
      %v1577 = vsel %vm1554, %v1574, %v1576
      %v1578 = vrot.slane %v1003, 2
      %v1579 = vsel %vm1554, %v1576, %v1578
      %v1580 = vrot.slane %v1004, 2
      %v1581 = vsel %vm1554, %v1578, %v1580
      %v1582 = vrot.slane %v1005, 2
      %v1583 = vsel %vm1554, %v1580, %v1582
      %v1584 = vrot.slane %v1006, 2
      %v1585 = vsel %vm1554, %v1582, %v1584
      %v1586 = vrot.slane %v1007, 2
      %v1587 = vsel %vm1554, %v1584, %v1586
      %v1588 = vrot.slane %v1008, 2
      %v1589 = vsel %vm1554, %v1586, %v1588
      %v1590 = vrot.slane %v1009, 2
      %v1591 = vsel %vm1554, %v1588, %v1590
      %v1592 = vrot.slane %v1010, 2
      %v1593 = vsel %vm1554, %v1590, %v1592
      %v1594 = vrot.slane %v1011, 2
      %v1595 = vsel %vm1554, %v1592, %v1594
      %v1596 = vrot.slane %v1012, 2
      %v1597 = vsel %vm1554, %v1594, %v1596
      %v1598 = vrot.slane %v1013, 2
      %v1599 = vsel %vm1554, %v1596, %v1598
      %v1600 = vrot.slane %v1014, 2
      %v1601 = vsel %vm1554, %v1598, %v1600
      %v1602 = vrot.slane %v1015, 2
      %v1603 = vsel %vm1554, %v1600, %v1602
      %v1604 = vrot.slane %v1016, 2
      %v1605 = vsel %vm1554, %v1602, %v1604
      %v1606 = vrot.slane %v1017, 2
      %v1607 = vsel %vm1554, %v1604, %v1606
      %v1608 = vrot.slane %v1018, 2
      %v1609 = vsel %vm1554, %v1606, %v1608
      %v1610 = vrot.slane %v1019, 2
      %v1611 = vsel %vm1554, %v1608, %v1610
      %v1612 = vrot.slane %v1020, 2
      %v1613 = vsel %vm1554, %v1610, %v1612
      %v1614 = vrot.slane %v1021, 2
      %v1615 = vsel %vm1554, %v1612, %v1614
      %v1616 = vrot.slane %v1022, 2
      %v1617 = vsel %vm1554, %v1614, %v1616
      %v1618 = vrot.slane %v1023, 2
      %v1619 = vsel %vm1554, %v1616, %v1618
      %v1620 = vrot.slane %v1024, 2
      %v1621 = vsel %vm1554, %v1618, %v1620
      %v1622 = vrot.slane %v1025, 2
      %v1623 = vsel %vm1554, %v1620, %v1622
      %v1624 = vrot.slane %v1026, 2
      %v1625 = vsel %vm1554, %v1622, %v1624
      %v1626 = vrot.slane %v1027, 2
      %v1627 = vsel %vm1554, %v1624, %v1626
      %v1628 = vrot.slane %v1028, 2
      %v1629 = vsel %vm1554, %v1626, %v1628
      %v1630 = vrot.slane %v1029, 2
      %v1631 = vsel %vm1554, %v1628, %v1630
      %v1632 = vrot.slane %v1151, 2
      %v1633 = vsel %vm1554, %v1630, %v1632
      %v1678 = vunpack.c.l.b16 %v259
      %v1679 = vunpack.c.l.b16 %v260
      %v1680 = vunpack.c.l.b16 %v261
      %v1681 = vunpack.c.l.b16 %v262
      %v1682 = vunpack.c.l.b16 %v263
      %v1683 = vpack.c.b16 %v351, %v1678
      %v1684 = vpack.c.b16 %v988, %v987
      %v1685 = vpack.c.b16 %v1679, %v989
      %v1686 = vpack.c.b16 %v1681, %v1680
      %v1687 = vpack.c.b16 %v1682, %v1682
      %v1688 = vrot.slane %v1683, 2
      %v1689 = vrot.slane %v426, 2
      %v1690 = vsel %vm1554, %v1688, %v1689
      %v1691 = vrot.slane %v427, 2
      %v1692 = vsel %vm1554, %v1689, %v1691
      %v1693 = vrot.slane %v428, 2
      %v1694 = vsel %vm1554, %v1691, %v1693
      %v1695 = vrot.slane %v429, 2
      %v1696 = vsel %vm1554, %v1693, %v1695
      %v1697 = vrot.slane %v430, 2
      %v1698 = vsel %vm1554, %v1695, %v1697
      %v1699 = vrot.slane %v431, 2
      %v1700 = vsel %vm1554, %v1697, %v1699
      %v1701 = vrot.slane %v432, 2
      %v1702 = vsel %vm1554, %v1699, %v1701
      %v1703 = vrot.slane %v433, 2
      %v1704 = vsel %vm1554, %v1701, %v1703
      %v1705 = vrot.slane %v434, 2
      %v1706 = vsel %vm1554, %v1703, %v1705
      %v1707 = vrot.slane %v435, 2
      %v1708 = vsel %vm1554, %v1705, %v1707
      %v1709 = vrot.slane %v436, 2
      %v1710 = vsel %vm1554, %v1707, %v1709
      %v1711 = vrot.slane %v437, 2
      %v1712 = vsel %vm1554, %v1709, %v1711
      %v1713 = vrot.slane %v438, 2
      %v1714 = vsel %vm1554, %v1711, %v1713
      %v1715 = vrot.slane %v439, 2
      %v1716 = vsel %vm1554, %v1713, %v1715
      %v1717 = vrot.slane %v440, 2
      %v1718 = vsel %vm1554, %v1715, %v1717
      %v1719 = vrot.slane %v441, 2
      %v1720 = vsel %vm1554, %v1717, %v1719
      %v1721 = vrot.slane %v442, 2
      %v1722 = vsel %vm1554, %v1719, %v1721
      %v1723 = vrot.slane %v443, 2
      %v1724 = vsel %vm1554, %v1721, %v1723
      %v1725 = vrot.slane %v444, 2
      %v1726 = vsel %vm1554, %v1723, %v1725
      %v1727 = vrot.slane %v445, 2
      %v1728 = vsel %vm1554, %v1725, %v1727
      %v1729 = vrot.slane %v446, 2
      %v1730 = vsel %vm1554, %v1727, %v1729
      %v1731 = vrot.slane %v447, 2
      %v1732 = vsel %vm1554, %v1729, %v1731
      %v1733 = vrot.slane %v448, 2
      %v1734 = vsel %vm1554, %v1731, %v1733
      %v1735 = vrot.slane %v449, 2
      %v1736 = vsel %vm1554, %v1733, %v1735
      %v1737 = vrot.slane %v450, 2
      %v1738 = vsel %vm1554, %v1735, %v1737
      %v1739 = vrot.slane %v451, 2
      %v1740 = vsel %vm1554, %v1737, %v1739
      %v1741 = vrot.slane %v452, 2
      %v1742 = vsel %vm1554, %v1739, %v1741
      %v1743 = vrot.slane %v453, 2
      %v1744 = vsel %vm1554, %v1741, %v1743
      %v1745 = vrot.slane %v454, 2
      %v1746 = vsel %vm1554, %v1743, %v1745
      %v1747 = vrot.slane %v455, 2
      %v1748 = vsel %vm1554, %v1745, %v1747
      %v1749 = vrot.slane %v456, 2
      %v1750 = vsel %vm1554, %v1747, %v1749
      %v1751 = vrot.slane %v457, 2
      %v1752 = vsel %vm1554, %v1749, %v1751
      %v1753 = vrot.slane %v458, 2
      %v1754 = vsel %vm1554, %v1751, %v1753
      %v1755 = vrot.slane %v459, 2
      %v1756 = vsel %vm1554, %v1753, %v1755
      %v1757 = vrot.slane %v460, 2
      %v1758 = vsel %vm1554, %v1755, %v1757
      %v1759 = vrot.slane %v1684, 2
      %v1760 = vsel %vm1554, %v1757, %v1759
      %v1761 = vrot.slane %v1685, 2
      %v1762 = vsel %vm1554, %v1759, %v1761
      %v1763 = vrot.slane %v1686, 2
      %v1764 = vsel %vm1554, %v1761, %v1763
      %v1765 = vrot.slane %v1687, 2
      %v1766 = vsel %vm1554, %v1763, %v1765
      %v1807 = vunpack.c.l.b16 %v264
      %v1808 = vpack.c.b16 %v1807, %v1807
      %vm1809 = vsmask.f32 5376
      %v1811 = vshrl.u32 %v1683, 16
      %v1813 = vrot.slane %v1811, 2
      %v1814 = vshll.u32 %v1683, 16
      %v1816 = vrot.slane %v1814, 3
      %v1817 = vor.u32 %v1813, %v1816
      %v1818 = vrot.slane %v540, 2
      %v1819 = vrot.slane %v536, 3
      %v1820 = vor.u32 %v1818, %v1819
      %v1821 = vsel %vm1809, %v1817, %v1820
      %v1822 = vrot.slane %v548, 2
      %v1823 = vrot.slane %v544, 3
      %v1824 = vor.u32 %v1822, %v1823
      %v1825 = vsel %vm1809, %v1820, %v1824
      %v1826 = vrot.slane %v556, 2
      %v1827 = vrot.slane %v552, 3
      %v1828 = vor.u32 %v1826, %v1827
      %v1829 = vsel %vm1809, %v1824, %v1828
      %v1830 = vrot.slane %v564, 2
      %v1831 = vrot.slane %v560, 3
      %v1832 = vor.u32 %v1830, %v1831
      %v1833 = vsel %vm1809, %v1828, %v1832
      %v1834 = vrot.slane %v572, 2
      %v1835 = vrot.slane %v568, 3
      %v1836 = vor.u32 %v1834, %v1835
      %v1837 = vsel %vm1809, %v1832, %v1836
      %v1838 = vrot.slane %v580, 2
      %v1839 = vrot.slane %v576, 3
      %v1840 = vor.u32 %v1838, %v1839
      %v1841 = vsel %vm1809, %v1836, %v1840
      %v1842 = vrot.slane %v588, 2
      %v1843 = vrot.slane %v584, 3
      %v1844 = vor.u32 %v1842, %v1843
      %v1845 = vsel %vm1809, %v1840, %v1844
      %v1846 = vrot.slane %v596, 2
      %v1847 = vrot.slane %v592, 3
      %v1848 = vor.u32 %v1846, %v1847
      %v1849 = vsel %vm1809, %v1844, %v1848
      %v1850 = vrot.slane %v604, 2
      %v1851 = vrot.slane %v600, 3
      %v1852 = vor.u32 %v1850, %v1851
      %v1853 = vsel %vm1809, %v1848, %v1852
      %v1854 = vrot.slane %v612, 2
      %v1855 = vrot.slane %v608, 3
      %v1856 = vor.u32 %v1854, %v1855
      %v1857 = vsel %vm1809, %v1852, %v1856
      %v1858 = vrot.slane %v620, 2
      %v1859 = vrot.slane %v616, 3
      %v1860 = vor.u32 %v1858, %v1859
      %v1861 = vsel %vm1809, %v1856, %v1860
      %v1862 = vrot.slane %v628, 2
      %v1863 = vrot.slane %v624, 3
      %v1864 = vor.u32 %v1862, %v1863
      %v1865 = vsel %vm1809, %v1860, %v1864
      %v1866 = vrot.slane %v636, 2
      %v1867 = vrot.slane %v632, 3
      %v1868 = vor.u32 %v1866, %v1867
      %v1869 = vsel %vm1809, %v1864, %v1868
      %v1870 = vrot.slane %v644, 2
      %v1871 = vrot.slane %v640, 3
      %v1872 = vor.u32 %v1870, %v1871
      %v1873 = vsel %vm1809, %v1868, %v1872
      %v1874 = vrot.slane %v652, 2
      %v1875 = vrot.slane %v648, 3
      %v1876 = vor.u32 %v1874, %v1875
      %v1877 = vsel %vm1809, %v1872, %v1876
      %v1878 = vrot.slane %v660, 2
      %v1879 = vrot.slane %v656, 3
      %v1880 = vor.u32 %v1878, %v1879
      %v1881 = vsel %vm1809, %v1876, %v1880
      %v1882 = vrot.slane %v668, 2
      %v1883 = vrot.slane %v664, 3
      %v1884 = vor.u32 %v1882, %v1883
      %v1885 = vsel %vm1809, %v1880, %v1884
      %v1886 = vrot.slane %v676, 2
      %v1887 = vrot.slane %v672, 3
      %v1888 = vor.u32 %v1886, %v1887
      %v1889 = vsel %vm1809, %v1884, %v1888
      %v1890 = vrot.slane %v684, 2
      %v1891 = vrot.slane %v680, 3
      %v1892 = vor.u32 %v1890, %v1891
      %v1893 = vsel %vm1809, %v1888, %v1892
      %v1894 = vrot.slane %v692, 2
      %v1895 = vrot.slane %v688, 3
      %v1896 = vor.u32 %v1894, %v1895
      %v1897 = vsel %vm1809, %v1892, %v1896
      %v1898 = vrot.slane %v700, 2
      %v1899 = vrot.slane %v696, 3
      %v1900 = vor.u32 %v1898, %v1899
      %v1901 = vsel %vm1809, %v1896, %v1900
      %v1902 = vrot.slane %v708, 2
      %v1903 = vrot.slane %v704, 3
      %v1904 = vor.u32 %v1902, %v1903
      %v1905 = vsel %vm1809, %v1900, %v1904
      %v1906 = vrot.slane %v716, 2
      %v1907 = vrot.slane %v712, 3
      %v1908 = vor.u32 %v1906, %v1907
      %v1909 = vsel %vm1809, %v1904, %v1908
      %v1910 = vrot.slane %v724, 2
      %v1911 = vrot.slane %v720, 3
      %v1912 = vor.u32 %v1910, %v1911
      %v1913 = vsel %vm1809, %v1908, %v1912
      %v1914 = vrot.slane %v732, 2
      %v1915 = vrot.slane %v728, 3
      %v1916 = vor.u32 %v1914, %v1915
      %v1917 = vsel %vm1809, %v1912, %v1916
      %v1918 = vrot.slane %v740, 2
      %v1919 = vrot.slane %v736, 3
      %v1920 = vor.u32 %v1918, %v1919
      %v1921 = vsel %vm1809, %v1916, %v1920
      %v1922 = vrot.slane %v748, 2
      %v1923 = vrot.slane %v744, 3
      %v1924 = vor.u32 %v1922, %v1923
      %v1925 = vsel %vm1809, %v1920, %v1924
      %v1926 = vrot.slane %v756, 2
      %v1927 = vrot.slane %v752, 3
      %v1928 = vor.u32 %v1926, %v1927
      %v1929 = vsel %vm1809, %v1924, %v1928
      %v1930 = vrot.slane %v764, 2
      %v1931 = vrot.slane %v760, 3
      %v1932 = vor.u32 %v1930, %v1931
      %v1933 = vsel %vm1809, %v1928, %v1932
      %v1934 = vrot.slane %v772, 2
      %v1935 = vrot.slane %v768, 3
      %v1936 = vor.u32 %v1934, %v1935
      %v1937 = vsel %vm1809, %v1932, %v1936
      %v1938 = vrot.slane %v780, 2
      %v1939 = vrot.slane %v776, 3
      %v1940 = vor.u32 %v1938, %v1939
      %v1941 = vsel %vm1809, %v1936, %v1940
      %v1942 = vrot.slane %v788, 2
      %v1943 = vrot.slane %v784, 3
      %v1944 = vor.u32 %v1942, %v1943
      %v1945 = vsel %vm1809, %v1940, %v1944
      %v1946 = vrot.slane %v796, 2
      %v1947 = vrot.slane %v792, 3
      %v1948 = vor.u32 %v1946, %v1947
      %v1949 = vsel %vm1809, %v1944, %v1948
      %v1950 = vrot.slane %v804, 2
      %v1951 = vrot.slane %v800, 3
      %v1952 = vor.u32 %v1950, %v1951
      %v1953 = vsel %vm1809, %v1948, %v1952
      %v1954 = vrot.slane %v812, 2
      %v1955 = vrot.slane %v808, 3
      %v1956 = vor.u32 %v1954, %v1955
      %v1957 = vsel %vm1809, %v1952, %v1956
      %v1959 = vshrl.u32 %v1684, 16
      %v1961 = vrot.slane %v1959, 2
      %v1962 = vshll.u32 %v1684, 16
      %v1964 = vrot.slane %v1962, 3
      %v1965 = vor.u32 %v1961, %v1964
      %v1966 = vsel %vm1809, %v1956, %v1965
      %v1968 = vshrl.u32 %v1685, 16
      %v1970 = vrot.slane %v1968, 2
      %v1971 = vshll.u32 %v1685, 16
      %v1973 = vrot.slane %v1971, 3
      %v1974 = vor.u32 %v1970, %v1973
      %v1975 = vsel %vm1809, %v1965, %v1974
      %v1977 = vshrl.u32 %v1686, 16
      %v1979 = vrot.slane %v1977, 2
      %v1980 = vshll.u32 %v1686, 16
      %v1982 = vrot.slane %v1980, 3
      %v1983 = vor.u32 %v1979, %v1982
      %v1984 = vsel %vm1809, %v1974, %v1983
      %v1986 = vshrl.u32 %v1808, 16
      %v1988 = vrot.slane %v1986, 2
      %v1989 = vshll.u32 %v1808, 16
      %v1991 = vrot.slane %v1989, 3
      %v1992 = vor.u32 %v1988, %v1991
      %v1993 = vsel %vm1809, %v1983, %v1992
      %v2034 = vunpack.c.l.b16 %v265
      %v2035 = vpack.c.b16 %v351, %v2034
      %vm2036 = vcmask 1044480
      %v2037 = vrot.slane %v2035, 3
      %v2038 = vrot.slane %v426, 3
      %v2039 = vsel %vm2036, %v2037, %v2038
      %v2040 = vrot.slane %v427, 3
      %v2041 = vsel %vm2036, %v2038, %v2040
      %v2042 = vrot.slane %v428, 3
      %v2043 = vsel %vm2036, %v2040, %v2042
      %v2044 = vrot.slane %v429, 3
      %v2045 = vsel %vm2036, %v2042, %v2044
      %v2046 = vrot.slane %v430, 3
      %v2047 = vsel %vm2036, %v2044, %v2046
      %v2048 = vrot.slane %v431, 3
      %v2049 = vsel %vm2036, %v2046, %v2048
      %v2050 = vrot.slane %v432, 3
      %v2051 = vsel %vm2036, %v2048, %v2050
      %v2052 = vrot.slane %v433, 3
      %v2053 = vsel %vm2036, %v2050, %v2052
      %v2054 = vrot.slane %v434, 3
      %v2055 = vsel %vm2036, %v2052, %v2054
      %v2056 = vrot.slane %v435, 3
      %v2057 = vsel %vm2036, %v2054, %v2056
      %v2058 = vrot.slane %v436, 3
      %v2059 = vsel %vm2036, %v2056, %v2058
      %v2060 = vrot.slane %v437, 3
      %v2061 = vsel %vm2036, %v2058, %v2060
      %v2062 = vrot.slane %v438, 3
      %v2063 = vsel %vm2036, %v2060, %v2062
      %v2064 = vrot.slane %v439, 3
      %v2065 = vsel %vm2036, %v2062, %v2064
      %v2066 = vrot.slane %v440, 3
      %v2067 = vsel %vm2036, %v2064, %v2066
      %v2068 = vrot.slane %v441, 3
      %v2069 = vsel %vm2036, %v2066, %v2068
      %v2070 = vrot.slane %v442, 3
      %v2071 = vsel %vm2036, %v2068, %v2070
      %v2072 = vrot.slane %v443, 3
      %v2073 = vsel %vm2036, %v2070, %v2072
      %v2074 = vrot.slane %v444, 3
      %v2075 = vsel %vm2036, %v2072, %v2074
      %v2076 = vrot.slane %v445, 3
      %v2077 = vsel %vm2036, %v2074, %v2076
      %v2078 = vrot.slane %v446, 3
      %v2079 = vsel %vm2036, %v2076, %v2078
      %v2080 = vrot.slane %v447, 3
      %v2081 = vsel %vm2036, %v2078, %v2080
      %v2082 = vrot.slane %v448, 3
      %v2083 = vsel %vm2036, %v2080, %v2082
      %v2084 = vrot.slane %v449, 3
      %v2085 = vsel %vm2036, %v2082, %v2084
      %v2086 = vrot.slane %v450, 3
      %v2087 = vsel %vm2036, %v2084, %v2086
      %v2088 = vrot.slane %v451, 3
      %v2089 = vsel %vm2036, %v2086, %v2088
      %v2090 = vrot.slane %v452, 3
      %v2091 = vsel %vm2036, %v2088, %v2090
      %v2092 = vrot.slane %v453, 3
      %v2093 = vsel %vm2036, %v2090, %v2092
      %v2094 = vrot.slane %v454, 3
      %v2095 = vsel %vm2036, %v2092, %v2094
      %v2096 = vrot.slane %v455, 3
      %v2097 = vsel %vm2036, %v2094, %v2096
      %v2098 = vrot.slane %v456, 3
      %v2099 = vsel %vm2036, %v2096, %v2098
      %v2100 = vrot.slane %v457, 3
      %v2101 = vsel %vm2036, %v2098, %v2100
      %v2102 = vrot.slane %v458, 3
      %v2103 = vsel %vm2036, %v2100, %v2102
      %v2104 = vrot.slane %v459, 3
      %v2105 = vsel %vm2036, %v2102, %v2104
      %v2106 = vrot.slane %v460, 3
      %v2107 = vsel %vm2036, %v2104, %v2106
      %v2108 = vrot.slane %v1684, 3
      %v2109 = vsel %vm2036, %v2106, %v2108
      %v2110 = vrot.slane %v1685, 3
      %v2111 = vsel %vm2036, %v2108, %v2110
      %v2112 = vrot.slane %v1686, 3
      %v2113 = vsel %vm2036, %v2110, %v2112
      %v2114 = vrot.slane %v1808, 3
      %v2115 = vsel %vm2036, %v2112, %v2114
      %v2155 = vld [vmem:[%s1] sm:$0xf]
      %v2156 = vld [vmem:[%s1 + $0x4] sm:$0xf]
      %v2157 = vld [vmem:[%s1 + $0x8] sm:$0xf]
      %v2158 = vld [vmem:[%s1 + $0xc] sm:$0xf]
      %v2159 = vld [vmem:[%s1 + $0x10] sm:$0xf]
      %v2160 = vld [vmem:[%s1 + $0x14] sm:$0xf]
      %v2161 = vld [vmem:[%s1 + $0x18] sm:$0xf]
      %v2162 = vld [vmem:[%s1 + $0x1c] sm:$0xf]
      %v2163 = vld [vmem:[%s1 + $0x20] sm:$0xf]
      %v2164 = vld [vmem:[%s1 + $0x24] sm:$0xf]
      %v2165 = vld [vmem:[%s1 + $0x28] sm:$0xf]
      %v2166 = vld [vmem:[%s1 + $0x2c] sm:$0xf]
      %v2167 = vld [vmem:[%s1 + $0x30] sm:$0xf]
      %v2168 = vld [vmem:[%s1 + $0x34] sm:$0xf]
      %v2169 = vld [vmem:[%s1 + $0x38] sm:$0xf]
      %v2170 = vld [vmem:[%s1 + $0x3c] sm:$0xf]
      %v2171 = vld [vmem:[%s1 + $0x40] sm:$0xf]
      %v2172 = vld [vmem:[%s1 + $0x44] sm:$0xf]
      %v2173 = vld [vmem:[%s1 + $0x48] sm:$0xf]
      %v2174 = vld [vmem:[%s1 + $0x4c] sm:$0xf]
      %v2175 = vld [vmem:[%s1 + $0x50] sm:$0xf]
      %v2176 = vld [vmem:[%s1 + $0x54] sm:$0xf]
      %v2177 = vld [vmem:[%s1 + $0x58] sm:$0xf]
      %v2178 = vld [vmem:[%s1 + $0x5c] sm:$0xf]
      %v2179 = vld [vmem:[%s1 + $0x60] sm:$0xf]
      %v2180 = vld [vmem:[%s1 + $0x64] sm:$0xf]
      %v2181 = vld [vmem:[%s1 + $0x68] sm:$0xf]
      %v2182 = vld [vmem:[%s1 + $0x6c] sm:$0xf]
      %v2183 = vld [vmem:[%s1 + $0x70] sm:$0xf]
      %v2184 = vld [vmem:[%s1 + $0x74] sm:$0xf]
      %v2185 = vld [vmem:[%s1 + $0x78] sm:$0xf]
      %v2186 = vld [vmem:[%s1 + $0x7c] sm:$0xf]
      %v2187 = vld [vmem:[%s1 + $0x80] sm:$0xf]
      %v2188 = vld [vmem:[%s1 + $0x84] sm:$0xf]
      %v2189 = vld [vmem:[%s1 + $0x88] sm:$0xf]
      %v2190 = vld [vmem:[%s1 + $0x8c] sm:$0xf]
      %v2191 = vld [vmem:[%s1 + $0x90] sm:$0xf]
      %v2192 = vld [vmem:[%s1 + $0x94] sm:$0xf]
      %v2193 = vld [vmem:[%s1 + $0x98] sm:$0xf]
      %v2194 = vld [vmem:[%s1 + $0x9c] sm:$0xf]
      %v2195 = vld [vmem:[%s1 + $0xa0] sm:$0xf]
      %v2196 = vld [vmem:[%s1 + $0xa4] sm:$0xf]
      %v2197 = vld [vmem:[%s1 + $0xa8] sm:$0xf]
      %v2198 = vld [vmem:[%s1 + $0xac] sm:$0xf]
      %v2199 = vld [vmem:[%s1 + $0xb0] sm:$0xf]
      %v2200 = vld [vmem:[%s1 + $0xb4] sm:$0xf]
      %v2201 = vld [vmem:[%s1 + $0xb8] sm:$0xf]
      %v2202 = vld [vmem:[%s1 + $0xbc] sm:$0xf]
      %v2203 = vld [vmem:[%s1 + $0xc0] sm:$0xf]
      %v2204 = vld [vmem:[%s1 + $0xc4] sm:$0xf]
      %v2205 = vld [vmem:[%s1 + $0xc8] sm:$0xf]
      %v2206 = vld [vmem:[%s1 + $0xcc] sm:$0xf]
      %v2207 = vld [vmem:[%s1 + $0xd0] sm:$0xf]
      %v2208 = vld [vmem:[%s1 + $0xd4] sm:$0xf]
      %v2209 = vld [vmem:[%s1 + $0xd8] sm:$0xf]
      %v2210 = vld [vmem:[%s1 + $0xdc] sm:$0xf]
      %v2211 = vld [vmem:[%s1 + $0xe0] sm:$0xf]
      %v2212 = vld [vmem:[%s1 + $0xe4] sm:$0xf]
      %v2213 = vld [vmem:[%s1 + $0xe8] sm:$0xf]
      %v2214 = vld [vmem:[%s1 + $0xec] sm:$0xf]
      %v2215 = vld [vmem:[%s1 + $0xf0] sm:$0xf]
      %v2216 = vld [vmem:[%s1 + $0xf4] sm:$0xf]
      %v2217 = vld [vmem:[%s1 + $0xf8] sm:$0xf]
      %v2218 = vld [vmem:[%s1 + $0xfc] sm:$0xf]
      %v2219 = vld [vmem:[%s1 + $0x100] sm:$0xf]
      %v2220 = vld [vmem:[%s1 + $0x104] sm:$0xf]
      %v2221 = vld [vmem:[%s1 + $0x108] sm:$0xf]
      %v2222 = vld [vmem:[%s1 + $0x10c] sm:$0xf]
      %v2223 = vld [vmem:[%s1 + $0x110] sm:$0xf]
      %v2224 = vld [vmem:[%s1 + $0x114] sm:$0xf]
      %v2225 = vld [vmem:[%s1 + $0x118] sm:$0xf]
      %v2226 = vld [vmem:[%s1 + $0x11c] sm:$0xf]
      %v2227 = vld [vmem:[%s1 + $0x120] sm:$0xf]
      %v2228 = vld [vmem:[%s1 + $0x124] sm:$0xf]
      %v2229 = vld [vmem:[%s1 + $0x128] sm:$0xf]
      %v2230 = vld [vmem:[%s1 + $0x12c] sm:$0xf]
      %v2231 = vld [vmem:[%s1 + $0x130] sm:$0xf]
      %v2232 = vld [vmem:[%s1 + $0x134] sm:$0xf]
      %v2233 = vld [vmem:[%s1 + $0x138] sm:$0xf]
      %v2234 = vld [vmem:[%s1 + $0x13c] sm:$0xf]
      %v2235 = vld [vmem:[%s1 + $0x140] sm:$0xf]
      %v2236 = vld [vmem:[%s1 + $0x144] sm:$0xf]
      %v2237 = vld [vmem:[%s1 + $0x148] sm:$0xf]
      %v2238 = vld [vmem:[%s1 + $0x14c] sm:$0xf]
      %v2239 = vld [vmem:[%s1 + $0x150] sm:$0xf]
      %v2240 = vld [vmem:[%s1 + $0x154] sm:$0xf]
      %v2241 = vld [vmem:[%s1 + $0x158] sm:$0xf]
      %v2242 = vld [vmem:[%s1 + $0x15c] sm:$0xf]
      %v2243 = vld [vmem:[%s1 + $0x160] sm:$0xf]
      %v2244 = vld [vmem:[%s1 + $0x164] sm:$0xf]
      %v2245 = vld [vmem:[%s1 + $0x168] sm:$0xf]
      %v2246 = vld [vmem:[%s1 + $0x16c] sm:$0xf]
      %v2247 = vld [vmem:[%s1 + $0x170] sm:$0xf]
      %v2248 = vld [vmem:[%s1 + $0x174] sm:$0xf]
      %v2249 = vld [vmem:[%s1 + $0x178] sm:$0xf]
      %v2250 = vld [vmem:[%s1 + $0x17c] sm:$0xf]
      %v2251 = vld [vmem:[%s1 + $0x180] sm:$0xf]
      %v2252 = vld [vmem:[%s1 + $0x184] sm:$0xf]
      %v2253 = vld [vmem:[%s1 + $0x188] sm:$0xf]
      %v2254 = vld [vmem:[%s1 + $0x18c] sm:$0xf]
      %v2255 = vld [vmem:[%s1 + $0x190] sm:$0xf]
      %v2256 = vld [vmem:[%s1 + $0x194] sm:$0xf]
      %v2257 = vld [vmem:[%s1 + $0x198] sm:$0xf]
      %v2258 = vld [vmem:[%s1 + $0x19c] sm:$0xf]
      %v2259 = vld [vmem:[%s1 + $0x1a0] sm:$0xf]
      %v2260 = vld [vmem:[%s1 + $0x1a4] sm:$0xf]
      %v2261 = vld [vmem:[%s1 + $0x1a8] sm:$0xf]
      %v2262 = vld [vmem:[%s1 + $0x1ac] sm:$0xf]
      %v2263 = vld [vmem:[%s1 + $0x1b0] sm:$0xf]
      %v2264 = vld [vmem:[%s1 + $0x1b4] sm:$0xf]
      %v2265 = vld [vmem:[%s1 + $0x1b8] sm:$0xf]
      %v2266 = vld [vmem:[%s1 + $0x1bc] sm:$0xf]
      %v2267 = vld [vmem:[%s1 + $0x1c0] sm:$0xf]
      %v2268 = vld [vmem:[%s1 + $0x1c4] sm:$0xf]
      %v2269 = vld [vmem:[%s1 + $0x1c8] sm:$0xf]
      %v2270 = vld [vmem:[%s1 + $0x1cc] sm:$0xf]
      %v2271 = vld [vmem:[%s1 + $0x1d0] sm:$0xf]
      %v2272 = vld [vmem:[%s1 + $0x1d4] sm:$0xf]
      %v2273 = vld [vmem:[%s1 + $0x1d8] sm:$0xf]
      %v2274 = vld [vmem:[%s1 + $0x1dc] sm:$0xf]
      %v2275 = vld [vmem:[%s1 + $0x1e0] sm:$0xf]
      %v2276 = vld [vmem:[%s1 + $0x1e4] sm:$0xf]
      %v2277 = vld [vmem:[%s1 + $0x1e8] sm:$0xf]
      %v2278 = vld [vmem:[%s1 + $0x1ec] sm:$0xf]
      %v2279 = vld [vmem:[%s1 + $0x1f0] sm:$0xf]
      %v2280 = vld [vmem:[%s1 + $0x1f4] sm:$0xf]
      %v2281 = vld [vmem:[%s1 + $0x1f8] sm:$0xf]
      %v2282 = vld [vmem:[%s1 + $0x1fc] sm:$0xf]
      %v2283 = vld [vmem:[%s1 + $0x200] sm:$0xf]
      %v2284 = vld [vmem:[%s1 + $0x204] sm:$0xf]
      %v2285 = vld [vmem:[%s1 + $0x208] sm:$0xf]
      %v2286 = vld [vmem:[%s1 + $0x20c] sm:$0xf]
      %v2287 = vld [vmem:[%s1 + $0x210] sm:$0xf]
      %v2288 = vld [vmem:[%s1 + $0x214] sm:$0xf]
      %v2289 = vld [vmem:[%s1 + $0x218] sm:$0xf]
      %v2290 = vld [vmem:[%s1 + $0x21c] sm:$0xf]
      %v2291 = vld [vmem:[%s1 + $0x220] sm:$0xf]
      %v2292 = vld [vmem:[%s1 + $0x224] sm:$0xf]
      %v2293 = vld [vmem:[%s1 + $0x228] sm:$0xf]
      %v2294 = vld [vmem:[%s1 + $0x22c] sm:$0xf]
      %v2295 = vld [vmem:[%s1 + $0x230] sm:$0xf]
      %v2296 = vld [vmem:[%s1 + $0x234] sm:$0xf]
      %v2297 = vld [vmem:[%s1 + $0x238] sm:$0xf]
      %v2298 = vld [vmem:[%s1 + $0x23c] sm:$0xf]
      %v2299 = vld [vmem:[%s2] sm:$0x1]
      %v2301 = vlaneseq
      %v2302 = vshrl.u32 %v2301, 7
      %v2303 = vsub.s32 0, %v2302
      %v2304 = vrot.slane %v2299, %v2303
      %v2450 = vunpack.c.l.b16 %v2155
      %v2451 = vunpack.c.l.b16 %v2156
      %v2452 = vunpack.c.l.b16 %v2157
      %v2453 = vunpack.c.l.b16 %v2158
      %v2454 = vunpack.c.l.b16 %v2159
      %v2455 = vunpack.c.l.b16 %v2160
      %v2456 = vunpack.c.l.b16 %v2161
      %v2457 = vunpack.c.l.b16 %v2162
      %v2458 = vunpack.c.l.b16 %v2163
      %v2459 = vunpack.c.l.b16 %v2164
      %v2460 = vunpack.c.l.b16 %v2165
      %v2461 = vunpack.c.l.b16 %v2166
      %v2462 = vunpack.c.l.b16 %v2167
      %v2463 = vunpack.c.l.b16 %v2168
      %v2464 = vunpack.c.l.b16 %v2169
      %v2465 = vunpack.c.l.b16 %v2170
      %v2466 = vunpack.c.l.b16 %v2171
      %v2467 = vunpack.c.l.b16 %v2172
      %v2468 = vunpack.c.l.b16 %v2173
      %v2469 = vunpack.c.l.b16 %v2174
      %v2470 = vunpack.c.l.b16 %v2175
      %v2471 = vunpack.c.l.b16 %v2176
      %v2472 = vunpack.c.l.b16 %v2177
      %v2473 = vunpack.c.l.b16 %v2178
      %v2474 = vunpack.c.l.b16 %v2179
      %v2475 = vunpack.c.l.b16 %v2180
      %v2476 = vunpack.c.l.b16 %v2181
      %v2477 = vunpack.c.l.b16 %v2182
      %v2478 = vunpack.c.l.b16 %v2183
      %v2479 = vunpack.c.l.b16 %v2184
      %v2480 = vunpack.c.l.b16 %v2185
      %v2481 = vunpack.c.l.b16 %v2186
      %v2482 = vunpack.c.l.b16 %v2187
      %v2483 = vunpack.c.l.b16 %v2188
      %v2484 = vunpack.c.l.b16 %v2189
      %v2485 = vunpack.c.l.b16 %v2190
      %v2486 = vunpack.c.l.b16 %v2191
      %v2487 = vunpack.c.l.b16 %v2192
      %v2488 = vunpack.c.l.b16 %v2193
      %v2489 = vunpack.c.l.b16 %v2194
      %v2490 = vunpack.c.l.b16 %v2195
      %v2491 = vunpack.c.l.b16 %v2196
      %v2492 = vunpack.c.l.b16 %v2197
      %v2493 = vunpack.c.l.b16 %v2198
      %v2494 = vunpack.c.l.b16 %v2199
      %v2495 = vunpack.c.l.b16 %v2200
      %v2496 = vunpack.c.l.b16 %v2201
      %v2497 = vunpack.c.l.b16 %v2202
      %v2498 = vunpack.c.l.b16 %v2203
      %v2499 = vunpack.c.l.b16 %v2204
      %v2500 = vunpack.c.l.b16 %v2205
      %v2501 = vunpack.c.l.b16 %v2206
      %v2502 = vunpack.c.l.b16 %v2207
      %v2503 = vunpack.c.l.b16 %v2208
      %v2504 = vunpack.c.l.b16 %v2209
      %v2505 = vunpack.c.l.b16 %v2210
      %v2506 = vunpack.c.l.b16 %v2211
      %v2507 = vunpack.c.l.b16 %v2212
      %v2508 = vunpack.c.l.b16 %v2213
      %v2509 = vunpack.c.l.b16 %v2214
      %v2510 = vunpack.c.l.b16 %v2215
      %v2511 = vunpack.c.l.b16 %v2216
      %v2512 = vunpack.c.l.b16 %v2217
      %v2513 = vunpack.c.l.b16 %v2218
      %v2514 = vunpack.c.l.b16 %v2219
      %v2515 = vunpack.c.l.b16 %v2220
      %v2516 = vunpack.c.l.b16 %v2221
      %v2517 = vunpack.c.l.b16 %v2222
      %v2518 = vunpack.c.l.b16 %v2223
      %v2519 = vunpack.c.l.b16 %v2224
      %v2520 = vunpack.c.l.b16 %v2225
      %v2521 = vunpack.c.l.b16 %v2226
      %v2522 = vunpack.c.l.b16 %v2227
      %v2523 = vunpack.c.l.b16 %v2228
      %v2524 = vunpack.c.l.b16 %v2229
      %v2525 = vunpack.c.l.b16 %v2230
      %v2526 = vunpack.c.l.b16 %v2231
      %v2527 = vunpack.c.l.b16 %v2232
      %v2528 = vunpack.c.l.b16 %v2233
      %v2529 = vunpack.c.l.b16 %v2234
      %v2530 = vunpack.c.l.b16 %v2235
      %v2531 = vunpack.c.l.b16 %v2236
      %v2532 = vunpack.c.l.b16 %v2237
      %v2533 = vunpack.c.l.b16 %v2238
      %v2534 = vunpack.c.l.b16 %v2239
      %v2535 = vunpack.c.l.b16 %v2240
      %v2536 = vunpack.c.l.b16 %v2241
      %v2537 = vunpack.c.l.b16 %v2242
      %v2538 = vunpack.c.l.b16 %v2243
      %v2539 = vunpack.c.l.b16 %v2244
      %v2540 = vunpack.c.l.b16 %v2245
      %v2541 = vunpack.c.l.b16 %v2246
      %v2542 = vunpack.c.l.b16 %v2247
      %v2543 = vunpack.c.l.b16 %v2248
      %v2544 = vunpack.c.l.b16 %v2249
      %v2545 = vunpack.c.l.b16 %v2250
      %v2546 = vunpack.c.l.b16 %v2251
      %v2547 = vunpack.c.l.b16 %v2252
      %v2548 = vunpack.c.l.b16 %v2253
      %v2549 = vunpack.c.l.b16 %v2254
      %v2550 = vunpack.c.l.b16 %v2255
      %v2551 = vunpack.c.l.b16 %v2256
      %v2552 = vunpack.c.l.b16 %v2257
      %v2553 = vunpack.c.l.b16 %v2258
      %v2554 = vunpack.c.l.b16 %v2259
      %v2555 = vunpack.c.l.b16 %v2260
      %v2556 = vunpack.c.l.b16 %v2261
      %v2557 = vunpack.c.l.b16 %v2262
      %v2558 = vunpack.c.l.b16 %v2263
      %v2559 = vunpack.c.l.b16 %v2264
      %v2560 = vunpack.c.l.b16 %v2265
      %v2561 = vunpack.c.l.b16 %v2266
      %v2562 = vunpack.c.l.b16 %v2267
      %v2563 = vunpack.c.l.b16 %v2268
      %v2564 = vunpack.c.l.b16 %v2269
      %v2565 = vunpack.c.l.b16 %v2270
      %v2566 = vunpack.c.l.b16 %v2271
      %v2567 = vunpack.c.l.b16 %v2272
      %v2568 = vunpack.c.l.b16 %v2273
      %v2569 = vunpack.c.l.b16 %v2274
      %v2570 = vunpack.c.l.b16 %v2275
      %v2571 = vunpack.c.l.b16 %v2276
      %v2572 = vunpack.c.l.b16 %v2277
      %v2573 = vunpack.c.l.b16 %v2278
      %v2574 = vunpack.c.l.b16 %v2279
      %v2575 = vunpack.c.l.b16 %v2280
      %v2576 = vunpack.c.l.b16 %v2281
      %v2577 = vunpack.c.l.b16 %v2282
      %v2578 = vunpack.c.l.b16 %v2283
      %v2579 = vunpack.c.l.b16 %v2284
      %v2580 = vunpack.c.l.b16 %v2285
      %v2581 = vunpack.c.l.b16 %v2286
      %v2582 = vunpack.c.l.b16 %v2287
      %v2583 = vunpack.c.l.b16 %v2288
      %v2584 = vunpack.c.l.b16 %v2289
      %v2585 = vunpack.c.l.b16 %v2290
      %v2586 = vunpack.c.l.b16 %v2291
      %v2587 = vunpack.c.l.b16 %v2292
      %v2588 = vunpack.c.l.b16 %v2293
      %v2589 = vunpack.c.l.b16 %v2294
      %v2590 = vunpack.c.l.b16 %v2295
      %v2591 = vunpack.c.l.b16 %v2296
      %v2592 = vunpack.c.l.b16 %v2297
      %v2593 = vunpack.c.l.b16 %v2298
      %v2594 = vpack.c.b16 %v2451, %v2450
      %v2595 = vpack.c.b16 %v2453, %v2452
      %v2596 = vpack.c.b16 %v2455, %v2454
      %v2597 = vpack.c.b16 %v2457, %v2456
      %v2598 = vpack.c.b16 %v2459, %v2458
      %v2599 = vpack.c.b16 %v2461, %v2460
      %v2600 = vpack.c.b16 %v2463, %v2462
      %v2601 = vpack.c.b16 %v2465, %v2464
      %v2602 = vpack.c.b16 %v2467, %v2466
      %v2603 = vpack.c.b16 %v2469, %v2468
      %v2604 = vpack.c.b16 %v2471, %v2470
      %v2605 = vpack.c.b16 %v2473, %v2472
      %v2606 = vpack.c.b16 %v2475, %v2474
      %v2607 = vpack.c.b16 %v2477, %v2476
      %v2608 = vpack.c.b16 %v2479, %v2478
      %v2609 = vpack.c.b16 %v2481, %v2480
      %v2610 = vpack.c.b16 %v2483, %v2482
      %v2611 = vpack.c.b16 %v2485, %v2484
      %v2612 = vpack.c.b16 %v2487, %v2486
      %v2613 = vpack.c.b16 %v2489, %v2488
      %v2614 = vpack.c.b16 %v2491, %v2490
      %v2615 = vpack.c.b16 %v2493, %v2492
      %v2616 = vpack.c.b16 %v2495, %v2494
      %v2617 = vpack.c.b16 %v2497, %v2496
      %v2618 = vpack.c.b16 %v2499, %v2498
      %v2619 = vpack.c.b16 %v2501, %v2500
      %v2620 = vpack.c.b16 %v2503, %v2502
      %v2621 = vpack.c.b16 %v2505, %v2504
      %v2622 = vpack.c.b16 %v2507, %v2506
      %v2623 = vpack.c.b16 %v2509, %v2508
      %v2624 = vpack.c.b16 %v2511, %v2510
      %v2625 = vpack.c.b16 %v2513, %v2512
      %v2626 = vpack.c.b16 %v2515, %v2514
      %v2627 = vpack.c.b16 %v2517, %v2516
      %v2628 = vpack.c.b16 %v2519, %v2518
      %v2629 = vpack.c.b16 %v2521, %v2520
      %v2630 = vpack.c.b16 %v2523, %v2522
      %v2631 = vpack.c.b16 %v2525, %v2524
      %v2632 = vpack.c.b16 %v2527, %v2526
      %v2633 = vpack.c.b16 %v2529, %v2528
      %v2634 = vpack.c.b16 %v2531, %v2530
      %v2635 = vpack.c.b16 %v2533, %v2532
      %v2636 = vpack.c.b16 %v2535, %v2534
      %v2637 = vpack.c.b16 %v2537, %v2536
      %v2638 = vpack.c.b16 %v2539, %v2538
      %v2639 = vpack.c.b16 %v2541, %v2540
      %v2640 = vpack.c.b16 %v2543, %v2542
      %v2641 = vpack.c.b16 %v2545, %v2544
      %v2642 = vpack.c.b16 %v2547, %v2546
      %v2643 = vpack.c.b16 %v2549, %v2548
      %v2644 = vpack.c.b16 %v2551, %v2550
      %v2645 = vpack.c.b16 %v2553, %v2552
      %v2646 = vpack.c.b16 %v2555, %v2554
      %v2647 = vpack.c.b16 %v2557, %v2556
      %v2648 = vpack.c.b16 %v2559, %v2558
      %v2649 = vpack.c.b16 %v2561, %v2560
      %v2650 = vpack.c.b16 %v2563, %v2562
      %v2651 = vpack.c.b16 %v2565, %v2564
      %v2652 = vpack.c.b16 %v2567, %v2566
      %v2653 = vpack.c.b16 %v2569, %v2568
      %v2654 = vpack.c.b16 %v2571, %v2570
      %v2655 = vpack.c.b16 %v2573, %v2572
      %v2656 = vpack.c.b16 %v2575, %v2574
      %v2657 = vpack.c.b16 %v2577, %v2576
      %v2658 = vpack.c.b16 %v2579, %v2578
      %v2659 = vpack.c.b16 %v2581, %v2580
      %v2660 = vpack.c.b16 %v2583, %v2582
      %v2661 = vpack.c.b16 %v2585, %v2584
      %v2662 = vpack.c.b16 %v2587, %v2586
      %v2663 = vpack.c.b16 %v2589, %v2588
      %v2664 = vpack.c.b16 %v2591, %v2590
      %v2665 = vpack.c.b16 %v2593, %v2592
      %2738 = vmatprep.subr.bf16.mxu0 0
      %2739 = vmatpush1.bf16.msra.mxu0 %v2594
      %2740 = vmatprep.subr.bf16.mxu0 0
      %2741 = vmatpush1.bf16.msra.mxu0 %v2595
      %2742 = vmatprep.subr.bf16.mxu0 0
      %2743 = vmatpush1.bf16.msra.mxu0 %v2596
      %2744 = vmatprep.subr.bf16.mxu0 0
      %2745 = vmatpush1.bf16.msra.mxu0 %v2597
      %2746 = vmatprep.subr.bf16.mxu0 0
      %2747 = vmatpush1.bf16.msra.mxu0 %v2598
      %2748 = vmatprep.subr.bf16.mxu0 0
      %2749 = vmatpush1.bf16.msra.mxu0 %v2599
      %2750 = vmatprep.subr.bf16.mxu0 0
      %2751 = vmatpush1.bf16.msra.mxu0 %v2600
      %2752 = vmatprep.subr.bf16.mxu0 0
      %2753 = vmatpush1.bf16.msra.mxu0 %v2601
      %2754 = vmatprep.subr.bf16.mxu0 0
      %2755 = vmatpush1.bf16.msra.mxu0 %v2602
      %2756 = vmatprep.subr.bf16.mxu0 0
      %2757 = vmatpush1.bf16.msra.mxu0 %v2603
      %2758 = vmatprep.subr.bf16.mxu0 0
      %2759 = vmatpush1.bf16.msra.mxu0 %v2604
      %2760 = vmatprep.subr.bf16.mxu0 0
      %2761 = vmatpush1.bf16.msra.mxu0 %v2605
      %2762 = vmatprep.subr.bf16.mxu0 0
      %2763 = vmatpush1.bf16.msra.mxu0 %v2606
      %2764 = vmatprep.subr.bf16.mxu0 0
      %2765 = vmatpush1.bf16.msra.mxu0 %v2607
      %2766 = vmatprep.subr.bf16.mxu0 0
      %2767 = vmatpush1.bf16.msra.mxu0 %v2608
      %2768 = vmatprep.subr.bf16.mxu0 0
      %2769 = vmatpush1.bf16.msra.mxu0 %v2609
      %2770 = vmatprep.mubr.bf16.mxu0 %v515
      %2771 = vmatmul.mubr.bf16.gmra.mrb[0].mxu0 %v422
      %v2772 = vpop.f32.mrb[0].mxu0
      %v2773 = vadd.f32 %v2304, %v2772
      %v2774 = vpop.f32.mrb[0].mxu0
      %v2775 = vpop.f32.mrb[0].mxu0
      %v2776 = vadd.f32 %v2304, %v2775
      %v2777 = vpop.f32.mrb[0].mxu0
      %2778 = vmatprep.mubr.bf16.mxu0 %v523
      %2779 = vmatmul.mubr.bf16.gmra.mrb[0].mxu0 %v423
      %v2780 = vpop.f32.mrb[0].mxu0
      %v2781 = vadd.f32 %v2304, %v2780
      %v2782 = vpop.f32.mrb[0].mxu0
      %v2783 = vpop.f32.mrb[0].mxu0
      %v2784 = vadd.f32 %v2304, %v2783
      %v2785 = vpop.f32.mrb[0].mxu0
      %2786 = vmatprep.mubr.bf16.mxu0 %v531
      %2787 = vmatmul.mubr.bf16.gmra.mrb[0].mxu0 %v424
      %v2788 = vpop.f32.mrb[0].mxu0
      %v2789 = vadd.f32 %v2304, %v2788
      %v2790 = vpop.f32.mrb[0].mxu0
      %v2791 = vpop.f32.mrb[0].mxu0
      %v2792 = vadd.f32 %v2304, %v2791
      %v2793 = vpop.f32.mrb[0].mxu0
      %2794 = vmatprep.mubr.bf16.mxu0 %v539
      %2795 = vmatmul.mubr.bf16.gmra.mrb[0].mxu0 %v425
      %v2796 = vpop.f32.mrb[0].mxu0
      %v2797 = vadd.f32 %v2304, %v2796
      %v2798 = vpop.f32.mrb[0].mxu0
      %v2799 = vpop.f32.mrb[0].mxu0
      %v2800 = vadd.f32 %v2304, %v2799
      %v2801 = vpop.f32.mrb[0].mxu0
      %2802 = vmatprep.mubr.bf16.mxu0 %v547
      %2803 = vmatmul.mubr.bf16.gmra.mrb[0].mxu0 %v426
      %v2804 = vpop.f32.mrb[0].mxu0
      %v2805 = vadd.f32 %v2304, %v2804
      %v2806 = vpop.f32.mrb[0].mxu0
      %v2807 = vpop.f32.mrb[0].mxu0
      %v2808 = vadd.f32 %v2304, %v2807
      %v2809 = vpop.f32.mrb[0].mxu0
      %2810 = vmatprep.mubr.bf16.mxu0 %v555
      %2811 = vmatmul.mubr.bf16.gmra.mrb[0].mxu0 %v427
      %v2812 = vpop.f32.mrb[0].mxu0
      %v2813 = vadd.f32 %v2304, %v2812
      %v2814 = vpop.f32.mrb[0].mxu0
      %v2815 = vpop.f32.mrb[0].mxu0
      %v2816 = vadd.f32 %v2304, %v2815
      %v2817 = vpop.f32.mrb[0].mxu0
      %2818 = vmatprep.mubr.bf16.mxu0 %v563
      %2819 = vmatmul.mubr.bf16.gmra.mrb[0].mxu0 %v428
      %v2820 = vpop.f32.mrb[0].mxu0
      %v2821 = vadd.f32 %v2304, %v2820
      %v2822 = vpop.f32.mrb[0].mxu0
      %v2823 = vpop.f32.mrb[0].mxu0
      %v2824 = vadd.f32 %v2304, %v2823
      %v2825 = vpop.f32.mrb[0].mxu0
      %2826 = vmatprep.mubr.bf16.mxu0 %v571
      %2827 = vmatmul.mubr.bf16.gmra.mrb[0].mxu0 %v429
      %v2828 = vpop.f32.mrb[0].mxu0
      %v2829 = vadd.f32 %v2304, %v2828
      %v2830 = vpop.f32.mrb[0].mxu0
      %v2831 = vpop.f32.mrb[0].mxu0
      %v2832 = vadd.f32 %v2304, %v2831
      %v2833 = vpop.f32.mrb[0].mxu0
      %2834 = vmatprep.mubr.bf16.mxu0 %v579
      %2835 = vmatmul.mubr.bf16.gmra.mrb[0].mxu0 %v430
      %v2836 = vpop.f32.mrb[0].mxu0
      %v2837 = vadd.f32 %v2304, %v2836
      %v2838 = vpop.f32.mrb[0].mxu0
      %v2839 = vpop.f32.mrb[0].mxu0
      %v2840 = vadd.f32 %v2304, %v2839
      %v2841 = vpop.f32.mrb[0].mxu0
      %2842 = vmatprep.mubr.bf16.mxu0 %v587
      %2843 = vmatmul.mubr.bf16.gmra.mrb[0].mxu0 %v431
      %v2844 = vpop.f32.mrb[0].mxu0
      %v2845 = vadd.f32 %v2304, %v2844
      %v2846 = vpop.f32.mrb[0].mxu0
      %v2847 = vpop.f32.mrb[0].mxu0
      %v2848 = vadd.f32 %v2304, %v2847
      %v2849 = vpop.f32.mrb[0].mxu0
      %2850 = vmatprep.mubr.bf16.mxu0 %v595
      %2851 = vmatmul.mubr.bf16.gmra.mrb[0].mxu0 %v432
      %v2852 = vpop.f32.mrb[0].mxu0
      %v2853 = vadd.f32 %v2304, %v2852
      %v2854 = vpop.f32.mrb[0].mxu0
      %v2855 = vpop.f32.mrb[0].mxu0
      %v2856 = vadd.f32 %v2304, %v2855
      %v2857 = vpop.f32.mrb[0].mxu0
      %2858 = vmatprep.mubr.bf16.mxu0 %v603
      %2859 = vmatmul.mubr.bf16.gmra.mrb[0].mxu0 %v433
      %v2860 = vpop.f32.mrb[0].mxu0
      %v2861 = vadd.f32 %v2304, %v2860
      %v2862 = vpop.f32.mrb[0].mxu0
      %v2863 = vpop.f32.mrb[0].mxu0
      %v2864 = vadd.f32 %v2304, %v2863
      %v2865 = vpop.f32.mrb[0].mxu0
      %2866 = vmatprep.mubr.bf16.mxu0 %v611
      %2867 = vmatmul.mubr.bf16.gmra.mrb[0].mxu0 %v434
      %v2868 = vpop.f32.mrb[0].mxu0
      %v2869 = vadd.f32 %v2304, %v2868
      %v2870 = vpop.f32.mrb[0].mxu0
      %v2871 = vpop.f32.mrb[0].mxu0
      %v2872 = vadd.f32 %v2304, %v2871
      %v2873 = vpop.f32.mrb[0].mxu0
      %2874 = vmatprep.mubr.bf16.mxu0 %v619
      %2875 = vmatmul.mubr.bf16.gmra.mrb[0].mxu0 %v435
      %v2876 = vpop.f32.mrb[0].mxu0
      %v2877 = vadd.f32 %v2304, %v2876
      %v2878 = vpop.f32.mrb[0].mxu0
      %v2879 = vpop.f32.mrb[0].mxu0
      %v2880 = vadd.f32 %v2304, %v2879
      %v2881 = vpop.f32.mrb[0].mxu0
      %2882 = vmatprep.mubr.bf16.mxu0 %v627
      %2883 = vmatmul.mubr.bf16.gmra.mrb[0].mxu0 %v436
      %v2884 = vpop.f32.mrb[0].mxu0
      %v2885 = vadd.f32 %v2304, %v2884
      %v2886 = vpop.f32.mrb[0].mxu0
      %v2887 = vpop.f32.mrb[0].mxu0
      %v2888 = vadd.f32 %v2304, %v2887
      %v2889 = vpop.f32.mrb[0].mxu0
      %2890 = vmatprep.mubr.bf16.mxu0 %v635
      %2891 = vmatmul.mubr.bf16.gmra.mrb[0].mxu0 %v437
      %v2892 = vpop.f32.mrb[0].mxu0
      %v2893 = vadd.f32 %v2304, %v2892
      %v2894 = vpop.f32.mrb[0].mxu0
      %v2895 = vpop.f32.mrb[0].mxu0
      %v2896 = vadd.f32 %v2304, %v2895
      %v2897 = vpop.f32.mrb[0].mxu0
      %2898 = vmatprep.mubr.bf16.mxu0 %v643
      %2899 = vmatmul.mubr.bf16.gmra.mrb[0].mxu0 %v438
      %v2900 = vpop.f32.mrb[0].mxu0
      %v2901 = vadd.f32 %v2304, %v2900
      %v2902 = vpop.f32.mrb[0].mxu0
      %v2903 = vpop.f32.mrb[0].mxu0
      %v2904 = vadd.f32 %v2304, %v2903
      %v2905 = vpop.f32.mrb[0].mxu0
      %2906 = vmatprep.mubr.bf16.mxu0 %v651
      %2907 = vmatmul.mubr.bf16.gmra.mrb[0].mxu0 %v439
      %v2908 = vpop.f32.mrb[0].mxu0
      %v2909 = vadd.f32 %v2304, %v2908
      %v2910 = vpop.f32.mrb[0].mxu0
      %v2911 = vpop.f32.mrb[0].mxu0
      %v2912 = vadd.f32 %v2304, %v2911
      %v2913 = vpop.f32.mrb[0].mxu0
      %2914 = vmatprep.mubr.bf16.mxu0 %v659
      %2915 = vmatmul.mubr.bf16.gmra.mrb[0].mxu0 %v440
      %v2916 = vpop.f32.mrb[0].mxu0
      %v2917 = vadd.f32 %v2304, %v2916
      %v2918 = vpop.f32.mrb[0].mxu0
      %v2919 = vpop.f32.mrb[0].mxu0
      %v2920 = vadd.f32 %v2304, %v2919
      %v2921 = vpop.f32.mrb[0].mxu0
      %2922 = vmatprep.mubr.bf16.mxu0 %v667
      %2923 = vmatmul.mubr.bf16.gmra.mrb[0].mxu0 %v441
      %v2924 = vpop.f32.mrb[0].mxu0
      %v2925 = vadd.f32 %v2304, %v2924
      %v2926 = vpop.f32.mrb[0].mxu0
      %v2927 = vpop.f32.mrb[0].mxu0
      %v2928 = vadd.f32 %v2304, %v2927
      %v2929 = vpop.f32.mrb[0].mxu0
      %2930 = vmatprep.mubr.bf16.mxu0 %v675
      %2931 = vmatmul.mubr.bf16.gmra.mrb[0].mxu0 %v442
      %v2932 = vpop.f32.mrb[0].mxu0
      %v2933 = vadd.f32 %v2304, %v2932
      %v2934 = vpop.f32.mrb[0].mxu0
      %v2935 = vpop.f32.mrb[0].mxu0
      %v2936 = vadd.f32 %v2304, %v2935
      %v2937 = vpop.f32.mrb[0].mxu0
      %2938 = vmatprep.mubr.bf16.mxu0 %v683
      %2939 = vmatmul.mubr.bf16.gmra.mrb[0].mxu0 %v443
      %v2940 = vpop.f32.mrb[0].mxu0
      %v2941 = vadd.f32 %v2304, %v2940
      %v2942 = vpop.f32.mrb[0].mxu0
      %v2943 = vpop.f32.mrb[0].mxu0
      %v2944 = vadd.f32 %v2304, %v2943
      %v2945 = vpop.f32.mrb[0].mxu0
      %2946 = vmatprep.mubr.bf16.mxu0 %v691
      %2947 = vmatmul.mubr.bf16.gmra.mrb[0].mxu0 %v444
      %v2948 = vpop.f32.mrb[0].mxu0
      %v2949 = vadd.f32 %v2304, %v2948
      %v2950 = vpop.f32.mrb[0].mxu0
      %v2951 = vpop.f32.mrb[0].mxu0
      %v2952 = vadd.f32 %v2304, %v2951
      %v2953 = vpop.f32.mrb[0].mxu0
      %2954 = vmatprep.mubr.bf16.mxu0 %v699
      %2955 = vmatmul.mubr.bf16.gmra.mrb[0].mxu0 %v445
      %v2956 = vpop.f32.mrb[0].mxu0
      %v2957 = vadd.f32 %v2304, %v2956
      %v2958 = vpop.f32.mrb[0].mxu0
      %v2959 = vpop.f32.mrb[0].mxu0
      %v2960 = vadd.f32 %v2304, %v2959
      %v2961 = vpop.f32.mrb[0].mxu0
      %2962 = vmatprep.mubr.bf16.mxu0 %v707
      %2963 = vmatmul.mubr.bf16.gmra.mrb[0].mxu0 %v446
      %v2964 = vpop.f32.mrb[0].mxu0
      %v2965 = vadd.f32 %v2304, %v2964
      %v2966 = vpop.f32.mrb[0].mxu0
      %v2967 = vpop.f32.mrb[0].mxu0
      %v2968 = vadd.f32 %v2304, %v2967
      %v2969 = vpop.f32.mrb[0].mxu0
      %2970 = vmatprep.mubr.bf16.mxu0 %v715
      %2971 = vmatmul.mubr.bf16.gmra.mrb[0].mxu0 %v447
      %v2972 = vpop.f32.mrb[0].mxu0
      %v2973 = vadd.f32 %v2304, %v2972
      %v2974 = vpop.f32.mrb[0].mxu0
      %v2975 = vpop.f32.mrb[0].mxu0
      %v2976 = vadd.f32 %v2304, %v2975
      %v2977 = vpop.f32.mrb[0].mxu0
      %2978 = vmatprep.mubr.bf16.mxu0 %v723
      %2979 = vmatmul.mubr.bf16.gmra.mrb[0].mxu0 %v448
      %v2980 = vpop.f32.mrb[0].mxu0
      %v2981 = vadd.f32 %v2304, %v2980
      %v2982 = vpop.f32.mrb[0].mxu0
      %v2983 = vpop.f32.mrb[0].mxu0
      %v2984 = vadd.f32 %v2304, %v2983
      %v2985 = vpop.f32.mrb[0].mxu0
      %2986 = vmatprep.mubr.bf16.mxu0 %v731
      %2987 = vmatmul.mubr.bf16.gmra.mrb[0].mxu0 %v449
      %v2988 = vpop.f32.mrb[0].mxu0
      %v2989 = vadd.f32 %v2304, %v2988
      %v2990 = vpop.f32.mrb[0].mxu0
      %v2991 = vpop.f32.mrb[0].mxu0
      %v2992 = vadd.f32 %v2304, %v2991
      %v2993 = vpop.f32.mrb[0].mxu0
      %2994 = vmatprep.mubr.bf16.mxu0 %v739
      %2995 = vmatmul.mubr.bf16.gmra.mrb[0].mxu0 %v450
      %v2996 = vpop.f32.mrb[0].mxu0
      %v2997 = vadd.f32 %v2304, %v2996
      %v2998 = vpop.f32.mrb[0].mxu0
      %v2999 = vpop.f32.mrb[0].mxu0
      %v3000 = vadd.f32 %v2304, %v2999
      %v3001 = vpop.f32.mrb[0].mxu0
      %3002 = vmatprep.mubr.bf16.mxu0 %v747
      %3003 = vmatmul.mubr.bf16.gmra.mrb[0].mxu0 %v451
      %v3004 = vpop.f32.mrb[0].mxu0
      %v3005 = vadd.f32 %v2304, %v3004
      %v3006 = vpop.f32.mrb[0].mxu0
      %v3007 = vpop.f32.mrb[0].mxu0
      %v3008 = vadd.f32 %v2304, %v3007
      %v3009 = vpop.f32.mrb[0].mxu0
      %3010 = vmatprep.mubr.bf16.mxu0 %v755
      %3011 = vmatmul.mubr.bf16.gmra.mrb[0].mxu0 %v452
      %v3012 = vpop.f32.mrb[0].mxu0
      %v3013 = vadd.f32 %v2304, %v3012
      %v3014 = vpop.f32.mrb[0].mxu0
      %v3015 = vpop.f32.mrb[0].mxu0
      %v3016 = vadd.f32 %v2304, %v3015
      %v3017 = vpop.f32.mrb[0].mxu0
      %3018 = vmatprep.mubr.bf16.mxu0 %v763
      %3019 = vmatmul.mubr.bf16.gmra.mrb[0].mxu0 %v453
      %v3020 = vpop.f32.mrb[0].mxu0
      %v3021 = vadd.f32 %v2304, %v3020
      %v3022 = vpop.f32.mrb[0].mxu0
      %v3023 = vpop.f32.mrb[0].mxu0
      %v3024 = vadd.f32 %v2304, %v3023
      %v3025 = vpop.f32.mrb[0].mxu0
      %3026 = vmatprep.mubr.bf16.mxu0 %v771
      %3027 = vmatmul.mubr.bf16.gmra.mrb[0].mxu0 %v454
      %v3028 = vpop.f32.mrb[0].mxu0
      %v3029 = vadd.f32 %v2304, %v3028
      %v3030 = vpop.f32.mrb[0].mxu0
      %v3031 = vpop.f32.mrb[0].mxu0
      %v3032 = vadd.f32 %v2304, %v3031
      %v3033 = vpop.f32.mrb[0].mxu0
      %3034 = vmatprep.mubr.bf16.mxu0 %v779
      %3035 = vmatmul.mubr.bf16.gmra.mrb[0].mxu0 %v455
      %v3036 = vpop.f32.mrb[0].mxu0
      %v3037 = vadd.f32 %v2304, %v3036
      %v3038 = vpop.f32.mrb[0].mxu0
      %v3039 = vpop.f32.mrb[0].mxu0
      %v3040 = vadd.f32 %v2304, %v3039
      %v3041 = vpop.f32.mrb[0].mxu0
      %3042 = vmatprep.mubr.bf16.mxu0 %v787
      %3043 = vmatmul.mubr.bf16.gmra.mrb[0].mxu0 %v456
      %v3044 = vpop.f32.mrb[0].mxu0
      %v3045 = vadd.f32 %v2304, %v3044
      %v3046 = vpop.f32.mrb[0].mxu0
      %v3047 = vpop.f32.mrb[0].mxu0
      %v3048 = vadd.f32 %v2304, %v3047
      %v3049 = vpop.f32.mrb[0].mxu0
      %3050 = vmatprep.mubr.bf16.mxu0 %v795
      %3051 = vmatmul.mubr.bf16.gmra.mrb[0].mxu0 %v457
      %v3052 = vpop.f32.mrb[0].mxu0
      %v3053 = vadd.f32 %v2304, %v3052
      %v3054 = vpop.f32.mrb[0].mxu0
      %v3055 = vpop.f32.mrb[0].mxu0
      %v3056 = vadd.f32 %v2304, %v3055
      %v3057 = vpop.f32.mrb[0].mxu0
      %3058 = vmatprep.mubr.bf16.mxu0 %v803
      %3059 = vmatmul.mubr.bf16.gmra.mrb[0].mxu0 %v458
      %v3060 = vpop.f32.mrb[0].mxu0
      %v3061 = vadd.f32 %v2304, %v3060
      %v3062 = vpop.f32.mrb[0].mxu0
      %v3063 = vpop.f32.mrb[0].mxu0
      %v3064 = vadd.f32 %v2304, %v3063
      %v3065 = vpop.f32.mrb[0].mxu0
      %3066 = vmatprep.mubr.bf16.mxu0 %v811
      %3067 = vmatmul.mubr.bf16.gmra.mrb[0].mxu0 %v459
      %v3068 = vpop.f32.mrb[0].mxu0
      %v3069 = vadd.f32 %v2304, %v3068
      %v3070 = vpop.f32.mrb[0].mxu0
      %v3071 = vpop.f32.mrb[0].mxu0
      %v3072 = vadd.f32 %v2304, %v3071
      %v3073 = vpop.f32.mrb[0].mxu0
      %3074 = vmatprep.mubr.bf16.mxu0 %v819
      %3075 = vmatmul.mubr.bf16.gmra.mrb[0].mxu0 %v460
      %v3076 = vpop.f32.mrb[0].mxu0
      %v3077 = vadd.f32 %v2304, %v3076
      %v3078 = vpop.f32.mrb[0].mxu0
      %v3079 = vpop.f32.mrb[0].mxu0
      %v3080 = vadd.f32 %v2304, %v3079
      %v3081 = vpop.f32.mrb[0].mxu0
      %3082 = vdwg.mxu0
      %3083 = vmatprep.subr.bf16.mxu0 0
      %3084 = vmatpush1.bf16.msra.mxu0 %v2610
      %3085 = vmatprep.subr.bf16.mxu0 0
      %3086 = vmatpush1.bf16.msra.mxu0 %v2611
      %3087 = vmatprep.subr.bf16.mxu0 0
      %3088 = vmatpush1.bf16.msra.mxu0 %v2612
      %3089 = vmatprep.subr.bf16.mxu0 0
      %3090 = vmatpush1.bf16.msra.mxu0 %v2613
      %3091 = vmatprep.subr.bf16.mxu0 0
      %3092 = vmatpush1.bf16.msra.mxu0 %v2614
      %3093 = vmatprep.subr.bf16.mxu0 0
      %3094 = vmatpush1.bf16.msra.mxu0 %v2615
      %3095 = vmatprep.subr.bf16.mxu0 0
      %3096 = vmatpush1.bf16.msra.mxu0 %v2616
      %3097 = vmatprep.subr.bf16.mxu0 0
      %3098 = vmatpush1.bf16.msra.mxu0 %v2617
      %3099 = vmatprep.subr.bf16.mxu0 0
      %3100 = vmatpush1.bf16.msra.mxu0 %v2618
      %3101 = vmatprep.subr.bf16.mxu0 0
      %3102 = vmatpush1.bf16.msra.mxu0 %v2619
      %3103 = vmatprep.subr.bf16.mxu0 0
      %3104 = vmatpush1.bf16.msra.mxu0 %v2620
      %3105 = vmatprep.subr.bf16.mxu0 0
      %3106 = vmatpush1.bf16.msra.mxu0 %v2621
      %3107 = vmatprep.subr.bf16.mxu0 0
      %3108 = vmatpush1.bf16.msra.mxu0 %v2622
      %3109 = vmatprep.subr.bf16.mxu0 0
      %3110 = vmatpush1.bf16.msra.mxu0 %v2623
      %3111 = vmatprep.subr.bf16.mxu0 0
      %3112 = vmatpush1.bf16.msra.mxu0 %v2624
      %3113 = vmatprep.subr.bf16.mxu0 0
      %3114 = vmatpush1.bf16.msra.mxu0 %v2625
      %3115 = vmatprep.mubr.bf16.mxu0 %v1033
      %3116 = vmatmul.mubr.bf16.gmra.mrb[0].mxu0 %v865
      %v3117 = vpop.f32.mrb[0].mxu0
      %v3118 = vadd.f32 %v2773, %v3117
      %v3119 = vpop.f32.mrb[0].mxu0
      %v3120 = vpop.f32.mrb[0].mxu0
      %v3121 = vadd.f32 %v2776, %v3120
      %v3122 = vpop.f32.mrb[0].mxu0
      %3123 = vmatprep.mubr.bf16.mxu0 %v1035
      %3124 = vmatmul.mubr.bf16.gmra.mrb[0].mxu0 %v867
      %v3125 = vpop.f32.mrb[0].mxu0
      %v3126 = vadd.f32 %v2781, %v3125
      %v3127 = vpop.f32.mrb[0].mxu0
      %v3128 = vpop.f32.mrb[0].mxu0
      %v3129 = vadd.f32 %v2784, %v3128
      %v3130 = vpop.f32.mrb[0].mxu0
      %3131 = vmatprep.mubr.bf16.mxu0 %v1037
      %3132 = vmatmul.mubr.bf16.gmra.mrb[0].mxu0 %v869
      %v3133 = vpop.f32.mrb[0].mxu0
      %v3134 = vadd.f32 %v2789, %v3133
      %v3135 = vpop.f32.mrb[0].mxu0
      %v3136 = vpop.f32.mrb[0].mxu0
      %v3137 = vadd.f32 %v2792, %v3136
      %v3138 = vpop.f32.mrb[0].mxu0
      %3139 = vmatprep.mubr.bf16.mxu0 %v1039
      %3140 = vmatmul.mubr.bf16.gmra.mrb[0].mxu0 %v871
      %v3141 = vpop.f32.mrb[0].mxu0
      %v3142 = vadd.f32 %v2797, %v3141
      %v3143 = vpop.f32.mrb[0].mxu0
      %v3144 = vpop.f32.mrb[0].mxu0
      %v3145 = vadd.f32 %v2800, %v3144
      %v3146 = vpop.f32.mrb[0].mxu0
      %3147 = vmatprep.mubr.bf16.mxu0 %v1041
      %3148 = vmatmul.mubr.bf16.gmra.mrb[0].mxu0 %v873
      %v3149 = vpop.f32.mrb[0].mxu0
      %v3150 = vadd.f32 %v2805, %v3149
      %v3151 = vpop.f32.mrb[0].mxu0
      %v3152 = vpop.f32.mrb[0].mxu0
      %v3153 = vadd.f32 %v2808, %v3152
      %v3154 = vpop.f32.mrb[0].mxu0
      %3155 = vmatprep.mubr.bf16.mxu0 %v1043
      %3156 = vmatmul.mubr.bf16.gmra.mrb[0].mxu0 %v875
      %v3157 = vpop.f32.mrb[0].mxu0
      %v3158 = vadd.f32 %v2813, %v3157
      %v3159 = vpop.f32.mrb[0].mxu0
      %v3160 = vpop.f32.mrb[0].mxu0
      %v3161 = vadd.f32 %v2816, %v3160
      %v3162 = vpop.f32.mrb[0].mxu0
      %3163 = vmatprep.mubr.bf16.mxu0 %v1045
      %3164 = vmatmul.mubr.bf16.gmra.mrb[0].mxu0 %v877
      %v3165 = vpop.f32.mrb[0].mxu0
      %v3166 = vadd.f32 %v2821, %v3165
      %v3167 = vpop.f32.mrb[0].mxu0
      %v3168 = vpop.f32.mrb[0].mxu0
      %v3169 = vadd.f32 %v2824, %v3168
      %v3170 = vpop.f32.mrb[0].mxu0
      %3171 = vmatprep.mubr.bf16.mxu0 %v1047
      %3172 = vmatmul.mubr.bf16.gmra.mrb[0].mxu0 %v879
      %v3173 = vpop.f32.mrb[0].mxu0
      %v3174 = vadd.f32 %v2829, %v3173
      %v3175 = vpop.f32.mrb[0].mxu0
      %v3176 = vpop.f32.mrb[0].mxu0
      %v3177 = vadd.f32 %v2832, %v3176
      %v3178 = vpop.f32.mrb[0].mxu0
      %3179 = vmatprep.mubr.bf16.mxu0 %v1049
      %3180 = vmatmul.mubr.bf16.gmra.mrb[0].mxu0 %v881
      %v3181 = vpop.f32.mrb[0].mxu0
      %v3182 = vadd.f32 %v2837, %v3181
      %v3183 = vpop.f32.mrb[0].mxu0
      %v3184 = vpop.f32.mrb[0].mxu0
      %v3185 = vadd.f32 %v2840, %v3184
      %v3186 = vpop.f32.mrb[0].mxu0
      %3187 = vmatprep.mubr.bf16.mxu0 %v1051
      %3188 = vmatmul.mubr.bf16.gmra.mrb[0].mxu0 %v883
      %v3189 = vpop.f32.mrb[0].mxu0
      %v3190 = vadd.f32 %v2845, %v3189
      %v3191 = vpop.f32.mrb[0].mxu0
      %v3192 = vpop.f32.mrb[0].mxu0
      %v3193 = vadd.f32 %v2848, %v3192
      %v3194 = vpop.f32.mrb[0].mxu0
      %3195 = vmatprep.mubr.bf16.mxu0 %v1053
      %3196 = vmatmul.mubr.bf16.gmra.mrb[0].mxu0 %v885
      %v3197 = vpop.f32.mrb[0].mxu0
      %v3198 = vadd.f32 %v2853, %v3197
      %v3199 = vpop.f32.mrb[0].mxu0
      %v3200 = vpop.f32.mrb[0].mxu0
      %v3201 = vadd.f32 %v2856, %v3200
      %v3202 = vpop.f32.mrb[0].mxu0
      %3203 = vmatprep.mubr.bf16.mxu0 %v1055
      %3204 = vmatmul.mubr.bf16.gmra.mrb[0].mxu0 %v887
      %v3205 = vpop.f32.mrb[0].mxu0
      %v3206 = vadd.f32 %v2861, %v3205
      %v3207 = vpop.f32.mrb[0].mxu0
      %v3208 = vpop.f32.mrb[0].mxu0
      %v3209 = vadd.f32 %v2864, %v3208
      %v3210 = vpop.f32.mrb[0].mxu0
      %3211 = vmatprep.mubr.bf16.mxu0 %v1057
      %3212 = vmatmul.mubr.bf16.gmra.mrb[0].mxu0 %v889
      %v3213 = vpop.f32.mrb[0].mxu0
      %v3214 = vadd.f32 %v2869, %v3213
      %v3215 = vpop.f32.mrb[0].mxu0
      %v3216 = vpop.f32.mrb[0].mxu0
      %v3217 = vadd.f32 %v2872, %v3216
      %v3218 = vpop.f32.mrb[0].mxu0
      %3219 = vmatprep.mubr.bf16.mxu0 %v1059
      %3220 = vmatmul.mubr.bf16.gmra.mrb[0].mxu0 %v891
      %v3221 = vpop.f32.mrb[0].mxu0
      %v3222 = vadd.f32 %v2877, %v3221
      %v3223 = vpop.f32.mrb[0].mxu0
      %v3224 = vpop.f32.mrb[0].mxu0
      %v3225 = vadd.f32 %v2880, %v3224
      %v3226 = vpop.f32.mrb[0].mxu0
      %3227 = vmatprep.mubr.bf16.mxu0 %v1061
      %3228 = vmatmul.mubr.bf16.gmra.mrb[0].mxu0 %v893
      %v3229 = vpop.f32.mrb[0].mxu0
      %v3230 = vadd.f32 %v2885, %v3229
      %v3231 = vpop.f32.mrb[0].mxu0
      %v3232 = vpop.f32.mrb[0].mxu0
      %v3233 = vadd.f32 %v2888, %v3232
      %v3234 = vpop.f32.mrb[0].mxu0
      %3235 = vmatprep.mubr.bf16.mxu0 %v1063
      %3236 = vmatmul.mubr.bf16.gmra.mrb[0].mxu0 %v895
      %v3237 = vpop.f32.mrb[0].mxu0
      %v3238 = vadd.f32 %v2893, %v3237
      %v3239 = vpop.f32.mrb[0].mxu0
      %v3240 = vpop.f32.mrb[0].mxu0
      %v3241 = vadd.f32 %v2896, %v3240
      %v3242 = vpop.f32.mrb[0].mxu0
      %3243 = vmatprep.mubr.bf16.mxu0 %v1065
      %3244 = vmatmul.mubr.bf16.gmra.mrb[0].mxu0 %v897
      %v3245 = vpop.f32.mrb[0].mxu0
      %v3246 = vadd.f32 %v2901, %v3245
      %v3247 = vpop.f32.mrb[0].mxu0
      %v3248 = vpop.f32.mrb[0].mxu0
      %v3249 = vadd.f32 %v2904, %v3248
      %v3250 = vpop.f32.mrb[0].mxu0
      %3251 = vmatprep.mubr.bf16.mxu0 %v1067
      %3252 = vmatmul.mubr.bf16.gmra.mrb[0].mxu0 %v899
      %v3253 = vpop.f32.mrb[0].mxu0
      %v3254 = vadd.f32 %v2909, %v3253
      %v3255 = vpop.f32.mrb[0].mxu0
      %v3256 = vpop.f32.mrb[0].mxu0
      %v3257 = vadd.f32 %v2912, %v3256
      %v3258 = vpop.f32.mrb[0].mxu0
      %3259 = vmatprep.mubr.bf16.mxu0 %v1069
      %3260 = vmatmul.mubr.bf16.gmra.mrb[0].mxu0 %v901
      %v3261 = vpop.f32.mrb[0].mxu0
      %v3262 = vadd.f32 %v2917, %v3261
      %v3263 = vpop.f32.mrb[0].mxu0
      %v3264 = vpop.f32.mrb[0].mxu0
      %v3265 = vadd.f32 %v2920, %v3264
      %v3266 = vpop.f32.mrb[0].mxu0
      %3267 = vmatprep.mubr.bf16.mxu0 %v1071
      %3268 = vmatmul.mubr.bf16.gmra.mrb[0].mxu0 %v903
      %v3269 = vpop.f32.mrb[0].mxu0
      %v3270 = vadd.f32 %v2925, %v3269
      %v3271 = vpop.f32.mrb[0].mxu0
      %v3272 = vpop.f32.mrb[0].mxu0
      %v3273 = vadd.f32 %v2928, %v3272
      %v3274 = vpop.f32.mrb[0].mxu0
      %3275 = vmatprep.mubr.bf16.mxu0 %v1073
      %3276 = vmatmul.mubr.bf16.gmra.mrb[0].mxu0 %v905
      %v3277 = vpop.f32.mrb[0].mxu0
      %v3278 = vadd.f32 %v2933, %v3277
      %v3279 = vpop.f32.mrb[0].mxu0
      %v3280 = vpop.f32.mrb[0].mxu0
      %v3281 = vadd.f32 %v2936, %v3280
      %v3282 = vpop.f32.mrb[0].mxu0
      %3283 = vmatprep.mubr.bf16.mxu0 %v1075
      %3284 = vmatmul.mubr.bf16.gmra.mrb[0].mxu0 %v907
      %v3285 = vpop.f32.mrb[0].mxu0
      %v3286 = vadd.f32 %v2941, %v3285
      %v3287 = vpop.f32.mrb[0].mxu0
      %v3288 = vpop.f32.mrb[0].mxu0
      %v3289 = vadd.f32 %v2944, %v3288
      %v3290 = vpop.f32.mrb[0].mxu0
      %3291 = vmatprep.mubr.bf16.mxu0 %v1077
      %3292 = vmatmul.mubr.bf16.gmra.mrb[0].mxu0 %v909
      %v3293 = vpop.f32.mrb[0].mxu0
      %v3294 = vadd.f32 %v2949, %v3293
      %v3295 = vpop.f32.mrb[0].mxu0
      %v3296 = vpop.f32.mrb[0].mxu0
      %v3297 = vadd.f32 %v2952, %v3296
      %v3298 = vpop.f32.mrb[0].mxu0
      %3299 = vmatprep.mubr.bf16.mxu0 %v1079
      %3300 = vmatmul.mubr.bf16.gmra.mrb[0].mxu0 %v911
      %v3301 = vpop.f32.mrb[0].mxu0
      %v3302 = vadd.f32 %v2957, %v3301
      %v3303 = vpop.f32.mrb[0].mxu0
      %v3304 = vpop.f32.mrb[0].mxu0
      %v3305 = vadd.f32 %v2960, %v3304
      %v3306 = vpop.f32.mrb[0].mxu0
      %3307 = vmatprep.mubr.bf16.mxu0 %v1081
      %3308 = vmatmul.mubr.bf16.gmra.mrb[0].mxu0 %v913
      %v3309 = vpop.f32.mrb[0].mxu0
      %v3310 = vadd.f32 %v2965, %v3309
      %v3311 = vpop.f32.mrb[0].mxu0
      %v3312 = vpop.f32.mrb[0].mxu0
      %v3313 = vadd.f32 %v2968, %v3312
      %v3314 = vpop.f32.mrb[0].mxu0
      %3315 = vmatprep.mubr.bf16.mxu0 %v1083
      %3316 = vmatmul.mubr.bf16.gmra.mrb[0].mxu0 %v915
      %v3317 = vpop.f32.mrb[0].mxu0
      %v3318 = vadd.f32 %v2973, %v3317
      %v3319 = vpop.f32.mrb[0].mxu0
      %v3320 = vpop.f32.mrb[0].mxu0
      %v3321 = vadd.f32 %v2976, %v3320
      %v3322 = vpop.f32.mrb[0].mxu0
      %3323 = vmatprep.mubr.bf16.mxu0 %v1085
      %3324 = vmatmul.mubr.bf16.gmra.mrb[0].mxu0 %v917
      %v3325 = vpop.f32.mrb[0].mxu0
      %v3326 = vadd.f32 %v2981, %v3325
      %v3327 = vpop.f32.mrb[0].mxu0
      %v3328 = vpop.f32.mrb[0].mxu0
      %v3329 = vadd.f32 %v2984, %v3328
      %v3330 = vpop.f32.mrb[0].mxu0
      %3331 = vmatprep.mubr.bf16.mxu0 %v1087
      %3332 = vmatmul.mubr.bf16.gmra.mrb[0].mxu0 %v919
      %v3333 = vpop.f32.mrb[0].mxu0
      %v3334 = vadd.f32 %v2989, %v3333
      %v3335 = vpop.f32.mrb[0].mxu0
      %v3336 = vpop.f32.mrb[0].mxu0
      %v3337 = vadd.f32 %v2992, %v3336
      %v3338 = vpop.f32.mrb[0].mxu0
      %3339 = vmatprep.mubr.bf16.mxu0 %v1089
      %3340 = vmatmul.mubr.bf16.gmra.mrb[0].mxu0 %v921
      %v3341 = vpop.f32.mrb[0].mxu0
      %v3342 = vadd.f32 %v2997, %v3341
      %v3343 = vpop.f32.mrb[0].mxu0
      %v3344 = vpop.f32.mrb[0].mxu0
      %v3345 = vadd.f32 %v3000, %v3344
      %v3346 = vpop.f32.mrb[0].mxu0
      %3347 = vmatprep.mubr.bf16.mxu0 %v1091
      %3348 = vmatmul.mubr.bf16.gmra.mrb[0].mxu0 %v923
      %v3349 = vpop.f32.mrb[0].mxu0
      %v3350 = vadd.f32 %v3005, %v3349
      %v3351 = vpop.f32.mrb[0].mxu0
      %v3352 = vpop.f32.mrb[0].mxu0
      %v3353 = vadd.f32 %v3008, %v3352
      %v3354 = vpop.f32.mrb[0].mxu0
      %3355 = vmatprep.mubr.bf16.mxu0 %v1093
      %3356 = vmatmul.mubr.bf16.gmra.mrb[0].mxu0 %v925
      %v3357 = vpop.f32.mrb[0].mxu0
      %v3358 = vadd.f32 %v3013, %v3357
      %v3359 = vpop.f32.mrb[0].mxu0
      %v3360 = vpop.f32.mrb[0].mxu0
      %v3361 = vadd.f32 %v3016, %v3360
      %v3362 = vpop.f32.mrb[0].mxu0
      %3363 = vmatprep.mubr.bf16.mxu0 %v1095
      %3364 = vmatmul.mubr.bf16.gmra.mrb[0].mxu0 %v927
      %v3365 = vpop.f32.mrb[0].mxu0
      %v3366 = vadd.f32 %v3021, %v3365
      %v3367 = vpop.f32.mrb[0].mxu0
      %v3368 = vpop.f32.mrb[0].mxu0
      %v3369 = vadd.f32 %v3024, %v3368
      %v3370 = vpop.f32.mrb[0].mxu0
      %3371 = vmatprep.mubr.bf16.mxu0 %v1097
      %3372 = vmatmul.mubr.bf16.gmra.mrb[0].mxu0 %v929
      %v3373 = vpop.f32.mrb[0].mxu0
      %v3374 = vadd.f32 %v3029, %v3373
      %v3375 = vpop.f32.mrb[0].mxu0
      %v3376 = vpop.f32.mrb[0].mxu0
      %v3377 = vadd.f32 %v3032, %v3376
      %v3378 = vpop.f32.mrb[0].mxu0
      %3379 = vmatprep.mubr.bf16.mxu0 %v1099
      %3380 = vmatmul.mubr.bf16.gmra.mrb[0].mxu0 %v931
      %v3381 = vpop.f32.mrb[0].mxu0
      %v3382 = vadd.f32 %v3037, %v3381
      %v3383 = vpop.f32.mrb[0].mxu0
      %v3384 = vpop.f32.mrb[0].mxu0
      %v3385 = vadd.f32 %v3040, %v3384
      %v3386 = vpop.f32.mrb[0].mxu0
      %3387 = vmatprep.mubr.bf16.mxu0 %v1101
      %3388 = vmatmul.mubr.bf16.gmra.mrb[0].mxu0 %v933
      %v3389 = vpop.f32.mrb[0].mxu0
      %v3390 = vadd.f32 %v3045, %v3389
      %v3391 = vpop.f32.mrb[0].mxu0
      %v3392 = vpop.f32.mrb[0].mxu0
      %v3393 = vadd.f32 %v3048, %v3392
      %v3394 = vpop.f32.mrb[0].mxu0
      %3395 = vmatprep.mubr.bf16.mxu0 %v1103
      %3396 = vmatmul.mubr.bf16.gmra.mrb[0].mxu0 %v935
      %v3397 = vpop.f32.mrb[0].mxu0
      %v3398 = vadd.f32 %v3053, %v3397
      %v3399 = vpop.f32.mrb[0].mxu0
      %v3400 = vpop.f32.mrb[0].mxu0
      %v3401 = vadd.f32 %v3056, %v3400
      %v3402 = vpop.f32.mrb[0].mxu0
      %3403 = vmatprep.mubr.bf16.mxu0 %v1105
      %3404 = vmatmul.mubr.bf16.gmra.mrb[0].mxu0 %v937
      %v3405 = vpop.f32.mrb[0].mxu0
      %v3406 = vadd.f32 %v3061, %v3405
      %v3407 = vpop.f32.mrb[0].mxu0
      %v3408 = vpop.f32.mrb[0].mxu0
      %v3409 = vadd.f32 %v3064, %v3408
      %v3410 = vpop.f32.mrb[0].mxu0
      %3411 = vmatprep.mubr.bf16.mxu0 %v1107
      %3412 = vmatmul.mubr.bf16.gmra.mrb[0].mxu0 %v939
      %v3413 = vpop.f32.mrb[0].mxu0
      %v3414 = vadd.f32 %v3069, %v3413
      %v3415 = vpop.f32.mrb[0].mxu0
      %v3416 = vpop.f32.mrb[0].mxu0
      %v3417 = vadd.f32 %v3072, %v3416
      %v3418 = vpop.f32.mrb[0].mxu0
      %3419 = vmatprep.mubr.bf16.mxu0 %v1109
      %3420 = vmatmul.mubr.bf16.gmra.mrb[0].mxu0 %v941
      %v3421 = vpop.f32.mrb[0].mxu0
      %v3422 = vadd.f32 %v3077, %v3421
      %v3423 = vpop.f32.mrb[0].mxu0
      %v3424 = vpop.f32.mrb[0].mxu0
      %v3425 = vadd.f32 %v3080, %v3424
      %v3426 = vpop.f32.mrb[0].mxu0
      %3427 = vdwg.mxu0
      %3428 = vmatprep.subr.bf16.mxu0 0
      %3429 = vmatpush1.bf16.msra.mxu0 %v2626
      %3430 = vmatprep.subr.bf16.mxu0 0
      %3431 = vmatpush1.bf16.msra.mxu0 %v2627
      %3432 = vmatprep.subr.bf16.mxu0 0
      %3433 = vmatpush1.bf16.msra.mxu0 %v2628
      %3434 = vmatprep.subr.bf16.mxu0 0
      %3435 = vmatpush1.bf16.msra.mxu0 %v2629
      %3436 = vmatprep.subr.bf16.mxu0 0
      %3437 = vmatpush1.bf16.msra.mxu0 %v2630
      %3438 = vmatprep.subr.bf16.mxu0 0
      %3439 = vmatpush1.bf16.msra.mxu0 %v2631
      %3440 = vmatprep.subr.bf16.mxu0 0
      %3441 = vmatpush1.bf16.msra.mxu0 %v2632
      %3442 = vmatprep.subr.bf16.mxu0 0
      %3443 = vmatpush1.bf16.msra.mxu0 %v2633
      %3444 = vmatprep.subr.bf16.mxu0 0
      %3445 = vmatpush1.bf16.msra.mxu0 %v2634
      %3446 = vmatprep.subr.bf16.mxu0 0
      %3447 = vmatpush1.bf16.msra.mxu0 %v2635
      %3448 = vmatprep.subr.bf16.mxu0 0
      %3449 = vmatpush1.bf16.msra.mxu0 %v2636
      %3450 = vmatprep.subr.bf16.mxu0 0
      %3451 = vmatpush1.bf16.msra.mxu0 %v2637
      %3452 = vmatprep.subr.bf16.mxu0 0
      %3453 = vmatpush1.bf16.msra.mxu0 %v2638
      %3454 = vmatprep.subr.bf16.mxu0 0
      %3455 = vmatpush1.bf16.msra.mxu0 %v2639
      %3456 = vmatprep.subr.bf16.mxu0 0
      %3457 = vmatpush1.bf16.msra.mxu0 %v2640
      %3458 = vmatprep.subr.bf16.mxu0 0
      %3459 = vmatpush1.bf16.msra.mxu0 %v2641
      %3460 = vmatprep.mubr.bf16.mxu0 %v1557
      %3461 = vmatmul.mubr.bf16.gmra.mrb[0].mxu0 %v1169
      %v3462 = vpop.f32.mrb[0].mxu0
      %v3463 = vadd.f32 %v3118, %v3462
      %v3464 = vpop.f32.mrb[0].mxu0
      %v3465 = vpop.f32.mrb[0].mxu0
      %v3466 = vadd.f32 %v3121, %v3465
      %v3467 = vpop.f32.mrb[0].mxu0
      %3468 = vmatprep.mubr.bf16.mxu0 %v1559
      %3469 = vmatmul.mubr.bf16.gmra.mrb[0].mxu0 %v1178
      %v3470 = vpop.f32.mrb[0].mxu0
      %v3471 = vadd.f32 %v3126, %v3470
      %v3472 = vpop.f32.mrb[0].mxu0
      %v3473 = vpop.f32.mrb[0].mxu0
      %v3474 = vadd.f32 %v3129, %v3473
      %v3475 = vpop.f32.mrb[0].mxu0
      %3476 = vmatprep.mubr.bf16.mxu0 %v1561
      %3477 = vmatmul.mubr.bf16.gmra.mrb[0].mxu0 %v1187
      %v3478 = vpop.f32.mrb[0].mxu0
      %v3479 = vadd.f32 %v3134, %v3478
      %v3480 = vpop.f32.mrb[0].mxu0
      %v3481 = vpop.f32.mrb[0].mxu0
      %v3482 = vadd.f32 %v3137, %v3481
      %v3483 = vpop.f32.mrb[0].mxu0
      %3484 = vmatprep.mubr.bf16.mxu0 %v1563
      %3485 = vmatmul.mubr.bf16.gmra.mrb[0].mxu0 %v1196
      %v3486 = vpop.f32.mrb[0].mxu0
      %v3487 = vadd.f32 %v3142, %v3486
      %v3488 = vpop.f32.mrb[0].mxu0
      %v3489 = vpop.f32.mrb[0].mxu0
      %v3490 = vadd.f32 %v3145, %v3489
      %v3491 = vpop.f32.mrb[0].mxu0
      %3492 = vmatprep.mubr.bf16.mxu0 %v1565
      %3493 = vmatmul.mubr.bf16.gmra.mrb[0].mxu0 %v1205
      %v3494 = vpop.f32.mrb[0].mxu0
      %v3495 = vadd.f32 %v3150, %v3494
      %v3496 = vpop.f32.mrb[0].mxu0
      %v3497 = vpop.f32.mrb[0].mxu0
      %v3498 = vadd.f32 %v3153, %v3497
      %v3499 = vpop.f32.mrb[0].mxu0
      %3500 = vmatprep.mubr.bf16.mxu0 %v1567
      %3501 = vmatmul.mubr.bf16.gmra.mrb[0].mxu0 %v1214
      %v3502 = vpop.f32.mrb[0].mxu0
      %v3503 = vadd.f32 %v3158, %v3502
      %v3504 = vpop.f32.mrb[0].mxu0
      %v3505 = vpop.f32.mrb[0].mxu0
      %v3506 = vadd.f32 %v3161, %v3505
      %v3507 = vpop.f32.mrb[0].mxu0
      %3508 = vmatprep.mubr.bf16.mxu0 %v1569
      %3509 = vmatmul.mubr.bf16.gmra.mrb[0].mxu0 %v1223
      %v3510 = vpop.f32.mrb[0].mxu0
      %v3511 = vadd.f32 %v3166, %v3510
      %v3512 = vpop.f32.mrb[0].mxu0
      %v3513 = vpop.f32.mrb[0].mxu0
      %v3514 = vadd.f32 %v3169, %v3513
      %v3515 = vpop.f32.mrb[0].mxu0
      %3516 = vmatprep.mubr.bf16.mxu0 %v1571
      %3517 = vmatmul.mubr.bf16.gmra.mrb[0].mxu0 %v1232
      %v3518 = vpop.f32.mrb[0].mxu0
      %v3519 = vadd.f32 %v3174, %v3518
      %v3520 = vpop.f32.mrb[0].mxu0
      %v3521 = vpop.f32.mrb[0].mxu0
      %v3522 = vadd.f32 %v3177, %v3521
      %v3523 = vpop.f32.mrb[0].mxu0
      %3524 = vmatprep.mubr.bf16.mxu0 %v1573
      %3525 = vmatmul.mubr.bf16.gmra.mrb[0].mxu0 %v1241
      %v3526 = vpop.f32.mrb[0].mxu0
      %v3527 = vadd.f32 %v3182, %v3526
      %v3528 = vpop.f32.mrb[0].mxu0
      %v3529 = vpop.f32.mrb[0].mxu0
      %v3530 = vadd.f32 %v3185, %v3529
      %v3531 = vpop.f32.mrb[0].mxu0
      %3532 = vmatprep.mubr.bf16.mxu0 %v1575
      %3533 = vmatmul.mubr.bf16.gmra.mrb[0].mxu0 %v1250
      %v3534 = vpop.f32.mrb[0].mxu0
      %v3535 = vadd.f32 %v3190, %v3534
      %v3536 = vpop.f32.mrb[0].mxu0
      %v3537 = vpop.f32.mrb[0].mxu0
      %v3538 = vadd.f32 %v3193, %v3537
      %v3539 = vpop.f32.mrb[0].mxu0
      %3540 = vmatprep.mubr.bf16.mxu0 %v1577
      %3541 = vmatmul.mubr.bf16.gmra.mrb[0].mxu0 %v1259
      %v3542 = vpop.f32.mrb[0].mxu0
      %v3543 = vadd.f32 %v3198, %v3542
      %v3544 = vpop.f32.mrb[0].mxu0
      %v3545 = vpop.f32.mrb[0].mxu0
      %v3546 = vadd.f32 %v3201, %v3545
      %v3547 = vpop.f32.mrb[0].mxu0
      %3548 = vmatprep.mubr.bf16.mxu0 %v1579
      %3549 = vmatmul.mubr.bf16.gmra.mrb[0].mxu0 %v1268
      %v3550 = vpop.f32.mrb[0].mxu0
      %v3551 = vadd.f32 %v3206, %v3550
      %v3552 = vpop.f32.mrb[0].mxu0
      %v3553 = vpop.f32.mrb[0].mxu0
      %v3554 = vadd.f32 %v3209, %v3553
      %v3555 = vpop.f32.mrb[0].mxu0
      %3556 = vmatprep.mubr.bf16.mxu0 %v1581
      %3557 = vmatmul.mubr.bf16.gmra.mrb[0].mxu0 %v1277
      %v3558 = vpop.f32.mrb[0].mxu0
      %v3559 = vadd.f32 %v3214, %v3558
      %v3560 = vpop.f32.mrb[0].mxu0
      %v3561 = vpop.f32.mrb[0].mxu0
      %v3562 = vadd.f32 %v3217, %v3561
      %v3563 = vpop.f32.mrb[0].mxu0
      %3564 = vmatprep.mubr.bf16.mxu0 %v1583
      %3565 = vmatmul.mubr.bf16.gmra.mrb[0].mxu0 %v1286
      %v3566 = vpop.f32.mrb[0].mxu0
      %v3567 = vadd.f32 %v3222, %v3566
      %v3568 = vpop.f32.mrb[0].mxu0
      %v3569 = vpop.f32.mrb[0].mxu0
      %v3570 = vadd.f32 %v3225, %v3569
      %v3571 = vpop.f32.mrb[0].mxu0
      %3572 = vmatprep.mubr.bf16.mxu0 %v1585
      %3573 = vmatmul.mubr.bf16.gmra.mrb[0].mxu0 %v1295
      %v3574 = vpop.f32.mrb[0].mxu0
      %v3575 = vadd.f32 %v3230, %v3574
      %v3576 = vpop.f32.mrb[0].mxu0
      %v3577 = vpop.f32.mrb[0].mxu0
      %v3578 = vadd.f32 %v3233, %v3577
      %v3579 = vpop.f32.mrb[0].mxu0
      %3580 = vmatprep.mubr.bf16.mxu0 %v1587
      %3581 = vmatmul.mubr.bf16.gmra.mrb[0].mxu0 %v1304
      %v3582 = vpop.f32.mrb[0].mxu0
      %v3583 = vadd.f32 %v3238, %v3582
      %v3584 = vpop.f32.mrb[0].mxu0
      %v3585 = vpop.f32.mrb[0].mxu0
      %v3586 = vadd.f32 %v3241, %v3585
      %v3587 = vpop.f32.mrb[0].mxu0
      %3588 = vmatprep.mubr.bf16.mxu0 %v1589
      %3589 = vmatmul.mubr.bf16.gmra.mrb[0].mxu0 %v1313
      %v3590 = vpop.f32.mrb[0].mxu0
      %v3591 = vadd.f32 %v3246, %v3590
      %v3592 = vpop.f32.mrb[0].mxu0
      %v3593 = vpop.f32.mrb[0].mxu0
      %v3594 = vadd.f32 %v3249, %v3593
      %v3595 = vpop.f32.mrb[0].mxu0
      %3596 = vmatprep.mubr.bf16.mxu0 %v1591
      %3597 = vmatmul.mubr.bf16.gmra.mrb[0].mxu0 %v1322
      %v3598 = vpop.f32.mrb[0].mxu0
      %v3599 = vadd.f32 %v3254, %v3598
      %v3600 = vpop.f32.mrb[0].mxu0
      %v3601 = vpop.f32.mrb[0].mxu0
      %v3602 = vadd.f32 %v3257, %v3601
      %v3603 = vpop.f32.mrb[0].mxu0
      %3604 = vmatprep.mubr.bf16.mxu0 %v1593
      %3605 = vmatmul.mubr.bf16.gmra.mrb[0].mxu0 %v1331
      %v3606 = vpop.f32.mrb[0].mxu0
      %v3607 = vadd.f32 %v3262, %v3606
      %v3608 = vpop.f32.mrb[0].mxu0
      %v3609 = vpop.f32.mrb[0].mxu0
      %v3610 = vadd.f32 %v3265, %v3609
      %v3611 = vpop.f32.mrb[0].mxu0
      %3612 = vmatprep.mubr.bf16.mxu0 %v1595
      %3613 = vmatmul.mubr.bf16.gmra.mrb[0].mxu0 %v1340
      %v3614 = vpop.f32.mrb[0].mxu0
      %v3615 = vadd.f32 %v3270, %v3614
      %v3616 = vpop.f32.mrb[0].mxu0
      %v3617 = vpop.f32.mrb[0].mxu0
      %v3618 = vadd.f32 %v3273, %v3617
      %v3619 = vpop.f32.mrb[0].mxu0
      %3620 = vmatprep.mubr.bf16.mxu0 %v1597
      %3621 = vmatmul.mubr.bf16.gmra.mrb[0].mxu0 %v1349
      %v3622 = vpop.f32.mrb[0].mxu0
      %v3623 = vadd.f32 %v3278, %v3622
      %v3624 = vpop.f32.mrb[0].mxu0
      %v3625 = vpop.f32.mrb[0].mxu0
      %v3626 = vadd.f32 %v3281, %v3625
      %v3627 = vpop.f32.mrb[0].mxu0
      %3628 = vmatprep.mubr.bf16.mxu0 %v1599
      %3629 = vmatmul.mubr.bf16.gmra.mrb[0].mxu0 %v1358
      %v3630 = vpop.f32.mrb[0].mxu0
      %v3631 = vadd.f32 %v3286, %v3630
      %v3632 = vpop.f32.mrb[0].mxu0
      %v3633 = vpop.f32.mrb[0].mxu0
      %v3634 = vadd.f32 %v3289, %v3633
      %v3635 = vpop.f32.mrb[0].mxu0
      %3636 = vmatprep.mubr.bf16.mxu0 %v1601
      %3637 = vmatmul.mubr.bf16.gmra.mrb[0].mxu0 %v1367
      %v3638 = vpop.f32.mrb[0].mxu0
      %v3639 = vadd.f32 %v3294, %v3638
      %v3640 = vpop.f32.mrb[0].mxu0
      %v3641 = vpop.f32.mrb[0].mxu0
      %v3642 = vadd.f32 %v3297, %v3641
      %v3643 = vpop.f32.mrb[0].mxu0
      %3644 = vmatprep.mubr.bf16.mxu0 %v1603
      %3645 = vmatmul.mubr.bf16.gmra.mrb[0].mxu0 %v1376
      %v3646 = vpop.f32.mrb[0].mxu0
      %v3647 = vadd.f32 %v3302, %v3646
      %v3648 = vpop.f32.mrb[0].mxu0
      %v3649 = vpop.f32.mrb[0].mxu0
      %v3650 = vadd.f32 %v3305, %v3649
      %v3651 = vpop.f32.mrb[0].mxu0
      %3652 = vmatprep.mubr.bf16.mxu0 %v1605
      %3653 = vmatmul.mubr.bf16.gmra.mrb[0].mxu0 %v1385
      %v3654 = vpop.f32.mrb[0].mxu0
      %v3655 = vadd.f32 %v3310, %v3654
      %v3656 = vpop.f32.mrb[0].mxu0
      %v3657 = vpop.f32.mrb[0].mxu0
      %v3658 = vadd.f32 %v3313, %v3657
      %v3659 = vpop.f32.mrb[0].mxu0
      %3660 = vmatprep.mubr.bf16.mxu0 %v1607
      %3661 = vmatmul.mubr.bf16.gmra.mrb[0].mxu0 %v1394
      %v3662 = vpop.f32.mrb[0].mxu0
      %v3663 = vadd.f32 %v3318, %v3662
      %v3664 = vpop.f32.mrb[0].mxu0
      %v3665 = vpop.f32.mrb[0].mxu0
      %v3666 = vadd.f32 %v3321, %v3665
      %v3667 = vpop.f32.mrb[0].mxu0
      %3668 = vmatprep.mubr.bf16.mxu0 %v1609
      %3669 = vmatmul.mubr.bf16.gmra.mrb[0].mxu0 %v1403
      %v3670 = vpop.f32.mrb[0].mxu0
      %v3671 = vadd.f32 %v3326, %v3670
      %v3672 = vpop.f32.mrb[0].mxu0
      %v3673 = vpop.f32.mrb[0].mxu0
      %v3674 = vadd.f32 %v3329, %v3673
      %v3675 = vpop.f32.mrb[0].mxu0
      %3676 = vmatprep.mubr.bf16.mxu0 %v1611
      %3677 = vmatmul.mubr.bf16.gmra.mrb[0].mxu0 %v1412
      %v3678 = vpop.f32.mrb[0].mxu0
      %v3679 = vadd.f32 %v3334, %v3678
      %v3680 = vpop.f32.mrb[0].mxu0
      %v3681 = vpop.f32.mrb[0].mxu0
      %v3682 = vadd.f32 %v3337, %v3681
      %v3683 = vpop.f32.mrb[0].mxu0
      %3684 = vmatprep.mubr.bf16.mxu0 %v1613
      %3685 = vmatmul.mubr.bf16.gmra.mrb[0].mxu0 %v1421
      %v3686 = vpop.f32.mrb[0].mxu0
      %v3687 = vadd.f32 %v3342, %v3686
      %v3688 = vpop.f32.mrb[0].mxu0
      %v3689 = vpop.f32.mrb[0].mxu0
      %v3690 = vadd.f32 %v3345, %v3689
      %v3691 = vpop.f32.mrb[0].mxu0
      %3692 = vmatprep.mubr.bf16.mxu0 %v1615
      %3693 = vmatmul.mubr.bf16.gmra.mrb[0].mxu0 %v1430
      %v3694 = vpop.f32.mrb[0].mxu0
      %v3695 = vadd.f32 %v3350, %v3694
      %v3696 = vpop.f32.mrb[0].mxu0
      %v3697 = vpop.f32.mrb[0].mxu0
      %v3698 = vadd.f32 %v3353, %v3697
      %v3699 = vpop.f32.mrb[0].mxu0
      %3700 = vmatprep.mubr.bf16.mxu0 %v1617
      %3701 = vmatmul.mubr.bf16.gmra.mrb[0].mxu0 %v1439
      %v3702 = vpop.f32.mrb[0].mxu0
      %v3703 = vadd.f32 %v3358, %v3702
      %v3704 = vpop.f32.mrb[0].mxu0
      %v3705 = vpop.f32.mrb[0].mxu0
      %v3706 = vadd.f32 %v3361, %v3705
      %v3707 = vpop.f32.mrb[0].mxu0
      %3708 = vmatprep.mubr.bf16.mxu0 %v1619
      %3709 = vmatmul.mubr.bf16.gmra.mrb[0].mxu0 %v1448
      %v3710 = vpop.f32.mrb[0].mxu0
      %v3711 = vadd.f32 %v3366, %v3710
      %v3712 = vpop.f32.mrb[0].mxu0
      %v3713 = vpop.f32.mrb[0].mxu0
      %v3714 = vadd.f32 %v3369, %v3713
      %v3715 = vpop.f32.mrb[0].mxu0
      %3716 = vmatprep.mubr.bf16.mxu0 %v1621
      %3717 = vmatmul.mubr.bf16.gmra.mrb[0].mxu0 %v1457
      %v3718 = vpop.f32.mrb[0].mxu0
      %v3719 = vadd.f32 %v3374, %v3718
      %v3720 = vpop.f32.mrb[0].mxu0
      %v3721 = vpop.f32.mrb[0].mxu0
      %v3722 = vadd.f32 %v3377, %v3721
      %v3723 = vpop.f32.mrb[0].mxu0
      %3724 = vmatprep.mubr.bf16.mxu0 %v1623
      %3725 = vmatmul.mubr.bf16.gmra.mrb[0].mxu0 %v1466
      %v3726 = vpop.f32.mrb[0].mxu0
      %v3727 = vadd.f32 %v3382, %v3726
      %v3728 = vpop.f32.mrb[0].mxu0
      %v3729 = vpop.f32.mrb[0].mxu0
      %v3730 = vadd.f32 %v3385, %v3729
      %v3731 = vpop.f32.mrb[0].mxu0
      %3732 = vmatprep.mubr.bf16.mxu0 %v1625
      %3733 = vmatmul.mubr.bf16.gmra.mrb[0].mxu0 %v1475
      %v3734 = vpop.f32.mrb[0].mxu0
      %v3735 = vadd.f32 %v3390, %v3734
      %v3736 = vpop.f32.mrb[0].mxu0
      %v3737 = vpop.f32.mrb[0].mxu0
      %v3738 = vadd.f32 %v3393, %v3737
      %v3739 = vpop.f32.mrb[0].mxu0
      %3740 = vmatprep.mubr.bf16.mxu0 %v1627
      %3741 = vmatmul.mubr.bf16.gmra.mrb[0].mxu0 %v1484
      %v3742 = vpop.f32.mrb[0].mxu0
      %v3743 = vadd.f32 %v3398, %v3742
      %v3744 = vpop.f32.mrb[0].mxu0
      %v3745 = vpop.f32.mrb[0].mxu0
      %v3746 = vadd.f32 %v3401, %v3745
      %v3747 = vpop.f32.mrb[0].mxu0
      %3748 = vmatprep.mubr.bf16.mxu0 %v1629
      %3749 = vmatmul.mubr.bf16.gmra.mrb[0].mxu0 %v1493
      %v3750 = vpop.f32.mrb[0].mxu0
      %v3751 = vadd.f32 %v3406, %v3750
      %v3752 = vpop.f32.mrb[0].mxu0
      %v3753 = vpop.f32.mrb[0].mxu0
      %v3754 = vadd.f32 %v3409, %v3753
      %v3755 = vpop.f32.mrb[0].mxu0
      %3756 = vmatprep.mubr.bf16.mxu0 %v1631
      %3757 = vmatmul.mubr.bf16.gmra.mrb[0].mxu0 %v1502
      %v3758 = vpop.f32.mrb[0].mxu0
      %v3759 = vadd.f32 %v3414, %v3758
      %v3760 = vpop.f32.mrb[0].mxu0
      %v3761 = vpop.f32.mrb[0].mxu0
      %v3762 = vadd.f32 %v3417, %v3761
      %v3763 = vpop.f32.mrb[0].mxu0
      %3764 = vmatprep.mubr.bf16.mxu0 %v1633
      %3765 = vmatmul.mubr.bf16.gmra.mrb[0].mxu0 %v1511
      %v3766 = vpop.f32.mrb[0].mxu0
      %v3767 = vadd.f32 %v3422, %v3766
      %v3768 = vpop.f32.mrb[0].mxu0
      %v3769 = vpop.f32.mrb[0].mxu0
      %v3770 = vadd.f32 %v3425, %v3769
      %v3771 = vpop.f32.mrb[0].mxu0
      %3772 = vdwg.mxu0
      %3773 = vmatprep.subr.bf16.mxu0 0
      %3774 = vmatpush1.bf16.msra.mxu0 %v2642
      %3775 = vmatprep.subr.bf16.mxu0 0
      %3776 = vmatpush1.bf16.msra.mxu0 %v2643
      %3777 = vmatprep.subr.bf16.mxu0 0
      %3778 = vmatpush1.bf16.msra.mxu0 %v2644
      %3779 = vmatprep.subr.bf16.mxu0 0
      %3780 = vmatpush1.bf16.msra.mxu0 %v2645
      %3781 = vmatprep.subr.bf16.mxu0 0
      %3782 = vmatpush1.bf16.msra.mxu0 %v2646
      %3783 = vmatprep.subr.bf16.mxu0 0
      %3784 = vmatpush1.bf16.msra.mxu0 %v2647
      %3785 = vmatprep.subr.bf16.mxu0 0
      %3786 = vmatpush1.bf16.msra.mxu0 %v2648
      %3787 = vmatprep.subr.bf16.mxu0 0
      %3788 = vmatpush1.bf16.msra.mxu0 %v2649
      %3789 = vmatprep.subr.bf16.mxu0 0
      %3790 = vmatpush1.bf16.msra.mxu0 %v2650
      %3791 = vmatprep.subr.bf16.mxu0 0
      %3792 = vmatpush1.bf16.msra.mxu0 %v2651
      %3793 = vmatprep.subr.bf16.mxu0 0
      %3794 = vmatpush1.bf16.msra.mxu0 %v2652
      %3795 = vmatprep.subr.bf16.mxu0 0
      %3796 = vmatpush1.bf16.msra.mxu0 %v2653
      %3797 = vmatprep.subr.bf16.mxu0 0
      %3798 = vmatpush1.bf16.msra.mxu0 %v2654
      %3799 = vmatprep.subr.bf16.mxu0 0
      %3800 = vmatpush1.bf16.msra.mxu0 %v2655
      %3801 = vmatprep.subr.bf16.mxu0 0
      %3802 = vmatpush1.bf16.msra.mxu0 %v2656
      %3803 = vmatprep.subr.bf16.mxu0 0
      %3804 = vmatpush1.bf16.msra.mxu0 %v2657
      %3805 = vmatprep.mubr.bf16.mxu0 %v1821
      %3806 = vmatmul.mubr.bf16.gmra.mrb[0].mxu0 %v1690
      %v3807 = vpop.f32.mrb[0].mxu0
      %v3808 = vadd.f32 %v3463, %v3807
      %v3809 = vpop.f32.mrb[0].mxu0
      %v3810 = vpop.f32.mrb[0].mxu0
      %v3811 = vadd.f32 %v3466, %v3810
      %v3812 = vpop.f32.mrb[0].mxu0
      %3813 = vmatprep.mubr.bf16.mxu0 %v1825
      %3814 = vmatmul.mubr.bf16.gmra.mrb[0].mxu0 %v1692
      %v3815 = vpop.f32.mrb[0].mxu0
      %v3816 = vadd.f32 %v3471, %v3815
      %v3817 = vpop.f32.mrb[0].mxu0
      %v3818 = vpop.f32.mrb[0].mxu0
      %v3819 = vadd.f32 %v3474, %v3818
      %v3820 = vpop.f32.mrb[0].mxu0
      %3821 = vmatprep.mubr.bf16.mxu0 %v1829
      %3822 = vmatmul.mubr.bf16.gmra.mrb[0].mxu0 %v1694
      %v3823 = vpop.f32.mrb[0].mxu0
      %v3824 = vadd.f32 %v3479, %v3823
      %v3825 = vpop.f32.mrb[0].mxu0
      %v3826 = vpop.f32.mrb[0].mxu0
      %v3827 = vadd.f32 %v3482, %v3826
      %v3828 = vpop.f32.mrb[0].mxu0
      %3829 = vmatprep.mubr.bf16.mxu0 %v1833
      %3830 = vmatmul.mubr.bf16.gmra.mrb[0].mxu0 %v1696
      %v3831 = vpop.f32.mrb[0].mxu0
      %v3832 = vadd.f32 %v3487, %v3831
      %v3833 = vpop.f32.mrb[0].mxu0
      %v3834 = vpop.f32.mrb[0].mxu0
      %v3835 = vadd.f32 %v3490, %v3834
      %v3836 = vpop.f32.mrb[0].mxu0
      %3837 = vmatprep.mubr.bf16.mxu0 %v1837
      %3838 = vmatmul.mubr.bf16.gmra.mrb[0].mxu0 %v1698
      %v3839 = vpop.f32.mrb[0].mxu0
      %v3840 = vadd.f32 %v3495, %v3839
      %v3841 = vpop.f32.mrb[0].mxu0
      %v3842 = vpop.f32.mrb[0].mxu0
      %v3843 = vadd.f32 %v3498, %v3842
      %v3844 = vpop.f32.mrb[0].mxu0
      %3845 = vmatprep.mubr.bf16.mxu0 %v1841
      %3846 = vmatmul.mubr.bf16.gmra.mrb[0].mxu0 %v1700
      %v3847 = vpop.f32.mrb[0].mxu0
      %v3848 = vadd.f32 %v3503, %v3847
      %v3849 = vpop.f32.mrb[0].mxu0
      %v3850 = vpop.f32.mrb[0].mxu0
      %v3851 = vadd.f32 %v3506, %v3850
      %v3852 = vpop.f32.mrb[0].mxu0
      %3853 = vmatprep.mubr.bf16.mxu0 %v1845
      %3854 = vmatmul.mubr.bf16.gmra.mrb[0].mxu0 %v1702
      %v3855 = vpop.f32.mrb[0].mxu0
      %v3856 = vadd.f32 %v3511, %v3855
      %v3857 = vpop.f32.mrb[0].mxu0
      %v3858 = vpop.f32.mrb[0].mxu0
      %v3859 = vadd.f32 %v3514, %v3858
      %v3860 = vpop.f32.mrb[0].mxu0
      %3861 = vmatprep.mubr.bf16.mxu0 %v1849
      %3862 = vmatmul.mubr.bf16.gmra.mrb[0].mxu0 %v1704
      %v3863 = vpop.f32.mrb[0].mxu0
      %v3864 = vadd.f32 %v3519, %v3863
      %v3865 = vpop.f32.mrb[0].mxu0
      %v3866 = vpop.f32.mrb[0].mxu0
      %v3867 = vadd.f32 %v3522, %v3866
      %v3868 = vpop.f32.mrb[0].mxu0
      %3869 = vmatprep.mubr.bf16.mxu0 %v1853
      %3870 = vmatmul.mubr.bf16.gmra.mrb[0].mxu0 %v1706
      %v3871 = vpop.f32.mrb[0].mxu0
      %v3872 = vadd.f32 %v3527, %v3871
      %v3873 = vpop.f32.mrb[0].mxu0
      %v3874 = vpop.f32.mrb[0].mxu0
      %v3875 = vadd.f32 %v3530, %v3874
      %v3876 = vpop.f32.mrb[0].mxu0
      %3877 = vmatprep.mubr.bf16.mxu0 %v1857
      %3878 = vmatmul.mubr.bf16.gmra.mrb[0].mxu0 %v1708
      %v3879 = vpop.f32.mrb[0].mxu0
      %v3880 = vadd.f32 %v3535, %v3879
      %v3881 = vpop.f32.mrb[0].mxu0
      %v3882 = vpop.f32.mrb[0].mxu0
      %v3883 = vadd.f32 %v3538, %v3882
      %v3884 = vpop.f32.mrb[0].mxu0
      %3885 = vmatprep.mubr.bf16.mxu0 %v1861
      %3886 = vmatmul.mubr.bf16.gmra.mrb[0].mxu0 %v1710
      %v3887 = vpop.f32.mrb[0].mxu0
      %v3888 = vadd.f32 %v3543, %v3887
      %v3889 = vpop.f32.mrb[0].mxu0
      %v3890 = vpop.f32.mrb[0].mxu0
      %v3891 = vadd.f32 %v3546, %v3890
      %v3892 = vpop.f32.mrb[0].mxu0
      %3893 = vmatprep.mubr.bf16.mxu0 %v1865
      %3894 = vmatmul.mubr.bf16.gmra.mrb[0].mxu0 %v1712
      %v3895 = vpop.f32.mrb[0].mxu0
      %v3896 = vadd.f32 %v3551, %v3895
      %v3897 = vpop.f32.mrb[0].mxu0
      %v3898 = vpop.f32.mrb[0].mxu0
      %v3899 = vadd.f32 %v3554, %v3898
      %v3900 = vpop.f32.mrb[0].mxu0
      %3901 = vmatprep.mubr.bf16.mxu0 %v1869
      %3902 = vmatmul.mubr.bf16.gmra.mrb[0].mxu0 %v1714
      %v3903 = vpop.f32.mrb[0].mxu0
      %v3904 = vadd.f32 %v3559, %v3903
      %v3905 = vpop.f32.mrb[0].mxu0
      %v3906 = vpop.f32.mrb[0].mxu0
      %v3907 = vadd.f32 %v3562, %v3906
      %v3908 = vpop.f32.mrb[0].mxu0
      %3909 = vmatprep.mubr.bf16.mxu0 %v1873
      %3910 = vmatmul.mubr.bf16.gmra.mrb[0].mxu0 %v1716
      %v3911 = vpop.f32.mrb[0].mxu0
      %v3912 = vadd.f32 %v3567, %v3911
      %v3913 = vpop.f32.mrb[0].mxu0
      %v3914 = vpop.f32.mrb[0].mxu0
      %v3915 = vadd.f32 %v3570, %v3914
      %v3916 = vpop.f32.mrb[0].mxu0
      %3917 = vmatprep.mubr.bf16.mxu0 %v1877
      %3918 = vmatmul.mubr.bf16.gmra.mrb[0].mxu0 %v1718
      %v3919 = vpop.f32.mrb[0].mxu0
      %v3920 = vadd.f32 %v3575, %v3919
      %v3921 = vpop.f32.mrb[0].mxu0
      %v3922 = vpop.f32.mrb[0].mxu0
      %v3923 = vadd.f32 %v3578, %v3922
      %v3924 = vpop.f32.mrb[0].mxu0
      %3925 = vmatprep.mubr.bf16.mxu0 %v1881
      %3926 = vmatmul.mubr.bf16.gmra.mrb[0].mxu0 %v1720
      %v3927 = vpop.f32.mrb[0].mxu0
      %v3928 = vadd.f32 %v3583, %v3927
      %v3929 = vpop.f32.mrb[0].mxu0
      %v3930 = vpop.f32.mrb[0].mxu0
      %v3931 = vadd.f32 %v3586, %v3930
      %v3932 = vpop.f32.mrb[0].mxu0
      %3933 = vmatprep.mubr.bf16.mxu0 %v1885
      %3934 = vmatmul.mubr.bf16.gmra.mrb[0].mxu0 %v1722
      %v3935 = vpop.f32.mrb[0].mxu0
      %v3936 = vadd.f32 %v3591, %v3935
      %v3937 = vpop.f32.mrb[0].mxu0
      %v3938 = vpop.f32.mrb[0].mxu0
      %v3939 = vadd.f32 %v3594, %v3938
      %v3940 = vpop.f32.mrb[0].mxu0
      %3941 = vmatprep.mubr.bf16.mxu0 %v1889
      %3942 = vmatmul.mubr.bf16.gmra.mrb[0].mxu0 %v1724
      %v3943 = vpop.f32.mrb[0].mxu0
      %v3944 = vadd.f32 %v3599, %v3943
      %v3945 = vpop.f32.mrb[0].mxu0
      %v3946 = vpop.f32.mrb[0].mxu0
      %v3947 = vadd.f32 %v3602, %v3946
      %v3948 = vpop.f32.mrb[0].mxu0
      %3949 = vmatprep.mubr.bf16.mxu0 %v1893
      %3950 = vmatmul.mubr.bf16.gmra.mrb[0].mxu0 %v1726
      %v3951 = vpop.f32.mrb[0].mxu0
      %v3952 = vadd.f32 %v3607, %v3951
      %v3953 = vpop.f32.mrb[0].mxu0
      %v3954 = vpop.f32.mrb[0].mxu0
      %v3955 = vadd.f32 %v3610, %v3954
      %v3956 = vpop.f32.mrb[0].mxu0
      %3957 = vmatprep.mubr.bf16.mxu0 %v1897
      %3958 = vmatmul.mubr.bf16.gmra.mrb[0].mxu0 %v1728
      %v3959 = vpop.f32.mrb[0].mxu0
      %v3960 = vadd.f32 %v3615, %v3959
      %v3961 = vpop.f32.mrb[0].mxu0
      %v3962 = vpop.f32.mrb[0].mxu0
      %v3963 = vadd.f32 %v3618, %v3962
      %v3964 = vpop.f32.mrb[0].mxu0
      %3965 = vmatprep.mubr.bf16.mxu0 %v1901
      %3966 = vmatmul.mubr.bf16.gmra.mrb[0].mxu0 %v1730
      %v3967 = vpop.f32.mrb[0].mxu0
      %v3968 = vadd.f32 %v3623, %v3967
      %v3969 = vpop.f32.mrb[0].mxu0
      %v3970 = vpop.f32.mrb[0].mxu0
      %v3971 = vadd.f32 %v3626, %v3970
      %v3972 = vpop.f32.mrb[0].mxu0
      %3973 = vmatprep.mubr.bf16.mxu0 %v1905
      %3974 = vmatmul.mubr.bf16.gmra.mrb[0].mxu0 %v1732
      %v3975 = vpop.f32.mrb[0].mxu0
      %v3976 = vadd.f32 %v3631, %v3975
      %v3977 = vpop.f32.mrb[0].mxu0
      %v3978 = vpop.f32.mrb[0].mxu0
      %v3979 = vadd.f32 %v3634, %v3978
      %v3980 = vpop.f32.mrb[0].mxu0
      %3981 = vmatprep.mubr.bf16.mxu0 %v1909
      %3982 = vmatmul.mubr.bf16.gmra.mrb[0].mxu0 %v1734
      %v3983 = vpop.f32.mrb[0].mxu0
      %v3984 = vadd.f32 %v3639, %v3983
      %v3985 = vpop.f32.mrb[0].mxu0
      %v3986 = vpop.f32.mrb[0].mxu0
      %v3987 = vadd.f32 %v3642, %v3986
      %v3988 = vpop.f32.mrb[0].mxu0
      %3989 = vmatprep.mubr.bf16.mxu0 %v1913
      %3990 = vmatmul.mubr.bf16.gmra.mrb[0].mxu0 %v1736
      %v3991 = vpop.f32.mrb[0].mxu0
      %v3992 = vadd.f32 %v3647, %v3991
      %v3993 = vpop.f32.mrb[0].mxu0
      %v3994 = vpop.f32.mrb[0].mxu0
      %v3995 = vadd.f32 %v3650, %v3994
      %v3996 = vpop.f32.mrb[0].mxu0
      %3997 = vmatprep.mubr.bf16.mxu0 %v1917
      %3998 = vmatmul.mubr.bf16.gmra.mrb[0].mxu0 %v1738
      %v3999 = vpop.f32.mrb[0].mxu0
      %v4000 = vadd.f32 %v3655, %v3999
      %v4001 = vpop.f32.mrb[0].mxu0
      %v4002 = vpop.f32.mrb[0].mxu0
      %v4003 = vadd.f32 %v3658, %v4002
      %v4004 = vpop.f32.mrb[0].mxu0
      %4005 = vmatprep.mubr.bf16.mxu0 %v1921
      %4006 = vmatmul.mubr.bf16.gmra.mrb[0].mxu0 %v1740
      %v4007 = vpop.f32.mrb[0].mxu0
      %v4008 = vadd.f32 %v3663, %v4007
      %v4009 = vpop.f32.mrb[0].mxu0
      %v4010 = vpop.f32.mrb[0].mxu0
      %v4011 = vadd.f32 %v3666, %v4010
      %v4012 = vpop.f32.mrb[0].mxu0
      %4013 = vmatprep.mubr.bf16.mxu0 %v1925
      %4014 = vmatmul.mubr.bf16.gmra.mrb[0].mxu0 %v1742
      %v4015 = vpop.f32.mrb[0].mxu0
      %v4016 = vadd.f32 %v3671, %v4015
      %v4017 = vpop.f32.mrb[0].mxu0
      %v4018 = vpop.f32.mrb[0].mxu0
      %v4019 = vadd.f32 %v3674, %v4018
      %v4020 = vpop.f32.mrb[0].mxu0
      %4021 = vmatprep.mubr.bf16.mxu0 %v1929
      %4022 = vmatmul.mubr.bf16.gmra.mrb[0].mxu0 %v1744
      %v4023 = vpop.f32.mrb[0].mxu0
      %v4024 = vadd.f32 %v3679, %v4023
      %v4025 = vpop.f32.mrb[0].mxu0
      %v4026 = vpop.f32.mrb[0].mxu0
      %v4027 = vadd.f32 %v3682, %v4026
      %v4028 = vpop.f32.mrb[0].mxu0
      %4029 = vmatprep.mubr.bf16.mxu0 %v1933
      %4030 = vmatmul.mubr.bf16.gmra.mrb[0].mxu0 %v1746
      %v4031 = vpop.f32.mrb[0].mxu0
      %v4032 = vadd.f32 %v3687, %v4031
      %v4033 = vpop.f32.mrb[0].mxu0
      %v4034 = vpop.f32.mrb[0].mxu0
      %v4035 = vadd.f32 %v3690, %v4034
      %v4036 = vpop.f32.mrb[0].mxu0
      %4037 = vmatprep.mubr.bf16.mxu0 %v1937
      %4038 = vmatmul.mubr.bf16.gmra.mrb[0].mxu0 %v1748
      %v4039 = vpop.f32.mrb[0].mxu0
      %v4040 = vadd.f32 %v3695, %v4039
      %v4041 = vpop.f32.mrb[0].mxu0
      %v4042 = vpop.f32.mrb[0].mxu0
      %v4043 = vadd.f32 %v3698, %v4042
      %v4044 = vpop.f32.mrb[0].mxu0
      %4045 = vmatprep.mubr.bf16.mxu0 %v1941
      %4046 = vmatmul.mubr.bf16.gmra.mrb[0].mxu0 %v1750
      %v4047 = vpop.f32.mrb[0].mxu0
      %v4048 = vadd.f32 %v3703, %v4047
      %v4049 = vpop.f32.mrb[0].mxu0
      %v4050 = vpop.f32.mrb[0].mxu0
      %v4051 = vadd.f32 %v3706, %v4050
      %v4052 = vpop.f32.mrb[0].mxu0
      %4053 = vmatprep.mubr.bf16.mxu0 %v1945
      %4054 = vmatmul.mubr.bf16.gmra.mrb[0].mxu0 %v1752
      %v4055 = vpop.f32.mrb[0].mxu0
      %v4056 = vadd.f32 %v3711, %v4055
      %v4057 = vpop.f32.mrb[0].mxu0
      %v4058 = vpop.f32.mrb[0].mxu0
      %v4059 = vadd.f32 %v3714, %v4058
      %v4060 = vpop.f32.mrb[0].mxu0
      %4061 = vmatprep.mubr.bf16.mxu0 %v1949
      %4062 = vmatmul.mubr.bf16.gmra.mrb[0].mxu0 %v1754
      %v4063 = vpop.f32.mrb[0].mxu0
      %v4064 = vadd.f32 %v3719, %v4063
      %v4065 = vpop.f32.mrb[0].mxu0
      %v4066 = vpop.f32.mrb[0].mxu0
      %v4067 = vadd.f32 %v3722, %v4066
      %v4068 = vpop.f32.mrb[0].mxu0
      %4069 = vmatprep.mubr.bf16.mxu0 %v1953
      %4070 = vmatmul.mubr.bf16.gmra.mrb[0].mxu0 %v1756
      %v4071 = vpop.f32.mrb[0].mxu0
      %v4072 = vadd.f32 %v3727, %v4071
      %v4073 = vpop.f32.mrb[0].mxu0
      %v4074 = vpop.f32.mrb[0].mxu0
      %v4075 = vadd.f32 %v3730, %v4074
      %v4076 = vpop.f32.mrb[0].mxu0
      %4077 = vmatprep.mubr.bf16.mxu0 %v1957
      %4078 = vmatmul.mubr.bf16.gmra.mrb[0].mxu0 %v1758
      %v4079 = vpop.f32.mrb[0].mxu0
      %v4080 = vadd.f32 %v3735, %v4079
      %v4081 = vpop.f32.mrb[0].mxu0
      %v4082 = vpop.f32.mrb[0].mxu0
      %v4083 = vadd.f32 %v3738, %v4082
      %v4084 = vpop.f32.mrb[0].mxu0
      %4085 = vmatprep.mubr.bf16.mxu0 %v1966
      %4086 = vmatmul.mubr.bf16.gmra.mrb[0].mxu0 %v1760
      %v4087 = vpop.f32.mrb[0].mxu0
      %v4088 = vadd.f32 %v3743, %v4087
      %v4089 = vpop.f32.mrb[0].mxu0
      %v4090 = vpop.f32.mrb[0].mxu0
      %v4091 = vadd.f32 %v3746, %v4090
      %v4092 = vpop.f32.mrb[0].mxu0
      %4093 = vmatprep.mubr.bf16.mxu0 %v1975
      %4094 = vmatmul.mubr.bf16.gmra.mrb[0].mxu0 %v1762
      %v4095 = vpop.f32.mrb[0].mxu0
      %v4096 = vadd.f32 %v3751, %v4095
      %v4097 = vpop.f32.mrb[0].mxu0
      %v4098 = vpop.f32.mrb[0].mxu0
      %v4099 = vadd.f32 %v3754, %v4098
      %v4100 = vpop.f32.mrb[0].mxu0
      %4101 = vmatprep.mubr.bf16.mxu0 %v1984
      %4102 = vmatmul.mubr.bf16.gmra.mrb[0].mxu0 %v1764
      %v4103 = vpop.f32.mrb[0].mxu0
      %v4104 = vadd.f32 %v3759, %v4103
      %v4105 = vpop.f32.mrb[0].mxu0
      %v4106 = vpop.f32.mrb[0].mxu0
      %v4107 = vadd.f32 %v3762, %v4106
      %v4108 = vpop.f32.mrb[0].mxu0
      %4109 = vmatprep.mubr.bf16.mxu0 %v1993
      %4110 = vmatmul.mubr.bf16.gmra.mrb[0].mxu0 %v1766
      %v4111 = vpop.f32.mrb[0].mxu0
      %v4112 = vadd.f32 %v3767, %v4111
      %v4113 = vpop.f32.mrb[0].mxu0
      %v4114 = vpop.f32.mrb[0].mxu0
      %v4115 = vadd.f32 %v3770, %v4114
      %v4116 = vpop.f32.mrb[0].mxu0
      %4117 = vdwg.mxu0
      %4118 = vmatprep.subr.bf16.mxu0 0
      %4119 = vmatpush1.bf16.msra.mxu0 %v2658
      %4120 = vmatprep.subr.bf16.mxu0 0
      %4121 = vmatpush1.bf16.msra.mxu0 %v2659
      %4122 = vmatprep.subr.bf16.mxu0 0
      %4123 = vmatpush1.bf16.msra.mxu0 %v2660
      %4124 = vmatprep.subr.bf16.mxu0 0
      %4125 = vmatpush1.bf16.msra.mxu0 %v2661
      %4126 = vmatprep.subr.bf16.mxu0 0
      %4127 = vmatpush1.bf16.msra.mxu0 %v2662
      %4128 = vmatprep.subr.bf16.mxu0 0
      %4129 = vmatpush1.bf16.msra.mxu0 %v2663
      %4130 = vmatprep.subr.bf16.mxu0 0
      %4131 = vmatpush1.bf16.msra.mxu0 %v2664
      %4132 = vmatprep.subr.bf16.mxu0 0
      %4133 = vmatpush1.bf16.msra.mxu0 %v2665
      %4134 = vmatprep.subr.bf16.mxu0 0
      %4135 = vmatpush1.bf16.msra.mxu0 0
      %4136 = vmatprep.subr.bf16.mxu0 0
      %4137 = vmatpush1.bf16.msra.mxu0 0
      %4138 = vmatprep.subr.bf16.mxu0 0
      %4139 = vmatpush1.bf16.msra.mxu0 0
      %4140 = vmatprep.subr.bf16.mxu0 0
      %4141 = vmatpush1.bf16.msra.mxu0 0
      %4142 = vmatprep.subr.bf16.mxu0 0
      %4143 = vmatpush1.bf16.msra.mxu0 0
      %4144 = vmatprep.subr.bf16.mxu0 0
      %4145 = vmatpush1.bf16.msra.mxu0 0
      %4146 = vmatprep.subr.bf16.mxu0 0
      %4147 = vmatpush1.bf16.msra.mxu0 0
      %4148 = vmatprep.subr.bf16.mxu0 0
      %4149 = vmatpush1.bf16.msra.mxu0 0
      %4150 = vmatprep.mubr.bf16.mxu0 0
      %4151 = vmatmul.mubr.bf16.gmra.mrb[0].mxu0 %v2039
      %v4152 = vpop.f32.mrb[0].mxu0
      %v4153 = vadd.f32 %v3808, %v4152
      %v4154 = vpop.f32.mrb[0].mxu0
      %v4155 = vpop.f32.mrb[0].mxu0
      %v4156 = vadd.f32 %v3811, %v4155
      %v4157 = vpop.f32.mrb[0].mxu0
      %4158 = vmatprep.mubr.bf16.mxu0 0
      %4159 = vmatmul.mubr.bf16.gmra.mrb[0].mxu0 %v2041
      %v4160 = vpop.f32.mrb[0].mxu0
      %v4161 = vadd.f32 %v3816, %v4160
      %v4162 = vpop.f32.mrb[0].mxu0
      %v4163 = vpop.f32.mrb[0].mxu0
      %v4164 = vadd.f32 %v3819, %v4163
      %v4165 = vpop.f32.mrb[0].mxu0
      %4166 = vmatprep.mubr.bf16.mxu0 0
      %4167 = vmatmul.mubr.bf16.gmra.mrb[0].mxu0 %v2043
      %v4168 = vpop.f32.mrb[0].mxu0
      %v4169 = vadd.f32 %v3824, %v4168
      %v4170 = vpop.f32.mrb[0].mxu0
      %v4171 = vpop.f32.mrb[0].mxu0
      %v4172 = vadd.f32 %v3827, %v4171
      %v4173 = vpop.f32.mrb[0].mxu0
      %4174 = vmatprep.mubr.bf16.mxu0 0
      %4175 = vmatmul.mubr.bf16.gmra.mrb[0].mxu0 %v2045
      %v4176 = vpop.f32.mrb[0].mxu0
      %v4177 = vadd.f32 %v3832, %v4176
      %v4178 = vpop.f32.mrb[0].mxu0
      %v4179 = vpop.f32.mrb[0].mxu0
      %v4180 = vadd.f32 %v3835, %v4179
      %v4181 = vpop.f32.mrb[0].mxu0
      %4182 = vmatprep.mubr.bf16.mxu0 0
      %4183 = vmatmul.mubr.bf16.gmra.mrb[0].mxu0 %v2047
      %v4184 = vpop.f32.mrb[0].mxu0
      %v4185 = vadd.f32 %v3840, %v4184
      %v4186 = vpop.f32.mrb[0].mxu0
      %v4187 = vpop.f32.mrb[0].mxu0
      %v4188 = vadd.f32 %v3843, %v4187
      %v4189 = vpop.f32.mrb[0].mxu0
      %4190 = vmatprep.mubr.bf16.mxu0 0
      %4191 = vmatmul.mubr.bf16.gmra.mrb[0].mxu0 %v2049
      %v4192 = vpop.f32.mrb[0].mxu0
      %v4193 = vadd.f32 %v3848, %v4192
      %v4194 = vpop.f32.mrb[0].mxu0
      %v4195 = vpop.f32.mrb[0].mxu0
      %v4196 = vadd.f32 %v3851, %v4195
      %v4197 = vpop.f32.mrb[0].mxu0
      %4198 = vmatprep.mubr.bf16.mxu0 0
      %4199 = vmatmul.mubr.bf16.gmra.mrb[0].mxu0 %v2051
      %v4200 = vpop.f32.mrb[0].mxu0
      %v4201 = vadd.f32 %v3856, %v4200
      %v4202 = vpop.f32.mrb[0].mxu0
      %v4203 = vpop.f32.mrb[0].mxu0
      %v4204 = vadd.f32 %v3859, %v4203
      %v4205 = vpop.f32.mrb[0].mxu0
      %4206 = vmatprep.mubr.bf16.mxu0 0
      %4207 = vmatmul.mubr.bf16.gmra.mrb[0].mxu0 %v2053
      %v4208 = vpop.f32.mrb[0].mxu0
      %v4209 = vadd.f32 %v3864, %v4208
      %v4210 = vpop.f32.mrb[0].mxu0
      %v4211 = vpop.f32.mrb[0].mxu0
      %v4212 = vadd.f32 %v3867, %v4211
      %v4213 = vpop.f32.mrb[0].mxu0
      %4214 = vmatprep.mubr.bf16.mxu0 0
      %4215 = vmatmul.mubr.bf16.gmra.mrb[0].mxu0 %v2055
      %v4216 = vpop.f32.mrb[0].mxu0
      %v4217 = vadd.f32 %v3872, %v4216
      %v4218 = vpop.f32.mrb[0].mxu0
      %v4219 = vpop.f32.mrb[0].mxu0
      %v4220 = vadd.f32 %v3875, %v4219
      %v4221 = vpop.f32.mrb[0].mxu0
      %4222 = vmatprep.mubr.bf16.mxu0 0
      %4223 = vmatmul.mubr.bf16.gmra.mrb[0].mxu0 %v2057
      %v4224 = vpop.f32.mrb[0].mxu0
      %v4225 = vadd.f32 %v3880, %v4224
      %v4226 = vpop.f32.mrb[0].mxu0
      %v4227 = vpop.f32.mrb[0].mxu0
      %v4228 = vadd.f32 %v3883, %v4227
      %v4229 = vpop.f32.mrb[0].mxu0
      %4230 = vmatprep.mubr.bf16.mxu0 0
      %4231 = vmatmul.mubr.bf16.gmra.mrb[0].mxu0 %v2059
      %v4232 = vpop.f32.mrb[0].mxu0
      %v4233 = vadd.f32 %v3888, %v4232
      %v4234 = vpop.f32.mrb[0].mxu0
      %v4235 = vpop.f32.mrb[0].mxu0
      %v4236 = vadd.f32 %v3891, %v4235
      %v4237 = vpop.f32.mrb[0].mxu0
      %4238 = vmatprep.mubr.bf16.mxu0 0
      %4239 = vmatmul.mubr.bf16.gmra.mrb[0].mxu0 %v2061
      %v4240 = vpop.f32.mrb[0].mxu0
      %v4241 = vadd.f32 %v3896, %v4240
      %v4242 = vpop.f32.mrb[0].mxu0
      %v4243 = vpop.f32.mrb[0].mxu0
      %v4244 = vadd.f32 %v3899, %v4243
      %v4245 = vpop.f32.mrb[0].mxu0
      %4246 = vmatprep.mubr.bf16.mxu0 0
      %4247 = vmatmul.mubr.bf16.gmra.mrb[0].mxu0 %v2063
      %v4248 = vpop.f32.mrb[0].mxu0
      %v4249 = vadd.f32 %v3904, %v4248
      %v4250 = vpop.f32.mrb[0].mxu0
      %v4251 = vpop.f32.mrb[0].mxu0
      %v4252 = vadd.f32 %v3907, %v4251
      %v4253 = vpop.f32.mrb[0].mxu0
      %4254 = vmatprep.mubr.bf16.mxu0 0
      %4255 = vmatmul.mubr.bf16.gmra.mrb[0].mxu0 %v2065
      %v4256 = vpop.f32.mrb[0].mxu0
      %v4257 = vadd.f32 %v3912, %v4256
      %v4258 = vpop.f32.mrb[0].mxu0
      %v4259 = vpop.f32.mrb[0].mxu0
      %v4260 = vadd.f32 %v3915, %v4259
      %v4261 = vpop.f32.mrb[0].mxu0
      %4262 = vmatprep.mubr.bf16.mxu0 0
      %4263 = vmatmul.mubr.bf16.gmra.mrb[0].mxu0 %v2067
      %v4264 = vpop.f32.mrb[0].mxu0
      %v4265 = vadd.f32 %v3920, %v4264
      %v4266 = vpop.f32.mrb[0].mxu0
      %v4267 = vpop.f32.mrb[0].mxu0
      %v4268 = vadd.f32 %v3923, %v4267
      %v4269 = vpop.f32.mrb[0].mxu0
      %4270 = vmatprep.mubr.bf16.mxu0 0
      %4271 = vmatmul.mubr.bf16.gmra.mrb[0].mxu0 %v2069
      %v4272 = vpop.f32.mrb[0].mxu0
      %v4273 = vadd.f32 %v3928, %v4272
      %v4274 = vpop.f32.mrb[0].mxu0
      %v4275 = vpop.f32.mrb[0].mxu0
      %v4276 = vadd.f32 %v3931, %v4275
      %v4277 = vpop.f32.mrb[0].mxu0
      %4278 = vmatprep.mubr.bf16.mxu0 0
      %4279 = vmatmul.mubr.bf16.gmra.mrb[0].mxu0 %v2071
      %v4280 = vpop.f32.mrb[0].mxu0
      %v4281 = vadd.f32 %v3936, %v4280
      %v4282 = vpop.f32.mrb[0].mxu0
      %v4283 = vpop.f32.mrb[0].mxu0
      %v4284 = vadd.f32 %v3939, %v4283
      %v4285 = vpop.f32.mrb[0].mxu0
      %4286 = vmatprep.mubr.bf16.mxu0 0
      %4287 = vmatmul.mubr.bf16.gmra.mrb[0].mxu0 %v2073
      %v4288 = vpop.f32.mrb[0].mxu0
      %v4289 = vadd.f32 %v3944, %v4288
      %v4290 = vpop.f32.mrb[0].mxu0
      %v4291 = vpop.f32.mrb[0].mxu0
      %v4292 = vadd.f32 %v3947, %v4291
      %v4293 = vpop.f32.mrb[0].mxu0
      %4294 = vmatprep.mubr.bf16.mxu0 0
      %4295 = vmatmul.mubr.bf16.gmra.mrb[0].mxu0 %v2075
      %v4296 = vpop.f32.mrb[0].mxu0
      %v4297 = vadd.f32 %v3952, %v4296
      %v4298 = vpop.f32.mrb[0].mxu0
      %v4299 = vpop.f32.mrb[0].mxu0
      %v4300 = vadd.f32 %v3955, %v4299
      %v4301 = vpop.f32.mrb[0].mxu0
      %4302 = vmatprep.mubr.bf16.mxu0 0
      %4303 = vmatmul.mubr.bf16.gmra.mrb[0].mxu0 %v2077
      %v4304 = vpop.f32.mrb[0].mxu0
      %v4305 = vadd.f32 %v3960, %v4304
      %v4306 = vpop.f32.mrb[0].mxu0
      %v4307 = vpop.f32.mrb[0].mxu0
      %v4308 = vadd.f32 %v3963, %v4307
      %v4309 = vpop.f32.mrb[0].mxu0
      %4310 = vmatprep.mubr.bf16.mxu0 0
      %4311 = vmatmul.mubr.bf16.gmra.mrb[0].mxu0 %v2079
      %v4312 = vpop.f32.mrb[0].mxu0
      %v4313 = vadd.f32 %v3968, %v4312
      %v4314 = vpop.f32.mrb[0].mxu0
      %v4315 = vpop.f32.mrb[0].mxu0
      %v4316 = vadd.f32 %v3971, %v4315
      %v4317 = vpop.f32.mrb[0].mxu0
      %4318 = vmatprep.mubr.bf16.mxu0 0
      %4319 = vmatmul.mubr.bf16.gmra.mrb[0].mxu0 %v2081
      %v4320 = vpop.f32.mrb[0].mxu0
      %v4321 = vadd.f32 %v3976, %v4320
      %v4322 = vpop.f32.mrb[0].mxu0
      %v4323 = vpop.f32.mrb[0].mxu0
      %v4324 = vadd.f32 %v3979, %v4323
      %v4325 = vpop.f32.mrb[0].mxu0
      %4326 = vmatprep.mubr.bf16.mxu0 0
      %4327 = vmatmul.mubr.bf16.gmra.mrb[0].mxu0 %v2083
      %v4328 = vpop.f32.mrb[0].mxu0
      %v4329 = vadd.f32 %v3984, %v4328
      %v4330 = vpop.f32.mrb[0].mxu0
      %v4331 = vpop.f32.mrb[0].mxu0
      %v4332 = vadd.f32 %v3987, %v4331
      %v4333 = vpop.f32.mrb[0].mxu0
      %4334 = vmatprep.mubr.bf16.mxu0 0
      %4335 = vmatmul.mubr.bf16.gmra.mrb[0].mxu0 %v2085
      %v4336 = vpop.f32.mrb[0].mxu0
      %v4337 = vadd.f32 %v3992, %v4336
      %v4338 = vpop.f32.mrb[0].mxu0
      %v4339 = vpop.f32.mrb[0].mxu0
      %v4340 = vadd.f32 %v3995, %v4339
      %v4341 = vpop.f32.mrb[0].mxu0
      %4342 = vmatprep.mubr.bf16.mxu0 0
      %4343 = vmatmul.mubr.bf16.gmra.mrb[0].mxu0 %v2087
      %v4344 = vpop.f32.mrb[0].mxu0
      %v4345 = vadd.f32 %v4000, %v4344
      %v4346 = vpop.f32.mrb[0].mxu0
      %v4347 = vpop.f32.mrb[0].mxu0
      %v4348 = vadd.f32 %v4003, %v4347
      %v4349 = vpop.f32.mrb[0].mxu0
      %4350 = vmatprep.mubr.bf16.mxu0 0
      %4351 = vmatmul.mubr.bf16.gmra.mrb[0].mxu0 %v2089
      %v4352 = vpop.f32.mrb[0].mxu0
      %v4353 = vadd.f32 %v4008, %v4352
      %v4354 = vpop.f32.mrb[0].mxu0
      %v4355 = vpop.f32.mrb[0].mxu0
      %v4356 = vadd.f32 %v4011, %v4355
      %v4357 = vpop.f32.mrb[0].mxu0
      %4358 = vmatprep.mubr.bf16.mxu0 0
      %4359 = vmatmul.mubr.bf16.gmra.mrb[0].mxu0 %v2091
      %v4360 = vpop.f32.mrb[0].mxu0
      %v4361 = vadd.f32 %v4016, %v4360
      %v4362 = vpop.f32.mrb[0].mxu0
      %v4363 = vpop.f32.mrb[0].mxu0
      %v4364 = vadd.f32 %v4019, %v4363
      %v4365 = vpop.f32.mrb[0].mxu0
      %4366 = vmatprep.mubr.bf16.mxu0 0
      %4367 = vmatmul.mubr.bf16.gmra.mrb[0].mxu0 %v2093
      %v4368 = vpop.f32.mrb[0].mxu0
      %v4369 = vadd.f32 %v4024, %v4368
      %v4370 = vpop.f32.mrb[0].mxu0
      %v4371 = vpop.f32.mrb[0].mxu0
      %v4372 = vadd.f32 %v4027, %v4371
      %v4373 = vpop.f32.mrb[0].mxu0
      %4374 = vmatprep.mubr.bf16.mxu0 0
      %4375 = vmatmul.mubr.bf16.gmra.mrb[0].mxu0 %v2095
      %v4376 = vpop.f32.mrb[0].mxu0
      %v4377 = vadd.f32 %v4032, %v4376
      %v4378 = vpop.f32.mrb[0].mxu0
      %v4379 = vpop.f32.mrb[0].mxu0
      %v4380 = vadd.f32 %v4035, %v4379
      %v4381 = vpop.f32.mrb[0].mxu0
      %4382 = vmatprep.mubr.bf16.mxu0 0
      %4383 = vmatmul.mubr.bf16.gmra.mrb[0].mxu0 %v2097
      %v4384 = vpop.f32.mrb[0].mxu0
      %v4385 = vadd.f32 %v4040, %v4384
      %v4386 = vpop.f32.mrb[0].mxu0
      %v4387 = vpop.f32.mrb[0].mxu0
      %v4388 = vadd.f32 %v4043, %v4387
      %v4389 = vpop.f32.mrb[0].mxu0
      %4390 = vmatprep.mubr.bf16.mxu0 0
      %4391 = vmatmul.mubr.bf16.gmra.mrb[0].mxu0 %v2099
      %v4392 = vpop.f32.mrb[0].mxu0
      %v4393 = vadd.f32 %v4048, %v4392
      %v4394 = vpop.f32.mrb[0].mxu0
      %v4395 = vpop.f32.mrb[0].mxu0
      %v4396 = vadd.f32 %v4051, %v4395
      %v4397 = vpop.f32.mrb[0].mxu0
      %4398 = vmatprep.mubr.bf16.mxu0 0
      %4399 = vmatmul.mubr.bf16.gmra.mrb[0].mxu0 %v2101
      %v4400 = vpop.f32.mrb[0].mxu0
      %v4401 = vadd.f32 %v4056, %v4400
      %v4402 = vpop.f32.mrb[0].mxu0
      %v4403 = vpop.f32.mrb[0].mxu0
      %v4404 = vadd.f32 %v4059, %v4403
      %v4405 = vpop.f32.mrb[0].mxu0
      %4406 = vmatprep.mubr.bf16.mxu0 0
      %4407 = vmatmul.mubr.bf16.gmra.mrb[0].mxu0 %v2103
      %v4408 = vpop.f32.mrb[0].mxu0
      %v4409 = vadd.f32 %v4064, %v4408
      %v4410 = vpop.f32.mrb[0].mxu0
      %v4411 = vpop.f32.mrb[0].mxu0
      %v4412 = vadd.f32 %v4067, %v4411
      %v4413 = vpop.f32.mrb[0].mxu0
      %4414 = vmatprep.mubr.bf16.mxu0 0
      %4415 = vmatmul.mubr.bf16.gmra.mrb[0].mxu0 %v2105
      %v4416 = vpop.f32.mrb[0].mxu0
      %v4417 = vadd.f32 %v4072, %v4416
      %v4418 = vpop.f32.mrb[0].mxu0
      %v4419 = vpop.f32.mrb[0].mxu0
      %v4420 = vadd.f32 %v4075, %v4419
      %v4421 = vpop.f32.mrb[0].mxu0
      %4422 = vmatprep.mubr.bf16.mxu0 0
      %4423 = vmatmul.mubr.bf16.gmra.mrb[0].mxu0 %v2107
      %v4424 = vpop.f32.mrb[0].mxu0
      %v4425 = vadd.f32 %v4080, %v4424
      %v4426 = vpop.f32.mrb[0].mxu0
      %v4427 = vpop.f32.mrb[0].mxu0
      %v4428 = vadd.f32 %v4083, %v4427
      %v4429 = vpop.f32.mrb[0].mxu0
      %4430 = vmatprep.mubr.bf16.mxu0 0
      %4431 = vmatmul.mubr.bf16.gmra.mrb[0].mxu0 %v2109
      %v4432 = vpop.f32.mrb[0].mxu0
      %v4433 = vadd.f32 %v4088, %v4432
      %v4434 = vpop.f32.mrb[0].mxu0
      %v4435 = vpop.f32.mrb[0].mxu0
      %v4436 = vadd.f32 %v4091, %v4435
      %v4437 = vpop.f32.mrb[0].mxu0
      %4438 = vmatprep.mubr.bf16.mxu0 0
      %4439 = vmatmul.mubr.bf16.gmra.mrb[0].mxu0 %v2111
      %v4440 = vpop.f32.mrb[0].mxu0
      %v4441 = vadd.f32 %v4096, %v4440
      %v4442 = vpop.f32.mrb[0].mxu0
      %v4443 = vpop.f32.mrb[0].mxu0
      %v4444 = vadd.f32 %v4099, %v4443
      %v4445 = vpop.f32.mrb[0].mxu0
      %4446 = vmatprep.mubr.bf16.mxu0 0
      %4447 = vmatmul.mubr.bf16.gmra.mrb[0].mxu0 %v2113
      %v4448 = vpop.f32.mrb[0].mxu0
      %v4449 = vadd.f32 %v4104, %v4448
      %v4450 = vpop.f32.mrb[0].mxu0
      %v4451 = vpop.f32.mrb[0].mxu0
      %v4452 = vadd.f32 %v4107, %v4451
      %v4453 = vpop.f32.mrb[0].mxu0
      %4454 = vmatprep.mubr.bf16.mxu0 0
      %4455 = vmatmul.mubr.bf16.gmra.mrb[0].mxu0 %v2115
      %v4456 = vpop.f32.mrb[0].mxu0
      %v4457 = vadd.f32 %v4112, %v4456
      %v4458 = vpop.f32.mrb[0].mxu0
      %v4459 = vpop.f32.mrb[0].mxu0
      %v4460 = vadd.f32 %v4115, %v4459
      %v4461 = vpop.f32.mrb[0].mxu0
      %4462 = vdwg.mxu0
      %v4463 = vmax.f32 %v4153, 0.0
      %v4464 = vmax.f32 %v4156, 0.0
      %v4465 = vmax.f32 %v4161, 0.0
      %v4466 = vmax.f32 %v4164, 0.0
      %v4467 = vmax.f32 %v4169, 0.0
      %v4468 = vmax.f32 %v4172, 0.0
      %v4469 = vmax.f32 %v4177, 0.0
      %v4470 = vmax.f32 %v4180, 0.0
      %v4471 = vmax.f32 %v4185, 0.0
      %v4472 = vmax.f32 %v4188, 0.0
      %v4473 = vmax.f32 %v4193, 0.0
      %v4474 = vmax.f32 %v4196, 0.0
      %v4475 = vmax.f32 %v4201, 0.0
      %v4476 = vmax.f32 %v4204, 0.0
      %v4477 = vmax.f32 %v4209, 0.0
      %v4478 = vmax.f32 %v4212, 0.0
      %v4479 = vmax.f32 %v4217, 0.0
      %v4480 = vmax.f32 %v4220, 0.0
      %v4481 = vmax.f32 %v4225, 0.0
      %v4482 = vmax.f32 %v4228, 0.0
      %v4483 = vmax.f32 %v4233, 0.0
      %v4484 = vmax.f32 %v4236, 0.0
      %v4485 = vmax.f32 %v4241, 0.0
      %v4486 = vmax.f32 %v4244, 0.0
      %v4487 = vmax.f32 %v4249, 0.0
      %v4488 = vmax.f32 %v4252, 0.0
      %v4489 = vmax.f32 %v4257, 0.0
      %v4490 = vmax.f32 %v4260, 0.0
      %v4491 = vmax.f32 %v4265, 0.0
      %v4492 = vmax.f32 %v4268, 0.0
      %v4493 = vmax.f32 %v4273, 0.0
      %v4494 = vmax.f32 %v4276, 0.0
      %v4495 = vmax.f32 %v4281, 0.0
      %v4496 = vmax.f32 %v4284, 0.0
      %v4497 = vmax.f32 %v4289, 0.0
      %v4498 = vmax.f32 %v4292, 0.0
      %v4499 = vmax.f32 %v4297, 0.0
      %v4500 = vmax.f32 %v4300, 0.0
      %v4501 = vmax.f32 %v4305, 0.0
      %v4502 = vmax.f32 %v4308, 0.0
      %v4503 = vmax.f32 %v4313, 0.0
      %v4504 = vmax.f32 %v4316, 0.0
      %v4505 = vmax.f32 %v4321, 0.0
      %v4506 = vmax.f32 %v4324, 0.0
      %v4507 = vmax.f32 %v4329, 0.0
      %v4508 = vmax.f32 %v4332, 0.0
      %v4509 = vmax.f32 %v4337, 0.0
      %v4510 = vmax.f32 %v4340, 0.0
      %v4511 = vmax.f32 %v4345, 0.0
      %v4512 = vmax.f32 %v4348, 0.0
      %v4513 = vmax.f32 %v4353, 0.0
      %v4514 = vmax.f32 %v4356, 0.0
      %v4515 = vmax.f32 %v4361, 0.0
      %v4516 = vmax.f32 %v4364, 0.0
      %v4517 = vmax.f32 %v4369, 0.0
      %v4518 = vmax.f32 %v4372, 0.0
      %v4519 = vmax.f32 %v4377, 0.0
      %v4520 = vmax.f32 %v4380, 0.0
      %v4521 = vmax.f32 %v4385, 0.0
      %v4522 = vmax.f32 %v4388, 0.0
      %v4523 = vmax.f32 %v4393, 0.0
      %v4524 = vmax.f32 %v4396, 0.0
      %v4525 = vmax.f32 %v4401, 0.0
      %v4526 = vmax.f32 %v4404, 0.0
      %v4527 = vmax.f32 %v4409, 0.0
      %v4528 = vmax.f32 %v4412, 0.0
      %v4529 = vmax.f32 %v4417, 0.0
      %v4530 = vmax.f32 %v4420, 0.0
      %v4531 = vmax.f32 %v4425, 0.0
      %v4532 = vmax.f32 %v4428, 0.0
      %v4533 = vmax.f32 %v4433, 0.0
      %v4534 = vmax.f32 %v4436, 0.0
      %v4535 = vmax.f32 %v4441, 0.0
      %v4536 = vmax.f32 %v4444, 0.0
      %v4537 = vmax.f32 %v4449, 0.0
      %v4538 = vmax.f32 %v4452, 0.0
      %v4539 = vmax.f32 %v4457, 0.0
      %v4540 = vmax.f32 %v4460, 0.0
      %v4541 = vpack.c.bf16 %v4464, %v4463
      %v4542 = vpack.c.bf16 %v4466, %v4465
      %v4543 = vpack.c.bf16 %v4468, %v4467
      %v4544 = vpack.c.bf16 %v4470, %v4469
      %v4545 = vpack.c.bf16 %v4472, %v4471
      %v4546 = vpack.c.bf16 %v4474, %v4473
      %v4547 = vpack.c.bf16 %v4476, %v4475
      %v4548 = vpack.c.bf16 %v4478, %v4477
      %v4549 = vpack.c.bf16 %v4480, %v4479
      %v4550 = vpack.c.bf16 %v4482, %v4481
      %v4551 = vpack.c.bf16 %v4484, %v4483
      %v4552 = vpack.c.bf16 %v4486, %v4485
      %v4553 = vpack.c.bf16 %v4488, %v4487
      %v4554 = vpack.c.bf16 %v4490, %v4489
      %v4555 = vpack.c.bf16 %v4492, %v4491
      %v4556 = vpack.c.bf16 %v4494, %v4493
      %v4557 = vpack.c.bf16 %v4496, %v4495
      %v4558 = vpack.c.bf16 %v4498, %v4497
      %v4559 = vpack.c.bf16 %v4500, %v4499
      %v4560 = vpack.c.bf16 %v4502, %v4501
      %v4561 = vpack.c.bf16 %v4504, %v4503
      %v4562 = vpack.c.bf16 %v4506, %v4505
      %v4563 = vpack.c.bf16 %v4508, %v4507
      %v4564 = vpack.c.bf16 %v4510, %v4509
      %v4565 = vpack.c.bf16 %v4512, %v4511
      %v4566 = vpack.c.bf16 %v4514, %v4513
      %v4567 = vpack.c.bf16 %v4516, %v4515
      %v4568 = vpack.c.bf16 %v4518, %v4517
      %v4569 = vpack.c.bf16 %v4520, %v4519
      %v4570 = vpack.c.bf16 %v4522, %v4521
      %v4571 = vpack.c.bf16 %v4524, %v4523
      %v4572 = vpack.c.bf16 %v4526, %v4525
      %v4573 = vpack.c.bf16 %v4528, %v4527
      %v4574 = vpack.c.bf16 %v4530, %v4529
      %v4575 = vpack.c.bf16 %v4532, %v4531
      %v4576 = vpack.c.bf16 %v4534, %v4533
      %v4577 = vpack.c.bf16 %v4536, %v4535
      %v4578 = vpack.c.bf16 %v4538, %v4537
      %v4579 = vpack.c.bf16 %v4540, %v4539
      %v4619 = vunpack.c.l.b16 %v4541
      %v4620 = vunpack.c.h.b16 %v4541
      %v4621 = vunpack.c.l.b16 %v4542
      %v4622 = vunpack.c.h.b16 %v4542
      %v4623 = vunpack.c.l.b16 %v4543
      %v4624 = vunpack.c.h.b16 %v4543
      %v4625 = vunpack.c.l.b16 %v4544
      %v4626 = vunpack.c.h.b16 %v4544
      %v4627 = vunpack.c.l.b16 %v4545
      %v4628 = vunpack.c.h.b16 %v4545
      %v4629 = vunpack.c.l.b16 %v4546
      %v4630 = vunpack.c.h.b16 %v4546
      %v4631 = vunpack.c.l.b16 %v4547
      %v4632 = vunpack.c.h.b16 %v4547
      %v4633 = vunpack.c.l.b16 %v4548
      %v4634 = vunpack.c.h.b16 %v4548
      %v4635 = vunpack.c.l.b16 %v4549
      %v4636 = vunpack.c.h.b16 %v4549
      %v4637 = vunpack.c.l.b16 %v4550
      %v4638 = vunpack.c.h.b16 %v4550
      %v4639 = vunpack.c.l.b16 %v4551
      %v4640 = vunpack.c.h.b16 %v4551
      %v4641 = vunpack.c.l.b16 %v4552
      %v4642 = vunpack.c.h.b16 %v4552
      %v4643 = vunpack.c.l.b16 %v4553
      %v4644 = vunpack.c.h.b16 %v4553
      %v4645 = vunpack.c.l.b16 %v4554
      %v4646 = vunpack.c.h.b16 %v4554
      %v4647 = vunpack.c.l.b16 %v4555
      %v4648 = vunpack.c.h.b16 %v4555
      %v4649 = vunpack.c.l.b16 %v4556
      %v4650 = vunpack.c.h.b16 %v4556
      %v4651 = vunpack.c.l.b16 %v4557
      %v4652 = vunpack.c.h.b16 %v4557
      %v4653 = vunpack.c.l.b16 %v4558
      %v4654 = vunpack.c.h.b16 %v4558
      %v4655 = vunpack.c.l.b16 %v4559
      %v4656 = vunpack.c.h.b16 %v4559
      %v4657 = vunpack.c.l.b16 %v4560
      %v4658 = vunpack.c.h.b16 %v4560
      %v4659 = vunpack.c.l.b16 %v4561
      %v4660 = vunpack.c.h.b16 %v4561
      %v4661 = vunpack.c.l.b16 %v4562
      %v4662 = vunpack.c.h.b16 %v4562
      %v4663 = vunpack.c.l.b16 %v4563
      %v4664 = vunpack.c.h.b16 %v4563
      %v4665 = vunpack.c.l.b16 %v4564
      %v4666 = vunpack.c.h.b16 %v4564
      %v4667 = vunpack.c.l.b16 %v4565
      %v4668 = vunpack.c.h.b16 %v4565
      %v4669 = vunpack.c.l.b16 %v4566
      %v4670 = vunpack.c.h.b16 %v4566
      %v4671 = vunpack.c.l.b16 %v4567
      %v4672 = vunpack.c.h.b16 %v4567
      %v4673 = vunpack.c.l.b16 %v4568
      %v4674 = vunpack.c.h.b16 %v4568
      %v4675 = vunpack.c.l.b16 %v4569
      %v4676 = vunpack.c.h.b16 %v4569
      %v4677 = vunpack.c.l.b16 %v4570
      %v4678 = vunpack.c.h.b16 %v4570
      %v4679 = vunpack.c.l.b16 %v4571
      %v4680 = vunpack.c.h.b16 %v4571
      %v4681 = vunpack.c.l.b16 %v4572
      %v4682 = vunpack.c.h.b16 %v4572
      %v4683 = vunpack.c.l.b16 %v4573
      %v4684 = vunpack.c.h.b16 %v4573
      %v4685 = vunpack.c.l.b16 %v4574
      %v4686 = vunpack.c.h.b16 %v4574
      %v4687 = vunpack.c.l.b16 %v4575
      %v4688 = vunpack.c.h.b16 %v4575
      %v4689 = vunpack.c.l.b16 %v4576
      %v4690 = vunpack.c.h.b16 %v4576
      %v4691 = vunpack.c.l.b16 %v4577
      %v4692 = vunpack.c.h.b16 %v4577
      %v4693 = vunpack.c.l.b16 %v4578
      %v4694 = vunpack.c.h.b16 %v4578
      %v4695 = vunpack.c.l.b16 %v4579
      %v4696 = vunpack.c.h.b16 %v4579
      %v4697 = vpack.c.b16 %v4619, %v4619
      %v4698 = vpack.c.b16 %v4620, %v4620
      %v4699 = vpack.c.b16 %v4621, %v4621
      %v4700 = vpack.c.b16 %v4622, %v4622
      %v4701 = vpack.c.b16 %v4623, %v4623
      %v4702 = vpack.c.b16 %v4624, %v4624
      %v4703 = vpack.c.b16 %v4625, %v4625
      %v4704 = vpack.c.b16 %v4626, %v4626
      %v4705 = vpack.c.b16 %v4627, %v4627
      %v4706 = vpack.c.b16 %v4628, %v4628
      %v4707 = vpack.c.b16 %v4629, %v4629
      %v4708 = vpack.c.b16 %v4630, %v4630
      %v4709 = vpack.c.b16 %v4631, %v4631
      %v4710 = vpack.c.b16 %v4632, %v4632
      %v4711 = vpack.c.b16 %v4633, %v4633
      %v4712 = vpack.c.b16 %v4634, %v4634
      %v4713 = vpack.c.b16 %v4635, %v4635
      %v4714 = vpack.c.b16 %v4636, %v4636
      %v4715 = vpack.c.b16 %v4637, %v4637
      %v4716 = vpack.c.b16 %v4638, %v4638
      %v4717 = vpack.c.b16 %v4639, %v4639
      %v4718 = vpack.c.b16 %v4640, %v4640
      %v4719 = vpack.c.b16 %v4641, %v4641
      %v4720 = vpack.c.b16 %v4642, %v4642
      %v4721 = vpack.c.b16 %v4643, %v4643
      %v4722 = vpack.c.b16 %v4644, %v4644
      %v4723 = vpack.c.b16 %v4645, %v4645
      %v4724 = vpack.c.b16 %v4646, %v4646
      %v4725 = vpack.c.b16 %v4647, %v4647
      %v4726 = vpack.c.b16 %v4648, %v4648
      %v4727 = vpack.c.b16 %v4649, %v4649
      %v4728 = vpack.c.b16 %v4650, %v4650
      %v4729 = vpack.c.b16 %v4651, %v4651
      %v4730 = vpack.c.b16 %v4652, %v4652
      %v4731 = vpack.c.b16 %v4653, %v4653
      %v4732 = vpack.c.b16 %v4654, %v4654
      %v4733 = vpack.c.b16 %v4655, %v4655
      %v4734 = vpack.c.b16 %v4656, %v4656
      %v4735 = vpack.c.b16 %v4657, %v4657
      %v4736 = vpack.c.b16 %v4658, %v4658
      %v4737 = vpack.c.b16 %v4659, %v4659
      %v4738 = vpack.c.b16 %v4660, %v4660
      %v4739 = vpack.c.b16 %v4661, %v4661
      %v4740 = vpack.c.b16 %v4662, %v4662
      %v4741 = vpack.c.b16 %v4663, %v4663
      %v4742 = vpack.c.b16 %v4664, %v4664
      %v4743 = vpack.c.b16 %v4665, %v4665
      %v4744 = vpack.c.b16 %v4666, %v4666
      %v4745 = vpack.c.b16 %v4667, %v4667
      %v4746 = vpack.c.b16 %v4668, %v4668
      %v4747 = vpack.c.b16 %v4669, %v4669
      %v4748 = vpack.c.b16 %v4670, %v4670
      %v4749 = vpack.c.b16 %v4671, %v4671
      %v4750 = vpack.c.b16 %v4672, %v4672
      %v4751 = vpack.c.b16 %v4673, %v4673
      %v4752 = vpack.c.b16 %v4674, %v4674
      %v4753 = vpack.c.b16 %v4675, %v4675
      %v4754 = vpack.c.b16 %v4676, %v4676
      %v4755 = vpack.c.b16 %v4677, %v4677
      %v4756 = vpack.c.b16 %v4678, %v4678
      %v4757 = vpack.c.b16 %v4679, %v4679
      %v4758 = vpack.c.b16 %v4680, %v4680
      %v4759 = vpack.c.b16 %v4681, %v4681
      %v4760 = vpack.c.b16 %v4682, %v4682
      %v4761 = vpack.c.b16 %v4683, %v4683
      %v4762 = vpack.c.b16 %v4684, %v4684
      %v4763 = vpack.c.b16 %v4685, %v4685
      %v4764 = vpack.c.b16 %v4686, %v4686
      %v4765 = vpack.c.b16 %v4687, %v4687
      %v4766 = vpack.c.b16 %v4688, %v4688
      %v4767 = vpack.c.b16 %v4689, %v4689
      %v4768 = vpack.c.b16 %v4690, %v4690
      %v4769 = vpack.c.b16 %v4691, %v4691
      %v4770 = vpack.c.b16 %v4692, %v4692
      %v4771 = vpack.c.b16 %v4693, %v4693
      %v4772 = vpack.c.b16 %v4694, %v4694
      %v4773 = vpack.c.b16 %v4695, %v4695
      %v4774 = vpack.c.b16 %v4696, %v4696
      %4853 = vst [vmem:[%s170] sm:$0xf] %v4697
      %4854 = vst [vmem:[%s170 + $0x4] sm:$0xf] %v4698
      %4855 = vst [vmem:[%s170 + $0x8] sm:$0xf] %v4699
      %4856 = vst [vmem:[%s170 + $0xc] sm:$0xf] %v4700
      %4857 = vst [vmem:[%s170 + $0x10] sm:$0xf] %v4701
      %4858 = vst [vmem:[%s170 + $0x14] sm:$0xf] %v4702
      %4859 = vst [vmem:[%s170 + $0x18] sm:$0xf] %v4703
      %4860 = vst [vmem:[%s170 + $0x1c] sm:$0xf] %v4704
      %4861 = vst [vmem:[%s170 + $0x20] sm:$0xf] %v4705
      %4862 = vst [vmem:[%s170 + $0x24] sm:$0xf] %v4706
      %4863 = vst [vmem:[%s170 + $0x28] sm:$0xf] %v4707
      %4864 = vst [vmem:[%s170 + $0x2c] sm:$0xf] %v4708
      %4865 = vst [vmem:[%s170 + $0x30] sm:$0xf] %v4709
      %4866 = vst [vmem:[%s170 + $0x34] sm:$0xf] %v4710
      %4867 = vst [vmem:[%s170 + $0x38] sm:$0xf] %v4711
      %4868 = vst [vmem:[%s170 + $0x3c] sm:$0xf] %v4712
      %4869 = vst [vmem:[%s170 + $0x40] sm:$0xf] %v4713
      %4870 = vst [vmem:[%s170 + $0x44] sm:$0xf] %v4714
      %4871 = vst [vmem:[%s170 + $0x48] sm:$0xf] %v4715
      %4872 = vst [vmem:[%s170 + $0x4c] sm:$0xf] %v4716
      %4873 = vst [vmem:[%s170 + $0x50] sm:$0xf] %v4717
      %4874 = vst [vmem:[%s170 + $0x54] sm:$0xf] %v4718
      %4875 = vst [vmem:[%s170 + $0x58] sm:$0xf] %v4719
      %4876 = vst [vmem:[%s170 + $0x5c] sm:$0xf] %v4720
      %4877 = vst [vmem:[%s170 + $0x60] sm:$0xf] %v4721
      %4878 = vst [vmem:[%s170 + $0x64] sm:$0xf] %v4722
      %4879 = vst [vmem:[%s170 + $0x68] sm:$0xf] %v4723
      %4880 = vst [vmem:[%s170 + $0x6c] sm:$0xf] %v4724
      %4881 = vst [vmem:[%s170 + $0x70] sm:$0xf] %v4725
      %4882 = vst [vmem:[%s170 + $0x74] sm:$0xf] %v4726
      %4883 = vst [vmem:[%s170 + $0x78] sm:$0xf] %v4727
      %4884 = vst [vmem:[%s170 + $0x7c] sm:$0xf] %v4728
      %4885 = vst [vmem:[%s170 + $0x80] sm:$0xf] %v4729
      %4886 = vst [vmem:[%s170 + $0x84] sm:$0xf] %v4730
      %4887 = vst [vmem:[%s170 + $0x88] sm:$0xf] %v4731
      %4888 = vst [vmem:[%s170 + $0x8c] sm:$0xf] %v4732
      %4889 = vst [vmem:[%s170 + $0x90] sm:$0xf] %v4733
      %4890 = vst [vmem:[%s170 + $0x94] sm:$0xf] %v4734
      %4891 = vst [vmem:[%s170 + $0x98] sm:$0xf] %v4735
      %4892 = vst [vmem:[%s170 + $0x9c] sm:$0xf] %v4736
      %4893 = vst [vmem:[%s170 + $0xa0] sm:$0xf] %v4737
      %4894 = vst [vmem:[%s170 + $0xa4] sm:$0xf] %v4738
      %4895 = vst [vmem:[%s170 + $0xa8] sm:$0xf] %v4739
      %4896 = vst [vmem:[%s170 + $0xac] sm:$0xf] %v4740
      %4897 = vst [vmem:[%s170 + $0xb0] sm:$0xf] %v4741
      %4898 = vst [vmem:[%s170 + $0xb4] sm:$0xf] %v4742
      %4899 = vst [vmem:[%s170 + $0xb8] sm:$0xf] %v4743
      %4900 = vst [vmem:[%s170 + $0xbc] sm:$0xf] %v4744
      %4901 = vst [vmem:[%s170 + $0xc0] sm:$0xf] %v4745
      %4902 = vst [vmem:[%s170 + $0xc4] sm:$0xf] %v4746
      %4903 = vst [vmem:[%s170 + $0xc8] sm:$0xf] %v4747
      %4904 = vst [vmem:[%s170 + $0xcc] sm:$0xf] %v4748
      %4905 = vst [vmem:[%s170 + $0xd0] sm:$0xf] %v4749
      %4906 = vst [vmem:[%s170 + $0xd4] sm:$0xf] %v4750
      %4907 = vst [vmem:[%s170 + $0xd8] sm:$0xf] %v4751
      %4908 = vst [vmem:[%s170 + $0xdc] sm:$0xf] %v4752
      %4909 = vst [vmem:[%s170 + $0xe0] sm:$0xf] %v4753
      %4910 = vst [vmem:[%s170 + $0xe4] sm:$0xf] %v4754
      %4911 = vst [vmem:[%s170 + $0xe8] sm:$0xf] %v4755
      %4912 = vst [vmem:[%s170 + $0xec] sm:$0xf] %v4756
      %4913 = vst [vmem:[%s170 + $0xf0] sm:$0xf] %v4757
      %4914 = vst [vmem:[%s170 + $0xf4] sm:$0xf] %v4758
      %4915 = vst [vmem:[%s170 + $0xf8] sm:$0xf] %v4759
      %4916 = vst [vmem:[%s170 + $0xfc] sm:$0xf] %v4760
      %4917 = vst [vmem:[%s170 + $0x100] sm:$0xf] %v4761
      %4918 = vst [vmem:[%s170 + $0x104] sm:$0xf] %v4762
      %4919 = vst [vmem:[%s170 + $0x108] sm:$0xf] %v4763
      %4920 = vst [vmem:[%s170 + $0x10c] sm:$0xf] %v4764
      %4921 = vst [vmem:[%s170 + $0x110] sm:$0xf] %v4765
      %4922 = vst [vmem:[%s170 + $0x114] sm:$0xf] %v4766
      %4923 = vst [vmem:[%s170 + $0x118] sm:$0xf] %v4767
      %4924 = vst [vmem:[%s170 + $0x11c] sm:$0xf] %v4768
      %4925 = vst [vmem:[%s170 + $0x120] sm:$0xf] %v4769
      %4926 = vst [vmem:[%s170 + $0x124] sm:$0xf] %v4770
      %4927 = vst [vmem:[%s170 + $0x128] sm:$0xf] %v4771
      %4928 = vst [vmem:[%s170 + $0x12c] sm:$0xf] %v4772
      %4929 = vst [vmem:[%s170 + $0x130] sm:$0xf] %v4773
      %4930 = vst [vmem:[%s170 + $0x134] sm:$0xf] %v4774
      %p4931 = scmp.lt.s32.totalorder %s14, 1
      %s4932 = scalar_select %p4931, %s14, 1
      %s4933 = smul.addr %s4932, 78
      %s4934 = smul.addr %s4933, 4
      %s4935 = scalar_lea.vmem %s3, %s4934
      // Predicated region
      $region33: #{base_model_forward.5} parent=31 // pred_check
        %p4936 = pneg %p100
      $region34: #{base_model_forward.5} parent=31 // pred_check_branch
        %4938 = sbr.rel (%p4936) target = $region36
      $region35: #{base_model_forward.5} parent=31 // pred_region
        _
      $region36: #{base_model_forward.5} parent=31 // pred_fallthru
        _
    $region32: #{base_model_forward.5} parent=5 // pred_fallthru
      _
    %p4939 = scmp.le.s32.totalorder 2, %s9
    // Predicated region
    $region37: #{base_model_forward.5} parent=5 // pred_check
      %p4940 = pneg %p4939
    $region38: #{base_model_forward.5} parent=5 // pred_check_branch
      %4942 = sbr.rel (%p4940) target = $region40
    $region39: #{base_model_forward.5} parent=5 // pred_region
      %s4943 = ssub.s32 %s9, 2
      // Predicated region
      $region41: #{base_model_forward.5} parent=39 // pred_check
        %p4944 = pneg %p106
      $region42: #{base_model_forward.5} parent=39 // pred_check_branch
        %4946 = sbr.rel (%p4944) target = $region44
      $region43: #{base_model_forward.5} parent=39 // pred_region
        %p4947 = scmp.lt.s32.totalorder %s15, 1
        %s4948 = scalar_select %p4947, %s15, 1
        %s4949 = smul.addr %s4948, 78
        %s4950 = smul.addr %s4949, 4
        %s4951 = scalar_lea.vmem %s3, %s4950
      $region44: #{base_model_forward.5} parent=39 // pred_fallthru
        _
    $region40: #{base_model_forward.5} parent=5 // pred_fallthru
      _
  $region6: #{base_model_forward.5} parent=0 // loop_footer
    %s13 = sadd.s32 1, %s9
  $region7: #{base_model_forward.5} parent=0 // loop_footer_branch
    %8 = sbr.rel target = $region3
  $region8: #{base_model_forward.5} parent=0 // loop_exit
    _

// kernel: base_model_forward.6
$region0: #{base_model_forward.6}
  #allocation0 [shape = 'u32[]', space=smem, size = 0x4, offset = 0x4, fixed_abs, tag = 'smem constant byte address 0x4 - core index']
  #allocation1 [shape = 'u32[144,128]{1,0:T(1,128)}', space=vmem, size = 0x12000, scoped, tag = 'internal scratch']
  %s0 = inlined_call_operand.vmem [shape: bf16[2,152,128], index: 0, kind: input, shape index: {}]
  %s1 = inlined_call_operand.vmem [shape: bf16[1152,128], index: 1, kind: input, shape index: {}]
  %s2 = inlined_call_operand.vmem [shape: f32[1,128], index: 2, kind: input, shape index: {}]
  %s3 = inlined_call_operand.vmem [shape: bf16[2,120,128], index: 3, kind: output, shape index: {}]
  %s4 = sld [smem:[#allocation0]]
  $region45: #{base_model_forward.6} parent=0
    _
  %s6 = ssub.s32 1, %s4
  %s7 = scalar_select 0, %s6, %s4
  loop: start=0, step=1, limit=4
  $region2: #{base_model_forward.6} parent=0 // loop_pre_header
    _
  $region3: #{base_model_forward.6} parent=0 // loop_header
    %s9 = sphi 0, %s13
    %p10 = scmp.ge.s32.totalorder %s9, 4
    %s19 = sphi 0, %s21
    %s22 = sphi 0, %s19
    %s23 = sphi 0, %s22
    %s39 = sphi 0, %s23
    %s43 = sphi 0, %s43
    %s45 = sphi 0, %s43
    %s46 = sphi 0, %s45
    %s60 = sphi 0, %s46
    %s64 = sphi 0, %s64
    %s66 = sphi 0, %s64
    %s67 = sphi 0, %s66
    %s81 = sphi 0, %s67
    %s87 = sphi 0, %s89
    %s90 = sphi 0, %s87
    %s91 = sphi 0, %s90
    %s107 = sphi 0, %s91
  $region4: #{base_model_forward.6} parent=0 // loop_header_branch
    %12 = sbr.rel (%p10) target = $region8
  $region5: #{base_model_forward.6} parent=0 // loop_body
    %s14 = ssub.s32 %s9, 1
    %s15 = ssub.s32 %s9, 2
    %s16 = sadd.s32 %s9, 1
    %s17 = ssub.s32 %s9, %s16
    %p18 = scmp.eq.s32.totalorder %s17, 0
    %s20 = sadd.s32 %s19, 1
    %s21 = scalar_select %p18, %s19, %s20
    %p24 = pneg %p18
    %p25 = scmp.eq.s32.totalorder %s9, 1
    %p26 = por %p24, %p25
    %p27 = scmp.ne.s32.totalorder %s19, %s22
    %p28 = scmp.eq.s32.totalorder %s9, 0
    %p29 = por %p27, %p28
    %p30 = scmp.ne.s32.totalorder %s19, %s22
    %p31 = scmp.eq.s32.totalorder %s14, 1
    %p32 = por %p30, %p31
    %p33 = scmp.ne.s32.totalorder %s22, %s23
    %p34 = scmp.eq.s32.totalorder %s14, 0
    %p35 = por %p33, %p34
    %p36 = scmp.ne.s32.totalorder %s22, %s23
    %p37 = scmp.eq.s32.totalorder %s15, 1
    %p38 = por %p36, %p37
    %p40 = scmp.ne.s32.totalorder %s23, %s39
    %p41 = scmp.eq.s32.totalorder %s15, 0
    %p42 = por %p40, %p41
    %s44 = sadd.s32 %s43, 1
    %p47 = scmp.eq.s32.totalorder %s9, 1
    %p48 = scmp.ne.s32.totalorder %s43, %s45
    %p49 = scmp.eq.s32.totalorder %s9, 0
    %p50 = por %p48, %p49
    %p51 = scmp.ne.s32.totalorder %s43, %s45
    %p52 = scmp.eq.s32.totalorder %s14, 1
    %p53 = por %p51, %p52
    %p54 = scmp.ne.s32.totalorder %s45, %s46
    %p55 = scmp.eq.s32.totalorder %s14, 0
    %p56 = por %p54, %p55
    %p57 = scmp.ne.s32.totalorder %s45, %s46
    %p58 = scmp.eq.s32.totalorder %s15, 1
    %p59 = por %p57, %p58
    %p61 = scmp.ne.s32.totalorder %s46, %s60
    %p62 = scmp.eq.s32.totalorder %s15, 0
    %p63 = por %p61, %p62
    %s65 = sadd.s32 %s64, 1
    %p68 = scmp.eq.s32.totalorder %s9, 1
    %p69 = scmp.ne.s32.totalorder %s64, %s66
    %p70 = scmp.eq.s32.totalorder %s9, 0
    %p71 = por %p69, %p70
    %p72 = scmp.ne.s32.totalorder %s64, %s66
    %p73 = scmp.eq.s32.totalorder %s14, 1
    %p74 = por %p72, %p73
    %p75 = scmp.ne.s32.totalorder %s66, %s67
    %p76 = scmp.eq.s32.totalorder %s14, 0
    %p77 = por %p75, %p76
    %p78 = scmp.ne.s32.totalorder %s66, %s67
    %p79 = scmp.eq.s32.totalorder %s15, 1
    %p80 = por %p78, %p79
    %p82 = scmp.ne.s32.totalorder %s67, %s81
    %p83 = scmp.eq.s32.totalorder %s15, 0
    %p84 = por %p82, %p83
    %s85 = ssub.s32 %s9, %s16
    %p86 = scmp.eq.s32.totalorder %s85, 0
    %s88 = sadd.s32 %s87, 1
    %s89 = scalar_select %p86, %s87, %s88
    %p92 = pneg %p86
    %p93 = scmp.eq.s32.totalorder %s9, 1
    %p94 = por %p92, %p93
    %p95 = scmp.ne.s32.totalorder %s87, %s90
    %p96 = scmp.eq.s32.totalorder %s9, 0
    %p97 = por %p95, %p96
    %p98 = scmp.ne.s32.totalorder %s87, %s90
    %p99 = scmp.eq.s32.totalorder %s14, 1
    %p100 = por %p98, %p99
    %p101 = scmp.ne.s32.totalorder %s90, %s91
    %p102 = scmp.eq.s32.totalorder %s14, 0
    %p103 = por %p101, %p102
    %p104 = scmp.ne.s32.totalorder %s90, %s91
    %p105 = scmp.eq.s32.totalorder %s15, 1
    %p106 = por %p104, %p105
    %p108 = scmp.ne.s32.totalorder %s91, %s107
    %p109 = scmp.eq.s32.totalorder %s15, 0
    %p110 = por %p108, %p109
    %p111 = scmp.le.s32.totalorder 1, %s9
    %p112 = scmp.lt.s32.totalorder %s9, 3
    %p113 = pnand %p111, %p112
    %p114 = pneg %p113
    // Predicated region
    $region9: #{base_model_forward.6} parent=5 // pred_check
      _
    $region10: #{base_model_forward.6} parent=5 // pred_check_branch
      %116 = sbr.rel (%p113) target = $region12
    $region11: #{base_model_forward.6} parent=5 // pred_region
      %s117 = ssub.s32 %s9, 1
      // Predicated region
      $region13: #{base_model_forward.6} parent=11 // pred_check
        %p118 = pneg %p56
      $region14: #{base_model_forward.6} parent=11 // pred_check_branch
        %120 = sbr.rel (%p118) target = $region16
      $region15: #{base_model_forward.6} parent=11 // pred_region
        _
      $region16: #{base_model_forward.6} parent=11 // pred_fallthru
        _
      // Predicated region
      $region17: #{base_model_forward.6} parent=11 // pred_check
        %p121 = pneg %p77
      $region18: #{base_model_forward.6} parent=11 // pred_check_branch
        %123 = sbr.rel (%p121) target = $region20
      $region19: #{base_model_forward.6} parent=11 // pred_region
        _
      $region20: #{base_model_forward.6} parent=11 // pred_fallthru
        _
    $region12: #{base_model_forward.6} parent=5 // pred_fallthru
      _
    %p124 = scmp.lt.s32.totalorder %s9, 2
    // Predicated region
    $region21: #{base_model_forward.6} parent=5 // pred_check
      %p125 = pneg %p124
    $region22: #{base_model_forward.6} parent=5 // pred_check_branch
      %127 = sbr.rel (%p125) target = $region24
    $region23: #{base_model_forward.6} parent=5 // pred_region
      // Predicated region
      $region25: #{base_model_forward.6} parent=23 // pred_check
        %p128 = pneg %p29
      $region26: #{base_model_forward.6} parent=23 // pred_check_branch
        %130 = sbr.rel (%p128) target = $region28
      $region27: #{base_model_forward.6} parent=23 // pred_region
        %p131 = scmp.lt.s32.totalorder %s9, 1
        %s132 = scalar_select %p131, %s9, 1
        %s133 = smul.addr %s132, 19
        %s134 = smul.addr %s133, 4
        %s135 = scalar_lea.vmem %s0, %s134
      $region28: #{base_model_forward.6} parent=23 // pred_fallthru
        _
    $region24: #{base_model_forward.6} parent=5 // pred_fallthru
      _
    %p136 = scmp.le.s32.totalorder 1, %s9
    %p137 = scmp.lt.s32.totalorder %s9, 3
    %p138 = pnand %p136, %p137
    %p139 = pneg %p138
    // Predicated region
    $region29: #{base_model_forward.6} parent=5 // pred_check
      _
    $region30: #{base_model_forward.6} parent=5 // pred_check_branch
      %141 = sbr.rel (%p138) target = $region32
    $region31: #{base_model_forward.6} parent=5 // pred_region
      %s142 = ssub.s32 %s9, 1
      %p143 = scmp.lt.s32.totalorder %s14, 1
      %s144 = scalar_select %p143, %s14, 1
      %s145 = smul.addr %s144, 19
      %s146 = smul.addr %s145, 4
      %s147 = scalar_lea.vmem %s0, %s146
      %p148 = pneg %p35
      %p149 = pneg %p32
      %p150 = pneg %p56
      %p151 = pneg %p53
      %p152 = pneg %p77
      %p153 = pneg %p74
      %p154 = pneg %p103
      %p155 = pneg %p100
      %p156 = scmp.lt.s32.totalorder %s14, 1
      %s157 = scalar_select %p156, %s14, 1
      %s158 = smul.addr %s157, 15
      %s159 = smul.addr %s158, 4
      %s160 = scalar_lea.vmem %s3, %s159
      %p161 = scmp.lt.s32.totalorder %s14, 1
      %s162 = scalar_select %p161, %s14, 1
      %s163 = smul.addr %s162, 19
      %s164 = smul.addr %s163, 4
      %s165 = scalar_lea.vmem %s0, %s164
      %p166 = scmp.lt.s32.totalorder %s14, 1
      %s167 = scalar_select %p166, %s14, 1
      %s168 = smul.addr %s167, 15
      %s169 = smul.addr %s168, 4
      %s170 = scalar_lea.vmem %s3, %s169
      %v172 = vld [vmem:[%s165] sm:$0xf]
      %v173 = vld [vmem:[%s165 + $0x4] sm:$0xf]
      %v174 = vld [vmem:[%s165 + $0x8] sm:$0xf]
      %v175 = vld [vmem:[%s165 + $0xc] sm:$0xf]
      %v176 = vld [vmem:[%s165 + $0x10] sm:$0xf]
      %v177 = vld [vmem:[%s165 + $0x14] sm:$0xf]
      %v178 = vld [vmem:[%s165 + $0x18] sm:$0xf]
      %v179 = vld [vmem:[%s165 + $0x1c] sm:$0xf]
      %v180 = vld [vmem:[%s165 + $0x20] sm:$0xf]
      %v181 = vld [vmem:[%s165 + $0x24] sm:$0xf]
      %v182 = vld [vmem:[%s165 + $0x28] sm:$0xf]
      %v183 = vld [vmem:[%s165 + $0x2c] sm:$0xf]
      %v184 = vld [vmem:[%s165 + $0x30] sm:$0xf]
      %v185 = vld [vmem:[%s165 + $0x34] sm:$0xf]
      %v186 = vld [vmem:[%s165 + $0x38] sm:$0xf]
      %v187 = vld [vmem:[%s165 + $0x3c] sm:$0x1]
      %v188 = vld [vmem:[%s165] sm:$0xe]
      %v189 = vld [vmem:[%s165 + $0x4] sm:$0xc]
      %v190 = vld [vmem:[%s165 + $0x3c] sm:$0xf]
      %v191 = vld [vmem:[%s165 + $0x40] sm:$0x3]
      %v192 = vld [vmem:[%s165 + $0x40] sm:$0x7]
      %v193 = vld [vmem:[%s165 + $0x4] sm:$0x8]
      %v194 = vld [vmem:[%s165 + $0x40] sm:$0xf]
      %v195 = vld [vmem:[%s165 + $0x44] sm:$0xf]
      %v196 = vld [vmem:[%s165 + $0xc] sm:$0xf]
      %v197 = vld [vmem:[%s165 + $0x10] sm:$0xf]
      %v198 = vld [vmem:[%s165 + $0x14] sm:$0xf]
      %v199 = vld [vmem:[%s165 + $0x18] sm:$0xf]
      %v200 = vld [vmem:[%s165 + $0x1c] sm:$0xf]
      %v201 = vld [vmem:[%s165 + $0x20] sm:$0xf]
      %v202 = vld [vmem:[%s165 + $0x24] sm:$0xf]
      %v203 = vld [vmem:[%s165 + $0x28] sm:$0xf]
      %v204 = vld [vmem:[%s165 + $0x2c] sm:$0xf]
      %v205 = vld [vmem:[%s165 + $0x30] sm:$0xf]
      %v206 = vld [vmem:[%s165 + $0x34] sm:$0xf]
      %v207 = vld [vmem:[%s165 + $0x38] sm:$0xf]
      %v208 = vld [vmem:[%s165 + $0x3c] sm:$0xf]
      %v209 = vld [vmem:[%s165 + $0x40] sm:$0xf]
      %v210 = vld [vmem:[%s165 + $0x44] sm:$0xf]
      %v211 = vld [vmem:[%s165 + $0x48] sm:$0x1]
      %v212 = vld [vmem:[%s165 + $0xc] sm:$0xe]
      %v228 = vunpack.c.l.b16 %v172
      %v229 = vunpack.c.l.b16 %v173
      %v230 = vunpack.c.l.b16 %v174
      %v231 = vunpack.c.l.b16 %v175
      %v232 = vunpack.c.l.b16 %v176
      %v233 = vunpack.c.l.b16 %v177
      %v234 = vunpack.c.l.b16 %v178
      %v235 = vunpack.c.l.b16 %v179
      %v236 = vunpack.c.l.b16 %v180
      %v237 = vunpack.c.l.b16 %v181
      %v238 = vunpack.c.l.b16 %v182
      %v239 = vunpack.c.l.b16 %v183
      %v240 = vunpack.c.l.b16 %v184
      %v241 = vunpack.c.l.b16 %v185
      %v242 = vunpack.c.l.b16 %v186
      %v243 = vpack.c.b16 %v229, %v228
      %v244 = vpack.c.b16 %v231, %v230
      %v245 = vpack.c.b16 %v233, %v232
      %v246 = vpack.c.b16 %v235, %v234
      %v247 = vpack.c.b16 %v237, %v236
      %v248 = vpack.c.b16 %v239, %v238
      %v249 = vpack.c.b16 %v241, %v240
      %v250 = vpack.c.b16 %v242, %v242
      %v260 = vunpack.c.l.b16 %v187
      %v261 = vpack.c.b16 %v260, %v242
      %vm262 = vsmask.f32 7424
      %v264 = vshrl.u32 %v243, 16
      %v266 = vshll.u32 %v243, 16
      %v268 = vrot.slane %v266, 1
      %v269 = vor.u32 %v264, %v268
      %v271 = vshll.u32 %v244, 16
      %v273 = vrot.slane %v271, 1
      %v274 = vsel %vm262, %v269, %v273
      %v275 = vshrl.u32 %v244, 16
      %v277 = vor.u32 %v275, %v273
      %v279 = vshll.u32 %v245, 16
      %v281 = vrot.slane %v279, 1
      %v282 = vsel %vm262, %v277, %v281
      %v283 = vshrl.u32 %v245, 16
      %v285 = vor.u32 %v283, %v281
      %v287 = vshll.u32 %v246, 16
      %v289 = vrot.slane %v287, 1
      %v290 = vsel %vm262, %v285, %v289
      %v291 = vshrl.u32 %v246, 16
      %v293 = vor.u32 %v291, %v289
      %v295 = vshll.u32 %v247, 16
      %v297 = vrot.slane %v295, 1
      %v298 = vsel %vm262, %v293, %v297
      %v299 = vshrl.u32 %v247, 16
      %v301 = vor.u32 %v299, %v297
      %v303 = vshll.u32 %v248, 16
      %v305 = vrot.slane %v303, 1
      %v306 = vsel %vm262, %v301, %v305
      %v307 = vshrl.u32 %v248, 16
      %v309 = vor.u32 %v307, %v305
      %v311 = vshll.u32 %v249, 16
      %v313 = vrot.slane %v311, 1
      %v314 = vsel %vm262, %v309, %v313
      %v315 = vshrl.u32 %v249, 16
      %v317 = vor.u32 %v315, %v313
      %v319 = vshll.u32 %v261, 16
      %v321 = vrot.slane %v319, 1
      %v322 = vsel %vm262, %v317, %v321
      %v323 = vshrl.u32 %v261, 16
      %v325 = vor.u32 %v323, %v321
      %v335 = vunpack.c.l.b16 %v188
      %v336 = vpack.c.b16 %v229, %v335
      %vm337 = vcmask 1046528
      %v338 = vrot.slane %v336, 1
      %v339 = vrot.slane %v244, 1
      %v340 = vsel %vm337, %v338, %v339
      %v341 = vrot.slane %v245, 1
      %v342 = vsel %vm337, %v339, %v341
      %v343 = vrot.slane %v246, 1
      %v344 = vsel %vm337, %v341, %v343
      %v345 = vrot.slane %v247, 1
      %v346 = vsel %vm337, %v343, %v345
      %v347 = vrot.slane %v248, 1
      %v348 = vsel %vm337, %v345, %v347
      %v349 = vrot.slane %v249, 1
      %v350 = vsel %vm337, %v347, %v349
      %v351 = vrot.slane %v261, 1
      %v352 = vsel %vm337, %v349, %v351
      %v364 = vunpack.c.l.b16 %v189
      %v365 = vunpack.c.l.b16 %v190
      %v366 = vunpack.c.l.b16 %v191
      %v367 = vpack.c.b16 %v230, %v364
      %v368 = vpack.c.b16 %v232, %v231
      %v369 = vpack.c.b16 %v234, %v233
      %v370 = vpack.c.b16 %v236, %v235
      %v371 = vpack.c.b16 %v238, %v237
      %v372 = vpack.c.b16 %v240, %v239
      %v373 = vpack.c.b16 %v242, %v241
      %v374 = vpack.c.b16 %v366, %v365
      %vm375 = vcmask 1045504
      %v376 = vrot.slane %v367, 2
      %v377 = vrot.slane %v368, 2
      %v378 = vsel %vm375, %v376, %v377
      %v379 = vrot.slane %v369, 2
      %v380 = vsel %vm375, %v377, %v379
      %v381 = vrot.slane %v370, 2
      %v382 = vsel %vm375, %v379, %v381
      %v383 = vrot.slane %v371, 2
      %v384 = vsel %vm375, %v381, %v383
      %v385 = vrot.slane %v372, 2
      %v386 = vsel %vm375, %v383, %v385
      %v387 = vrot.slane %v373, 2
      %v388 = vsel %vm375, %v385, %v387
      %v389 = vrot.slane %v374, 2
      %v390 = vsel %vm375, %v387, %v389
      %v400 = vunpack.c.l.b16 %v192
      %v401 = vpack.c.b16 %v400, %v365
      %vm402 = vsmask.f32 5376
      %v404 = vshrl.u32 %v367, 16
      %v406 = vrot.slane %v404, 2
      %v407 = vshll.u32 %v367, 16
      %v409 = vrot.slane %v407, 3
      %v410 = vor.u32 %v406, %v409
      %v412 = vshrl.u32 %v368, 16
      %v414 = vrot.slane %v412, 2
      %v415 = vshll.u32 %v368, 16
      %v417 = vrot.slane %v415, 3
      %v418 = vor.u32 %v414, %v417
      %v419 = vsel %vm402, %v410, %v418
      %v421 = vshrl.u32 %v369, 16
      %v423 = vrot.slane %v421, 2
      %v424 = vshll.u32 %v369, 16
      %v426 = vrot.slane %v424, 3
      %v427 = vor.u32 %v423, %v426
      %v428 = vsel %vm402, %v418, %v427
      %v430 = vshrl.u32 %v370, 16
      %v432 = vrot.slane %v430, 2
      %v433 = vshll.u32 %v370, 16
      %v435 = vrot.slane %v433, 3
      %v436 = vor.u32 %v432, %v435
      %v437 = vsel %vm402, %v427, %v436
      %v439 = vshrl.u32 %v371, 16
      %v441 = vrot.slane %v439, 2
      %v442 = vshll.u32 %v371, 16
      %v444 = vrot.slane %v442, 3
      %v445 = vor.u32 %v441, %v444
      %v446 = vsel %vm402, %v436, %v445
      %v448 = vshrl.u32 %v372, 16
      %v450 = vrot.slane %v448, 2
      %v451 = vshll.u32 %v372, 16
      %v453 = vrot.slane %v451, 3
      %v454 = vor.u32 %v450, %v453
      %v455 = vsel %vm402, %v445, %v454
      %v457 = vshrl.u32 %v373, 16
      %v459 = vrot.slane %v457, 2
      %v460 = vshll.u32 %v373, 16
      %v462 = vrot.slane %v460, 3
      %v463 = vor.u32 %v459, %v462
      %v464 = vsel %vm402, %v454, %v463
      %v466 = vshrl.u32 %v401, 16
      %v468 = vrot.slane %v466, 2
      %v469 = vshll.u32 %v401, 16
      %v471 = vrot.slane %v469, 3
      %v472 = vor.u32 %v468, %v471
      %v473 = vsel %vm402, %v463, %v472
      %v483 = vunpack.c.l.b16 %v193
      %v484 = vpack.c.b16 %v230, %v483
      %vm485 = vcmask 1044480
      %v486 = vrot.slane %v484, 3
      %v487 = vrot.slane %v368, 3
      %v488 = vsel %vm485, %v486, %v487
      %v489 = vrot.slane %v369, 3
      %v490 = vsel %vm485, %v487, %v489
      %v491 = vrot.slane %v370, 3
      %v492 = vsel %vm485, %v489, %v491
      %v493 = vrot.slane %v371, 3
      %v494 = vsel %vm485, %v491, %v493
      %v495 = vrot.slane %v372, 3
      %v496 = vsel %vm485, %v493, %v495
      %v497 = vrot.slane %v373, 3
      %v498 = vsel %vm485, %v495, %v497
      %v499 = vrot.slane %v401, 3
      %v500 = vsel %vm485, %v497, %v499
      %v511 = vunpack.c.l.b16 %v194
      %v512 = vunpack.c.l.b16 %v195
      %v513 = vpack.c.b16 %v511, %v365
      %v514 = vpack.c.b16 %v512, %v512
      %v539 = vunpack.c.l.b16 %v196
      %v540 = vunpack.c.l.b16 %v197
      %v541 = vunpack.c.l.b16 %v198
      %v542 = vunpack.c.l.b16 %v199
      %v543 = vunpack.c.l.b16 %v200
      %v544 = vunpack.c.l.b16 %v201
      %v545 = vunpack.c.l.b16 %v202
      %v546 = vunpack.c.l.b16 %v203
      %v547 = vunpack.c.l.b16 %v204
      %v548 = vunpack.c.l.b16 %v205
      %v549 = vunpack.c.l.b16 %v206
      %v550 = vunpack.c.l.b16 %v207
      %v551 = vunpack.c.l.b16 %v208
      %v552 = vunpack.c.l.b16 %v209
      %v553 = vunpack.c.l.b16 %v210
      %v554 = vunpack.c.l.b16 %v211
      %v555 = vpack.c.b16 %v540, %v539
      %v556 = vpack.c.b16 %v542, %v541
      %v557 = vpack.c.b16 %v544, %v543
      %v558 = vpack.c.b16 %v546, %v545
      %v559 = vpack.c.b16 %v548, %v547
      %v560 = vpack.c.b16 %v550, %v549
      %v561 = vpack.c.b16 %v552, %v551
      %v562 = vpack.c.b16 %v554, %v553
      %v564 = vshrl.u32 %v555, 16
      %v566 = vshll.u32 %v555, 16
      %v568 = vrot.slane %v566, 1
      %v569 = vor.u32 %v564, %v568
      %v571 = vshll.u32 %v556, 16
      %v573 = vrot.slane %v571, 1
      %v574 = vsel %vm262, %v569, %v573
      %v575 = vshrl.u32 %v556, 16
      %v577 = vor.u32 %v575, %v573
      %v579 = vshll.u32 %v557, 16
      %v581 = vrot.slane %v579, 1
      %v582 = vsel %vm262, %v577, %v581
      %v583 = vshrl.u32 %v557, 16
      %v585 = vor.u32 %v583, %v581
      %v587 = vshll.u32 %v558, 16
      %v589 = vrot.slane %v587, 1
      %v590 = vsel %vm262, %v585, %v589
      %v591 = vshrl.u32 %v558, 16
      %v593 = vor.u32 %v591, %v589
      %v595 = vshll.u32 %v559, 16
      %v597 = vrot.slane %v595, 1
      %v598 = vsel %vm262, %v593, %v597
      %v599 = vshrl.u32 %v559, 16
      %v601 = vor.u32 %v599, %v597
      %v603 = vshll.u32 %v560, 16
      %v605 = vrot.slane %v603, 1
      %v606 = vsel %vm262, %v601, %v605
      %v607 = vshrl.u32 %v560, 16
      %v609 = vor.u32 %v607, %v605
      %v611 = vshll.u32 %v561, 16
      %v613 = vrot.slane %v611, 1
      %v614 = vsel %vm262, %v609, %v613
      %v615 = vshrl.u32 %v561, 16
      %v617 = vor.u32 %v615, %v613
      %v619 = vshll.u32 %v562, 16
      %v621 = vrot.slane %v619, 1
      %v622 = vsel %vm262, %v617, %v621
      %v623 = vshrl.u32 %v562, 16
      %v625 = vor.u32 %v623, %v621
      %v635 = vunpack.c.l.b16 %v212
      %v636 = vpack.c.b16 %v540, %v635
      %v637 = vrot.slane %v636, 1
      %v638 = vrot.slane %v556, 1
      %v639 = vsel %vm337, %v637, %v638
      %v640 = vrot.slane %v557, 1
      %v641 = vsel %vm337, %v638, %v640
      %v642 = vrot.slane %v558, 1
      %v643 = vsel %vm337, %v640, %v642
      %v644 = vrot.slane %v559, 1
      %v645 = vsel %vm337, %v642, %v644
      %v646 = vrot.slane %v560, 1
      %v647 = vsel %vm337, %v644, %v646
      %v648 = vrot.slane %v561, 1
      %v649 = vsel %vm337, %v646, %v648
      %v650 = vrot.slane %v562, 1
      %v651 = vsel %vm337, %v648, %v650
      %v660 = vld [vmem:[%s1] sm:$0xf]
      %v661 = vld [vmem:[%s1 + $0x4] sm:$0xf]
      %v662 = vld [vmem:[%s1 + $0x8] sm:$0xf]
      %v663 = vld [vmem:[%s1 + $0xc] sm:$0xf]
      %v664 = vld [vmem:[%s1 + $0x10] sm:$0xf]
      %v665 = vld [vmem:[%s1 + $0x14] sm:$0xf]
      %v666 = vld [vmem:[%s1 + $0x18] sm:$0xf]
      %v667 = vld [vmem:[%s1 + $0x1c] sm:$0xf]
      %v668 = vld [vmem:[%s1 + $0x20] sm:$0xf]
      %v669 = vld [vmem:[%s1 + $0x24] sm:$0xf]
      %v670 = vld [vmem:[%s1 + $0x28] sm:$0xf]
      %v671 = vld [vmem:[%s1 + $0x2c] sm:$0xf]
      %v672 = vld [vmem:[%s1 + $0x30] sm:$0xf]
      %v673 = vld [vmem:[%s1 + $0x34] sm:$0xf]
      %v674 = vld [vmem:[%s1 + $0x38] sm:$0xf]
      %v675 = vld [vmem:[%s1 + $0x3c] sm:$0xf]
      %v676 = vld [vmem:[%s1 + $0x40] sm:$0xf]
      %v677 = vld [vmem:[%s1 + $0x44] sm:$0xf]
      %v678 = vld [vmem:[%s1 + $0x48] sm:$0xf]
      %v679 = vld [vmem:[%s1 + $0x4c] sm:$0xf]
      %v680 = vld [vmem:[%s1 + $0x50] sm:$0xf]
      %v681 = vld [vmem:[%s1 + $0x54] sm:$0xf]
      %v682 = vld [vmem:[%s1 + $0x58] sm:$0xf]
      %v683 = vld [vmem:[%s1 + $0x5c] sm:$0xf]
      %v684 = vld [vmem:[%s1 + $0x60] sm:$0xf]
      %v685 = vld [vmem:[%s1 + $0x64] sm:$0xf]
      %v686 = vld [vmem:[%s1 + $0x68] sm:$0xf]
      %v687 = vld [vmem:[%s1 + $0x6c] sm:$0xf]
      %v688 = vld [vmem:[%s1 + $0x70] sm:$0xf]
      %v689 = vld [vmem:[%s1 + $0x74] sm:$0xf]
      %v690 = vld [vmem:[%s1 + $0x78] sm:$0xf]
      %v691 = vld [vmem:[%s1 + $0x7c] sm:$0xf]
      %v692 = vld [vmem:[%s1 + $0x80] sm:$0xf]
      %v693 = vld [vmem:[%s1 + $0x84] sm:$0xf]
      %v694 = vld [vmem:[%s1 + $0x88] sm:$0xf]
      %v695 = vld [vmem:[%s1 + $0x8c] sm:$0xf]
      %v696 = vld [vmem:[%s1 + $0x90] sm:$0xf]
      %v697 = vld [vmem:[%s1 + $0x94] sm:$0xf]
      %v698 = vld [vmem:[%s1 + $0x98] sm:$0xf]
      %v699 = vld [vmem:[%s1 + $0x9c] sm:$0xf]
      %v700 = vld [vmem:[%s1 + $0xa0] sm:$0xf]
      %v701 = vld [vmem:[%s1 + $0xa4] sm:$0xf]
      %v702 = vld [vmem:[%s1 + $0xa8] sm:$0xf]
      %v703 = vld [vmem:[%s1 + $0xac] sm:$0xf]
      %v704 = vld [vmem:[%s1 + $0xb0] sm:$0xf]
      %v705 = vld [vmem:[%s1 + $0xb4] sm:$0xf]
      %v706 = vld [vmem:[%s1 + $0xb8] sm:$0xf]
      %v707 = vld [vmem:[%s1 + $0xbc] sm:$0xf]
      %v708 = vld [vmem:[%s1 + $0xc0] sm:$0xf]
      %v709 = vld [vmem:[%s1 + $0xc4] sm:$0xf]
      %v710 = vld [vmem:[%s1 + $0xc8] sm:$0xf]
      %v711 = vld [vmem:[%s1 + $0xcc] sm:$0xf]
      %v712 = vld [vmem:[%s1 + $0xd0] sm:$0xf]
      %v713 = vld [vmem:[%s1 + $0xd4] sm:$0xf]
      %v714 = vld [vmem:[%s1 + $0xd8] sm:$0xf]
      %v715 = vld [vmem:[%s1 + $0xdc] sm:$0xf]
      %v716 = vld [vmem:[%s1 + $0xe0] sm:$0xf]
      %v717 = vld [vmem:[%s1 + $0xe4] sm:$0xf]
      %v718 = vld [vmem:[%s1 + $0xe8] sm:$0xf]
      %v719 = vld [vmem:[%s1 + $0xec] sm:$0xf]
      %v720 = vld [vmem:[%s1 + $0xf0] sm:$0xf]
      %v721 = vld [vmem:[%s1 + $0xf4] sm:$0xf]
      %v722 = vld [vmem:[%s1 + $0xf8] sm:$0xf]
      %v723 = vld [vmem:[%s1 + $0xfc] sm:$0xf]
      %v724 = vld [vmem:[%s1 + $0x100] sm:$0xf]
      %v725 = vld [vmem:[%s1 + $0x104] sm:$0xf]
      %v726 = vld [vmem:[%s1 + $0x108] sm:$0xf]
      %v727 = vld [vmem:[%s1 + $0x10c] sm:$0xf]
      %v728 = vld [vmem:[%s1 + $0x110] sm:$0xf]
      %v729 = vld [vmem:[%s1 + $0x114] sm:$0xf]
      %v730 = vld [vmem:[%s1 + $0x118] sm:$0xf]
      %v731 = vld [vmem:[%s1 + $0x11c] sm:$0xf]
      %v732 = vld [vmem:[%s1 + $0x120] sm:$0xf]
      %v733 = vld [vmem:[%s1 + $0x124] sm:$0xf]
      %v734 = vld [vmem:[%s1 + $0x128] sm:$0xf]
      %v735 = vld [vmem:[%s1 + $0x12c] sm:$0xf]
      %v736 = vld [vmem:[%s1 + $0x130] sm:$0xf]
      %v737 = vld [vmem:[%s1 + $0x134] sm:$0xf]
      %v738 = vld [vmem:[%s1 + $0x138] sm:$0xf]
      %v739 = vld [vmem:[%s1 + $0x13c] sm:$0xf]
      %v740 = vld [vmem:[%s1 + $0x140] sm:$0xf]
      %v741 = vld [vmem:[%s1 + $0x144] sm:$0xf]
      %v742 = vld [vmem:[%s1 + $0x148] sm:$0xf]
      %v743 = vld [vmem:[%s1 + $0x14c] sm:$0xf]
      %v744 = vld [vmem:[%s1 + $0x150] sm:$0xf]
      %v745 = vld [vmem:[%s1 + $0x154] sm:$0xf]
      %v746 = vld [vmem:[%s1 + $0x158] sm:$0xf]
      %v747 = vld [vmem:[%s1 + $0x15c] sm:$0xf]
      %v748 = vld [vmem:[%s1 + $0x160] sm:$0xf]
      %v749 = vld [vmem:[%s1 + $0x164] sm:$0xf]
      %v750 = vld [vmem:[%s1 + $0x168] sm:$0xf]
      %v751 = vld [vmem:[%s1 + $0x16c] sm:$0xf]
      %v752 = vld [vmem:[%s1 + $0x170] sm:$0xf]
      %v753 = vld [vmem:[%s1 + $0x174] sm:$0xf]
      %v754 = vld [vmem:[%s1 + $0x178] sm:$0xf]
      %v755 = vld [vmem:[%s1 + $0x17c] sm:$0xf]
      %v756 = vld [vmem:[%s1 + $0x180] sm:$0xf]
      %v757 = vld [vmem:[%s1 + $0x184] sm:$0xf]
      %v758 = vld [vmem:[%s1 + $0x188] sm:$0xf]
      %v759 = vld [vmem:[%s1 + $0x18c] sm:$0xf]
      %v760 = vld [vmem:[%s1 + $0x190] sm:$0xf]
      %v761 = vld [vmem:[%s1 + $0x194] sm:$0xf]
      %v762 = vld [vmem:[%s1 + $0x198] sm:$0xf]
      %v763 = vld [vmem:[%s1 + $0x19c] sm:$0xf]
      %v764 = vld [vmem:[%s1 + $0x1a0] sm:$0xf]
      %v765 = vld [vmem:[%s1 + $0x1a4] sm:$0xf]
      %v766 = vld [vmem:[%s1 + $0x1a8] sm:$0xf]
      %v767 = vld [vmem:[%s1 + $0x1ac] sm:$0xf]
      %v768 = vld [vmem:[%s1 + $0x1b0] sm:$0xf]
      %v769 = vld [vmem:[%s1 + $0x1b4] sm:$0xf]
      %v770 = vld [vmem:[%s1 + $0x1b8] sm:$0xf]
      %v771 = vld [vmem:[%s1 + $0x1bc] sm:$0xf]
      %v772 = vld [vmem:[%s1 + $0x1c0] sm:$0xf]
      %v773 = vld [vmem:[%s1 + $0x1c4] sm:$0xf]
      %v774 = vld [vmem:[%s1 + $0x1c8] sm:$0xf]
      %v775 = vld [vmem:[%s1 + $0x1cc] sm:$0xf]
      %v776 = vld [vmem:[%s1 + $0x1d0] sm:$0xf]
      %v777 = vld [vmem:[%s1 + $0x1d4] sm:$0xf]
      %v778 = vld [vmem:[%s1 + $0x1d8] sm:$0xf]
      %v779 = vld [vmem:[%s1 + $0x1dc] sm:$0xf]
      %v780 = vld [vmem:[%s1 + $0x1e0] sm:$0xf]
      %v781 = vld [vmem:[%s1 + $0x1e4] sm:$0xf]
      %v782 = vld [vmem:[%s1 + $0x1e8] sm:$0xf]
      %v783 = vld [vmem:[%s1 + $0x1ec] sm:$0xf]
      %v784 = vld [vmem:[%s1 + $0x1f0] sm:$0xf]
      %v785 = vld [vmem:[%s1 + $0x1f4] sm:$0xf]
      %v786 = vld [vmem:[%s1 + $0x1f8] sm:$0xf]
      %v787 = vld [vmem:[%s1 + $0x1fc] sm:$0xf]
      %v788 = vld [vmem:[%s1 + $0x200] sm:$0xf]
      %v789 = vld [vmem:[%s1 + $0x204] sm:$0xf]
      %v790 = vld [vmem:[%s1 + $0x208] sm:$0xf]
      %v791 = vld [vmem:[%s1 + $0x20c] sm:$0xf]
      %v792 = vld [vmem:[%s1 + $0x210] sm:$0xf]
      %v793 = vld [vmem:[%s1 + $0x214] sm:$0xf]
      %v794 = vld [vmem:[%s1 + $0x218] sm:$0xf]
      %v795 = vld [vmem:[%s1 + $0x21c] sm:$0xf]
      %v796 = vld [vmem:[%s1 + $0x220] sm:$0xf]
      %v797 = vld [vmem:[%s1 + $0x224] sm:$0xf]
      %v798 = vld [vmem:[%s1 + $0x228] sm:$0xf]
      %v799 = vld [vmem:[%s1 + $0x22c] sm:$0xf]
      %v800 = vld [vmem:[%s1 + $0x230] sm:$0xf]
      %v801 = vld [vmem:[%s1 + $0x234] sm:$0xf]
      %v802 = vld [vmem:[%s1 + $0x238] sm:$0xf]
      %v803 = vld [vmem:[%s1 + $0x23c] sm:$0xf]
      %v804 = vld [vmem:[%s2] sm:$0x1]
      %v806 = vlaneseq
      %v807 = vshrl.u32 %v806, 7
      %v808 = vsub.s32 0, %v807
      %v809 = vrot.slane %v804, %v808
      %v955 = vunpack.c.l.b16 %v660
      %v956 = vunpack.c.l.b16 %v661
      %v957 = vunpack.c.l.b16 %v662
      %v958 = vunpack.c.l.b16 %v663
      %v959 = vunpack.c.l.b16 %v664
      %v960 = vunpack.c.l.b16 %v665
      %v961 = vunpack.c.l.b16 %v666
      %v962 = vunpack.c.l.b16 %v667
      %v963 = vunpack.c.l.b16 %v668
      %v964 = vunpack.c.l.b16 %v669
      %v965 = vunpack.c.l.b16 %v670
      %v966 = vunpack.c.l.b16 %v671
      %v967 = vunpack.c.l.b16 %v672
      %v968 = vunpack.c.l.b16 %v673
      %v969 = vunpack.c.l.b16 %v674
      %v970 = vunpack.c.l.b16 %v675
      %v971 = vunpack.c.l.b16 %v676
      %v972 = vunpack.c.l.b16 %v677
      %v973 = vunpack.c.l.b16 %v678
      %v974 = vunpack.c.l.b16 %v679
      %v975 = vunpack.c.l.b16 %v680
      %v976 = vunpack.c.l.b16 %v681
      %v977 = vunpack.c.l.b16 %v682
      %v978 = vunpack.c.l.b16 %v683
      %v979 = vunpack.c.l.b16 %v684
      %v980 = vunpack.c.l.b16 %v685
      %v981 = vunpack.c.l.b16 %v686
      %v982 = vunpack.c.l.b16 %v687
      %v983 = vunpack.c.l.b16 %v688
      %v984 = vunpack.c.l.b16 %v689
      %v985 = vunpack.c.l.b16 %v690
      %v986 = vunpack.c.l.b16 %v691
      %v987 = vunpack.c.l.b16 %v692
      %v988 = vunpack.c.l.b16 %v693
      %v989 = vunpack.c.l.b16 %v694
      %v990 = vunpack.c.l.b16 %v695
      %v991 = vunpack.c.l.b16 %v696
      %v992 = vunpack.c.l.b16 %v697
      %v993 = vunpack.c.l.b16 %v698
      %v994 = vunpack.c.l.b16 %v699
      %v995 = vunpack.c.l.b16 %v700
      %v996 = vunpack.c.l.b16 %v701
      %v997 = vunpack.c.l.b16 %v702
      %v998 = vunpack.c.l.b16 %v703
      %v999 = vunpack.c.l.b16 %v704
      %v1000 = vunpack.c.l.b16 %v705
      %v1001 = vunpack.c.l.b16 %v706
      %v1002 = vunpack.c.l.b16 %v707
      %v1003 = vunpack.c.l.b16 %v708
      %v1004 = vunpack.c.l.b16 %v709
      %v1005 = vunpack.c.l.b16 %v710
      %v1006 = vunpack.c.l.b16 %v711
      %v1007 = vunpack.c.l.b16 %v712
      %v1008 = vunpack.c.l.b16 %v713
      %v1009 = vunpack.c.l.b16 %v714
      %v1010 = vunpack.c.l.b16 %v715
      %v1011 = vunpack.c.l.b16 %v716
      %v1012 = vunpack.c.l.b16 %v717
      %v1013 = vunpack.c.l.b16 %v718
      %v1014 = vunpack.c.l.b16 %v719
      %v1015 = vunpack.c.l.b16 %v720
      %v1016 = vunpack.c.l.b16 %v721
      %v1017 = vunpack.c.l.b16 %v722
      %v1018 = vunpack.c.l.b16 %v723
      %v1019 = vunpack.c.l.b16 %v724
      %v1020 = vunpack.c.l.b16 %v725
      %v1021 = vunpack.c.l.b16 %v726
      %v1022 = vunpack.c.l.b16 %v727
      %v1023 = vunpack.c.l.b16 %v728
      %v1024 = vunpack.c.l.b16 %v729
      %v1025 = vunpack.c.l.b16 %v730
      %v1026 = vunpack.c.l.b16 %v731
      %v1027 = vunpack.c.l.b16 %v732
      %v1028 = vunpack.c.l.b16 %v733
      %v1029 = vunpack.c.l.b16 %v734
      %v1030 = vunpack.c.l.b16 %v735
      %v1031 = vunpack.c.l.b16 %v736
      %v1032 = vunpack.c.l.b16 %v737
      %v1033 = vunpack.c.l.b16 %v738
      %v1034 = vunpack.c.l.b16 %v739
      %v1035 = vunpack.c.l.b16 %v740
      %v1036 = vunpack.c.l.b16 %v741
      %v1037 = vunpack.c.l.b16 %v742
      %v1038 = vunpack.c.l.b16 %v743
      %v1039 = vunpack.c.l.b16 %v744
      %v1040 = vunpack.c.l.b16 %v745
      %v1041 = vunpack.c.l.b16 %v746
      %v1042 = vunpack.c.l.b16 %v747
      %v1043 = vunpack.c.l.b16 %v748
      %v1044 = vunpack.c.l.b16 %v749
      %v1045 = vunpack.c.l.b16 %v750
      %v1046 = vunpack.c.l.b16 %v751
      %v1047 = vunpack.c.l.b16 %v752
      %v1048 = vunpack.c.l.b16 %v753
      %v1049 = vunpack.c.l.b16 %v754
      %v1050 = vunpack.c.l.b16 %v755
      %v1051 = vunpack.c.l.b16 %v756
      %v1052 = vunpack.c.l.b16 %v757
      %v1053 = vunpack.c.l.b16 %v758
      %v1054 = vunpack.c.l.b16 %v759
      %v1055 = vunpack.c.l.b16 %v760
      %v1056 = vunpack.c.l.b16 %v761
      %v1057 = vunpack.c.l.b16 %v762
      %v1058 = vunpack.c.l.b16 %v763
      %v1059 = vunpack.c.l.b16 %v764
      %v1060 = vunpack.c.l.b16 %v765
      %v1061 = vunpack.c.l.b16 %v766
      %v1062 = vunpack.c.l.b16 %v767
      %v1063 = vunpack.c.l.b16 %v768
      %v1064 = vunpack.c.l.b16 %v769
      %v1065 = vunpack.c.l.b16 %v770
      %v1066 = vunpack.c.l.b16 %v771
      %v1067 = vunpack.c.l.b16 %v772
      %v1068 = vunpack.c.l.b16 %v773
      %v1069 = vunpack.c.l.b16 %v774
      %v1070 = vunpack.c.l.b16 %v775
      %v1071 = vunpack.c.l.b16 %v776
      %v1072 = vunpack.c.l.b16 %v777
      %v1073 = vunpack.c.l.b16 %v778
      %v1074 = vunpack.c.l.b16 %v779
      %v1075 = vunpack.c.l.b16 %v780
      %v1076 = vunpack.c.l.b16 %v781
      %v1077 = vunpack.c.l.b16 %v782
      %v1078 = vunpack.c.l.b16 %v783
      %v1079 = vunpack.c.l.b16 %v784
      %v1080 = vunpack.c.l.b16 %v785
      %v1081 = vunpack.c.l.b16 %v786
      %v1082 = vunpack.c.l.b16 %v787
      %v1083 = vunpack.c.l.b16 %v788
      %v1084 = vunpack.c.l.b16 %v789
      %v1085 = vunpack.c.l.b16 %v790
      %v1086 = vunpack.c.l.b16 %v791
      %v1087 = vunpack.c.l.b16 %v792
      %v1088 = vunpack.c.l.b16 %v793
      %v1089 = vunpack.c.l.b16 %v794
      %v1090 = vunpack.c.l.b16 %v795
      %v1091 = vunpack.c.l.b16 %v796
      %v1092 = vunpack.c.l.b16 %v797
      %v1093 = vunpack.c.l.b16 %v798
      %v1094 = vunpack.c.l.b16 %v799
      %v1095 = vunpack.c.l.b16 %v800
      %v1096 = vunpack.c.l.b16 %v801
      %v1097 = vunpack.c.l.b16 %v802
      %v1098 = vunpack.c.l.b16 %v803
      %v1099 = vpack.c.b16 %v956, %v955
      %v1100 = vpack.c.b16 %v958, %v957
      %v1101 = vpack.c.b16 %v960, %v959
      %v1102 = vpack.c.b16 %v962, %v961
      %v1103 = vpack.c.b16 %v964, %v963
      %v1104 = vpack.c.b16 %v966, %v965
      %v1105 = vpack.c.b16 %v968, %v967
      %v1106 = vpack.c.b16 %v970, %v969
      %v1107 = vpack.c.b16 %v972, %v971
      %v1108 = vpack.c.b16 %v974, %v973
      %v1109 = vpack.c.b16 %v976, %v975
      %v1110 = vpack.c.b16 %v978, %v977
      %v1111 = vpack.c.b16 %v980, %v979
      %v1112 = vpack.c.b16 %v982, %v981
      %v1113 = vpack.c.b16 %v984, %v983
      %v1114 = vpack.c.b16 %v986, %v985
      %v1115 = vpack.c.b16 %v988, %v987
      %v1116 = vpack.c.b16 %v990, %v989
      %v1117 = vpack.c.b16 %v992, %v991
      %v1118 = vpack.c.b16 %v994, %v993
      %v1119 = vpack.c.b16 %v996, %v995
      %v1120 = vpack.c.b16 %v998, %v997
      %v1121 = vpack.c.b16 %v1000, %v999
      %v1122 = vpack.c.b16 %v1002, %v1001
      %v1123 = vpack.c.b16 %v1004, %v1003
      %v1124 = vpack.c.b16 %v1006, %v1005
      %v1125 = vpack.c.b16 %v1008, %v1007
      %v1126 = vpack.c.b16 %v1010, %v1009
      %v1127 = vpack.c.b16 %v1012, %v1011
      %v1128 = vpack.c.b16 %v1014, %v1013
      %v1129 = vpack.c.b16 %v1016, %v1015
      %v1130 = vpack.c.b16 %v1018, %v1017
      %v1131 = vpack.c.b16 %v1020, %v1019
      %v1132 = vpack.c.b16 %v1022, %v1021
      %v1133 = vpack.c.b16 %v1024, %v1023
      %v1134 = vpack.c.b16 %v1026, %v1025
      %v1135 = vpack.c.b16 %v1028, %v1027
      %v1136 = vpack.c.b16 %v1030, %v1029
      %v1137 = vpack.c.b16 %v1032, %v1031
      %v1138 = vpack.c.b16 %v1034, %v1033
      %v1139 = vpack.c.b16 %v1036, %v1035
      %v1140 = vpack.c.b16 %v1038, %v1037
      %v1141 = vpack.c.b16 %v1040, %v1039
      %v1142 = vpack.c.b16 %v1042, %v1041
      %v1143 = vpack.c.b16 %v1044, %v1043
      %v1144 = vpack.c.b16 %v1046, %v1045
      %v1145 = vpack.c.b16 %v1048, %v1047
      %v1146 = vpack.c.b16 %v1050, %v1049
      %v1147 = vpack.c.b16 %v1052, %v1051
      %v1148 = vpack.c.b16 %v1054, %v1053
      %v1149 = vpack.c.b16 %v1056, %v1055
      %v1150 = vpack.c.b16 %v1058, %v1057
      %v1151 = vpack.c.b16 %v1060, %v1059
      %v1152 = vpack.c.b16 %v1062, %v1061
      %v1153 = vpack.c.b16 %v1064, %v1063
      %v1154 = vpack.c.b16 %v1066, %v1065
      %v1155 = vpack.c.b16 %v1068, %v1067
      %v1156 = vpack.c.b16 %v1070, %v1069
      %v1157 = vpack.c.b16 %v1072, %v1071
      %v1158 = vpack.c.b16 %v1074, %v1073
      %v1159 = vpack.c.b16 %v1076, %v1075
      %v1160 = vpack.c.b16 %v1078, %v1077
      %v1161 = vpack.c.b16 %v1080, %v1079
      %v1162 = vpack.c.b16 %v1082, %v1081
      %v1163 = vpack.c.b16 %v1084, %v1083
      %v1164 = vpack.c.b16 %v1086, %v1085
      %v1165 = vpack.c.b16 %v1088, %v1087
      %v1166 = vpack.c.b16 %v1090, %v1089
      %v1167 = vpack.c.b16 %v1092, %v1091
      %v1168 = vpack.c.b16 %v1094, %v1093
      %v1169 = vpack.c.b16 %v1096, %v1095
      %v1170 = vpack.c.b16 %v1098, %v1097
      %1243 = vmatprep.subr.bf16.mxu0 0
      %1244 = vmatpush1.bf16.msra.mxu0 %v1099
      %1245 = vmatprep.subr.bf16.mxu0 0
      %1246 = vmatpush1.bf16.msra.mxu0 %v1100
      %1247 = vmatprep.subr.bf16.mxu0 0
      %1248 = vmatpush1.bf16.msra.mxu0 %v1101
      %1249 = vmatprep.subr.bf16.mxu0 0
      %1250 = vmatpush1.bf16.msra.mxu0 %v1102
      %1251 = vmatprep.subr.bf16.mxu0 0
      %1252 = vmatpush1.bf16.msra.mxu0 %v1103
      %1253 = vmatprep.subr.bf16.mxu0 0
      %1254 = vmatpush1.bf16.msra.mxu0 %v1104
      %1255 = vmatprep.subr.bf16.mxu0 0
      %1256 = vmatpush1.bf16.msra.mxu0 %v1105
      %1257 = vmatprep.subr.bf16.mxu0 0
      %1258 = vmatpush1.bf16.msra.mxu0 %v1106
      %1259 = vmatprep.subr.bf16.mxu0 0
      %1260 = vmatpush1.bf16.msra.mxu0 %v1107
      %1261 = vmatprep.subr.bf16.mxu0 0
      %1262 = vmatpush1.bf16.msra.mxu0 %v1108
      %1263 = vmatprep.subr.bf16.mxu0 0
      %1264 = vmatpush1.bf16.msra.mxu0 %v1109
      %1265 = vmatprep.subr.bf16.mxu0 0
      %1266 = vmatpush1.bf16.msra.mxu0 %v1110
      %1267 = vmatprep.subr.bf16.mxu0 0
      %1268 = vmatpush1.bf16.msra.mxu0 %v1111
      %1269 = vmatprep.subr.bf16.mxu0 0
      %1270 = vmatpush1.bf16.msra.mxu0 %v1112
      %1271 = vmatprep.subr.bf16.mxu0 0
      %1272 = vmatpush1.bf16.msra.mxu0 %v1113
      %1273 = vmatprep.subr.bf16.mxu0 0
      %1274 = vmatpush1.bf16.msra.mxu0 %v1114
      %1275 = vmatprep.mubr.bf16.mxu0 %v274
      %1276 = vmatmul.mubr.bf16.gmra.mrb[0].mxu0 %v243
      %v1277 = vpop.f32.mrb[0].mxu0
      %v1278 = vadd.f32 %v809, %v1277
      %v1279 = vpop.f32.mrb[0].mxu0
      %v1280 = vpop.f32.mrb[0].mxu0
      %v1281 = vadd.f32 %v809, %v1280
      %v1282 = vpop.f32.mrb[0].mxu0
      %1283 = vmatprep.mubr.bf16.mxu0 %v282
      %1284 = vmatmul.mubr.bf16.gmra.mrb[0].mxu0 %v244
      %v1285 = vpop.f32.mrb[0].mxu0
      %v1286 = vadd.f32 %v809, %v1285
      %v1287 = vpop.f32.mrb[0].mxu0
      %v1288 = vpop.f32.mrb[0].mxu0
      %v1289 = vadd.f32 %v809, %v1288
      %v1290 = vpop.f32.mrb[0].mxu0
      %1291 = vmatprep.mubr.bf16.mxu0 %v290
      %1292 = vmatmul.mubr.bf16.gmra.mrb[0].mxu0 %v245
      %v1293 = vpop.f32.mrb[0].mxu0
      %v1294 = vadd.f32 %v809, %v1293
      %v1295 = vpop.f32.mrb[0].mxu0
      %v1296 = vpop.f32.mrb[0].mxu0
      %v1297 = vadd.f32 %v809, %v1296
      %v1298 = vpop.f32.mrb[0].mxu0
      %1299 = vmatprep.mubr.bf16.mxu0 %v298
      %1300 = vmatmul.mubr.bf16.gmra.mrb[0].mxu0 %v246
      %v1301 = vpop.f32.mrb[0].mxu0
      %v1302 = vadd.f32 %v809, %v1301
      %v1303 = vpop.f32.mrb[0].mxu0
      %v1304 = vpop.f32.mrb[0].mxu0
      %v1305 = vadd.f32 %v809, %v1304
      %v1306 = vpop.f32.mrb[0].mxu0
      %1307 = vmatprep.mubr.bf16.mxu0 %v306
      %1308 = vmatmul.mubr.bf16.gmra.mrb[0].mxu0 %v247
      %v1309 = vpop.f32.mrb[0].mxu0
      %v1310 = vadd.f32 %v809, %v1309
      %v1311 = vpop.f32.mrb[0].mxu0
      %v1312 = vpop.f32.mrb[0].mxu0
      %v1313 = vadd.f32 %v809, %v1312
      %v1314 = vpop.f32.mrb[0].mxu0
      %1315 = vmatprep.mubr.bf16.mxu0 %v314
      %1316 = vmatmul.mubr.bf16.gmra.mrb[0].mxu0 %v248
      %v1317 = vpop.f32.mrb[0].mxu0
      %v1318 = vadd.f32 %v809, %v1317
      %v1319 = vpop.f32.mrb[0].mxu0
      %v1320 = vpop.f32.mrb[0].mxu0
      %v1321 = vadd.f32 %v809, %v1320
      %v1322 = vpop.f32.mrb[0].mxu0
      %1323 = vmatprep.mubr.bf16.mxu0 %v322
      %1324 = vmatmul.mubr.bf16.gmra.mrb[0].mxu0 %v249
      %v1325 = vpop.f32.mrb[0].mxu0
      %v1326 = vadd.f32 %v809, %v1325
      %v1327 = vpop.f32.mrb[0].mxu0
      %v1328 = vpop.f32.mrb[0].mxu0
      %v1329 = vadd.f32 %v809, %v1328
      %v1330 = vpop.f32.mrb[0].mxu0
      %1331 = vmatprep.mubr.bf16.mxu0 %v325
      %1332 = vmatmul.mubr.bf16.gmra.mrb[0].mxu0 %v250
      %v1333 = vpop.f32.mrb[0].mxu0
      %v1334 = vadd.f32 %v809, %v1333
      %v1335 = vpop.f32.mrb[0].mxu0
      %v1336 = vpop.f32.mrb[0].mxu0
      %v1337 = vpop.f32.mrb[0].mxu0
      %1338 = vdwg.mxu0
      %1339 = vmatprep.subr.bf16.mxu0 0
      %1340 = vmatpush1.bf16.msra.mxu0 %v1115
      %1341 = vmatprep.subr.bf16.mxu0 0
      %1342 = vmatpush1.bf16.msra.mxu0 %v1116
      %1343 = vmatprep.subr.bf16.mxu0 0
      %1344 = vmatpush1.bf16.msra.mxu0 %v1117
      %1345 = vmatprep.subr.bf16.mxu0 0
      %1346 = vmatpush1.bf16.msra.mxu0 %v1118
      %1347 = vmatprep.subr.bf16.mxu0 0
      %1348 = vmatpush1.bf16.msra.mxu0 %v1119
      %1349 = vmatprep.subr.bf16.mxu0 0
      %1350 = vmatpush1.bf16.msra.mxu0 %v1120
      %1351 = vmatprep.subr.bf16.mxu0 0
      %1352 = vmatpush1.bf16.msra.mxu0 %v1121
      %1353 = vmatprep.subr.bf16.mxu0 0
      %1354 = vmatpush1.bf16.msra.mxu0 %v1122
      %1355 = vmatprep.subr.bf16.mxu0 0
      %1356 = vmatpush1.bf16.msra.mxu0 %v1123
      %1357 = vmatprep.subr.bf16.mxu0 0
      %1358 = vmatpush1.bf16.msra.mxu0 %v1124
      %1359 = vmatprep.subr.bf16.mxu0 0
      %1360 = vmatpush1.bf16.msra.mxu0 %v1125
      %1361 = vmatprep.subr.bf16.mxu0 0
      %1362 = vmatpush1.bf16.msra.mxu0 %v1126
      %1363 = vmatprep.subr.bf16.mxu0 0
      %1364 = vmatpush1.bf16.msra.mxu0 %v1127
      %1365 = vmatprep.subr.bf16.mxu0 0
      %1366 = vmatpush1.bf16.msra.mxu0 %v1128
      %1367 = vmatprep.subr.bf16.mxu0 0
      %1368 = vmatpush1.bf16.msra.mxu0 %v1129
      %1369 = vmatprep.subr.bf16.mxu0 0
      %1370 = vmatpush1.bf16.msra.mxu0 %v1130
      %1371 = vmatprep.mubr.bf16.mxu0 %v378
      %1372 = vmatmul.mubr.bf16.gmra.mrb[0].mxu0 %v340
      %v1373 = vpop.f32.mrb[0].mxu0
      %v1374 = vadd.f32 %v1278, %v1373
      %v1375 = vpop.f32.mrb[0].mxu0
      %v1376 = vpop.f32.mrb[0].mxu0
      %v1377 = vadd.f32 %v1281, %v1376
      %v1378 = vpop.f32.mrb[0].mxu0
      %1379 = vmatprep.mubr.bf16.mxu0 %v380
      %1380 = vmatmul.mubr.bf16.gmra.mrb[0].mxu0 %v342
      %v1381 = vpop.f32.mrb[0].mxu0
      %v1382 = vadd.f32 %v1286, %v1381
      %v1383 = vpop.f32.mrb[0].mxu0
      %v1384 = vpop.f32.mrb[0].mxu0
      %v1385 = vadd.f32 %v1289, %v1384
      %v1386 = vpop.f32.mrb[0].mxu0
      %1387 = vmatprep.mubr.bf16.mxu0 %v382
      %1388 = vmatmul.mubr.bf16.gmra.mrb[0].mxu0 %v344
      %v1389 = vpop.f32.mrb[0].mxu0
      %v1390 = vadd.f32 %v1294, %v1389
      %v1391 = vpop.f32.mrb[0].mxu0
      %v1392 = vpop.f32.mrb[0].mxu0
      %v1393 = vadd.f32 %v1297, %v1392
      %v1394 = vpop.f32.mrb[0].mxu0
      %1395 = vmatprep.mubr.bf16.mxu0 %v384
      %1396 = vmatmul.mubr.bf16.gmra.mrb[0].mxu0 %v346
      %v1397 = vpop.f32.mrb[0].mxu0
      %v1398 = vadd.f32 %v1302, %v1397
      %v1399 = vpop.f32.mrb[0].mxu0
      %v1400 = vpop.f32.mrb[0].mxu0
      %v1401 = vadd.f32 %v1305, %v1400
      %v1402 = vpop.f32.mrb[0].mxu0
      %1403 = vmatprep.mubr.bf16.mxu0 %v386
      %1404 = vmatmul.mubr.bf16.gmra.mrb[0].mxu0 %v348
      %v1405 = vpop.f32.mrb[0].mxu0
      %v1406 = vadd.f32 %v1310, %v1405
      %v1407 = vpop.f32.mrb[0].mxu0
      %v1408 = vpop.f32.mrb[0].mxu0
      %v1409 = vadd.f32 %v1313, %v1408
      %v1410 = vpop.f32.mrb[0].mxu0
      %1411 = vmatprep.mubr.bf16.mxu0 %v388
      %1412 = vmatmul.mubr.bf16.gmra.mrb[0].mxu0 %v350
      %v1413 = vpop.f32.mrb[0].mxu0
      %v1414 = vadd.f32 %v1318, %v1413
      %v1415 = vpop.f32.mrb[0].mxu0
      %v1416 = vpop.f32.mrb[0].mxu0
      %v1417 = vadd.f32 %v1321, %v1416
      %v1418 = vpop.f32.mrb[0].mxu0
      %1419 = vmatprep.mubr.bf16.mxu0 %v390
      %1420 = vmatmul.mubr.bf16.gmra.mrb[0].mxu0 %v352
      %v1421 = vpop.f32.mrb[0].mxu0
      %v1422 = vadd.f32 %v1326, %v1421
      %v1423 = vpop.f32.mrb[0].mxu0
      %v1424 = vpop.f32.mrb[0].mxu0
      %v1425 = vadd.f32 %v1329, %v1424
      %v1426 = vpop.f32.mrb[0].mxu0
      %1427 = vmatprep.mubr.bf16.mxu0 %v389
      %1428 = vmatmul.mubr.bf16.gmra.mrb[0].mxu0 %v351
      %v1429 = vpop.f32.mrb[0].mxu0
      %v1430 = vadd.f32 %v1334, %v1429
      %v1431 = vpop.f32.mrb[0].mxu0
      %v1432 = vpop.f32.mrb[0].mxu0
      %v1433 = vpop.f32.mrb[0].mxu0
      %1434 = vdwg.mxu0
      %1435 = vmatprep.subr.bf16.mxu0 0
      %1436 = vmatpush1.bf16.msra.mxu0 %v1131
      %1437 = vmatprep.subr.bf16.mxu0 0
      %1438 = vmatpush1.bf16.msra.mxu0 %v1132
      %1439 = vmatprep.subr.bf16.mxu0 0
      %1440 = vmatpush1.bf16.msra.mxu0 %v1133
      %1441 = vmatprep.subr.bf16.mxu0 0
      %1442 = vmatpush1.bf16.msra.mxu0 %v1134
      %1443 = vmatprep.subr.bf16.mxu0 0
      %1444 = vmatpush1.bf16.msra.mxu0 %v1135
      %1445 = vmatprep.subr.bf16.mxu0 0
      %1446 = vmatpush1.bf16.msra.mxu0 %v1136
      %1447 = vmatprep.subr.bf16.mxu0 0
      %1448 = vmatpush1.bf16.msra.mxu0 %v1137
      %1449 = vmatprep.subr.bf16.mxu0 0
      %1450 = vmatpush1.bf16.msra.mxu0 %v1138
      %1451 = vmatprep.subr.bf16.mxu0 0
      %1452 = vmatpush1.bf16.msra.mxu0 %v1139
      %1453 = vmatprep.subr.bf16.mxu0 0
      %1454 = vmatpush1.bf16.msra.mxu0 %v1140
      %1455 = vmatprep.subr.bf16.mxu0 0
      %1456 = vmatpush1.bf16.msra.mxu0 %v1141
      %1457 = vmatprep.subr.bf16.mxu0 0
      %1458 = vmatpush1.bf16.msra.mxu0 %v1142
      %1459 = vmatprep.subr.bf16.mxu0 0
      %1460 = vmatpush1.bf16.msra.mxu0 %v1143
      %1461 = vmatprep.subr.bf16.mxu0 0
      %1462 = vmatpush1.bf16.msra.mxu0 %v1144
      %1463 = vmatprep.subr.bf16.mxu0 0
      %1464 = vmatpush1.bf16.msra.mxu0 %v1145
      %1465 = vmatprep.subr.bf16.mxu0 0
      %1466 = vmatpush1.bf16.msra.mxu0 %v1146
      %1467 = vmatprep.mubr.bf16.mxu0 %v488
      %1468 = vmatmul.mubr.bf16.gmra.mrb[0].mxu0 %v419
      %v1469 = vpop.f32.mrb[0].mxu0
      %v1470 = vadd.f32 %v1374, %v1469
      %v1471 = vpop.f32.mrb[0].mxu0
      %v1472 = vpop.f32.mrb[0].mxu0
      %v1473 = vadd.f32 %v1377, %v1472
      %v1474 = vpop.f32.mrb[0].mxu0
      %1475 = vmatprep.mubr.bf16.mxu0 %v490
      %1476 = vmatmul.mubr.bf16.gmra.mrb[0].mxu0 %v428
      %v1477 = vpop.f32.mrb[0].mxu0
      %v1478 = vadd.f32 %v1382, %v1477
      %v1479 = vpop.f32.mrb[0].mxu0
      %v1480 = vpop.f32.mrb[0].mxu0
      %v1481 = vadd.f32 %v1385, %v1480
      %v1482 = vpop.f32.mrb[0].mxu0
      %1483 = vmatprep.mubr.bf16.mxu0 %v492
      %1484 = vmatmul.mubr.bf16.gmra.mrb[0].mxu0 %v437
      %v1485 = vpop.f32.mrb[0].mxu0
      %v1486 = vadd.f32 %v1390, %v1485
      %v1487 = vpop.f32.mrb[0].mxu0
      %v1488 = vpop.f32.mrb[0].mxu0
      %v1489 = vadd.f32 %v1393, %v1488
      %v1490 = vpop.f32.mrb[0].mxu0
      %1491 = vmatprep.mubr.bf16.mxu0 %v494
      %1492 = vmatmul.mubr.bf16.gmra.mrb[0].mxu0 %v446
      %v1493 = vpop.f32.mrb[0].mxu0
      %v1494 = vadd.f32 %v1398, %v1493
      %v1495 = vpop.f32.mrb[0].mxu0
      %v1496 = vpop.f32.mrb[0].mxu0
      %v1497 = vadd.f32 %v1401, %v1496
      %v1498 = vpop.f32.mrb[0].mxu0
      %1499 = vmatprep.mubr.bf16.mxu0 %v496
      %1500 = vmatmul.mubr.bf16.gmra.mrb[0].mxu0 %v455
      %v1501 = vpop.f32.mrb[0].mxu0
      %v1502 = vadd.f32 %v1406, %v1501
      %v1503 = vpop.f32.mrb[0].mxu0
      %v1504 = vpop.f32.mrb[0].mxu0
      %v1505 = vadd.f32 %v1409, %v1504
      %v1506 = vpop.f32.mrb[0].mxu0
      %1507 = vmatprep.mubr.bf16.mxu0 %v498
      %1508 = vmatmul.mubr.bf16.gmra.mrb[0].mxu0 %v464
      %v1509 = vpop.f32.mrb[0].mxu0
      %v1510 = vadd.f32 %v1414, %v1509
      %v1511 = vpop.f32.mrb[0].mxu0
      %v1512 = vpop.f32.mrb[0].mxu0
      %v1513 = vadd.f32 %v1417, %v1512
      %v1514 = vpop.f32.mrb[0].mxu0
      %1515 = vmatprep.mubr.bf16.mxu0 %v500
      %1516 = vmatmul.mubr.bf16.gmra.mrb[0].mxu0 %v473
      %v1517 = vpop.f32.mrb[0].mxu0
      %v1518 = vadd.f32 %v1422, %v1517
      %v1519 = vpop.f32.mrb[0].mxu0
      %v1520 = vpop.f32.mrb[0].mxu0
      %v1521 = vadd.f32 %v1425, %v1520
      %v1522 = vpop.f32.mrb[0].mxu0
      %1523 = vmatprep.mubr.bf16.mxu0 %v499
      %1524 = vmatmul.mubr.bf16.gmra.mrb[0].mxu0 %v472
      %v1525 = vpop.f32.mrb[0].mxu0
      %v1526 = vadd.f32 %v1430, %v1525
      %v1527 = vpop.f32.mrb[0].mxu0
      %v1528 = vpop.f32.mrb[0].mxu0
      %v1529 = vpop.f32.mrb[0].mxu0
      %1530 = vdwg.mxu0
      %1531 = vmatprep.subr.bf16.mxu0 0
      %1532 = vmatpush1.bf16.msra.mxu0 %v1147
      %1533 = vmatprep.subr.bf16.mxu0 0
      %1534 = vmatpush1.bf16.msra.mxu0 %v1148
      %1535 = vmatprep.subr.bf16.mxu0 0
      %1536 = vmatpush1.bf16.msra.mxu0 %v1149
      %1537 = vmatprep.subr.bf16.mxu0 0
      %1538 = vmatpush1.bf16.msra.mxu0 %v1150
      %1539 = vmatprep.subr.bf16.mxu0 0
      %1540 = vmatpush1.bf16.msra.mxu0 %v1151
      %1541 = vmatprep.subr.bf16.mxu0 0
      %1542 = vmatpush1.bf16.msra.mxu0 %v1152
      %1543 = vmatprep.subr.bf16.mxu0 0
      %1544 = vmatpush1.bf16.msra.mxu0 %v1153
      %1545 = vmatprep.subr.bf16.mxu0 0
      %1546 = vmatpush1.bf16.msra.mxu0 %v1154
      %1547 = vmatprep.subr.bf16.mxu0 0
      %1548 = vmatpush1.bf16.msra.mxu0 %v1155
      %1549 = vmatprep.subr.bf16.mxu0 0
      %1550 = vmatpush1.bf16.msra.mxu0 %v1156
      %1551 = vmatprep.subr.bf16.mxu0 0
      %1552 = vmatpush1.bf16.msra.mxu0 %v1157
      %1553 = vmatprep.subr.bf16.mxu0 0
      %1554 = vmatpush1.bf16.msra.mxu0 %v1158
      %1555 = vmatprep.subr.bf16.mxu0 0
      %1556 = vmatpush1.bf16.msra.mxu0 %v1159
      %1557 = vmatprep.subr.bf16.mxu0 0
      %1558 = vmatpush1.bf16.msra.mxu0 %v1160
      %1559 = vmatprep.subr.bf16.mxu0 0
      %1560 = vmatpush1.bf16.msra.mxu0 %v1161
      %1561 = vmatprep.subr.bf16.mxu0 0
      %1562 = vmatpush1.bf16.msra.mxu0 %v1162
      %1563 = vmatprep.mubr.bf16.mxu0 %v574
      %1564 = vmatmul.mubr.bf16.gmra.mrb[0].mxu0 %v368
      %v1565 = vpop.f32.mrb[0].mxu0
      %v1566 = vadd.f32 %v1470, %v1565
      %v1567 = vpop.f32.mrb[0].mxu0
      %v1568 = vpop.f32.mrb[0].mxu0
      %v1569 = vadd.f32 %v1473, %v1568
      %v1570 = vpop.f32.mrb[0].mxu0
      %1571 = vmatprep.mubr.bf16.mxu0 %v582
      %1572 = vmatmul.mubr.bf16.gmra.mrb[0].mxu0 %v369
      %v1573 = vpop.f32.mrb[0].mxu0
      %v1574 = vadd.f32 %v1478, %v1573
      %v1575 = vpop.f32.mrb[0].mxu0
      %v1576 = vpop.f32.mrb[0].mxu0
      %v1577 = vadd.f32 %v1481, %v1576
      %v1578 = vpop.f32.mrb[0].mxu0
      %1579 = vmatprep.mubr.bf16.mxu0 %v590
      %1580 = vmatmul.mubr.bf16.gmra.mrb[0].mxu0 %v370
      %v1581 = vpop.f32.mrb[0].mxu0
      %v1582 = vadd.f32 %v1486, %v1581
      %v1583 = vpop.f32.mrb[0].mxu0
      %v1584 = vpop.f32.mrb[0].mxu0
      %v1585 = vadd.f32 %v1489, %v1584
      %v1586 = vpop.f32.mrb[0].mxu0
      %1587 = vmatprep.mubr.bf16.mxu0 %v598
      %1588 = vmatmul.mubr.bf16.gmra.mrb[0].mxu0 %v371
      %v1589 = vpop.f32.mrb[0].mxu0
      %v1590 = vadd.f32 %v1494, %v1589
      %v1591 = vpop.f32.mrb[0].mxu0
      %v1592 = vpop.f32.mrb[0].mxu0
      %v1593 = vadd.f32 %v1497, %v1592
      %v1594 = vpop.f32.mrb[0].mxu0
      %1595 = vmatprep.mubr.bf16.mxu0 %v606
      %1596 = vmatmul.mubr.bf16.gmra.mrb[0].mxu0 %v372
      %v1597 = vpop.f32.mrb[0].mxu0
      %v1598 = vadd.f32 %v1502, %v1597
      %v1599 = vpop.f32.mrb[0].mxu0
      %v1600 = vpop.f32.mrb[0].mxu0
      %v1601 = vadd.f32 %v1505, %v1600
      %v1602 = vpop.f32.mrb[0].mxu0
      %1603 = vmatprep.mubr.bf16.mxu0 %v614
      %1604 = vmatmul.mubr.bf16.gmra.mrb[0].mxu0 %v373
      %v1605 = vpop.f32.mrb[0].mxu0
      %v1606 = vadd.f32 %v1510, %v1605
      %v1607 = vpop.f32.mrb[0].mxu0
      %v1608 = vpop.f32.mrb[0].mxu0
      %v1609 = vadd.f32 %v1513, %v1608
      %v1610 = vpop.f32.mrb[0].mxu0
      %1611 = vmatprep.mubr.bf16.mxu0 %v622
      %1612 = vmatmul.mubr.bf16.gmra.mrb[0].mxu0 %v513
      %v1613 = vpop.f32.mrb[0].mxu0
      %v1614 = vadd.f32 %v1518, %v1613
      %v1615 = vpop.f32.mrb[0].mxu0
      %v1616 = vpop.f32.mrb[0].mxu0
      %v1617 = vadd.f32 %v1521, %v1616
      %v1618 = vpop.f32.mrb[0].mxu0
      %1619 = vmatprep.mubr.bf16.mxu0 %v625
      %1620 = vmatmul.mubr.bf16.gmra.mrb[0].mxu0 %v514
      %v1621 = vpop.f32.mrb[0].mxu0
      %v1622 = vadd.f32 %v1526, %v1621
      %v1623 = vpop.f32.mrb[0].mxu0
      %v1624 = vpop.f32.mrb[0].mxu0
      %v1625 = vpop.f32.mrb[0].mxu0
      %1626 = vdwg.mxu0
      %1627 = vmatprep.subr.bf16.mxu0 0
      %1628 = vmatpush1.bf16.msra.mxu0 %v1163
      %1629 = vmatprep.subr.bf16.mxu0 0
      %1630 = vmatpush1.bf16.msra.mxu0 %v1164
      %1631 = vmatprep.subr.bf16.mxu0 0
      %1632 = vmatpush1.bf16.msra.mxu0 %v1165
      %1633 = vmatprep.subr.bf16.mxu0 0
      %1634 = vmatpush1.bf16.msra.mxu0 %v1166
      %1635 = vmatprep.subr.bf16.mxu0 0
      %1636 = vmatpush1.bf16.msra.mxu0 %v1167
      %1637 = vmatprep.subr.bf16.mxu0 0
      %1638 = vmatpush1.bf16.msra.mxu0 %v1168
      %1639 = vmatprep.subr.bf16.mxu0 0
      %1640 = vmatpush1.bf16.msra.mxu0 %v1169
      %1641 = vmatprep.subr.bf16.mxu0 0
      %1642 = vmatpush1.bf16.msra.mxu0 %v1170
      %1643 = vmatprep.subr.bf16.mxu0 0
      %1644 = vmatpush1.bf16.msra.mxu0 0
      %1645 = vmatprep.subr.bf16.mxu0 0
      %1646 = vmatpush1.bf16.msra.mxu0 0
      %1647 = vmatprep.subr.bf16.mxu0 0
      %1648 = vmatpush1.bf16.msra.mxu0 0
      %1649 = vmatprep.subr.bf16.mxu0 0
      %1650 = vmatpush1.bf16.msra.mxu0 0
      %1651 = vmatprep.subr.bf16.mxu0 0
      %1652 = vmatpush1.bf16.msra.mxu0 0
      %1653 = vmatprep.subr.bf16.mxu0 0
      %1654 = vmatpush1.bf16.msra.mxu0 0
      %1655 = vmatprep.subr.bf16.mxu0 0
      %1656 = vmatpush1.bf16.msra.mxu0 0
      %1657 = vmatprep.subr.bf16.mxu0 0
      %1658 = vmatpush1.bf16.msra.mxu0 0
      %1659 = vmatprep.mubr.bf16.mxu0 0
      %1660 = vmatmul.mubr.bf16.gmra.mrb[0].mxu0 %v639
      %v1661 = vpop.f32.mrb[0].mxu0
      %v1662 = vadd.f32 %v1566, %v1661
      %v1663 = vpop.f32.mrb[0].mxu0
      %v1664 = vpop.f32.mrb[0].mxu0
      %v1665 = vadd.f32 %v1569, %v1664
      %v1666 = vpop.f32.mrb[0].mxu0
      %1667 = vmatprep.mubr.bf16.mxu0 0
      %1668 = vmatmul.mubr.bf16.gmra.mrb[0].mxu0 %v641
      %v1669 = vpop.f32.mrb[0].mxu0
      %v1670 = vadd.f32 %v1574, %v1669
      %v1671 = vpop.f32.mrb[0].mxu0
      %v1672 = vpop.f32.mrb[0].mxu0
      %v1673 = vadd.f32 %v1577, %v1672
      %v1674 = vpop.f32.mrb[0].mxu0
      %1675 = vmatprep.mubr.bf16.mxu0 0
      %1676 = vmatmul.mubr.bf16.gmra.mrb[0].mxu0 %v643
      %v1677 = vpop.f32.mrb[0].mxu0
      %v1678 = vadd.f32 %v1582, %v1677
      %v1679 = vpop.f32.mrb[0].mxu0
      %v1680 = vpop.f32.mrb[0].mxu0
      %v1681 = vadd.f32 %v1585, %v1680
      %v1682 = vpop.f32.mrb[0].mxu0
      %1683 = vmatprep.mubr.bf16.mxu0 0
      %1684 = vmatmul.mubr.bf16.gmra.mrb[0].mxu0 %v645
      %v1685 = vpop.f32.mrb[0].mxu0
      %v1686 = vadd.f32 %v1590, %v1685
      %v1687 = vpop.f32.mrb[0].mxu0
      %v1688 = vpop.f32.mrb[0].mxu0
      %v1689 = vadd.f32 %v1593, %v1688
      %v1690 = vpop.f32.mrb[0].mxu0
      %1691 = vmatprep.mubr.bf16.mxu0 0
      %1692 = vmatmul.mubr.bf16.gmra.mrb[0].mxu0 %v647
      %v1693 = vpop.f32.mrb[0].mxu0
      %v1694 = vadd.f32 %v1598, %v1693
      %v1695 = vpop.f32.mrb[0].mxu0
      %v1696 = vpop.f32.mrb[0].mxu0
      %v1697 = vadd.f32 %v1601, %v1696
      %v1698 = vpop.f32.mrb[0].mxu0
      %1699 = vmatprep.mubr.bf16.mxu0 0
      %1700 = vmatmul.mubr.bf16.gmra.mrb[0].mxu0 %v649
      %v1701 = vpop.f32.mrb[0].mxu0
      %v1702 = vadd.f32 %v1606, %v1701
      %v1703 = vpop.f32.mrb[0].mxu0
      %v1704 = vpop.f32.mrb[0].mxu0
      %v1705 = vadd.f32 %v1609, %v1704
      %v1706 = vpop.f32.mrb[0].mxu0
      %1707 = vmatprep.mubr.bf16.mxu0 0
      %1708 = vmatmul.mubr.bf16.gmra.mrb[0].mxu0 %v651
      %v1709 = vpop.f32.mrb[0].mxu0
      %v1710 = vadd.f32 %v1614, %v1709
      %v1711 = vpop.f32.mrb[0].mxu0
      %v1712 = vpop.f32.mrb[0].mxu0
      %v1713 = vadd.f32 %v1617, %v1712
      %v1714 = vpop.f32.mrb[0].mxu0
      %1715 = vmatprep.mubr.bf16.mxu0 0
      %1716 = vmatmul.mubr.bf16.gmra.mrb[0].mxu0 %v650
      %v1717 = vpop.f32.mrb[0].mxu0
      %v1718 = vadd.f32 %v1622, %v1717
      %v1719 = vpop.f32.mrb[0].mxu0
      %v1720 = vpop.f32.mrb[0].mxu0
      %v1721 = vpop.f32.mrb[0].mxu0
      %1722 = vdwg.mxu0
      %v1723 = vmax.f32 %v1662, 0.0
      %v1724 = vmax.f32 %v1665, 0.0
      %v1725 = vmax.f32 %v1670, 0.0
      %v1726 = vmax.f32 %v1673, 0.0
      %v1727 = vmax.f32 %v1678, 0.0
      %v1728 = vmax.f32 %v1681, 0.0
      %v1729 = vmax.f32 %v1686, 0.0
      %v1730 = vmax.f32 %v1689, 0.0
      %v1731 = vmax.f32 %v1694, 0.0
      %v1732 = vmax.f32 %v1697, 0.0
      %v1733 = vmax.f32 %v1702, 0.0
      %v1734 = vmax.f32 %v1705, 0.0
      %v1735 = vmax.f32 %v1710, 0.0
      %v1736 = vmax.f32 %v1713, 0.0
      %v1737 = vmax.f32 %v1718, 0.0
      %v1738 = vpack.c.bf16 %v1724, %v1723
      %v1739 = vpack.c.bf16 %v1726, %v1725
      %v1740 = vpack.c.bf16 %v1728, %v1727
      %v1741 = vpack.c.bf16 %v1730, %v1729
      %v1742 = vpack.c.bf16 %v1732, %v1731
      %v1743 = vpack.c.bf16 %v1734, %v1733
      %v1744 = vpack.c.bf16 %v1736, %v1735
      %v1745 = vpack.c.bf16 %v1737, %v1737
      %v1754 = vunpack.c.l.b16 %v1738
      %v1755 = vunpack.c.h.b16 %v1738
      %v1756 = vunpack.c.l.b16 %v1739
      %v1757 = vunpack.c.h.b16 %v1739
      %v1758 = vunpack.c.l.b16 %v1740
      %v1759 = vunpack.c.h.b16 %v1740
      %v1760 = vunpack.c.l.b16 %v1741
      %v1761 = vunpack.c.h.b16 %v1741
      %v1762 = vunpack.c.l.b16 %v1742
      %v1763 = vunpack.c.h.b16 %v1742
      %v1764 = vunpack.c.l.b16 %v1743
      %v1765 = vunpack.c.h.b16 %v1743
      %v1766 = vunpack.c.l.b16 %v1744
      %v1767 = vunpack.c.h.b16 %v1744
      %v1768 = vunpack.c.l.b16 %v1745
      %v1769 = vpack.c.b16 %v1754, %v1754
      %v1770 = vpack.c.b16 %v1755, %v1755
      %v1771 = vpack.c.b16 %v1756, %v1756
      %v1772 = vpack.c.b16 %v1757, %v1757
      %v1773 = vpack.c.b16 %v1758, %v1758
      %v1774 = vpack.c.b16 %v1759, %v1759
      %v1775 = vpack.c.b16 %v1760, %v1760
      %v1776 = vpack.c.b16 %v1761, %v1761
      %v1777 = vpack.c.b16 %v1762, %v1762
      %v1778 = vpack.c.b16 %v1763, %v1763
      %v1779 = vpack.c.b16 %v1764, %v1764
      %v1780 = vpack.c.b16 %v1765, %v1765
      %v1781 = vpack.c.b16 %v1766, %v1766
      %v1782 = vpack.c.b16 %v1767, %v1767
      %v1783 = vpack.c.b16 %v1768, %v1768
      %1799 = vst [vmem:[%s170] sm:$0xf] %v1769
      %1800 = vst [vmem:[%s170 + $0x4] sm:$0xf] %v1770
      %1801 = vst [vmem:[%s170 + $0x8] sm:$0xf] %v1771
      %1802 = vst [vmem:[%s170 + $0xc] sm:$0xf] %v1772
      %1803 = vst [vmem:[%s170 + $0x10] sm:$0xf] %v1773
      %1804 = vst [vmem:[%s170 + $0x14] sm:$0xf] %v1774
      %1805 = vst [vmem:[%s170 + $0x18] sm:$0xf] %v1775
      %1806 = vst [vmem:[%s170 + $0x1c] sm:$0xf] %v1776
      %1807 = vst [vmem:[%s170 + $0x20] sm:$0xf] %v1777
      %1808 = vst [vmem:[%s170 + $0x24] sm:$0xf] %v1778
      %1809 = vst [vmem:[%s170 + $0x28] sm:$0xf] %v1779
      %1810 = vst [vmem:[%s170 + $0x2c] sm:$0xf] %v1780
      %1811 = vst [vmem:[%s170 + $0x30] sm:$0xf] %v1781
      %1812 = vst [vmem:[%s170 + $0x34] sm:$0xf] %v1782
      %1813 = vst [vmem:[%s170 + $0x38] sm:$0xf] %v1783
      %p1814 = scmp.lt.s32.totalorder %s14, 1
      %s1815 = scalar_select %p1814, %s14, 1
      %s1816 = smul.addr %s1815, 15
      %s1817 = smul.addr %s1816, 4
      %s1818 = scalar_lea.vmem %s3, %s1817
      // Predicated region
      $region33: #{base_model_forward.6} parent=31 // pred_check
        %p1819 = pneg %p100
      $region34: #{base_model_forward.6} parent=31 // pred_check_branch
        %1821 = sbr.rel (%p1819) target = $region36
      $region35: #{base_model_forward.6} parent=31 // pred_region
        _
      $region36: #{base_model_forward.6} parent=31 // pred_fallthru
        _
    $region32: #{base_model_forward.6} parent=5 // pred_fallthru
      _
    %p1822 = scmp.le.s32.totalorder 2, %s9
    // Predicated region
    $region37: #{base_model_forward.6} parent=5 // pred_check
      %p1823 = pneg %p1822
    $region38: #{base_model_forward.6} parent=5 // pred_check_branch
      %1825 = sbr.rel (%p1823) target = $region40
    $region39: #{base_model_forward.6} parent=5 // pred_region
      %s1826 = ssub.s32 %s9, 2
      // Predicated region
      $region41: #{base_model_forward.6} parent=39 // pred_check
        %p1827 = pneg %p106
      $region42: #{base_model_forward.6} parent=39 // pred_check_branch
        %1829 = sbr.rel (%p1827) target = $region44
      $region43: #{base_model_forward.6} parent=39 // pred_region
        %p1830 = scmp.lt.s32.totalorder %s15, 1
        %s1831 = scalar_select %p1830, %s15, 1
        %s1832 = smul.addr %s1831, 15
        %s1833 = smul.addr %s1832, 4
        %s1834 = scalar_lea.vmem %s3, %s1833
      $region44: #{base_model_forward.6} parent=39 // pred_fallthru
        _
    $region40: #{base_model_forward.6} parent=5 // pred_fallthru
      _
  $region6: #{base_model_forward.6} parent=0 // loop_footer
    %s13 = sadd.s32 1, %s9
  $region7: #{base_model_forward.6} parent=0 // loop_footer_branch
    %8 = sbr.rel target = $region3
  $region8: #{base_model_forward.6} parent=0 // loop_exit
    _

// kernel: base_model_forward.7
$region0: #{base_model_forward.7}
  #allocation0 [shape = 'u32[]', space=smem, size = 0x4, offset = 0x4, fixed_abs, tag = 'smem constant byte address 0x4 - core index']
  #allocation1 [shape = 'u32[144,128]{1,0:T(1,128)}', space=vmem, size = 0x12000, scoped, tag = 'internal scratch']
  %s0 = inlined_call_operand.vmem [shape: bf16[2,128], index: 0, kind: input, shape index: {}]
  %s1 = inlined_call_operand.vmem [shape: bf16[128,128], index: 1, kind: input, shape index: {}]
  %s2 = inlined_call_operand.vmem [shape: f32[1,128], index: 2, kind: input, shape index: {}]
  %s3 = inlined_call_operand.hbm [shape: f32[2,128], index: 3, kind: output, shape index: {}]
  %s4 = sld [smem:[#allocation0]]
  $region22: #{base_model_forward.7} parent=0
    _
  %s6 = ssub.s32 1, %s4
  %s7 = scalar_select 0, %s6, %s4
  $region1: #{base_model_forward.7} parent=0
    #allocation2 [shape = 'u8[1024]{0}', space=vmem, size = 0x400, scoped, tag = 'output window, operand 0, single buffered']
    #allocation3 [shape = 's32[1]{0}', space=sflag, size = 0x4, scoped, tag = 'scoped memory for base_model_forward.7']
    %8 = vsyncpa [#allocation3], 0
    // Predicated region
    $region2: #{base_model_forward.7} parent=1 // pred_check
      _
    $region3: #{base_model_forward.7} parent=1 // pred_check_branch
      %10 = sbr.rel (0) target = $region5
    $region4: #{base_model_forward.7} parent=1 // pred_region
      _
    $region5: #{base_model_forward.7} parent=1 // pred_fallthru
      _
    // Predicated region
    $region6: #{base_model_forward.7} parent=1 // pred_check
      _
    $region7: #{base_model_forward.7} parent=1 // pred_check_branch
      %12 = sbr.rel (0) target = $region9
    $region8: #{base_model_forward.7} parent=1 // pred_region
      _
    $region9: #{base_model_forward.7} parent=1 // pred_fallthru
      _
    // Predicated region
    $region10: #{base_model_forward.7} parent=1 // pred_check
      _
    $region11: #{base_model_forward.7} parent=1 // pred_check_branch
      %14 = sbr.rel (0) target = $region13
    $region12: #{base_model_forward.7} parent=1 // pred_region
      _
    $region13: #{base_model_forward.7} parent=1 // pred_fallthru
      _
    %v16 = vld [vmem:[%s0] sm:$0x1]
    %v17 = vld [vmem:[%s1] sm:$0xf]
    %v18 = vld [vmem:[%s1 + $0x4] sm:$0xf]
    %v19 = vld [vmem:[%s1 + $0x8] sm:$0xf]
    %v20 = vld [vmem:[%s1 + $0xc] sm:$0xf]
    %v21 = vld [vmem:[%s1 + $0x10] sm:$0xf]
    %v22 = vld [vmem:[%s1 + $0x14] sm:$0xf]
    %v23 = vld [vmem:[%s1 + $0x18] sm:$0xf]
    %v24 = vld [vmem:[%s1 + $0x1c] sm:$0xf]
    %v25 = vld [vmem:[%s1 + $0x20] sm:$0xf]
    %v26 = vld [vmem:[%s1 + $0x24] sm:$0xf]
    %v27 = vld [vmem:[%s1 + $0x28] sm:$0xf]
    %v28 = vld [vmem:[%s1 + $0x2c] sm:$0xf]
    %v29 = vld [vmem:[%s1 + $0x30] sm:$0xf]
    %v30 = vld [vmem:[%s1 + $0x34] sm:$0xf]
    %v31 = vld [vmem:[%s1 + $0x38] sm:$0xf]
    %v32 = vld [vmem:[%s1 + $0x3c] sm:$0xf]
    %v33 = vld [vmem:[%s2] sm:$0x1]
    %v35 = vlaneseq
    %v36 = vshrl.u32 %v35, 7
    %v37 = vsub.s32 0, %v36
    %v38 = vrot.slane %v33, %v37
    %v56 = vunpack.c.l.b16 %v17
    %v57 = vunpack.c.l.b16 %v18
    %v58 = vunpack.c.l.b16 %v19
    %v59 = vunpack.c.l.b16 %v20
    %v60 = vunpack.c.l.b16 %v21
    %v61 = vunpack.c.l.b16 %v22
    %v62 = vunpack.c.l.b16 %v23
    %v63 = vunpack.c.l.b16 %v24
    %v64 = vunpack.c.l.b16 %v25
    %v65 = vunpack.c.l.b16 %v26
    %v66 = vunpack.c.l.b16 %v27
    %v67 = vunpack.c.l.b16 %v28
    %v68 = vunpack.c.l.b16 %v29
    %v69 = vunpack.c.l.b16 %v30
    %v70 = vunpack.c.l.b16 %v31
    %v71 = vunpack.c.l.b16 %v32
    %v72 = vpack.c.b16 %v57, %v56
    %v73 = vpack.c.b16 %v59, %v58
    %v74 = vpack.c.b16 %v61, %v60
    %v75 = vpack.c.b16 %v63, %v62
    %v76 = vpack.c.b16 %v65, %v64
    %v77 = vpack.c.b16 %v67, %v66
    %v78 = vpack.c.b16 %v69, %v68
    %v79 = vpack.c.b16 %v71, %v70
    %88 = vmatprep.subr.bf16.mxu0 0
    %89 = vmatpush1.bf16.msra.mxu0 %v72
    %90 = vmatprep.subr.bf16.mxu0 0
    %91 = vmatpush1.bf16.msra.mxu0 %v73
    %92 = vmatprep.subr.bf16.mxu0 0
    %93 = vmatpush1.bf16.msra.mxu0 %v74
    %94 = vmatprep.subr.bf16.mxu0 0
    %95 = vmatpush1.bf16.msra.mxu0 %v75
    %96 = vmatprep.subr.bf16.mxu0 0
    %97 = vmatpush1.bf16.msra.mxu0 %v76
    %98 = vmatprep.subr.bf16.mxu0 0
    %99 = vmatpush1.bf16.msra.mxu0 %v77
    %100 = vmatprep.subr.bf16.mxu0 0
    %101 = vmatpush1.bf16.msra.mxu0 %v78
    %102 = vmatprep.subr.bf16.mxu0 0
    %103 = vmatpush1.bf16.msra.mxu0 %v79
    %104 = vmatprep.subr.bf16.mxu0 0
    %105 = vmatpush1.bf16.msra.mxu0 0
    %106 = vmatprep.subr.bf16.mxu0 0
    %107 = vmatpush1.bf16.msra.mxu0 0
    %108 = vmatprep.subr.bf16.mxu0 0
    %109 = vmatpush1.bf16.msra.mxu0 0
    %110 = vmatprep.subr.bf16.mxu0 0
    %111 = vmatpush1.bf16.msra.mxu0 0
    %112 = vmatprep.subr.bf16.mxu0 0
    %113 = vmatpush1.bf16.msra.mxu0 0
    %114 = vmatprep.subr.bf16.mxu0 0
    %115 = vmatpush1.bf16.msra.mxu0 0
    %116 = vmatprep.subr.bf16.mxu0 0
    %117 = vmatpush1.bf16.msra.mxu0 0
    %118 = vmatprep.subr.bf16.mxu0 0
    %119 = vmatpush1.bf16.msra.mxu0 0
    %120 = vmatprep.mubr.bf16.mxu0 0
    %121 = vmatmul.mubr.bf16.gmra.mrb[0].mxu0 %v16
    %v122 = vpop.f32.mrb[0].mxu0
    %v123 = vadd.f32 %v38, %v122
    %v124 = vpop.f32.mrb[0].mxu0
    %v125 = vpop.f32.mrb[0].mxu0
    %v126 = vpop.f32.mrb[0].mxu0
    %127 = vdwg.mxu0
    %128 = vst [vmem:[#allocation2] sm:$0x3] %v123
    // Predicated region
    $region14: #{base_model_forward.7} parent=1 // pred_check
      _
    $region15: #{base_model_forward.7} parent=1 // pred_check_branch
      %130 = sbr.rel (0) target = $region17
    $region16: #{base_model_forward.7} parent=1 // pred_region
      %s132 = ssub.s32 32, 32
      %133 = vsyncadd [#allocation3], %s132
      %s135 = sshll.u32 [#allocation2], 4
      %s136 = int_to_ptr.vmem [resolvable:$true] %s135
      %138 = dma.vmem_to_hbm [thread:$0]  %s136, 32, %s3, [#allocation3]
    $region17: #{base_model_forward.7} parent=1 // pred_fallthru
      _
    // Predicated region
    $region18: #{base_model_forward.7} parent=1 // pred_check
      _
    $region19: #{base_model_forward.7} parent=1 // pred_check_branch
      %140 = sbr.rel (0) target = $region21
    $region20: #{base_model_forward.7} parent=1 // pred_region
      %141 = dma.done [#allocation3], 32
    $region21: #{base_model_forward.7} parent=1 // pred_fallthru
      _
    %142 = vsyncpa [#allocation3], 1

</llo_original>
